<compile_context>
chip_gen: v7x
topology: tpu7x:2x2x1
jax: 0.10.0
libtpu: 0.0.40
codegen_flags: <defaults>
</compile_context>

<pallas_src>
import functools
import numpy as np
import jax
import jax.numpy as jnp
from jax.experimental import pallas as pl
from jax.experimental.pallas import tpu as pltpu


# ----------------------------- helpers -----------------------------

def _choose_tm(M, big_target=256):
    """Largest row-tile that is a multiple of 8, divides M and keeps >=2 grid steps
    for moderate M (so the pipeline / megacore actually have work)."""
    if M <= 8:
        return M
    target = big_target if M >= 2 * big_target else max(8, M // 2)
    best = None
    t = 8
    while t <= min(M, target):
        if M % t == 0:
            best = t
        t += 8
    return best if best is not None else M


def _cparams(n_parallel):
    return pltpu.CompilerParams(
        dimension_semantics=("parallel",) * n_parallel,
        vmem_limit_bytes=32 * 1024 * 1024)


def _erf_poly(x):
    # Abramowitz & Stegun 7.1.26 polynomial, max abs error ~1.5e-7 (f32).
    # TODO(synk): native erf lowering inside Mosaic is not relied upon; this
    # polynomial matches torch.nn.GELU()'s exact-erf to ~1e-7.
    a1, a2, a3, a4, a5 = 0.254829592, -0.284496736, 1.421413741, -1.453152027, 1.061405429
    p = 0.3275911
    s = jnp.where(x >= 0.0, 1.0, -1.0)
    ax = jnp.abs(x)
    t = 1.0 / (1.0 + p * ax)
    poly = ((((a5 * t + a4) * t + a3) * t + a2) * t + a1) * t
    return s * (1.0 - poly * jnp.exp(-ax * ax))


def _gelu_exact(x):
    return 0.5 * x * (1.0 + _erf_poly(x * 0.7071067811865476))


def _layernorm_f32(x, g, b, eps=1e-5):
    mu = jnp.mean(x, axis=-1, keepdims=True)
    xc = x - mu
    var = jnp.mean(xc * xc, axis=-1, keepdims=True)
    return xc * jax.lax.rsqrt(var + eps) * g + b


# ----------------------------- Pallas kernels -----------------------------

def _matmul_bias_kernel(x_ref, w_ref, b_ref, o_ref):
    """o = x @ w + b  (bf16 MXU inputs, f32 accumulation)."""
    y = jnp.dot(x_ref[...].astype(jnp.bfloat16), w_ref[...].astype(jnp.bfloat16),
                preferred_element_type=jnp.float32)
    y = y + b_ref[...].astype(jnp.float32)
    o_ref[...] = y.astype(o_ref.dtype)


def pallas_linear_bias(x, w, b):
    M, Din = x.shape
    Dout = w.shape[1]
    tm = _choose_tm(M)
    return pl.pallas_call(
        _matmul_bias_kernel,
        out_shape=jax.ShapeDtypeStruct((M, Dout), x.dtype),
        grid=(M // tm,),
        in_specs=[pl.BlockSpec((tm, Din), lambda i: (i, 0)),
                  pl.BlockSpec((Din, Dout), lambda i: (0, 0)),
                  pl.BlockSpec((1, Dout), lambda i: (0, 0))],
        out_specs=pl.BlockSpec((tm, Dout), lambda i: (i, 0)),
        compiler_params=_cparams(1),
    )(x, w, b)


def _ln_matmul_kernel(x_ref, g_ref, b_ref, w_ref, o_ref):
    """o = LayerNorm(x) @ w   (fused LN1 + bias-free QKV projection)."""
    x = x_ref[...].astype(jnp.float32)
    xn = _layernorm_f32(x, g_ref[...].astype(jnp.float32), b_ref[...].astype(jnp.float32))
    y = jnp.dot(xn.astype(jnp.bfloat16), w_ref[...].astype(jnp.bfloat16),
                preferred_element_type=jnp.float32)
    o_ref[...] = y.astype(o_ref.dtype)


def pallas_ln_linear(x, g, b, w):
    M, D = x.shape
    Dout = w.shape[1]
    tm = _choose_tm(M)
    return pl.pallas_call(
        _ln_matmul_kernel,
        out_shape=jax.ShapeDtypeStruct((M, Dout), x.dtype),
        grid=(M // tm,),
        in_specs=[pl.BlockSpec((tm, D), lambda i: (i, 0)),
                  pl.BlockSpec((1, D), lambda i: (0, 0)),
                  pl.BlockSpec((1, D), lambda i: (0, 0)),
                  pl.BlockSpec((D, Dout), lambda i: (0, 0))],
        out_specs=pl.BlockSpec((tm, Dout), lambda i: (i, 0)),
        compiler_params=_cparams(1),
    )(x, g, b, w)


def _matmul_bias_res_kernel(a_ref, w_ref, b_ref, r_ref, o_ref):
    """o = residual + a @ w + b  (fused attention out-projection + residual add)."""
    y = jnp.dot(a_ref[...].astype(jnp.bfloat16), w_ref[...].astype(jnp.bfloat16),
                preferred_element_type=jnp.float32)
    y = y + b_ref[...].astype(jnp.float32) + r_ref[...].astype(jnp.float32)
    o_ref[...] = y.astype(o_ref.dtype)


def pallas_linear_bias_residual(a, w, b, res):
    M, Din = a.shape
    Dout = w.shape[1]
    tm = _choose_tm(M)
    return pl.pallas_call(
        _matmul_bias_res_kernel,
        out_shape=jax.ShapeDtypeStruct((M, Dout), a.dtype),
        grid=(M // tm,),
        in_specs=[pl.BlockSpec((tm, Din), lambda i: (i, 0)),
                  pl.BlockSpec((Din, Dout), lambda i: (0, 0)),
                  pl.BlockSpec((1, Dout), lambda i: (0, 0)),
                  pl.BlockSpec((tm, Dout), lambda i: (i, 0))],
        out_specs=pl.BlockSpec((tm, Dout), lambda i: (i, 0)),
        compiler_params=_cparams(1),
    )(a, w, b, res)


def _ln_mlp_res_kernel(x_ref, g_ref, b_ref, w1_ref, b1_ref, w2_ref, b2_ref, o_ref):
    """o = x + W2( GELU( W1( LayerNorm(x) ) ) )  — whole MLP block, no HBM round-trips."""
    x = x_ref[...].astype(jnp.float32)
    xn = _layernorm_f32(x, g_ref[...].astype(jnp.float32), b_ref[...].astype(jnp.float32))
    h = jnp.dot(xn.astype(jnp.bfloat16), w1_ref[...].astype(jnp.bfloat16),
                preferred_element_type=jnp.float32) + b1_ref[...].astype(jnp.float32)
    h = _gelu_exact(h)
    y = jnp.dot(h.astype(jnp.bfloat16), w2_ref[...].astype(jnp.bfloat16),
                preferred_element_type=jnp.float32) + b2_ref[...].astype(jnp.float32)
    o_ref[...] = (x + y).astype(o_ref.dtype)


def pallas_ln_mlp_residual(x, g, b, w1, b1, w2, b2):
    M, D = x.shape
    Dh = w1.shape[1]
    tm = _choose_tm(M)
    return pl.pallas_call(
        _ln_mlp_res_kernel,
        out_shape=jax.ShapeDtypeStruct((M, D), x.dtype),
        grid=(M // tm,),
        in_specs=[pl.BlockSpec((tm, D), lambda i: (i, 0)),
                  pl.BlockSpec((1, D), lambda i: (0, 0)),
                  pl.BlockSpec((1, D), lambda i: (0, 0)),
                  pl.BlockSpec((D, Dh), lambda i: (0, 0)),
                  pl.BlockSpec((1, Dh), lambda i: (0, 0)),
                  pl.BlockSpec((Dh, D), lambda i: (0, 0)),
                  pl.BlockSpec((1, D), lambda i: (0, 0))],
        out_specs=pl.BlockSpec((tm, D), lambda i: (i, 0)),
        compiler_params=_cparams(1),
    )(x, g, b, w1, b1, w2, b2)


def _window_attn_kernel(q_ref, k_ref, v_ref, bias_ref, *rest, scale, heads, shifted):
    """Per grid step: all windows + all heads of one batch element.

    q/k/v refs: (1, heads, NW, T, D).  bias: (T, T) relative-position bias
    (resident across grid).  Shifted blocks additionally receive a static
    (NW, T, T) additive -inf mask (resident)."""
    if shifted:
        smask_ref, o_ref = rest
        bias = bias_ref[...].astype(jnp.float32)[None] + smask_ref[...].astype(jnp.float32)
    else:
        (o_ref,) = rest
        bias = bias_ref[...].astype(jnp.float32)[None]          # (1, T, T)

    for h in range(heads):                                       # static unroll (tiny)
        q = q_ref[0, h].astype(jnp.bfloat16)                     # (NW, T, D)
        k = k_ref[0, h].astype(jnp.bfloat16)
        v = v_ref[0, h].astype(jnp.bfloat16)
        s = jnp.einsum('wqd,wkd->wqk', q, k,
                       preferred_element_type=jnp.float32) * scale
        s = s + bias                                             # (NW, T, T)
        m = jnp.max(s, axis=-1, keepdims=True)
        p = jnp.exp(s - m)
        attn = p * pl.reciprocal(jnp.sum(p, axis=-1, keepdims=True), approx=True)
        out = jnp.einsum('wqk,wkd->wqd', attn.astype(jnp.bfloat16), v,
                         preferred_element_type=jnp.float32)
        o_ref[0, h] = out.astype(o_ref.dtype)


def pallas_window_attention(q, k, v, pos_bias, shift_mask, *, scale, heads, shifted):
    """q,k,v: (B, heads, NW, T, D) -> out: (B, heads, NW, T, D)."""
    B, H_, NW, T, D = q.shape
    kern = functools.partial(_window_attn_kernel, scale=scale, heads=heads, shifted=shifted)
    in_specs = [pl.BlockSpec((1, heads, NW, T, D), lambda b: (b, 0, 0, 0, 0)),
                pl.BlockSpec((1, heads, NW, T, D), lambda b: (b, 0, 0, 0, 0)),
                pl.BlockSpec((1, heads, NW, T, D), lambda b: (b, 0, 0, 0, 0)),
                pl.BlockSpec((T, T), lambda b: (0, 0))]
    inputs = [q, k, v, pos_bias]
    if shifted:
        in_specs.append(pl.BlockSpec((NW, T, T), lambda b: (0, 0, 0)))
        inputs.append(shift_mask)
    return pl.pallas_call(
        kern,
        out_shape=jax.ShapeDtypeStruct((B, heads, NW, T, D), q.dtype),
        grid=(B,),
        in_specs=in_specs,
        out_specs=pl.BlockSpec((1, heads, NW, T, D), lambda b: (b, 0, 0, 0, 0)),
        compiler_params=_cparams(1),
    )(*inputs)


# ----------------------------- host-side static helpers -----------------------------

def create_mask_np(window_size, displacement, upper_lower, left_right):
    T = window_size ** 2
    mask = np.zeros((T, T), dtype=np.float32)
    if upper_lower:
        mask[-displacement * window_size:, :-displacement * window_size] = -np.inf
        mask[:-displacement * window_size, -displacement * window_size:] = -np.inf
    if left_right:
        mask = mask.reshape(window_size, window_size, window_size, window_size)
        mask[:, -displacement:, :, :-displacement] = -np.inf
        mask[:, :-displacement, :, -displacement:] = -np.inf
        mask = mask.reshape(T, T)
    return mask


def build_shift_mask(window_size, nw_h, nw_w):
    """Static per-window additive mask, (NW, T, T). Matches
       dots[:, :, -nw_w:] += ul_mask ; dots[:, :, nw_w-1::nw_w] += lr_mask."""
    disp = window_size // 2
    T = window_size ** 2
    NW = nw_h * nw_w
    ul = create_mask_np(window_size, disp, True, False)
    lr = create_mask_np(window_size, disp, False, True)
    m = np.zeros((NW, T, T), np.float32)
    for w in range(NW):
        if w // nw_w == nw_h - 1:
            m[w] += ul
        if w % nw_w == nw_w - 1:
            m[w] += lr
    return jnp.asarray(m)


def get_relative_indices(window_size):
    idx = np.array([[x, y] for x in range(window_size) for y in range(window_size)])
    rel = idx[None, :, :] - idx[:, None, :] + window_size - 1   # (T, T, 2)
    return jnp.asarray(rel)


def init_params(key, in_channels, hidden_dim, layers, df, heads, head_dim,
                window_size, relative_pos_embedding=True):
    inner = heads * head_dim
    mlp_dim = hidden_dim * 4
    keys = iter(jax.random.split(key, 64))

    def nrm(shape, s=0.02):
        return jax.random.normal(next(keys), shape, jnp.float32) * s

    params = {
        'patch_w': nrm((in_channels * df * df, hidden_dim)),
        'patch_b': jnp.zeros((1, hidden_dim), jnp.float32),
        'blocks': [],
    }
    pos_shape = ((2 * window_size - 1, 2 * window_size - 1)
                 if relative_pos_embedding else (window_size ** 2, window_size ** 2))
    for _ in range(layers):
        params['blocks'].append({
            'ln1_g': jnp.ones((1, hidden_dim), jnp.float32),
            'ln1_b': jnp.zeros((1, hidden_dim), jnp.float32),
            'w_qkv': nrm((hidden_dim, inner * 3)),                       # bias-free
            'w_out': nrm((inner, hidden_dim)),
            'b_out': jnp.zeros((1, hidden_dim), jnp.float32),
            'pos_emb': jax.random.normal(next(keys), pos_shape, jnp.float32),
            'ln2_g': jnp.ones((1, hidden_dim), jnp.float32),
            'ln2_b': jnp.zeros((1, hidden_dim), jnp.float32),
            'w1': nrm((hidden_dim, mlp_dim)),
            'b1': jnp.zeros((1, mlp_dim), jnp.float32),
            'w2': nrm((mlp_dim, hidden_dim)),
            'b2': jnp.zeros((1, hidden_dim), jnp.float32),
        })
    return params


# ----------------------------- model forward -----------------------------

def swin_block(x, p, *, shifted, heads, head_dim, window_size,
               relative_pos_embedding, rel_idx, shift_mask):
    b, H, W, dim = x.shape
    ws = window_size
    T = ws * ws
    nw_h, nw_w = H // ws, W // ws
    NW = nw_h * nw_w
    inner = heads * head_dim
    disp = ws // 2
    M = b * H * W

    x_tok = x.reshape(M, dim)

    # ----- attention branch: fused LN1 + QKV (bias-free) -----
    qkv = pallas_ln_linear(x_tok, p['ln1_g'], p['ln1_b'], p['w_qkv'])    # (M, 3*inner)
    qkv = qkv.reshape(b, H, W, 3 * inner)
    if shifted:
        qkv = jnp.roll(qkv, shift=(-disp, -disp), axis=(1, 2))           # cyclic shift
    q, k, v = jnp.split(qkv, 3, axis=-1)

    def to_win(t):
        t = t.reshape(b, nw_h, ws, nw_w, ws, heads, head_dim)
        t = jnp.transpose(t, (0, 5, 1, 3, 2, 4, 6))
        return t.reshape(b, heads, NW, T, head_dim)

    q, k, v = to_win(q), to_win(k), to_win(v)

    if relative_pos_embedding:
        pos_bias = p['pos_emb'][rel_idx[:, :, 0], rel_idx[:, :, 1]]      # (T, T)
    else:
        pos_bias = p['pos_emb']                                          # (T, T)

    attn = pallas_window_attention(q, k, v, pos_bias, shift_mask,
                                   scale=head_dim ** (-0.5), heads=heads,
                                   shifted=shifted)                      # (b,h,NW,T,D)

    attn = attn.reshape(b, heads, nw_h, nw_w, ws, ws, head_dim)
    attn = jnp.transpose(attn, (0, 2, 4, 3, 5, 1, 6)).reshape(b, H, W, inner)
    if shifted:
        attn = jnp.roll(attn, shift=(disp, disp), axis=(1, 2))           # back shift

    # fused out-projection + residual add
    x_tok = pallas_linear_bias_residual(attn.reshape(M, inner), p['w_out'], p['b_out'], x_tok)

    # ----- MLP branch: fused LN2 + W1 + GELU + W2 + residual -----
    x_tok = pallas_ln_mlp_residual(x_tok, p['ln2_g'], p['ln2_b'],
                                   p['w1'], p['b1'], p['w2'], p['b2'])
    return x_tok.reshape(b, H, W, dim)


def swin_module_forward(x_nchw, params, *, downscaling_factor, heads, head_dim,
                        window_size, relative_pos_embedding=True):
    # TODO(synk): cross-attention path (y is not None) of SwinModule is not implemented.
    b, c, Hin, Win = x_nchw.shape
    df = downscaling_factor
    H, W = Hin // df, Win // df
    dim = params['patch_w'].shape[1]

    # PatchMerging: nn.Unfold(k=df, s=df) feature order (c, kh, kw), then Linear.
    x = x_nchw.reshape(b, c, H, df, W, df)
    x = jnp.transpose(x, (0, 2, 4, 1, 3, 5)).reshape(b, H, W, c * df * df)
    x = pallas_linear_bias(x.reshape(-1, c * df * df), params['patch_w'], params['patch_b'])
    x = x.reshape(b, H, W, dim)

    ws = window_size
    nw_h, nw_w = H // ws, W // ws
    assert H % ws == 0 and W % ws == 0, "H, W must be multiples of window_size"
    rel_idx = get_relative_indices(ws) if relative_pos_embedding else None
    shift_mask = build_shift_mask(ws, nw_h, nw_w)                        # static constant

    for i, p in enumerate(params['blocks']):
        x = swin_block(x, p, shifted=(i % 2 == 1), heads=heads, head_dim=head_dim,
                       window_size=ws, relative_pos_embedding=relative_pos_embedding,
                       rel_idx=rel_idx, shift_mask=shift_mask)

    return jnp.transpose(x, (0, 3, 1, 2))                                # back to NCHW


# ----------------------------- demo -----------------------------

if __name__ == "__main__":
    # SwinModule(in_channels=4, hidden_dimension=32, layers=2, downscaling_factor=2,
    #   num_heads=2, head_dim=16, window_size=4, relative_pos_embedding=True,
    #   cross_attn=False); x: (2, 4, 16, 16) NCHW.
    in_channels, hidden_dim, layers = 4, 32, 2
    df, heads, head_dim, ws = 2, 2, 16, 4

    key = jax.random.PRNGKey(0)
    kx, kp = jax.random.split(key)
    x = jax.random.normal(kx, (2, in_channels, 16, 16), jnp.float32)
    params = init_params(kp, in_channels, hidden_dim, layers, df, heads, head_dim,
                         ws, relative_pos_embedding=True)

    fwd = jax.jit(functools.partial(swin_module_forward,
                                    downscaling_factor=df, heads=heads,
                                    head_dim=head_dim, window_size=ws,
                                    relative_pos_embedding=True))
    out = fwd(x, params)
    jax.block_until_ready(out)
    assert out.shape == (2, hidden_dim, 16 // df, 16 // df), out.shape
    assert bool(jnp.all(jnp.isfinite(out)))
    print("KERNEL_OK")
</pallas_src>

<mosaic_0001>
module attributes {stable_mosaic.version = 11 : i64} {
  func.func @_matmul_bias_kernel(%arg0: i32, %arg1: memref<64x16xf32, #tpu.memory_space<vmem>>, %arg2: memref<16x32xf32, #tpu.memory_space<vmem>>, %arg3: memref<1x32xf32, #tpu.memory_space<vmem>>, %arg4: memref<64x32xf32, #tpu.memory_space<vmem>>) attributes {dimension_semantics = [#tpu.dimension_semantics<parallel>], iteration_bounds = array<i64: 2>, scalar_prefetch = 0 : i64, scratch_operands = 0 : i64, tpu.core_type = #tpu.core_type<tc>, window_params = [{transform_indices = @transform_0, window_bounds = array<i64: 64, 16>}, {pipeline_mode = #tpu.pipeline_mode<synchronous>, transform_indices = @transform_1, window_bounds = array<i64: 16, 32>}, {pipeline_mode = #tpu.pipeline_mode<synchronous>, transform_indices = @transform_2, window_bounds = array<i64: 1, 32>}, {transform_indices = @transform_3, window_bounds = array<i64: 64, 32>}]} {
    %c0 = arith.constant 0 : index
    %c0_0 = arith.constant 0 : index
    %0 = vector.load %arg1[%c0, %c0_0] : memref<64x16xf32, #tpu.memory_space<vmem>>, vector<64x16xf32>
    %1 = arith.truncf %0 : vector<64x16xf32> to vector<64x16xbf16>
    %c0_1 = arith.constant 0 : index
    %c0_2 = arith.constant 0 : index
    %2 = vector.load %arg2[%c0_1, %c0_2] : memref<16x32xf32, #tpu.memory_space<vmem>>, vector<16x32xf32>
    %3 = arith.truncf %2 : vector<16x32xf32> to vector<16x32xbf16>
    %cst = arith.constant dense<0.000000e+00> : vector<64x32xf32>
    %4 = tpu.matmul %1, %3, %cst {dimension_numbers = #tpu.dot_dimension_numbers<[1], [0], [0], [1], [0, 0, 1, 1], [], []>} : vector<64x16xbf16>, vector<16x32xbf16>, vector<64x32xf32> -> vector<64x32xf32>
    %c0_3 = arith.constant 0 : index
    %c0_4 = arith.constant 0 : index
    %5 = vector.load %arg3[%c0_3, %c0_4] : memref<1x32xf32, #tpu.memory_space<vmem>>, vector<1x32xf32>
    %6 = vector.broadcast %5 : vector<1x32xf32> to vector<64x32xf32>
    %7 = arith.addf %4, %6 : vector<64x32xf32>
    %c0_5 = arith.constant 0 : index
    %c0_6 = arith.constant 0 : index
    %8 = vector.load %arg4[%c0_5, %c0_6] : memref<64x32xf32, #tpu.memory_space<vmem>>, vector<64x32xf32>
    tpu.vector_store %arg4[%c0_5, %c0_6], %7 {strides = array<i32>} : memref<64x32xf32, #tpu.memory_space<vmem>>, vector<64x32xf32>,
    return
  }
  func.func @transform_0(%arg0: i32) -> (i32, i32) {
    %c0_i32 = arith.constant 0 : i32
    %c0_i32_0 = arith.constant 0 : i32
    return %arg0, %c0_i32 : i32, i32
  }
  func.func @transform_1(%arg0: i32) -> (i32, i32) {
    %c0_i32 = arith.constant 0 : i32
    %c0_i32_0 = arith.constant 0 : i32
    %c0_i32_1 = arith.constant 0 : i32
    return %c0_i32, %c0_i32_0 : i32, i32
  }
  func.func @transform_2(%arg0: i32) -> (i32, i32) {
    %c0_i32 = arith.constant 0 : i32
    %c0_i32_0 = arith.constant 0 : i32
    %c0_i32_1 = arith.constant 0 : i32
    return %c0_i32, %c0_i32_0 : i32, i32
  }
  func.func @transform_3(%arg0: i32) -> (i32, i32) {
    %c0_i32 = arith.constant 0 : i32
    %c0_i32_0 = arith.constant 0 : i32
    return %arg0, %c0_i32 : i32, i32
  }
}

module attributes {stable_mosaic.version = 11 : i64} {
  func.func @_ln_matmul_kernel(%arg0: i32, %arg1: memref<64x32xf32, #tpu.memory_space<vmem>>, %arg2: memref<1x32xf32, #tpu.memory_space<vmem>>, %arg3: memref<1x32xf32, #tpu.memory_space<vmem>>, %arg4: memref<32x96xf32, #tpu.memory_space<vmem>>, %arg5: memref<64x96xf32, #tpu.memory_space<vmem>>) attributes {dimension_semantics = [#tpu.dimension_semantics<parallel>], iteration_bounds = array<i64: 2>, scalar_prefetch = 0 : i64, scratch_operands = 0 : i64, tpu.core_type = #tpu.core_type<tc>, window_params = [{transform_indices = @transform_0, window_bounds = array<i64: 64, 32>}, {pipeline_mode = #tpu.pipeline_mode<synchronous>, transform_indices = @transform_1, window_bounds = array<i64: 1, 32>}, {pipeline_mode = #tpu.pipeline_mode<synchronous>, transform_indices = @transform_2, window_bounds = array<i64: 1, 32>}, {pipeline_mode = #tpu.pipeline_mode<synchronous>, transform_indices = @transform_3, window_bounds = array<i64: 32, 96>}, {transform_indices = @transform_4, window_bounds = array<i64: 64, 96>}]} {
    %c0 = arith.constant 0 : index
    %c0_0 = arith.constant 0 : index
    %0 = vector.load %arg1[%c0, %c0_0] : memref<64x32xf32, #tpu.memory_space<vmem>>, vector<64x32xf32>
    %c0_1 = arith.constant 0 : index
    %c0_2 = arith.constant 0 : index
    %1 = vector.load %arg2[%c0_1, %c0_2] : memref<1x32xf32, #tpu.memory_space<vmem>>, vector<1x32xf32>
    %c0_3 = arith.constant 0 : index
    %c0_4 = arith.constant 0 : index
    %2 = vector.load %arg3[%c0_3, %c0_4] : memref<1x32xf32, #tpu.memory_space<vmem>>, vector<1x32xf32>
    %cst = arith.constant dense<0.000000e+00> : vector<64xf32>
    %3 = vector.multi_reduction <add>, %0, %cst [1] : vector<64x32xf32> to vector<64xf32>
    %4 = vector.shape_cast %3 : vector<64xf32> to vector<64x1xf32>
    %cst_5 = arith.constant 3.200000e+01 : f32
    %5 = vector.broadcast %cst_5 : f32 to vector<64x1xf32>
    %6 = arith.divf %4, %5 : vector<64x1xf32>
    %7 = vector.broadcast %6 : vector<64x1xf32> to vector<64x32xf32>
    %8 = arith.subf %0, %7 : vector<64x32xf32>
    %9 = arith.mulf %8, %8 : vector<64x32xf32>
    %cst_6 = arith.constant dense<0.000000e+00> : vector<64xf32>
    %10 = vector.multi_reduction <add>, %9, %cst_6 [1] : vector<64x32xf32> to vector<64xf32>
    %11 = vector.shape_cast %10 : vector<64xf32> to vector<64x1xf32>
    %cst_7 = arith.constant 3.200000e+01 : f32
    %12 = vector.broadcast %cst_7 : f32 to vector<64x1xf32>
    %13 = arith.divf %11, %12 : vector<64x1xf32>
    %cst_8 = arith.constant 9.99999974E-6 : f32
    %14 = vector.broadcast %cst_8 : f32 to vector<64x1xf32>
    %15 = arith.addf %13, %14 : vector<64x1xf32>
    %16 = math.rsqrt %15 : vector<64x1xf32>
    %17 = vector.broadcast %16 : vector<64x1xf32> to vector<64x32xf32>
    %18 = arith.mulf %8, %17 : vector<64x32xf32>
    %19 = vector.broadcast %1 : vector<1x32xf32> to vector<64x32xf32>
    %20 = arith.mulf %18, %19 : vector<64x32xf32>
    %21 = vector.broadcast %2 : vector<1x32xf32> to vector<64x32xf32>
    %22 = arith.addf %20, %21 : vector<64x32xf32>
    %23 = arith.truncf %22 : vector<64x32xf32> to vector<64x32xbf16>
    %c0_9 = arith.constant 0 : index
    %c0_10 = arith.constant 0 : index
    %24 = vector.load %arg4[%c0_9, %c0_10] : memref<32x96xf32, #tpu.memory_space<vmem>>, vector<32x96xf32>
    %25 = arith.truncf %24 : vector<32x96xf32> to vector<32x96xbf16>
    %cst_11 = arith.constant dense<0.000000e+00> : vector<64x96xf32>
    %26 = tpu.matmul %23, %25, %cst_11 {dimension_numbers = #tpu.dot_dimension_numbers<[1], [0], [0], [1], [0, 0, 1, 1], [], []>} : vector<64x32xbf16>, vector<32x96xbf16>, vector<64x96xf32> -> vector<64x96xf32>
    %c0_12 = arith.constant 0 : index
    %c0_13 = arith.constant 0 : index
    %27 = vector.load %arg5[%c0_12, %c0_13] : memref<64x96xf32, #tpu.memory_space<vmem>>, vector<64x96xf32>
    tpu.vector_store %arg5[%c0_12, %c0_13], %26 {strides = array<i32>} : memref<64x96xf32, #tpu.memory_space<vmem>>, vector<64x96xf32>,
    return
  }
  func.func @transform_0(%arg0: i32) -> (i32, i32) {
    %c0_i32 = arith.constant 0 : i32
    %c0_i32_0 = arith.constant 0 : i32
    return %arg0, %c0_i32 : i32, i32
  }
  func.func @transform_1(%arg0: i32) -> (i32, i32) {
    %c0_i32 = arith.constant 0 : i32
    %c0_i32_0 = arith.constant 0 : i32
    %c0_i32_1 = arith.constant 0 : i32
    return %c0_i32, %c0_i32_0 : i32, i32
  }
  func.func @transform_2(%arg0: i32) -> (i32, i32) {
    %c0_i32 = arith.constant 0 : i32
    %c0_i32_0 = arith.constant 0 : i32
    %c0_i32_1 = arith.constant 0 : i32
    return %c0_i32, %c0_i32_0 : i32, i32
  }
  func.func @transform_3(%arg0: i32) -> (i32, i32) {
    %c0_i32 = arith.constant 0 : i32
    %c0_i32_0 = arith.constant 0 : i32
    %c0_i32_1 = arith.constant 0 : i32
    return %c0_i32, %c0_i32_0 : i32, i32
  }
  func.func @transform_4(%arg0: i32) -> (i32, i32) {
    %c0_i32 = arith.constant 0 : i32
    %c0_i32_0 = arith.constant 0 : i32
    return %arg0, %c0_i32 : i32, i32
  }
}

module attributes {stable_mosaic.version = 11 : i64} {
  func.func @_window_attn_kernel(%arg0: i32, %arg1: memref<1x2x4x16x16xf32, #tpu.memory_space<vmem>>, %arg2: memref<1x2x4x16x16xf32, #tpu.memory_space<vmem>>, %arg3: memref<1x2x4x16x16xf32, #tpu.memory_space<vmem>>, %arg4: memref<16x16xf32, #tpu.memory_space<vmem>>, %arg5: memref<1x2x4x16x16xf32, #tpu.memory_space<vmem>>) attributes {dimension_semantics = [#tpu.dimension_semantics<parallel>], iteration_bounds = array<i64: 2>, scalar_prefetch = 0 : i64, scratch_operands = 0 : i64, tpu.core_type = #tpu.core_type<tc>, window_params = [{transform_indices = @transform_0, window_bounds = array<i64: 1, 2, 4, 16, 16>}, {transform_indices = @transform_1, window_bounds = array<i64: 1, 2, 4, 16, 16>}, {transform_indices = @transform_2, window_bounds = array<i64: 1, 2, 4, 16, 16>}, {pipeline_mode = #tpu.pipeline_mode<synchronous>, transform_indices = @transform_3, window_bounds = array<i64: 16, 16>}, {transform_indices = @transform_4, window_bounds = array<i64: 1, 2, 4, 16, 16>}]} {
    %c0 = arith.constant 0 : index
    %c0_0 = arith.constant 0 : index
    %0 = vector.load %arg4[%c0, %c0_0] : memref<16x16xf32, #tpu.memory_space<vmem>>, vector<16x16xf32>
    %1 = vector.shape_cast %0 : vector<16x16xf32> to vector<1x16x16xf32>
    %c0_1 = arith.constant 0 : index
    %c0_2 = arith.constant 0 : index
    %c0_3 = arith.constant 0 : index
    %c0_4 = arith.constant 0 : index
    %c0_5 = arith.constant 0 : index
    %2 = vector.load %arg1[%c0_1, %c0_2, %c0_3, %c0_4, %c0_5] : memref<1x2x4x16x16xf32, #tpu.memory_space<vmem>>, vector<1x1x4x16x16xf32>
    %3 = vector.shape_cast %2 : vector<1x1x4x16x16xf32> to vector<4x16x16xf32>
    %4 = arith.truncf %3 : vector<4x16x16xf32> to vector<4x16x16xbf16>
    %c0_6 = arith.constant 0 : index
    %c0_7 = arith.constant 0 : index
    %c0_8 = arith.constant 0 : index
    %c0_9 = arith.constant 0 : index
    %c0_10 = arith.constant 0 : index
    %5 = vector.load %arg2[%c0_6, %c0_7, %c0_8, %c0_9, %c0_10] : memref<1x2x4x16x16xf32, #tpu.memory_space<vmem>>, vector<1x1x4x16x16xf32>
    %6 = vector.shape_cast %5 : vector<1x1x4x16x16xf32> to vector<4x16x16xf32>
    %7 = arith.truncf %6 : vector<4x16x16xf32> to vector<4x16x16xbf16>
    %c0_11 = arith.constant 0 : index
    %c0_12 = arith.constant 0 : index
    %c0_13 = arith.constant 0 : index
    %c0_14 = arith.constant 0 : index
    %c0_15 = arith.constant 0 : index
    %8 = vector.load %arg3[%c0_11, %c0_12, %c0_13, %c0_14, %c0_15] : memref<1x2x4x16x16xf32, #tpu.memory_space<vmem>>, vector<1x1x4x16x16xf32>
    %9 = vector.shape_cast %8 : vector<1x1x4x16x16xf32> to vector<4x16x16xf32>
    %10 = arith.truncf %9 : vector<4x16x16xf32> to vector<4x16x16xbf16>
    "tpu.trace_start"() <{level = 10 : i32, message = "wqd,wkd->wqk"}> : () -> ()
    %cst = arith.constant dense<0.000000e+00> : vector<4x16x16xf32>
    %11 = tpu.matmul %4, %7, %cst {dimension_numbers = #tpu.dot_dimension_numbers<[2], [2], [1], [1], [0, 0, 0, 1, 1, 1], [0], [0]>} : vector<4x16x16xbf16>, vector<4x16x16xbf16>, vector<4x16x16xf32> -> vector<4x16x16xf32>
    "tpu.trace_stop"() : () -> ()
    %cst_16 = arith.constant 2.500000e-01 : f32
    %12 = vector.broadcast %cst_16 : f32 to vector<4x16x16xf32>
    %13 = arith.mulf %11, %12 : vector<4x16x16xf32>
    %14 = vector.broadcast %1 : vector<1x16x16xf32> to vector<4x16x16xf32>
    %15 = arith.addf %13, %14 : vector<4x16x16xf32>
    %cst_17 = arith.constant dense<0xFF800000> : vector<4x16xf32>
    %16 = vector.multi_reduction <maximumf>, %15, %cst_17 [2] : vector<4x16x16xf32> to vector<4x16xf32>
    %17 = vector.shape_cast %16 : vector<4x16xf32> to vector<4x16x1xf32>
    %18 = vector.broadcast %17 : vector<4x16x1xf32> to vector<4x16x16xf32>
    %19 = arith.subf %15, %18 : vector<4x16x16xf32>
    %20 = math.exp %19 : vector<4x16x16xf32>
    %cst_18 = arith.constant dense<0.000000e+00> : vector<4x16xf32>
    %21 = vector.multi_reduction <add>, %20, %cst_18 [2] : vector<4x16x16xf32> to vector<4x16xf32>
    %22 = vector.shape_cast %21 : vector<4x16xf32> to vector<4x16x1xf32>
    %23 = tpu.reciprocal %22 {approx = true} : vector<4x16x1xf32> -> vector<4x16x1xf32>
    %24 = vector.broadcast %23 : vector<4x16x1xf32> to vector<4x16x16xf32>
    %25 = arith.mulf %20, %24 : vector<4x16x16xf32>
    %26 = arith.truncf %25 : vector<4x16x16xf32> to vector<4x16x16xbf16>
    "tpu.trace_start"() <{level = 10 : i32, message = "wqk,wkd->wqd"}> : () -> ()
    %cst_19 = arith.constant dense<0.000000e+00> : vector<4x16x16xf32>
    %27 = tpu.matmul %26, %10, %cst_19 {dimension_numbers = #tpu.dot_dimension_numbers<[2], [1], [1], [2], [0, 0, 0, 1, 1, 2], [0], [0]>} : vector<4x16x16xbf16>, vector<4x16x16xbf16>, vector<4x16x16xf32> -> vector<4x16x16xf32>
    "tpu.trace_stop"() : () -> ()
    %c0_20 = arith.constant 0 : index
    %c0_21 = arith.constant 0 : index
    %c0_22 = arith.constant 0 : index
    %c0_23 = arith.constant 0 : index
    %c0_24 = arith.constant 0 : index
    %28 = vector.load %arg5[%c0_20, %c0_21, %c0_22, %c0_23, %c0_24] : memref<1x2x4x16x16xf32, #tpu.memory_space<vmem>>, vector<1x1x4x16x16xf32>
    %29 = vector.shape_cast %28 : vector<1x1x4x16x16xf32> to vector<4x16x16xf32>
    %30 = vector.shape_cast %27 : vector<4x16x16xf32> to vector<1x1x4x16x16xf32>
    tpu.vector_store %arg5[%c0_20, %c0_21, %c0_22, %c0_23, %c0_24], %30 {strides = array<i32>} : memref<1x2x4x16x16xf32, #tpu.memory_space<vmem>>, vector<1x1x4x16x16xf32>,
    %c0_25 = arith.constant 0 : index
    %c1 = arith.constant 1 : index
    %c0_26 = arith.constant 0 : index
    %c0_27 = arith.constant 0 : index
    %c0_28 = arith.constant 0 : index
    %31 = vector.load %arg1[%c0_25, %c1, %c0_26, %c0_27, %c0_28] : memref<1x2x4x16x16xf32, #tpu.memory_space<vmem>>, vector<1x1x4x16x16xf32>
    %32 = vector.shape_cast %31 : vector<1x1x4x16x16xf32> to vector<4x16x16xf32>
    %33 = arith.truncf %32 : vector<4x16x16xf32> to vector<4x16x16xbf16>
    %c0_29 = arith.constant 0 : index
    %c1_30 = arith.constant 1 : index
    %c0_31 = arith.constant 0 : index
    %c0_32 = arith.constant 0 : index
    %c0_33 = arith.constant 0 : index
    %34 = vector.load %arg2[%c0_29, %c1_30, %c0_31, %c0_32, %c0_33] : memref<1x2x4x16x16xf32, #tpu.memory_space<vmem>>, vector<1x1x4x16x16xf32>
    %35 = vector.shape_cast %34 : vector<1x1x4x16x16xf32> to vector<4x16x16xf32>
    %36 = arith.truncf %35 : vector<4x16x16xf32> to vector<4x16x16xbf16>
    %c0_34 = arith.constant 0 : index
    %c1_35 = arith.constant 1 : index
    %c0_36 = arith.constant 0 : index
    %c0_37 = arith.constant 0 : index
    %c0_38 = arith.constant 0 : index
    %37 = vector.load %arg3[%c0_34, %c1_35, %c0_36, %c0_37, %c0_38] : memref<1x2x4x16x16xf32, #tpu.memory_space<vmem>>, vector<1x1x4x16x16xf32>
    %38 = vector.shape_cast %37 : vector<1x1x4x16x16xf32> to vector<4x16x16xf32>
    %39 = arith.truncf %38 : vector<4x16x16xf32> to vector<4x16x16xbf16>
    "tpu.trace_start"() <{level = 10 : i32, message = "wqd,wkd->wqk"}> : () -> ()
    %cst_39 = arith.constant dense<0.000000e+00> : vector<4x16x16xf32>
    %40 = tpu.matmul %33, %36, %cst_39 {dimension_numbers = #tpu.dot_dimension_numbers<[2], [2], [1], [1], [0, 0, 0, 1, 1, 1], [0], [0]>} : vector<4x16x16xbf16>, vector<4x16x16xbf16>, vector<4x16x16xf32> -> vector<4x16x16xf32>
    "tpu.trace_stop"() : () -> ()
    %cst_40 = arith.constant 2.500000e-01 : f32
    %41 = vector.broadcast %cst_40 : f32 to vector<4x16x16xf32>
    %42 = arith.mulf %40, %41 : vector<4x16x16xf32>
    %43 = vector.broadcast %1 : vector<1x16x16xf32> to vector<4x16x16xf32>
    %44 = arith.addf %42, %43 : vector<4x16x16xf32>
    %cst_41 = arith.constant dense<0xFF800000> : vector<4x16xf32>
    %45 = vector.multi_reduction <maximumf>, %44, %cst_41 [2] : vector<4x16x16xf32> to vector<4x16xf32>
    %46 = vector.shape_cast %45 : vector<4x16xf32> to vector<4x16x1xf32>
    %47 = vector.broadcast %46 : vector<4x16x1xf32> to vector<4x16x16xf32>
    %48 = arith.subf %44, %47 : vector<4x16x16xf32>
    %49 = math.exp %48 : vector<4x16x16xf32>
    %cst_42 = arith.constant dense<0.000000e+00> : vector<4x16xf32>
    %50 = vector.multi_reduction <add>, %49, %cst_42 [2] : vector<4x16x16xf32> to vector<4x16xf32>
    %51 = vector.shape_cast %50 : vector<4x16xf32> to vector<4x16x1xf32>
    %52 = tpu.reciprocal %51 {approx = true} : vector<4x16x1xf32> -> vector<4x16x1xf32>
    %53 = vector.broadcast %52 : vector<4x16x1xf32> to vector<4x16x16xf32>
    %54 = arith.mulf %49, %53 : vector<4x16x16xf32>
    %55 = arith.truncf %54 : vector<4x16x16xf32> to vector<4x16x16xbf16>
    "tpu.trace_start"() <{level = 10 : i32, message = "wqk,wkd->wqd"}> : () -> ()
    %cst_43 = arith.constant dense<0.000000e+00> : vector<4x16x16xf32>
    %56 = tpu.matmul %55, %39, %cst_43 {dimension_numbers = #tpu.dot_dimension_numbers<[2], [1], [1], [2], [0, 0, 0, 1, 1, 2], [0], [0]>} : vector<4x16x16xbf16>, vector<4x16x16xbf16>, vector<4x16x16xf32> -> vector<4x16x16xf32>
    "tpu.trace_stop"() : () -> ()
    %c0_44 = arith.constant 0 : index
    %c1_45 = arith.constant 1 : index
    %c0_46 = arith.constant 0 : index
    %c0_47 = arith.constant 0 : index
    %c0_48 = arith.constant 0 : index
    %57 = vector.load %arg5[%c0_44, %c1_45, %c0_46, %c0_47, %c0_48] : memref<1x2x4x16x16xf32, #tpu.memory_space<vmem>>, vector<1x1x4x16x16xf32>
    %58 = vector.shape_cast %57 : vector<1x1x4x16x16xf32> to vector<4x16x16xf32>
    %59 = vector.shape_cast %56 : vector<4x16x16xf32> to vector<1x1x4x16x16xf32>
    tpu.vector_store %arg5[%c0_44, %c1_45, %c0_46, %c0_47, %c0_48], %59 {strides = array<i32>} : memref<1x2x4x16x16xf32, #tpu.memory_space<vmem>>, vector<1x1x4x16x16xf32>,
    return
  }
  func.func @transform_0(%arg0: i32) -> (i32, i32, i32, i32, i32) {
    %c0_i32 = arith.constant 0 : i32
    %c0_i32_0 = arith.constant 0 : i32
    %c0_i32_1 = arith.constant 0 : i32
    %c0_i32_2 = arith.constant 0 : i32
    %c0_i32_3 = arith.constant 0 : i32
    return %arg0, %c0_i32, %c0_i32_0, %c0_i32_1, %c0_i32_2 : i32, i32, i32, i32, i32
  }
  func.func @transform_1(%arg0: i32) -> (i32, i32, i32, i32, i32) {
    %c0_i32 = arith.constant 0 : i32
    %c0_i32_0 = arith.constant 0 : i32
    %c0_i32_1 = arith.constant 0 : i32
    %c0_i32_2 = arith.constant 0 : i32
    %c0_i32_3 = arith.constant 0 : i32
    return %arg0, %c0_i32, %c0_i32_0, %c0_i32_1, %c0_i32_2 : i32, i32, i32, i32, i32
  }
  func.func @transform_2(%arg0: i32) -> (i32, i32, i32, i32, i32) {
    %c0_i32 = arith.constant 0 : i32
    %c0_i32_0 = arith.constant 0 : i32
    %c0_i32_1 = arith.constant 0 : i32
    %c0_i32_2 = arith.constant 0 : i32
    %c0_i32_3 = arith.constant 0 : i32
    return %arg0, %c0_i32, %c0_i32_0, %c0_i32_1, %c0_i32_2 : i32, i32, i32, i32, i32
  }
  func.func @transform_3(%arg0: i32) -> (i32, i32) {
    %c0_i32 = arith.constant 0 : i32
    %c0_i32_0 = arith.constant 0 : i32
    %c0_i32_1 = arith.constant 0 : i32
    return %c0_i32, %c0_i32_0 : i32, i32
  }
  func.func @transform_4(%arg0: i32) -> (i32, i32, i32, i32, i32) {
    %c0_i32 = arith.constant 0 : i32
    %c0_i32_0 = arith.constant 0 : i32
    %c0_i32_1 = arith.constant 0 : i32
    %c0_i32_2 = arith.constant 0 : i32
    %c0_i32_3 = arith.constant 0 : i32
    return %arg0, %c0_i32, %c0_i32_0, %c0_i32_1, %c0_i32_2 : i32, i32, i32, i32, i32
  }
}

module attributes {stable_mosaic.version = 11 : i64} {
  func.func @_matmul_bias_res_kernel(%arg0: i32, %arg1: memref<64x32xf32, #tpu.memory_space<vmem>>, %arg2: memref<32x32xf32, #tpu.memory_space<vmem>>, %arg3: memref<1x32xf32, #tpu.memory_space<vmem>>, %arg4: memref<64x32xf32, #tpu.memory_space<vmem>>, %arg5: memref<64x32xf32, #tpu.memory_space<vmem>>) attributes {dimension_semantics = [#tpu.dimension_semantics<parallel>], iteration_bounds = array<i64: 2>, scalar_prefetch = 0 : i64, scratch_operands = 0 : i64, tpu.core_type = #tpu.core_type<tc>, window_params = [{transform_indices = @transform_0, window_bounds = array<i64: 64, 32>}, {pipeline_mode = #tpu.pipeline_mode<synchronous>, transform_indices = @transform_1, window_bounds = array<i64: 32, 32>}, {pipeline_mode = #tpu.pipeline_mode<synchronous>, transform_indices = @transform_2, window_bounds = array<i64: 1, 32>}, {transform_indices = @transform_3, window_bounds = array<i64: 64, 32>}, {transform_indices = @transform_4, window_bounds = array<i64: 64, 32>}]} {
    %c0 = arith.constant 0 : index
    %c0_0 = arith.constant 0 : index
    %0 = vector.load %arg1[%c0, %c0_0] : memref<64x32xf32, #tpu.memory_space<vmem>>, vector<64x32xf32>
    %1 = arith.truncf %0 : vector<64x32xf32> to vector<64x32xbf16>
    %c0_1 = arith.constant 0 : index
    %c0_2 = arith.constant 0 : index
    %2 = vector.load %arg2[%c0_1, %c0_2] : memref<32x32xf32, #tpu.memory_space<vmem>>, vector<32x32xf32>
    %3 = arith.truncf %2 : vector<32x32xf32> to vector<32x32xbf16>
    %cst = arith.constant dense<0.000000e+00> : vector<64x32xf32>
    %4 = tpu.matmul %1, %3, %cst {dimension_numbers = #tpu.dot_dimension_numbers<[1], [0], [0], [1], [0, 0, 1, 1], [], []>} : vector<64x32xbf16>, vector<32x32xbf16>, vector<64x32xf32> -> vector<64x32xf32>
    %c0_3 = arith.constant 0 : index
    %c0_4 = arith.constant 0 : index
    %5 = vector.load %arg3[%c0_3, %c0_4] : memref<1x32xf32, #tpu.memory_space<vmem>>, vector<1x32xf32>
    %6 = vector.broadcast %5 : vector<1x32xf32> to vector<64x32xf32>
    %7 = arith.addf %4, %6 : vector<64x32xf32>
    %c0_5 = arith.constant 0 : index
    %c0_6 = arith.constant 0 : index
    %8 = vector.load %arg4[%c0_5, %c0_6] : memref<64x32xf32, #tpu.memory_space<vmem>>, vector<64x32xf32>
    %9 = arith.addf %7, %8 : vector<64x32xf32>
    %c0_7 = arith.constant 0 : index
    %c0_8 = arith.constant 0 : index
    %10 = vector.load %arg5[%c0_7, %c0_8] : memref<64x32xf32, #tpu.memory_space<vmem>>, vector<64x32xf32>
    tpu.vector_store %arg5[%c0_7, %c0_8], %9 {strides = array<i32>} : memref<64x32xf32, #tpu.memory_space<vmem>>, vector<64x32xf32>,
    return
  }
  func.func @transform_0(%arg0: i32) -> (i32, i32) {
    %c0_i32 = arith.constant 0 : i32
    %c0_i32_0 = arith.constant 0 : i32
    return %arg0, %c0_i32 : i32, i32
  }
  func.func @transform_1(%arg0: i32) -> (i32, i32) {
    %c0_i32 = arith.constant 0 : i32
    %c0_i32_0 = arith.constant 0 : i32
    %c0_i32_1 = arith.constant 0 : i32
    return %c0_i32, %c0_i32_0 : i32, i32
  }
  func.func @transform_2(%arg0: i32) -> (i32, i32) {
    %c0_i32 = arith.constant 0 : i32
    %c0_i32_0 = arith.constant 0 : i32
    %c0_i32_1 = arith.constant 0 : i32
    return %c0_i32, %c0_i32_0 : i32, i32
  }
  func.func @transform_3(%arg0: i32) -> (i32, i32) {
    %c0_i32 = arith.constant 0 : i32
    %c0_i32_0 = arith.constant 0 : i32
    return %arg0, %c0_i32 : i32, i32
  }
  func.func @transform_4(%arg0: i32) -> (i32, i32) {
    %c0_i32 = arith.constant 0 : i32
    %c0_i32_0 = arith.constant 0 : i32
    return %arg0, %c0_i32 : i32, i32
  }
}

module attributes {stable_mosaic.version = 11 : i64} {
  func.func @_ln_mlp_res_kernel(%arg0: i32, %arg1: memref<64x32xf32, #tpu.memory_space<vmem>>, %arg2: memref<1x32xf32, #tpu.memory_space<vmem>>, %arg3: memref<1x32xf32, #tpu.memory_space<vmem>>, %arg4: memref<32x128xf32, #tpu.memory_space<vmem>>, %arg5: memref<1x128xf32, #tpu.memory_space<vmem>>, %arg6: memref<128x32xf32, #tpu.memory_space<vmem>>, %arg7: memref<1x32xf32, #tpu.memory_space<vmem>>, %arg8: memref<64x32xf32, #tpu.memory_space<vmem>>) attributes {dimension_semantics = [#tpu.dimension_semantics<parallel>], iteration_bounds = array<i64: 2>, scalar_prefetch = 0 : i64, scratch_operands = 0 : i64, tpu.core_type = #tpu.core_type<tc>, window_params = [{transform_indices = @transform_0, window_bounds = array<i64: 64, 32>}, {pipeline_mode = #tpu.pipeline_mode<synchronous>, transform_indices = @transform_1, window_bounds = array<i64: 1, 32>}, {pipeline_mode = #tpu.pipeline_mode<synchronous>, transform_indices = @transform_2, window_bounds = array<i64: 1, 32>}, {pipeline_mode = #tpu.pipeline_mode<synchronous>, transform_indices = @transform_3, window_bounds = array<i64: 32, 128>}, {pipeline_mode = #tpu.pipeline_mode<synchronous>, transform_indices = @transform_4, window_bounds = array<i64: 1, 128>}, {pipeline_mode = #tpu.pipeline_mode<synchronous>, transform_indices = @transform_5, window_bounds = array<i64: 128, 32>}, {pipeline_mode = #tpu.pipeline_mode<synchronous>, transform_indices = @transform_6, window_bounds = array<i64: 1, 32>}, {transform_indices = @transform_7, window_bounds = array<i64: 64, 32>}]} {
    %c0 = arith.constant 0 : index
    %c0_0 = arith.constant 0 : index
    %0 = vector.load %arg1[%c0, %c0_0] : memref<64x32xf32, #tpu.memory_space<vmem>>, vector<64x32xf32>
    %c0_1 = arith.constant 0 : index
    %c0_2 = arith.constant 0 : index
    %1 = vector.load %arg2[%c0_1, %c0_2] : memref<1x32xf32, #tpu.memory_space<vmem>>, vector<1x32xf32>
    %c0_3 = arith.constant 0 : index
    %c0_4 = arith.constant 0 : index
    %2 = vector.load %arg3[%c0_3, %c0_4] : memref<1x32xf32, #tpu.memory_space<vmem>>, vector<1x32xf32>
    %cst = arith.constant dense<0.000000e+00> : vector<64xf32>
    %3 = vector.multi_reduction <add>, %0, %cst [1] : vector<64x32xf32> to vector<64xf32>
    %4 = vector.shape_cast %3 : vector<64xf32> to vector<64x1xf32>
    %cst_5 = arith.constant 3.200000e+01 : f32
    %5 = vector.broadcast %cst_5 : f32 to vector<64x1xf32>
    %6 = arith.divf %4, %5 : vector<64x1xf32>
    %7 = vector.broadcast %6 : vector<64x1xf32> to vector<64x32xf32>
    %8 = arith.subf %0, %7 : vector<64x32xf32>
    %9 = arith.mulf %8, %8 : vector<64x32xf32>
    %cst_6 = arith.constant dense<0.000000e+00> : vector<64xf32>
    %10 = vector.multi_reduction <add>, %9, %cst_6 [1] : vector<64x32xf32> to vector<64xf32>
    %11 = vector.shape_cast %10 : vector<64xf32> to vector<64x1xf32>
    %cst_7 = arith.constant 3.200000e+01 : f32
    %12 = vector.broadcast %cst_7 : f32 to vector<64x1xf32>
    %13 = arith.divf %11, %12 : vector<64x1xf32>
    %cst_8 = arith.constant 9.99999974E-6 : f32
    %14 = vector.broadcast %cst_8 : f32 to vector<64x1xf32>
    %15 = arith.addf %13, %14 : vector<64x1xf32>
    %16 = math.rsqrt %15 : vector<64x1xf32>
    %17 = vector.broadcast %16 : vector<64x1xf32> to vector<64x32xf32>
    %18 = arith.mulf %8, %17 : vector<64x32xf32>
    %19 = vector.broadcast %1 : vector<1x32xf32> to vector<64x32xf32>
    %20 = arith.mulf %18, %19 : vector<64x32xf32>
    %21 = vector.broadcast %2 : vector<1x32xf32> to vector<64x32xf32>
    %22 = arith.addf %20, %21 : vector<64x32xf32>
    %23 = arith.truncf %22 : vector<64x32xf32> to vector<64x32xbf16>
    %c0_9 = arith.constant 0 : index
    %c0_10 = arith.constant 0 : index
    %24 = vector.load %arg4[%c0_9, %c0_10] : memref<32x128xf32, #tpu.memory_space<vmem>>, vector<32x128xf32>
    %25 = arith.truncf %24 : vector<32x128xf32> to vector<32x128xbf16>
    %cst_11 = arith.constant dense<0.000000e+00> : vector<64x128xf32>
    %26 = tpu.matmul %23, %25, %cst_11 {dimension_numbers = #tpu.dot_dimension_numbers<[1], [0], [0], [1], [0, 0, 1, 1], [], []>} : vector<64x32xbf16>, vector<32x128xbf16>, vector<64x128xf32> -> vector<64x128xf32>
    %c0_12 = arith.constant 0 : index
    %c0_13 = arith.constant 0 : index
    %27 = vector.load %arg5[%c0_12, %c0_13] : memref<1x128xf32, #tpu.memory_space<vmem>>, vector<1x128xf32>
    %28 = vector.broadcast %27 : vector<1x128xf32> to vector<64x128xf32>
    %29 = arith.addf %26, %28 : vector<64x128xf32>
    %cst_14 = arith.constant 5.000000e-01 : f32
    %30 = vector.broadcast %cst_14 : f32 to vector<64x128xf32>
    %31 = arith.mulf %30, %29 : vector<64x128xf32>
    %cst_15 = arith.constant 0.707106769 : f32
    %32 = vector.broadcast %cst_15 : f32 to vector<64x128xf32>
    %33 = arith.mulf %29, %32 : vector<64x128xf32>
    %cst_16 = arith.constant 0.000000e+00 : f32
    %34 = vector.broadcast %cst_16 : f32 to vector<64x128xf32>
    %35 = arith.cmpf oge, %33, %34 : vector<64x128xf32>
    %cst_17 = arith.constant 1.000000e+00 : f32
    %cst_18 = arith.constant -1.000000e+00 : f32
    %36 = vector.broadcast %cst_17 : f32 to vector<64x128xf32>
    %37 = vector.broadcast %cst_18 : f32 to vector<64x128xf32>
    %38 = arith.select %35, %36, %37 : vector<64x128xi1>, vector<64x128xf32>
    %39 = math.absf %33 : vector<64x128xf32>
    %cst_19 = arith.constant 0.327591091 : f32
    %40 = vector.broadcast %cst_19 : f32 to vector<64x128xf32>
    %41 = arith.mulf %40, %39 : vector<64x128xf32>
    %cst_20 = arith.constant 1.000000e+00 : f32
    %42 = vector.broadcast %cst_20 : f32 to vector<64x128xf32>
    %43 = arith.addf %42, %41 : vector<64x128xf32>
    %cst_21 = arith.constant 1.000000e+00 : f32
    %44 = vector.broadcast %cst_21 : f32 to vector<64x128xf32>
    %45 = arith.divf %44, %43 : vector<64x128xf32>
    %cst_22 = arith.constant 1.06140542 : f32
    %46 = vector.broadcast %cst_22 : f32 to vector<64x128xf32>
    %47 = arith.mulf %46, %45 : vector<64x128xf32>
    %cst_23 = arith.constant -1.45315206 : f32
    %48 = vector.broadcast %cst_23 : f32 to vector<64x128xf32>
    %49 = arith.addf %47, %48 : vector<64x128xf32>
    %50 = arith.mulf %49, %45 : vector<64x128xf32>
    %cst_24 = arith.constant 1.42141378 : f32
    %51 = vector.broadcast %cst_24 : f32 to vector<64x128xf32>
    %52 = arith.addf %50, %51 : vector<64x128xf32>
    %53 = arith.mulf %52, %45 : vector<64x128xf32>
    %cst_25 = arith.constant -0.284496725 : f32
    %54 = vector.broadcast %cst_25 : f32 to vector<64x128xf32>
    %55 = arith.addf %53, %54 : vector<64x128xf32>
    %56 = arith.mulf %55, %45 : vector<64x128xf32>
    %cst_26 = arith.constant 0.254829586 : f32
    %57 = vector.broadcast %cst_26 : f32 to vector<64x128xf32>
    %58 = arith.addf %56, %57 : vector<64x128xf32>
    %59 = arith.mulf %58, %45 : vector<64x128xf32>
    %cst_27 = arith.constant 0.000000e+00 : f32
    %60 = vector.broadcast %cst_27 : f32 to vector<64x128xf32>
    %61 = arith.subf %60, %39 : vector<64x128xf32>
    %62 = arith.mulf %61, %39 : vector<64x128xf32>
    %63 = math.exp %62 : vector<64x128xf32>
    %64 = arith.mulf %59, %63 : vector<64x128xf32>
    %cst_28 = arith.constant 1.000000e+00 : f32
    %65 = vector.broadcast %cst_28 : f32 to vector<64x128xf32>
    %66 = arith.subf %65, %64 : vector<64x128xf32>
    %67 = arith.mulf %38, %66 : vector<64x128xf32>
    %cst_29 = arith.constant 1.000000e+00 : f32
    %68 = vector.broadcast %cst_29 : f32 to vector<64x128xf32>
    %69 = arith.addf %68, %67 : vector<64x128xf32>
    %70 = arith.mulf %31, %69 : vector<64x128xf32>
    %71 = arith.truncf %70 : vector<64x128xf32> to vector<64x128xbf16>
    %c0_30 = arith.constant 0 : index
    %c0_31 = arith.constant 0 : index
    %72 = vector.load %arg6[%c0_30, %c0_31] : memref<128x32xf32, #tpu.memory_space<vmem>>, vector<128x32xf32>
    %73 = arith.truncf %72 : vector<128x32xf32> to vector<128x32xbf16>
    %cst_32 = arith.constant dense<0.000000e+00> : vector<64x32xf32>
    %74 = tpu.matmul %71, %73, %cst_32 {dimension_numbers = #tpu.dot_dimension_numbers<[1], [0], [0], [1], [0, 0, 1, 1], [], []>} : vector<64x128xbf16>, vector<128x32xbf16>, vector<64x32xf32> -> vector<64x32xf32>
    %c0_33 = arith.constant 0 : index
    %c0_34 = arith.constant 0 : index
    %75 = vector.load %arg7[%c0_33, %c0_34] : memref<1x32xf32, #tpu.memory_space<vmem>>, vector<1x32xf32>
    %76 = vector.broadcast %75 : vector<1x32xf32> to vector<64x32xf32>
    %77 = arith.addf %74, %76 : vector<64x32xf32>
    %78 = arith.addf %0, %77 : vector<64x32xf32>
    %c0_35 = arith.constant 0 : index
    %c0_36 = arith.constant 0 : index
    %79 = vector.load %arg8[%c0_35, %c0_36] : memref<64x32xf32, #tpu.memory_space<vmem>>, vector<64x32xf32>
    tpu.vector_store %arg8[%c0_35, %c0_36], %78 {strides = array<i32>} : memref<64x32xf32, #tpu.memory_space<vmem>>, vector<64x32xf32>,
    return
  }
  func.func @transform_0(%arg0: i32) -> (i32, i32) {
    %c0_i32 = arith.constant 0 : i32
    %c0_i32_0 = arith.constant 0 : i32
    return %arg0, %c0_i32 : i32, i32
  }
  func.func @transform_1(%arg0: i32) -> (i32, i32) {
    %c0_i32 = arith.constant 0 : i32
    %c0_i32_0 = arith.constant 0 : i32
    %c0_i32_1 = arith.constant 0 : i32
    return %c0_i32, %c0_i32_0 : i32, i32
  }
  func.func @transform_2(%arg0: i32) -> (i32, i32) {
    %c0_i32 = arith.constant 0 : i32
    %c0_i32_0 = arith.constant 0 : i32
    %c0_i32_1 = arith.constant 0 : i32
    return %c0_i32, %c0_i32_0 : i32, i32
  }
  func.func @transform_3(%arg0: i32) -> (i32, i32) {
    %c0_i32 = arith.constant 0 : i32
    %c0_i32_0 = arith.constant 0 : i32
    %c0_i32_1 = arith.constant 0 : i32
    return %c0_i32, %c0_i32_0 : i32, i32
  }
  func.func @transform_4(%arg0: i32) -> (i32, i32) {
    %c0_i32 = arith.constant 0 : i32
    %c0_i32_0 = arith.constant 0 : i32
    %c0_i32_1 = arith.constant 0 : i32
    return %c0_i32, %c0_i32_0 : i32, i32
  }
  func.func @transform_5(%arg0: i32) -> (i32, i32) {
    %c0_i32 = arith.constant 0 : i32
    %c0_i32_0 = arith.constant 0 : i32
    %c0_i32_1 = arith.constant 0 : i32
    return %c0_i32, %c0_i32_0 : i32, i32
  }
  func.func @transform_6(%arg0: i32) -> (i32, i32) {
    %c0_i32 = arith.constant 0 : i32
    %c0_i32_0 = arith.constant 0 : i32
    %c0_i32_1 = arith.constant 0 : i32
    return %c0_i32, %c0_i32_0 : i32, i32
  }
  func.func @transform_7(%arg0: i32) -> (i32, i32) {
    %c0_i32 = arith.constant 0 : i32
    %c0_i32_0 = arith.constant 0 : i32
    return %arg0, %c0_i32 : i32, i32
  }
}

module attributes {stable_mosaic.version = 11 : i64} {
  func.func @_window_attn_kernel(%arg0: i32, %arg1: memref<1x2x4x16x16xf32, #tpu.memory_space<vmem>>, %arg2: memref<1x2x4x16x16xf32, #tpu.memory_space<vmem>>, %arg3: memref<1x2x4x16x16xf32, #tpu.memory_space<vmem>>, %arg4: memref<16x16xf32, #tpu.memory_space<vmem>>, %arg5: memref<4x16x16xf32, #tpu.memory_space<vmem>>, %arg6: memref<1x2x4x16x16xf32, #tpu.memory_space<vmem>>) attributes {dimension_semantics = [#tpu.dimension_semantics<parallel>], iteration_bounds = array<i64: 2>, scalar_prefetch = 0 : i64, scratch_operands = 0 : i64, tpu.core_type = #tpu.core_type<tc>, window_params = [{transform_indices = @transform_0, window_bounds = array<i64: 1, 2, 4, 16, 16>}, {transform_indices = @transform_1, window_bounds = array<i64: 1, 2, 4, 16, 16>}, {transform_indices = @transform_2, window_bounds = array<i64: 1, 2, 4, 16, 16>}, {pipeline_mode = #tpu.pipeline_mode<synchronous>, transform_indices = @transform_3, window_bounds = array<i64: 16, 16>}, {pipeline_mode = #tpu.pipeline_mode<synchronous>, transform_indices = @transform_4, window_bounds = array<i64: 4, 16, 16>}, {transform_indices = @transform_5, window_bounds = array<i64: 1, 2, 4, 16, 16>}]} {
    %c0 = arith.constant 0 : index
    %c0_0 = arith.constant 0 : index
    %0 = vector.load %arg4[%c0, %c0_0] : memref<16x16xf32, #tpu.memory_space<vmem>>, vector<16x16xf32>
    %1 = vector.shape_cast %0 : vector<16x16xf32> to vector<1x16x16xf32>
    %c0_1 = arith.constant 0 : index
    %c0_2 = arith.constant 0 : index
    %c0_3 = arith.constant 0 : index
    %2 = vector.load %arg5[%c0_1, %c0_2, %c0_3] : memref<4x16x16xf32, #tpu.memory_space<vmem>>, vector<4x16x16xf32>
    %3 = vector.broadcast %1 : vector<1x16x16xf32> to vector<4x16x16xf32>
    %4 = arith.addf %3, %2 : vector<4x16x16xf32>
    %c0_4 = arith.constant 0 : index
    %c0_5 = arith.constant 0 : index
    %c0_6 = arith.constant 0 : index
    %c0_7 = arith.constant 0 : index
    %c0_8 = arith.constant 0 : index
    %5 = vector.load %arg1[%c0_4, %c0_5, %c0_6, %c0_7, %c0_8] : memref<1x2x4x16x16xf32, #tpu.memory_space<vmem>>, vector<1x1x4x16x16xf32>
    %6 = vector.shape_cast %5 : vector<1x1x4x16x16xf32> to vector<4x16x16xf32>
    %7 = arith.truncf %6 : vector<4x16x16xf32> to vector<4x16x16xbf16>
    %c0_9 = arith.constant 0 : index
    %c0_10 = arith.constant 0 : index
    %c0_11 = arith.constant 0 : index
    %c0_12 = arith.constant 0 : index
    %c0_13 = arith.constant 0 : index
    %8 = vector.load %arg2[%c0_9, %c0_10, %c0_11, %c0_12, %c0_13] : memref<1x2x4x16x16xf32, #tpu.memory_space<vmem>>, vector<1x1x4x16x16xf32>
    %9 = vector.shape_cast %8 : vector<1x1x4x16x16xf32> to vector<4x16x16xf32>
    %10 = arith.truncf %9 : vector<4x16x16xf32> to vector<4x16x16xbf16>
    %c0_14 = arith.constant 0 : index
    %c0_15 = arith.constant 0 : index
    %c0_16 = arith.constant 0 : index
    %c0_17 = arith.constant 0 : index
    %c0_18 = arith.constant 0 : index
    %11 = vector.load %arg3[%c0_14, %c0_15, %c0_16, %c0_17, %c0_18] : memref<1x2x4x16x16xf32, #tpu.memory_space<vmem>>, vector<1x1x4x16x16xf32>
    %12 = vector.shape_cast %11 : vector<1x1x4x16x16xf32> to vector<4x16x16xf32>
    %13 = arith.truncf %12 : vector<4x16x16xf32> to vector<4x16x16xbf16>
    "tpu.trace_start"() <{level = 10 : i32, message = "wqd,wkd->wqk"}> : () -> ()
    %cst = arith.constant dense<0.000000e+00> : vector<4x16x16xf32>
    %14 = tpu.matmul %7, %10, %cst {dimension_numbers = #tpu.dot_dimension_numbers<[2], [2], [1], [1], [0, 0, 0, 1, 1, 1], [0], [0]>} : vector<4x16x16xbf16>, vector<4x16x16xbf16>, vector<4x16x16xf32> -> vector<4x16x16xf32>
    "tpu.trace_stop"() : () -> ()
    %cst_19 = arith.constant 2.500000e-01 : f32
    %15 = vector.broadcast %cst_19 : f32 to vector<4x16x16xf32>
    %16 = arith.mulf %14, %15 : vector<4x16x16xf32>
    %17 = arith.addf %16, %4 : vector<4x16x16xf32>
    %cst_20 = arith.constant dense<0xFF800000> : vector<4x16xf32>
    %18 = vector.multi_reduction <maximumf>, %17, %cst_20 [2] : vector<4x16x16xf32> to vector<4x16xf32>
    %19 = vector.shape_cast %18 : vector<4x16xf32> to vector<4x16x1xf32>
    %20 = vector.broadcast %19 : vector<4x16x1xf32> to vector<4x16x16xf32>
    %21 = arith.subf %17, %20 : vector<4x16x16xf32>
    %22 = math.exp %21 : vector<4x16x16xf32>
    %cst_21 = arith.constant dense<0.000000e+00> : vector<4x16xf32>
    %23 = vector.multi_reduction <add>, %22, %cst_21 [2] : vector<4x16x16xf32> to vector<4x16xf32>
    %24 = vector.shape_cast %23 : vector<4x16xf32> to vector<4x16x1xf32>
    %25 = tpu.reciprocal %24 {approx = true} : vector<4x16x1xf32> -> vector<4x16x1xf32>
    %26 = vector.broadcast %25 : vector<4x16x1xf32> to vector<4x16x16xf32>
    %27 = arith.mulf %22, %26 : vector<4x16x16xf32>
    %28 = arith.truncf %27 : vector<4x16x16xf32> to vector<4x16x16xbf16>
    "tpu.trace_start"() <{level = 10 : i32, message = "wqk,wkd->wqd"}> : () -> ()
    %cst_22 = arith.constant dense<0.000000e+00> : vector<4x16x16xf32>
    %29 = tpu.matmul %28, %13, %cst_22 {dimension_numbers = #tpu.dot_dimension_numbers<[2], [1], [1], [2], [0, 0, 0, 1, 1, 2], [0], [0]>} : vector<4x16x16xbf16>, vector<4x16x16xbf16>, vector<4x16x16xf32> -> vector<4x16x16xf32>
    "tpu.trace_stop"() : () -> ()
    %c0_23 = arith.constant 0 : index
    %c0_24 = arith.constant 0 : index
    %c0_25 = arith.constant 0 : index
    %c0_26 = arith.constant 0 : index
    %c0_27 = arith.constant 0 : index
    %30 = vector.load %arg6[%c0_23, %c0_24, %c0_25, %c0_26, %c0_27] : memref<1x2x4x16x16xf32, #tpu.memory_space<vmem>>, vector<1x1x4x16x16xf32>
    %31 = vector.shape_cast %30 : vector<1x1x4x16x16xf32> to vector<4x16x16xf32>
    %32 = vector.shape_cast %29 : vector<4x16x16xf32> to vector<1x1x4x16x16xf32>
    tpu.vector_store %arg6[%c0_23, %c0_24, %c0_25, %c0_26, %c0_27], %32 {strides = array<i32>} : memref<1x2x4x16x16xf32, #tpu.memory_space<vmem>>, vector<1x1x4x16x16xf32>,
    %c0_28 = arith.constant 0 : index
    %c1 = arith.constant 1 : index
    %c0_29 = arith.constant 0 : index
    %c0_30 = arith.constant 0 : index
    %c0_31 = arith.constant 0 : index
    %33 = vector.load %arg1[%c0_28, %c1, %c0_29, %c0_30, %c0_31] : memref<1x2x4x16x16xf32, #tpu.memory_space<vmem>>, vector<1x1x4x16x16xf32>
    %34 = vector.shape_cast %33 : vector<1x1x4x16x16xf32> to vector<4x16x16xf32>
    %35 = arith.truncf %34 : vector<4x16x16xf32> to vector<4x16x16xbf16>
    %c0_32 = arith.constant 0 : index
    %c1_33 = arith.constant 1 : index
    %c0_34 = arith.constant 0 : index
    %c0_35 = arith.constant 0 : index
    %c0_36 = arith.constant 0 : index
    %36 = vector.load %arg2[%c0_32, %c1_33, %c0_34, %c0_35, %c0_36] : memref<1x2x4x16x16xf32, #tpu.memory_space<vmem>>, vector<1x1x4x16x16xf32>
    %37 = vector.shape_cast %36 : vector<1x1x4x16x16xf32> to vector<4x16x16xf32>
    %38 = arith.truncf %37 : vector<4x16x16xf32> to vector<4x16x16xbf16>
    %c0_37 = arith.constant 0 : index
    %c1_38 = arith.constant 1 : index
    %c0_39 = arith.constant 0 : index
    %c0_40 = arith.constant 0 : index
    %c0_41 = arith.constant 0 : index
    %39 = vector.load %arg3[%c0_37, %c1_38, %c0_39, %c0_40, %c0_41] : memref<1x2x4x16x16xf32, #tpu.memory_space<vmem>>, vector<1x1x4x16x16xf32>
    %40 = vector.shape_cast %39 : vector<1x1x4x16x16xf32> to vector<4x16x16xf32>
    %41 = arith.truncf %40 : vector<4x16x16xf32> to vector<4x16x16xbf16>
    "tpu.trace_start"() <{level = 10 : i32, message = "wqd,wkd->wqk"}> : () -> ()
    %cst_42 = arith.constant dense<0.000000e+00> : vector<4x16x16xf32>
    %42 = tpu.matmul %35, %38, %cst_42 {dimension_numbers = #tpu.dot_dimension_numbers<[2], [2], [1], [1], [0, 0, 0, 1, 1, 1], [0], [0]>} : vector<4x16x16xbf16>, vector<4x16x16xbf16>, vector<4x16x16xf32> -> vector<4x16x16xf32>
    "tpu.trace_stop"() : () -> ()
    %cst_43 = arith.constant 2.500000e-01 : f32
    %43 = vector.broadcast %cst_43 : f32 to vector<4x16x16xf32>
    %44 = arith.mulf %42, %43 : vector<4x16x16xf32>
    %45 = arith.addf %44, %4 : vector<4x16x16xf32>
    %cst_44 = arith.constant dense<0xFF800000> : vector<4x16xf32>
    %46 = vector.multi_reduction <maximumf>, %45, %cst_44 [2] : vector<4x16x16xf32> to vector<4x16xf32>
    %47 = vector.shape_cast %46 : vector<4x16xf32> to vector<4x16x1xf32>
    %48 = vector.broadcast %47 : vector<4x16x1xf32> to vector<4x16x16xf32>
    %49 = arith.subf %45, %48 : vector<4x16x16xf32>
    %50 = math.exp %49 : vector<4x16x16xf32>
    %cst_45 = arith.constant dense<0.000000e+00> : vector<4x16xf32>
    %51 = vector.multi_reduction <add>, %50, %cst_45 [2] : vector<4x16x16xf32> to vector<4x16xf32>
    %52 = vector.shape_cast %51 : vector<4x16xf32> to vector<4x16x1xf32>
    %53 = tpu.reciprocal %52 {approx = true} : vector<4x16x1xf32> -> vector<4x16x1xf32>
    %54 = vector.broadcast %53 : vector<4x16x1xf32> to vector<4x16x16xf32>
    %55 = arith.mulf %50, %54 : vector<4x16x16xf32>
    %56 = arith.truncf %55 : vector<4x16x16xf32> to vector<4x16x16xbf16>
    "tpu.trace_start"() <{level = 10 : i32, message = "wqk,wkd->wqd"}> : () -> ()
    %cst_46 = arith.constant dense<0.000000e+00> : vector<4x16x16xf32>
    %57 = tpu.matmul %56, %41, %cst_46 {dimension_numbers = #tpu.dot_dimension_numbers<[2], [1], [1], [2], [0, 0, 0, 1, 1, 2], [0], [0]>} : vector<4x16x16xbf16>, vector<4x16x16xbf16>, vector<4x16x16xf32> -> vector<4x16x16xf32>
    "tpu.trace_stop"() : () -> ()
    %c0_47 = arith.constant 0 : index
    %c1_48 = arith.constant 1 : index
    %c0_49 = arith.constant 0 : index
    %c0_50 = arith.constant 0 : index
    %c0_51 = arith.constant 0 : index
    %58 = vector.load %arg6[%c0_47, %c1_48, %c0_49, %c0_50, %c0_51] : memref<1x2x4x16x16xf32, #tpu.memory_space<vmem>>, vector<1x1x4x16x16xf32>
    %59 = vector.shape_cast %58 : vector<1x1x4x16x16xf32> to vector<4x16x16xf32>
    %60 = vector.shape_cast %57 : vector<4x16x16xf32> to vector<1x1x4x16x16xf32>
    tpu.vector_store %arg6[%c0_47, %c1_48, %c0_49, %c0_50, %c0_51], %60 {strides = array<i32>} : memref<1x2x4x16x16xf32, #tpu.memory_space<vmem>>, vector<1x1x4x16x16xf32>,
    return
  }
  func.func @transform_0(%arg0: i32) -> (i32, i32, i32, i32, i32) {
    %c0_i32 = arith.constant 0 : i32
    %c0_i32_0 = arith.constant 0 : i32
    %c0_i32_1 = arith.constant 0 : i32
    %c0_i32_2 = arith.constant 0 : i32
    %c0_i32_3 = arith.constant 0 : i32
    return %arg0, %c0_i32, %c0_i32_0, %c0_i32_1, %c0_i32_2 : i32, i32, i32, i32, i32
  }
  func.func @transform_1(%arg0: i32) -> (i32, i32, i32, i32, i32) {
    %c0_i32 = arith.constant 0 : i32
    %c0_i32_0 = arith.constant 0 : i32
    %c0_i32_1 = arith.constant 0 : i32
    %c0_i32_2 = arith.constant 0 : i32
    %c0_i32_3 = arith.constant 0 : i32
    return %arg0, %c0_i32, %c0_i32_0, %c0_i32_1, %c0_i32_2 : i32, i32, i32, i32, i32
  }
  func.func @transform_2(%arg0: i32) -> (i32, i32, i32, i32, i32) {
    %c0_i32 = arith.constant 0 : i32
    %c0_i32_0 = arith.constant 0 : i32
    %c0_i32_1 = arith.constant 0 : i32
    %c0_i32_2 = arith.constant 0 : i32
    %c0_i32_3 = arith.constant 0 : i32
    return %arg0, %c0_i32, %c0_i32_0, %c0_i32_1, %c0_i32_2 : i32, i32, i32, i32, i32
  }
  func.func @transform_3(%arg0: i32) -> (i32, i32) {
    %c0_i32 = arith.constant 0 : i32
    %c0_i32_0 = arith.constant 0 : i32
    %c0_i32_1 = arith.constant 0 : i32
    return %c0_i32, %c0_i32_0 : i32, i32
  }
  func.func @transform_4(%arg0: i32) -> (i32, i32, i32) {
    %c0_i32 = arith.constant 0 : i32
    %c0_i32_0 = arith.constant 0 : i32
    %c0_i32_1 = arith.constant 0 : i32
    %c0_i32_2 = arith.constant 0 : i32
    return %c0_i32, %c0_i32_0, %c0_i32_1 : i32, i32, i32
  }
  func.func @transform_5(%arg0: i32) -> (i32, i32, i32, i32, i32) {
    %c0_i32 = arith.constant 0 : i32
    %c0_i32_0 = arith.constant 0 : i32
    %c0_i32_1 = arith.constant 0 : i32
    %c0_i32_2 = arith.constant 0 : i32
    %c0_i32_3 = arith.constant 0 : i32
    return %arg0, %c0_i32, %c0_i32_0, %c0_i32_1, %c0_i32_2 : i32, i32, i32, i32, i32
  }
}

module attributes {stable_mosaic.version = 11 : i64} {
  func.func @_ln_mlp_res_kernel(%arg0: i32, %arg1: memref<64x32xf32, #tpu.memory_space<vmem>>, %arg2: memref<1x32xf32, #tpu.memory_space<vmem>>, %arg3: memref<1x32xf32, #tpu.memory_space<vmem>>, %arg4: memref<32x128xf32, #tpu.memory_space<vmem>>, %arg5: memref<1x128xf32, #tpu.memory_space<vmem>>, %arg6: memref<128x32xf32, #tpu.memory_space<vmem>>, %arg7: memref<1x32xf32, #tpu.memory_space<vmem>>, %arg8: memref<64x32xf32, #tpu.memory_space<vmem>>) attributes {dimension_semantics = [#tpu.dimension_semantics<parallel>], iteration_bounds = array<i64: 2>, scalar_prefetch = 0 : i64, scratch_operands = 0 : i64, tpu.core_type = #tpu.core_type<tc>, window_params = [{transform_indices = @transform_0, window_bounds = array<i64: 64, 32>}, {pipeline_mode = #tpu.pipeline_mode<synchronous>, transform_indices = @transform_1, window_bounds = array<i64: 1, 32>}, {pipeline_mode = #tpu.pipeline_mode<synchronous>, transform_indices = @transform_2, window_bounds = array<i64: 1, 32>}, {pipeline_mode = #tpu.pipeline_mode<synchronous>, transform_indices = @transform_3, window_bounds = array<i64: 32, 128>}, {pipeline_mode = #tpu.pipeline_mode<synchronous>, transform_indices = @transform_4, window_bounds = array<i64: 1, 128>}, {pipeline_mode = #tpu.pipeline_mode<synchronous>, transform_indices = @transform_5, window_bounds = array<i64: 128, 32>}, {pipeline_mode = #tpu.pipeline_mode<synchronous>, transform_indices = @transform_6, window_bounds = array<i64: 1, 32>}, {transform_indices = @transform_7, window_bounds = array<i64: 64, 32>}]} {
    %c0 = arith.constant 0 : index
    %c0_0 = arith.constant 0 : index
    %0 = vector.load %arg1[%c0, %c0_0] : memref<64x32xf32, #tpu.memory_space<vmem>>, vector<64x32xf32>
    %c0_1 = arith.constant 0 : index
    %c0_2 = arith.constant 0 : index
    %1 = vector.load %arg2[%c0_1, %c0_2] : memref<1x32xf32, #tpu.memory_space<vmem>>, vector<1x32xf32>
    %c0_3 = arith.constant 0 : index
    %c0_4 = arith.constant 0 : index
    %2 = vector.load %arg3[%c0_3, %c0_4] : memref<1x32xf32, #tpu.memory_space<vmem>>, vector<1x32xf32>
    %cst = arith.constant dense<0.000000e+00> : vector<64xf32>
    %3 = vector.multi_reduction <add>, %0, %cst [1] : vector<64x32xf32> to vector<64xf32>
    %4 = vector.shape_cast %3 : vector<64xf32> to vector<64x1xf32>
    %cst_5 = arith.constant 3.200000e+01 : f32
    %5 = vector.broadcast %cst_5 : f32 to vector<64x1xf32>
    %6 = arith.divf %4, %5 : vector<64x1xf32>
    %7 = vector.broadcast %6 : vector<64x1xf32> to vector<64x32xf32>
    %8 = arith.subf %0, %7 : vector<64x32xf32>
    %9 = arith.mulf %8, %8 : vector<64x32xf32>
    %cst_6 = arith.constant dense<0.000000e+00> : vector<64xf32>
    %10 = vector.multi_reduction <add>, %9, %cst_6 [1] : vector<64x32xf32> to vector<64xf32>
    %11 = vector.shape_cast %10 : vector<64xf32> to vector<64x1xf32>
    %cst_7 = arith.constant 3.200000e+01 : f32
    %12 = vector.broadcast %cst_7 : f32 to vector<64x1xf32>
    %13 = arith.divf %11, %12 : vector<64x1xf32>
    %cst_8 = arith.constant 9.99999974E-6 : f32
    %14 = vector.broadcast %cst_8 : f32 to vector<64x1xf32>
    %15 = arith.addf %13, %14 : vector<64x1xf32>
    %16 = math.rsqrt %15 : vector<64x1xf32>
    %17 = vector.broadcast %16 : vector<64x1xf32> to vector<64x32xf32>
    %18 = arith.mulf %8, %17 : vector<64x32xf32>
    %19 = vector.broadcast %1 : vector<1x32xf32> to vector<64x32xf32>
    %20 = arith.mulf %18, %19 : vector<64x32xf32>
    %21 = vector.broadcast %2 : vector<1x32xf32> to vector<64x32xf32>
    %22 = arith.addf %20, %21 : vector<64x32xf32>
    %23 = arith.truncf %22 : vector<64x32xf32> to vector<64x32xbf16>
    %c0_9 = arith.constant 0 : index
    %c0_10 = arith.constant 0 : index
    %24 = vector.load %arg4[%c0_9, %c0_10] : memref<32x128xf32, #tpu.memory_space<vmem>>, vector<32x128xf32>
    %25 = arith.truncf %24 : vector<32x128xf32> to vector<32x128xbf16>
    %cst_11 = arith.constant dense<0.000000e+00> : vector<64x128xf32>
    %26 = tpu.matmul %23, %25, %cst_11 {dimension_numbers = #tpu.dot_dimension_numbers<[1], [0], [0], [1], [0, 0, 1, 1], [], []>} : vector<64x32xbf16>, vector<32x128xbf16>, vector<64x128xf32> -> vector<64x128xf32>
    %c0_12 = arith.constant 0 : index
    %c0_13 = arith.constant 0 : index
    %27 = vector.load %arg5[%c0_12, %c0_13] : memref<1x128xf32, #tpu.memory_space<vmem>>, vector<1x128xf32>
    %28 = vector.broadcast %27 : vector<1x128xf32> to vector<64x128xf32>
    %29 = arith.addf %26, %28 : vector<64x128xf32>
    %cst_14 = arith.constant 5.000000e-01 : f32
    %30 = vector.broadcast %cst_14 : f32 to vector<64x128xf32>
    %31 = arith.mulf %30, %29 : vector<64x128xf32>
    %cst_15 = arith.constant 0.707106769 : f32
    %32 = vector.broadcast %cst_15 : f32 to vector<64x128xf32>
    %33 = arith.mulf %29, %32 : vector<64x128xf32>
    %cst_16 = arith.constant 0.000000e+00 : f32
    %34 = vector.broadcast %cst_16 : f32 to vector<64x128xf32>
    %35 = arith.cmpf oge, %33, %34 : vector<64x128xf32>
    %cst_17 = arith.constant 1.000000e+00 : f32
    %cst_18 = arith.constant -1.000000e+00 : f32
    %36 = vector.broadcast %cst_17 : f32 to vector<64x128xf32>
    %37 = vector.broadcast %cst_18 : f32 to vector<64x128xf32>
    %38 = arith.select %35, %36, %37 : vector<64x128xi1>, vector<64x128xf32>
    %39 = math.absf %33 : vector<64x128xf32>
    %cst_19 = arith.constant 0.327591091 : f32
    %40 = vector.broadcast %cst_19 : f32 to vector<64x128xf32>
    %41 = arith.mulf %40, %39 : vector<64x128xf32>
    %cst_20 = arith.constant 1.000000e+00 : f32
    %42 = vector.broadcast %cst_20 : f32 to vector<64x128xf32>
    %43 = arith.addf %42, %41 : vector<64x128xf32>
    %cst_21 = arith.constant 1.000000e+00 : f32
    %44 = vector.broadcast %cst_21 : f32 to vector<64x128xf32>
    %45 = arith.divf %44, %43 : vector<64x128xf32>
    %cst_22 = arith.constant 1.06140542 : f32
    %46 = vector.broadcast %cst_22 : f32 to vector<64x128xf32>
    %47 = arith.mulf %46, %45 : vector<64x128xf32>
    %cst_23 = arith.constant -1.45315206 : f32
    %48 = vector.broadcast %cst_23 : f32 to vector<64x128xf32>
    %49 = arith.addf %47, %48 : vector<64x128xf32>
    %50 = arith.mulf %49, %45 : vector<64x128xf32>
    %cst_24 = arith.constant 1.42141378 : f32
    %51 = vector.broadcast %cst_24 : f32 to vector<64x128xf32>
    %52 = arith.addf %50, %51 : vector<64x128xf32>
    %53 = arith.mulf %52, %45 : vector<64x128xf32>
    %cst_25 = arith.constant -0.284496725 : f32
    %54 = vector.broadcast %cst_25 : f32 to vector<64x128xf32>
    %55 = arith.addf %53, %54 : vector<64x128xf32>
    %56 = arith.mulf %55, %45 : vector<64x128xf32>
    %cst_26 = arith.constant 0.254829586 : f32
    %57 = vector.broadcast %cst_26 : f32 to vector<64x128xf32>
    %58 = arith.addf %56, %57 : vector<64x128xf32>
    %59 = arith.mulf %58, %45 : vector<64x128xf32>
    %cst_27 = arith.constant 0.000000e+00 : f32
    %60 = vector.broadcast %cst_27 : f32 to vector<64x128xf32>
    %61 = arith.subf %60, %39 : vector<64x128xf32>
    %62 = arith.mulf %61, %39 : vector<64x128xf32>
    %63 = math.exp %62 : vector<64x128xf32>
    %64 = arith.mulf %59, %63 : vector<64x128xf32>
    %cst_28 = arith.constant 1.000000e+00 : f32
    %65 = vector.broadcast %cst_28 : f32 to vector<64x128xf32>
    %66 = arith.subf %65, %64 : vector<64x128xf32>
    %67 = arith.mulf %38, %66 : vector<64x128xf32>
    %cst_29 = arith.constant 1.000000e+00 : f32
    %68 = vector.broadcast %cst_29 : f32 to vector<64x128xf32>
    %69 = arith.addf %68, %67 : vector<64x128xf32>
    %70 = arith.mulf %31, %69 : vector<64x128xf32>
    %71 = arith.truncf %70 : vector<64x128xf32> to vector<64x128xbf16>
    %c0_30 = arith.constant 0 : index
    %c0_31 = arith.constant 0 : index
    %72 = vector.load %arg6[%c0_30, %c0_31] : memref<128x32xf32, #tpu.memory_space<vmem>>, vector<128x32xf32>
    %73 = arith.truncf %72 : vector<128x32xf32> to vector<128x32xbf16>
    %cst_32 = arith.constant dense<0.000000e+00> : vector<64x32xf32>
    %74 = tpu.matmul %71, %73, %cst_32 {dimension_numbers = #tpu.dot_dimension_numbers<[1], [0], [0], [1], [0, 0, 1, 1], [], []>} : vector<64x128xbf16>, vector<128x32xbf16>, vector<64x32xf32> -> vector<64x32xf32>
    %c0_33 = arith.constant 0 : index
    %c0_34 = arith.constant 0 : index
    %75 = vector.load %arg7[%c0_33, %c0_34] : memref<1x32xf32, #tpu.memory_space<vmem>>, vector<1x32xf32>
    %76 = vector.broadcast %75 : vector<1x32xf32> to vector<64x32xf32>
    %77 = arith.addf %74, %76 : vector<64x32xf32>
    %78 = arith.addf %0, %77 : vector<64x32xf32>
    %c0_35 = arith.constant 0 : index
    %c0_36 = arith.constant 0 : index
    %79 = vector.load %arg8[%c0_35, %c0_36] : memref<64x32xf32, #tpu.memory_space<vmem>>, vector<64x32xf32>
    tpu.vector_store %arg8[%c0_35, %c0_36], %78 {strides = array<i32>} : memref<64x32xf32, #tpu.memory_space<vmem>>, vector<64x32xf32>,
    return
  }
  func.func @transform_0(%arg0: i32) -> (i32, i32) {
    %c0_i32 = arith.constant 0 : i32
    %c0_i32_0 = arith.constant 0 : i32
    return %arg0, %c0_i32 : i32, i32
  }
  func.func @transform_1(%arg0: i32) -> (i32, i32) {
    %c0_i32 = arith.constant 0 : i32
    %c0_i32_0 = arith.constant 0 : i32
    %c0_i32_1 = arith.constant 0 : i32
    return %c0_i32, %c0_i32_0 : i32, i32
  }
  func.func @transform_2(%arg0: i32) -> (i32, i32) {
    %c0_i32 = arith.constant 0 : i32
    %c0_i32_0 = arith.constant 0 : i32
    %c0_i32_1 = arith.constant 0 : i32
    return %c0_i32, %c0_i32_0 : i32, i32
  }
  func.func @transform_3(%arg0: i32) -> (i32, i32) {
    %c0_i32 = arith.constant 0 : i32
    %c0_i32_0 = arith.constant 0 : i32
    %c0_i32_1 = arith.constant 0 : i32
    return %c0_i32, %c0_i32_0 : i32, i32
  }
  func.func @transform_4(%arg0: i32) -> (i32, i32) {
    %c0_i32 = arith.constant 0 : i32
    %c0_i32_0 = arith.constant 0 : i32
    %c0_i32_1 = arith.constant 0 : i32
    return %c0_i32, %c0_i32_0 : i32, i32
  }
  func.func @transform_5(%arg0: i32) -> (i32, i32) {
    %c0_i32 = arith.constant 0 : i32
    %c0_i32_0 = arith.constant 0 : i32
    %c0_i32_1 = arith.constant 0 : i32
    return %c0_i32, %c0_i32_0 : i32, i32
  }
  func.func @transform_6(%arg0: i32) -> (i32, i32) {
    %c0_i32 = arith.constant 0 : i32
    %c0_i32_0 = arith.constant 0 : i32
    %c0_i32_1 = arith.constant 0 : i32
    return %c0_i32, %c0_i32_0 : i32, i32
  }
  func.func @transform_7(%arg0: i32) -> (i32, i32) {
    %c0_i32 = arith.constant 0 : i32
    %c0_i32_0 = arith.constant 0 : i32
    return %arg0, %c0_i32 : i32, i32
  }
}

</mosaic_0001>

<llo_original>
// kernel: swin_module_forward.9
$region0: #{swin_module_forward.9}
  #allocation0 [shape = 'u32[]', space=smem, size = 0x4, offset = 0x4, fixed_abs, tag = 'smem constant byte address 0x4 - core index']
  #allocation1 [shape = 'u32[144,128]{1,0:T(1,128)}', space=vmem, size = 0x12000, scoped, tag = 'internal scratch']
  %s0 = inlined_call_operand.vmem [shape: f32[128,16], index: 0, kind: input, shape index: {}]
  %s1 = inlined_call_operand.vmem [shape: f32[16,32], index: 1, kind: input, shape index: {}]
  %s2 = inlined_call_operand.vmem [shape: f32[1,32], index: 2, kind: input, shape index: {}]
  %s3 = inlined_call_operand.vmem [shape: f32[128,32], index: 3, kind: output, shape index: {}]
  %s4 = sld [smem:[#allocation0]]
  $region45: #{swin_module_forward.9} parent=0
    _
  %s6 = ssub.s32 1, %s4
  %s7 = scalar_select 0, %s6, %s4
  loop: start=0, step=1, limit=4
  $region2: #{swin_module_forward.9} parent=0 // loop_pre_header
    _
  $region3: #{swin_module_forward.9} parent=0 // loop_header
    %s9 = sphi 0, %s13
    %p10 = scmp.ge.s32.totalorder %s9, 4
    %s19 = sphi 0, %s21
    %s22 = sphi 0, %s19
    %s23 = sphi 0, %s22
    %s39 = sphi 0, %s23
    %s43 = sphi 0, %s43
    %s45 = sphi 0, %s43
    %s46 = sphi 0, %s45
    %s60 = sphi 0, %s46
    %s64 = sphi 0, %s64
    %s66 = sphi 0, %s64
    %s67 = sphi 0, %s66
    %s81 = sphi 0, %s67
    %s87 = sphi 0, %s89
    %s90 = sphi 0, %s87
    %s91 = sphi 0, %s90
    %s107 = sphi 0, %s91
  $region4: #{swin_module_forward.9} parent=0 // loop_header_branch
    %12 = sbr.rel (%p10) target = $region8
  $region5: #{swin_module_forward.9} parent=0 // loop_body
    %s14 = ssub.s32 %s9, 1
    %s15 = ssub.s32 %s9, 2
    %s16 = sadd.s32 %s9, 1
    %s17 = ssub.s32 %s9, %s16
    %p18 = scmp.eq.s32.totalorder %s17, 0
    %s20 = sadd.s32 %s19, 1
    %s21 = scalar_select %p18, %s19, %s20
    %p24 = pneg %p18
    %p25 = scmp.eq.s32.totalorder %s9, 1
    %p26 = por %p24, %p25
    %p27 = scmp.ne.s32.totalorder %s19, %s22
    %p28 = scmp.eq.s32.totalorder %s9, 0
    %p29 = por %p27, %p28
    %p30 = scmp.ne.s32.totalorder %s19, %s22
    %p31 = scmp.eq.s32.totalorder %s14, 1
    %p32 = por %p30, %p31
    %p33 = scmp.ne.s32.totalorder %s22, %s23
    %p34 = scmp.eq.s32.totalorder %s14, 0
    %p35 = por %p33, %p34
    %p36 = scmp.ne.s32.totalorder %s22, %s23
    %p37 = scmp.eq.s32.totalorder %s15, 1
    %p38 = por %p36, %p37
    %p40 = scmp.ne.s32.totalorder %s23, %s39
    %p41 = scmp.eq.s32.totalorder %s15, 0
    %p42 = por %p40, %p41
    %s44 = sadd.s32 %s43, 1
    %p47 = scmp.eq.s32.totalorder %s9, 1
    %p48 = scmp.ne.s32.totalorder %s43, %s45
    %p49 = scmp.eq.s32.totalorder %s9, 0
    %p50 = por %p48, %p49
    %p51 = scmp.ne.s32.totalorder %s43, %s45
    %p52 = scmp.eq.s32.totalorder %s14, 1
    %p53 = por %p51, %p52
    %p54 = scmp.ne.s32.totalorder %s45, %s46
    %p55 = scmp.eq.s32.totalorder %s14, 0
    %p56 = por %p54, %p55
    %p57 = scmp.ne.s32.totalorder %s45, %s46
    %p58 = scmp.eq.s32.totalorder %s15, 1
    %p59 = por %p57, %p58
    %p61 = scmp.ne.s32.totalorder %s46, %s60
    %p62 = scmp.eq.s32.totalorder %s15, 0
    %p63 = por %p61, %p62
    %s65 = sadd.s32 %s64, 1
    %p68 = scmp.eq.s32.totalorder %s9, 1
    %p69 = scmp.ne.s32.totalorder %s64, %s66
    %p70 = scmp.eq.s32.totalorder %s9, 0
    %p71 = por %p69, %p70
    %p72 = scmp.ne.s32.totalorder %s64, %s66
    %p73 = scmp.eq.s32.totalorder %s14, 1
    %p74 = por %p72, %p73
    %p75 = scmp.ne.s32.totalorder %s66, %s67
    %p76 = scmp.eq.s32.totalorder %s14, 0
    %p77 = por %p75, %p76
    %p78 = scmp.ne.s32.totalorder %s66, %s67
    %p79 = scmp.eq.s32.totalorder %s15, 1
    %p80 = por %p78, %p79
    %p82 = scmp.ne.s32.totalorder %s67, %s81
    %p83 = scmp.eq.s32.totalorder %s15, 0
    %p84 = por %p82, %p83
    %s85 = ssub.s32 %s9, %s16
    %p86 = scmp.eq.s32.totalorder %s85, 0
    %s88 = sadd.s32 %s87, 1
    %s89 = scalar_select %p86, %s87, %s88
    %p92 = pneg %p86
    %p93 = scmp.eq.s32.totalorder %s9, 1
    %p94 = por %p92, %p93
    %p95 = scmp.ne.s32.totalorder %s87, %s90
    %p96 = scmp.eq.s32.totalorder %s9, 0
    %p97 = por %p95, %p96
    %p98 = scmp.ne.s32.totalorder %s87, %s90
    %p99 = scmp.eq.s32.totalorder %s14, 1
    %p100 = por %p98, %p99
    %p101 = scmp.ne.s32.totalorder %s90, %s91
    %p102 = scmp.eq.s32.totalorder %s14, 0
    %p103 = por %p101, %p102
    %p104 = scmp.ne.s32.totalorder %s90, %s91
    %p105 = scmp.eq.s32.totalorder %s15, 1
    %p106 = por %p104, %p105
    %p108 = scmp.ne.s32.totalorder %s91, %s107
    %p109 = scmp.eq.s32.totalorder %s15, 0
    %p110 = por %p108, %p109
    %p111 = scmp.le.s32.totalorder 1, %s9
    %p112 = scmp.lt.s32.totalorder %s9, 3
    %p113 = pnand %p111, %p112
    %p114 = pneg %p113
    // Predicated region
    $region9: #{swin_module_forward.9} parent=5 // pred_check
      _
    $region10: #{swin_module_forward.9} parent=5 // pred_check_branch
      %116 = sbr.rel (%p113) target = $region12
    $region11: #{swin_module_forward.9} parent=5 // pred_region
      %s117 = ssub.s32 %s9, 1
      // Predicated region
      $region13: #{swin_module_forward.9} parent=11 // pred_check
        %p118 = pneg %p56
      $region14: #{swin_module_forward.9} parent=11 // pred_check_branch
        %120 = sbr.rel (%p118) target = $region16
      $region15: #{swin_module_forward.9} parent=11 // pred_region
        _
      $region16: #{swin_module_forward.9} parent=11 // pred_fallthru
        _
      // Predicated region
      $region17: #{swin_module_forward.9} parent=11 // pred_check
        %p121 = pneg %p77
      $region18: #{swin_module_forward.9} parent=11 // pred_check_branch
        %123 = sbr.rel (%p121) target = $region20
      $region19: #{swin_module_forward.9} parent=11 // pred_region
        _
      $region20: #{swin_module_forward.9} parent=11 // pred_fallthru
        _
    $region12: #{swin_module_forward.9} parent=5 // pred_fallthru
      _
    %p124 = scmp.lt.s32.totalorder %s9, 2
    // Predicated region
    $region21: #{swin_module_forward.9} parent=5 // pred_check
      %p125 = pneg %p124
    $region22: #{swin_module_forward.9} parent=5 // pred_check_branch
      %127 = sbr.rel (%p125) target = $region24
    $region23: #{swin_module_forward.9} parent=5 // pred_region
      // Predicated region
      $region25: #{swin_module_forward.9} parent=23 // pred_check
        %p128 = pneg %p29
      $region26: #{swin_module_forward.9} parent=23 // pred_check_branch
        %130 = sbr.rel (%p128) target = $region28
      $region27: #{swin_module_forward.9} parent=23 // pred_region
        %s131 = smul.u32 8, %s9
        %p132 = scmp.lt.s32.totalorder %s131, 15
        %s133 = scalar_select %p132, %s131, 15
        %s134 = smul.addr %s133, 8
        %s135 = scalar_lea.vmem %s0, %s134
        %s136 = smul.u32 8, %s9
      $region28: #{swin_module_forward.9} parent=23 // pred_fallthru
        _
    $region24: #{swin_module_forward.9} parent=5 // pred_fallthru
      _
    %p137 = scmp.le.s32.totalorder 1, %s9
    %p138 = scmp.lt.s32.totalorder %s9, 3
    %p139 = pnand %p137, %p138
    %p140 = pneg %p139
    // Predicated region
    $region29: #{swin_module_forward.9} parent=5 // pred_check
      _
    $region30: #{swin_module_forward.9} parent=5 // pred_check_branch
      %142 = sbr.rel (%p139) target = $region32
    $region31: #{swin_module_forward.9} parent=5 // pred_region
      %s143 = ssub.s32 %s9, 1
      %s144 = smul.u32 8, %s14
      %p145 = scmp.lt.s32.totalorder %s144, 15
      %s146 = scalar_select %p145, %s144, 15
      %s147 = smul.addr %s146, 8
      %s148 = scalar_lea.vmem %s0, %s147
      %p149 = pneg %p35
      %p150 = pneg %p32
      %p151 = pneg %p56
      %p152 = pneg %p53
      %p153 = pneg %p77
      %p154 = pneg %p74
      %p155 = pneg %p103
      %p156 = pneg %p100
      %s157 = smul.u32 8, %s14
      %p158 = scmp.lt.s32.totalorder %s157, 15
      %s159 = scalar_select %p158, %s157, 15
      %s160 = smul.addr %s159, 8
      %s161 = scalar_lea.vmem %s3, %s160
      %s162 = smul.u32 8, %s14
      %p163 = scmp.lt.s32.totalorder %s162, 15
      %s164 = scalar_select %p163, %s162, 15
      %s165 = smul.addr %s164, 8
      %s166 = scalar_lea.vmem %s0, %s165
      %s167 = smul.u32 8, %s14
      %s168 = smul.u32 8, %s14
      %p169 = scmp.lt.s32.totalorder %s168, 15
      %s170 = scalar_select %p169, %s168, 15
      %s171 = smul.addr %s170, 8
      %s172 = scalar_lea.vmem %s3, %s171
      %s173 = smul.u32 8, %s14
      %v175 = vld [vmem:[%s166] sm:$0xff]
      %v176 = vld [vmem:[%s166 + $0x8] sm:$0xff]
      %v177 = vld [vmem:[%s166 + $0x10] sm:$0xff]
      %v178 = vld [vmem:[%s166 + $0x18] sm:$0xff]
      %v179 = vld [vmem:[%s166 + $0x20] sm:$0xff]
      %v180 = vld [vmem:[%s166 + $0x28] sm:$0xff]
      %v181 = vld [vmem:[%s166 + $0x30] sm:$0xff]
      %v182 = vld [vmem:[%s166 + $0x38] sm:$0xff]
      %v183 = vpack.c.bf16 %v176, %v175
      %v184 = vpack.c.bf16 %v178, %v177
      %v185 = vpack.c.bf16 %v180, %v179
      %v186 = vpack.c.bf16 %v182, %v181
      %v187 = vld [vmem:[%s1] sm:$0xff]
      %v188 = vld [vmem:[%s1 + $0x8] sm:$0xff]
      %v189 = vpack.c.bf16 %v188, %v187
      %v190 = vld [vmem:[%s2] sm:$0x1]
      %v192 = vlaneseq
      %v193 = vshrl.u32 %v192, 7
      %v194 = vsub.s32 0, %v193
      %v195 = vrot.slane %v190, %v194
      %vm197 = vcmask 130048
      %v199 = vsel %vm197, %v183, 0
      %v202 = vsel %vm197, %v184, 0
      %v205 = vsel %vm197, %v185, 0
      %v208 = vsel %vm197, %v186, 0
      %210 = vmatprep.subr.bf16.mxu0 0
      %211 = vmatpush1.bf16.msra.mxu0 %v189
      %212 = vmatprep.subr.bf16.mxu0 0
      %213 = vmatpush1.bf16.msra.mxu0 0
      %214 = vmatprep.subr.bf16.mxu0 0
      %215 = vmatpush1.bf16.msra.mxu0 0
      %216 = vmatprep.subr.bf16.mxu0 0
      %217 = vmatpush1.bf16.msra.mxu0 0
      %218 = vmatprep.subr.bf16.mxu0 0
      %219 = vmatpush1.bf16.msra.mxu0 0
      %220 = vmatprep.subr.bf16.mxu0 0
      %221 = vmatpush1.bf16.msra.mxu0 0
      %222 = vmatprep.subr.bf16.mxu0 0
      %223 = vmatpush1.bf16.msra.mxu0 0
      %224 = vmatprep.subr.bf16.mxu0 0
      %225 = vmatpush1.bf16.msra.mxu0 0
      %226 = vmatprep.subr.bf16.mxu0 0
      %227 = vmatpush1.bf16.msra.mxu0 0
      %228 = vmatprep.subr.bf16.mxu0 0
      %229 = vmatpush1.bf16.msra.mxu0 0
      %230 = vmatprep.subr.bf16.mxu0 0
      %231 = vmatpush1.bf16.msra.mxu0 0
      %232 = vmatprep.subr.bf16.mxu0 0
      %233 = vmatpush1.bf16.msra.mxu0 0
      %234 = vmatprep.subr.bf16.mxu0 0
      %235 = vmatpush1.bf16.msra.mxu0 0
      %236 = vmatprep.subr.bf16.mxu0 0
      %237 = vmatpush1.bf16.msra.mxu0 0
      %238 = vmatprep.subr.bf16.mxu0 0
      %239 = vmatpush1.bf16.msra.mxu0 0
      %240 = vmatprep.subr.bf16.mxu0 0
      %241 = vmatpush1.bf16.msra.mxu0 0
      %242 = vmatprep.mubr.bf16.mxu0 0
      %243 = vmatmul.mubr.bf16.gmra.mrb[0].mxu0 %v199
      %v244 = vpop.f32.mrb[0].mxu0
      %v245 = vadd.f32 %v195, %v244
      %v246 = vpop.f32.mrb[0].mxu0
      %v247 = vpop.f32.mrb[0].mxu0
      %v248 = vadd.f32 %v195, %v247
      %v249 = vpop.f32.mrb[0].mxu0
      %250 = vmatprep.mubr.bf16.mxu0 0
      %251 = vmatmul.mubr.bf16.gmra.mrb[0].mxu0 %v202
      %v252 = vpop.f32.mrb[0].mxu0
      %v253 = vadd.f32 %v195, %v252
      %v254 = vpop.f32.mrb[0].mxu0
      %v255 = vpop.f32.mrb[0].mxu0
      %v256 = vadd.f32 %v195, %v255
      %v257 = vpop.f32.mrb[0].mxu0
      %258 = vmatprep.mubr.bf16.mxu0 0
      %259 = vmatmul.mubr.bf16.gmra.mrb[0].mxu0 %v205
      %v260 = vpop.f32.mrb[0].mxu0
      %v261 = vadd.f32 %v195, %v260
      %v262 = vpop.f32.mrb[0].mxu0
      %v263 = vpop.f32.mrb[0].mxu0
      %v264 = vadd.f32 %v195, %v263
      %v265 = vpop.f32.mrb[0].mxu0
      %266 = vmatprep.mubr.bf16.mxu0 0
      %267 = vmatmul.mubr.bf16.gmra.mrb[0].mxu0 %v208
      %v268 = vpop.f32.mrb[0].mxu0
      %v269 = vadd.f32 %v195, %v268
      %v270 = vpop.f32.mrb[0].mxu0
      %v271 = vpop.f32.mrb[0].mxu0
      %v272 = vadd.f32 %v195, %v271
      %v273 = vpop.f32.mrb[0].mxu0
      %274 = vdwg.mxu0
      %vm275 = vcmask 261120
      %276 = vst.msk [vmem:[%s172] sm:$0xff] %vm275, %v245
      %277 = vst.msk [vmem:[%s172 + $0x8] sm:$0xff] %vm275, %v248
      %278 = vst.msk [vmem:[%s172 + $0x10] sm:$0xff] %vm275, %v253
      %279 = vst.msk [vmem:[%s172 + $0x18] sm:$0xff] %vm275, %v256
      %280 = vst.msk [vmem:[%s172 + $0x20] sm:$0xff] %vm275, %v261
      %281 = vst.msk [vmem:[%s172 + $0x28] sm:$0xff] %vm275, %v264
      %282 = vst.msk [vmem:[%s172 + $0x30] sm:$0xff] %vm275, %v269
      %283 = vst.msk [vmem:[%s172 + $0x38] sm:$0xff] %vm275, %v272
      %s284 = smul.u32 8, %s14
      %p285 = scmp.lt.s32.totalorder %s284, 15
      %s286 = scalar_select %p285, %s284, 15
      %s287 = smul.addr %s286, 8
      %s288 = scalar_lea.vmem %s3, %s287
      // Predicated region
      $region33: #{swin_module_forward.9} parent=31 // pred_check
        %p289 = pneg %p100
      $region34: #{swin_module_forward.9} parent=31 // pred_check_branch
        %291 = sbr.rel (%p289) target = $region36
      $region35: #{swin_module_forward.9} parent=31 // pred_region
        %s292 = smul.u32 8, %s14
      $region36: #{swin_module_forward.9} parent=31 // pred_fallthru
        _
    $region32: #{swin_module_forward.9} parent=5 // pred_fallthru
      _
    %p293 = scmp.le.s32.totalorder 2, %s9
    // Predicated region
    $region37: #{swin_module_forward.9} parent=5 // pred_check
      %p294 = pneg %p293
    $region38: #{swin_module_forward.9} parent=5 // pred_check_branch
      %296 = sbr.rel (%p294) target = $region40
    $region39: #{swin_module_forward.9} parent=5 // pred_region
      %s297 = ssub.s32 %s9, 2
      // Predicated region
      $region41: #{swin_module_forward.9} parent=39 // pred_check
        %p298 = pneg %p106
      $region42: #{swin_module_forward.9} parent=39 // pred_check_branch
        %300 = sbr.rel (%p298) target = $region44
      $region43: #{swin_module_forward.9} parent=39 // pred_region
        %s301 = smul.u32 8, %s15
        %p302 = scmp.lt.s32.totalorder %s301, 15
        %s303 = scalar_select %p302, %s301, 15
        %s304 = smul.addr %s303, 8
        %s305 = scalar_lea.vmem %s3, %s304
      $region44: #{swin_module_forward.9} parent=39 // pred_fallthru
        _
    $region40: #{swin_module_forward.9} parent=5 // pred_fallthru
      _
  $region6: #{swin_module_forward.9} parent=0 // loop_footer
    %s13 = sadd.s32 1, %s9
  $region7: #{swin_module_forward.9} parent=0 // loop_footer_branch
    %8 = sbr.rel target = $region3
  $region8: #{swin_module_forward.9} parent=0 // loop_exit
    _

// kernel: swin_module_forward.10
$region0: #{swin_module_forward.10}
  #allocation0 [shape = 'u32[]', space=smem, size = 0x4, offset = 0x4, fixed_abs, tag = 'smem constant byte address 0x4 - core index']
  #allocation1 [shape = 'u32[144,128]{1,0:T(1,128)}', space=vmem, size = 0x12000, scoped, tag = 'internal scratch']
  %s0 = inlined_call_operand.vmem [shape: f32[128,32], index: 0, kind: input, shape index: {}]
  %s1 = inlined_call_operand.vmem [shape: f32[1,32], index: 1, kind: input, shape index: {}]
  %s2 = inlined_call_operand.vmem [shape: f32[1,32], index: 2, kind: input, shape index: {}]
  %s3 = inlined_call_operand.vmem [shape: f32[32,96], index: 3, kind: input, shape index: {}]
  %s4 = inlined_call_operand.vmem [shape: f32[128,96], index: 4, kind: output, shape index: {}]
  %s5 = sld [smem:[#allocation0]]
  $region49: #{swin_module_forward.10} parent=0
    _
  %s7 = ssub.s32 1, %s5
  %s8 = scalar_select 0, %s7, %s5
  loop: start=0, step=1, limit=4
  $region2: #{swin_module_forward.10} parent=0 // loop_pre_header
    _
  $region3: #{swin_module_forward.10} parent=0 // loop_header
    %s10 = sphi 0, %s14
    %p11 = scmp.ge.s32.totalorder %s10, 4
    %s20 = sphi 0, %s22
    %s23 = sphi 0, %s20
    %s24 = sphi 0, %s23
    %s40 = sphi 0, %s24
    %s44 = sphi 0, %s44
    %s46 = sphi 0, %s44
    %s47 = sphi 0, %s46
    %s61 = sphi 0, %s47
    %s65 = sphi 0, %s65
    %s67 = sphi 0, %s65
    %s68 = sphi 0, %s67
    %s82 = sphi 0, %s68
    %s86 = sphi 0, %s86
    %s88 = sphi 0, %s86
    %s89 = sphi 0, %s88
    %s103 = sphi 0, %s89
    %s109 = sphi 0, %s111
    %s112 = sphi 0, %s109
    %s113 = sphi 0, %s112
    %s129 = sphi 0, %s113
  $region4: #{swin_module_forward.10} parent=0 // loop_header_branch
    %13 = sbr.rel (%p11) target = $region8
  $region5: #{swin_module_forward.10} parent=0 // loop_body
    %s15 = ssub.s32 %s10, 1
    %s16 = ssub.s32 %s10, 2
    %s17 = sadd.s32 %s10, 1
    %s18 = ssub.s32 %s10, %s17
    %p19 = scmp.eq.s32.totalorder %s18, 0
    %s21 = sadd.s32 %s20, 1
    %s22 = scalar_select %p19, %s20, %s21
    %p25 = pneg %p19
    %p26 = scmp.eq.s32.totalorder %s10, 1
    %p27 = por %p25, %p26
    %p28 = scmp.ne.s32.totalorder %s20, %s23
    %p29 = scmp.eq.s32.totalorder %s10, 0
    %p30 = por %p28, %p29
    %p31 = scmp.ne.s32.totalorder %s20, %s23
    %p32 = scmp.eq.s32.totalorder %s15, 1
    %p33 = por %p31, %p32
    %p34 = scmp.ne.s32.totalorder %s23, %s24
    %p35 = scmp.eq.s32.totalorder %s15, 0
    %p36 = por %p34, %p35
    %p37 = scmp.ne.s32.totalorder %s23, %s24
    %p38 = scmp.eq.s32.totalorder %s16, 1
    %p39 = por %p37, %p38
    %p41 = scmp.ne.s32.totalorder %s24, %s40
    %p42 = scmp.eq.s32.totalorder %s16, 0
    %p43 = por %p41, %p42
    %s45 = sadd.s32 %s44, 1
    %p48 = scmp.eq.s32.totalorder %s10, 1
    %p49 = scmp.ne.s32.totalorder %s44, %s46
    %p50 = scmp.eq.s32.totalorder %s10, 0
    %p51 = por %p49, %p50
    %p52 = scmp.ne.s32.totalorder %s44, %s46
    %p53 = scmp.eq.s32.totalorder %s15, 1
    %p54 = por %p52, %p53
    %p55 = scmp.ne.s32.totalorder %s46, %s47
    %p56 = scmp.eq.s32.totalorder %s15, 0
    %p57 = por %p55, %p56
    %p58 = scmp.ne.s32.totalorder %s46, %s47
    %p59 = scmp.eq.s32.totalorder %s16, 1
    %p60 = por %p58, %p59
    %p62 = scmp.ne.s32.totalorder %s47, %s61
    %p63 = scmp.eq.s32.totalorder %s16, 0
    %p64 = por %p62, %p63
    %s66 = sadd.s32 %s65, 1
    %p69 = scmp.eq.s32.totalorder %s10, 1
    %p70 = scmp.ne.s32.totalorder %s65, %s67
    %p71 = scmp.eq.s32.totalorder %s10, 0
    %p72 = por %p70, %p71
    %p73 = scmp.ne.s32.totalorder %s65, %s67
    %p74 = scmp.eq.s32.totalorder %s15, 1
    %p75 = por %p73, %p74
    %p76 = scmp.ne.s32.totalorder %s67, %s68
    %p77 = scmp.eq.s32.totalorder %s15, 0
    %p78 = por %p76, %p77
    %p79 = scmp.ne.s32.totalorder %s67, %s68
    %p80 = scmp.eq.s32.totalorder %s16, 1
    %p81 = por %p79, %p80
    %p83 = scmp.ne.s32.totalorder %s68, %s82
    %p84 = scmp.eq.s32.totalorder %s16, 0
    %p85 = por %p83, %p84
    %s87 = sadd.s32 %s86, 1
    %p90 = scmp.eq.s32.totalorder %s10, 1
    %p91 = scmp.ne.s32.totalorder %s86, %s88
    %p92 = scmp.eq.s32.totalorder %s10, 0
    %p93 = por %p91, %p92
    %p94 = scmp.ne.s32.totalorder %s86, %s88
    %p95 = scmp.eq.s32.totalorder %s15, 1
    %p96 = por %p94, %p95
    %p97 = scmp.ne.s32.totalorder %s88, %s89
    %p98 = scmp.eq.s32.totalorder %s15, 0
    %p99 = por %p97, %p98
    %p100 = scmp.ne.s32.totalorder %s88, %s89
    %p101 = scmp.eq.s32.totalorder %s16, 1
    %p102 = por %p100, %p101
    %p104 = scmp.ne.s32.totalorder %s89, %s103
    %p105 = scmp.eq.s32.totalorder %s16, 0
    %p106 = por %p104, %p105
    %s107 = ssub.s32 %s10, %s17
    %p108 = scmp.eq.s32.totalorder %s107, 0
    %s110 = sadd.s32 %s109, 1
    %s111 = scalar_select %p108, %s109, %s110
    %p114 = pneg %p108
    %p115 = scmp.eq.s32.totalorder %s10, 1
    %p116 = por %p114, %p115
    %p117 = scmp.ne.s32.totalorder %s109, %s112
    %p118 = scmp.eq.s32.totalorder %s10, 0
    %p119 = por %p117, %p118
    %p120 = scmp.ne.s32.totalorder %s109, %s112
    %p121 = scmp.eq.s32.totalorder %s15, 1
    %p122 = por %p120, %p121
    %p123 = scmp.ne.s32.totalorder %s112, %s113
    %p124 = scmp.eq.s32.totalorder %s15, 0
    %p125 = por %p123, %p124
    %p126 = scmp.ne.s32.totalorder %s112, %s113
    %p127 = scmp.eq.s32.totalorder %s16, 1
    %p128 = por %p126, %p127
    %p130 = scmp.ne.s32.totalorder %s113, %s129
    %p131 = scmp.eq.s32.totalorder %s16, 0
    %p132 = por %p130, %p131
    %p133 = scmp.le.s32.totalorder 1, %s10
    %p134 = scmp.lt.s32.totalorder %s10, 3
    %p135 = pnand %p133, %p134
    %p136 = pneg %p135
    // Predicated region
    $region9: #{swin_module_forward.10} parent=5 // pred_check
      _
    $region10: #{swin_module_forward.10} parent=5 // pred_check_branch
      %138 = sbr.rel (%p135) target = $region12
    $region11: #{swin_module_forward.10} parent=5 // pred_region
      %s139 = ssub.s32 %s10, 1
      // Predicated region
      $region13: #{swin_module_forward.10} parent=11 // pred_check
        %p140 = pneg %p57
      $region14: #{swin_module_forward.10} parent=11 // pred_check_branch
        %142 = sbr.rel (%p140) target = $region16
      $region15: #{swin_module_forward.10} parent=11 // pred_region
        _
      $region16: #{swin_module_forward.10} parent=11 // pred_fallthru
        _
      // Predicated region
      $region17: #{swin_module_forward.10} parent=11 // pred_check
        %p143 = pneg %p78
      $region18: #{swin_module_forward.10} parent=11 // pred_check_branch
        %145 = sbr.rel (%p143) target = $region20
      $region19: #{swin_module_forward.10} parent=11 // pred_region
        _
      $region20: #{swin_module_forward.10} parent=11 // pred_fallthru
        _
      // Predicated region
      $region21: #{swin_module_forward.10} parent=11 // pred_check
        %p146 = pneg %p99
      $region22: #{swin_module_forward.10} parent=11 // pred_check_branch
        %148 = sbr.rel (%p146) target = $region24
      $region23: #{swin_module_forward.10} parent=11 // pred_region
        _
      $region24: #{swin_module_forward.10} parent=11 // pred_fallthru
        _
    $region12: #{swin_module_forward.10} parent=5 // pred_fallthru
      _
    %p149 = scmp.lt.s32.totalorder %s10, 2
    // Predicated region
    $region25: #{swin_module_forward.10} parent=5 // pred_check
      %p150 = pneg %p149
    $region26: #{swin_module_forward.10} parent=5 // pred_check_branch
      %152 = sbr.rel (%p150) target = $region28
    $region27: #{swin_module_forward.10} parent=5 // pred_region
      // Predicated region
      $region29: #{swin_module_forward.10} parent=27 // pred_check
        %p153 = pneg %p30
      $region30: #{swin_module_forward.10} parent=27 // pred_check_branch
        %155 = sbr.rel (%p153) target = $region32
      $region31: #{swin_module_forward.10} parent=27 // pred_region
        %s156 = smul.u32 8, %s10
        %p157 = scmp.lt.s32.totalorder %s156, 15
        %s158 = scalar_select %p157, %s156, 15
        %s159 = smul.addr %s158, 8
        %s160 = scalar_lea.vmem %s0, %s159
        %s161 = smul.u32 8, %s10
      $region32: #{swin_module_forward.10} parent=27 // pred_fallthru
        _
    $region28: #{swin_module_forward.10} parent=5 // pred_fallthru
      _
    %p162 = scmp.le.s32.totalorder 1, %s10
    %p163 = scmp.lt.s32.totalorder %s10, 3
    %p164 = pnand %p162, %p163
    %p165 = pneg %p164
    // Predicated region
    $region33: #{swin_module_forward.10} parent=5 // pred_check
      _
    $region34: #{swin_module_forward.10} parent=5 // pred_check_branch
      %167 = sbr.rel (%p164) target = $region36
    $region35: #{swin_module_forward.10} parent=5 // pred_region
      %s168 = ssub.s32 %s10, 1
      %s169 = smul.u32 8, %s15
      %p170 = scmp.lt.s32.totalorder %s169, 15
      %s171 = scalar_select %p170, %s169, 15
      %s172 = smul.addr %s171, 8
      %s173 = scalar_lea.vmem %s0, %s172
      %p174 = pneg %p36
      %p175 = pneg %p33
      %p176 = pneg %p57
      %p177 = pneg %p54
      %p178 = pneg %p78
      %p179 = pneg %p75
      %p180 = pneg %p99
      %p181 = pneg %p96
      %p182 = pneg %p125
      %p183 = pneg %p122
      %s184 = smul.u32 8, %s15
      %p185 = scmp.lt.s32.totalorder %s184, 15
      %s186 = scalar_select %p185, %s184, 15
      %s187 = smul.addr %s186, 8
      %s188 = scalar_lea.vmem %s4, %s187
      %s189 = smul.u32 8, %s15
      %p190 = scmp.lt.s32.totalorder %s189, 15
      %s191 = scalar_select %p190, %s189, 15
      %s192 = smul.addr %s191, 8
      %s193 = scalar_lea.vmem %s0, %s192
      %s194 = smul.u32 8, %s15
      %s195 = smul.u32 8, %s15
      %p196 = scmp.lt.s32.totalorder %s195, 15
      %s197 = scalar_select %p196, %s195, 15
      %s198 = smul.addr %s197, 8
      %s199 = scalar_lea.vmem %s4, %s198
      %s200 = smul.u32 8, %s15
      %v202 = vld [vmem:[%s193] sm:$0xff]
      %v203 = vld [vmem:[%s193 + $0x8] sm:$0xff]
      %v204 = vld [vmem:[%s193 + $0x10] sm:$0xff]
      %v205 = vld [vmem:[%s193 + $0x18] sm:$0xff]
      %v206 = vld [vmem:[%s193 + $0x20] sm:$0xff]
      %v207 = vld [vmem:[%s193 + $0x28] sm:$0xff]
      %v208 = vld [vmem:[%s193 + $0x30] sm:$0xff]
      %v209 = vld [vmem:[%s193 + $0x38] sm:$0xff]
      %v210 = vld [vmem:[%s1] sm:$0x1]
      %v211 = vld [vmem:[%s2] sm:$0x1]
      %vm212 = vcmask 261120
      %v213 = vsel %vm212, %v202, 0.0
      %214 = vadd.xlane.f32.xlu0 %v213
      %v215 = vpop.xlane.xlu0 %214
      %v216 = vsel %vm212, %v203, 0.0
      %217 = vadd.xlane.f32.xlu0 %v216
      %v218 = vpop.xlane.xlu0 %217
      %v219 = vsel %vm212, %v204, 0.0
      %220 = vadd.xlane.f32.xlu0 %v219
      %v221 = vpop.xlane.xlu0 %220
      %v222 = vsel %vm212, %v205, 0.0
      %223 = vadd.xlane.f32.xlu0 %v222
      %v224 = vpop.xlane.xlu0 %223
      %v225 = vsel %vm212, %v206, 0.0
      %226 = vadd.xlane.f32.xlu0 %v225
      %v227 = vpop.xlane.xlu0 %226
      %v228 = vsel %vm212, %v207, 0.0
      %229 = vadd.xlane.f32.xlu0 %v228
      %v230 = vpop.xlane.xlu0 %229
      %v231 = vsel %vm212, %v208, 0.0
      %232 = vadd.xlane.f32.xlu0 %v231
      %v233 = vpop.xlane.xlu0 %232
      %v234 = vsel %vm212, %v209, 0.0
      %235 = vadd.xlane.f32.xlu0 %v234
      %v236 = vpop.xlane.xlu0 %235
      %v237 = vrcp.pop 32.0
      %v238 = vmul.f32 %v215, %v237
      %v239 = vmul.f32 %v218, %v237
      %v240 = vmul.f32 %v221, %v237
      %v241 = vmul.f32 %v224, %v237
      %v242 = vmul.f32 %v227, %v237
      %v243 = vmul.f32 %v230, %v237
      %v244 = vmul.f32 %v233, %v237
      %v245 = vmul.f32 %v236, %v237
      %v246 = vsub.f32 %v202, %v238
      %v247 = vsub.f32 %v203, %v239
      %v248 = vsub.f32 %v204, %v240
      %v249 = vsub.f32 %v205, %v241
      %v250 = vsub.f32 %v206, %v242
      %v251 = vsub.f32 %v207, %v243
      %v252 = vsub.f32 %v208, %v244
      %v253 = vsub.f32 %v209, %v245
      %v254 = vmul.f32 %v246, %v246
      %v255 = vmul.f32 %v247, %v247
      %v256 = vmul.f32 %v248, %v248
      %v257 = vmul.f32 %v249, %v249
      %v258 = vmul.f32 %v250, %v250
      %v259 = vmul.f32 %v251, %v251
      %v260 = vmul.f32 %v252, %v252
      %v261 = vmul.f32 %v253, %v253
      %v262 = vsel %vm212, %v254, 0.0
      %263 = vadd.xlane.f32.xlu0 %v262
      %v264 = vpop.xlane.xlu0 %263
      %v265 = vsel %vm212, %v255, 0.0
      %266 = vadd.xlane.f32.xlu0 %v265
      %v267 = vpop.xlane.xlu0 %266
      %v268 = vsel %vm212, %v256, 0.0
      %269 = vadd.xlane.f32.xlu0 %v268
      %v270 = vpop.xlane.xlu0 %269
      %v271 = vsel %vm212, %v257, 0.0
      %272 = vadd.xlane.f32.xlu0 %v271
      %v273 = vpop.xlane.xlu0 %272
      %v274 = vsel %vm212, %v258, 0.0
      %275 = vadd.xlane.f32.xlu0 %v274
      %v276 = vpop.xlane.xlu0 %275
      %v277 = vsel %vm212, %v259, 0.0
      %278 = vadd.xlane.f32.xlu0 %v277
      %v279 = vpop.xlane.xlu0 %278
      %v280 = vsel %vm212, %v260, 0.0
      %281 = vadd.xlane.f32.xlu0 %v280
      %v282 = vpop.xlane.xlu0 %281
      %v283 = vsel %vm212, %v261, 0.0
      %284 = vadd.xlane.f32.xlu0 %v283
      %v285 = vpop.xlane.xlu0 %284
      %v286 = vmul.f32 %v264, %v237
      %v287 = vmul.f32 %v267, %v237
      %v288 = vmul.f32 %v270, %v237
      %v289 = vmul.f32 %v273, %v237
      %v290 = vmul.f32 %v276, %v237
      %v291 = vmul.f32 %v279, %v237
      %v292 = vmul.f32 %v282, %v237
      %v293 = vmul.f32 %v285, %v237
      %v294 = vadd.f32 %v286, 1e-05
      %v295 = vadd.f32 %v287, 1e-05
      %v296 = vadd.f32 %v288, 1e-05
      %v297 = vadd.f32 %v289, 1e-05
      %v298 = vadd.f32 %v290, 1e-05
      %v299 = vadd.f32 %v291, 1e-05
      %v300 = vadd.f32 %v292, 1e-05
      %v301 = vadd.f32 %v293, 1e-05
      %v302 = vrsqrt.pop %v294
      %v303 = vrsqrt.pop %v295
      %v304 = vrsqrt.pop %v296
      %v305 = vrsqrt.pop %v297
      %v306 = vrsqrt.pop %v298
      %v307 = vrsqrt.pop %v299
      %v308 = vrsqrt.pop %v300
      %v309 = vrsqrt.pop %v301
      %v310 = vmul.f32 %v246, %v302
      %v311 = vmul.f32 %v247, %v303
      %v312 = vmul.f32 %v248, %v304
      %v313 = vmul.f32 %v249, %v305
      %v314 = vmul.f32 %v250, %v306
      %v315 = vmul.f32 %v251, %v307
      %v316 = vmul.f32 %v252, %v308
      %v317 = vmul.f32 %v253, %v309
      %v319 = vlaneseq
      %v320 = vshrl.u32 %v319, 7
      %v321 = vsub.s32 0, %v320
      %v322 = vrot.slane %v210, %v321
      %v324 = vmul.f32 %v310, %v322
      %v325 = vmul.f32 %v311, %v322
      %v326 = vmul.f32 %v312, %v322
      %v327 = vmul.f32 %v313, %v322
      %v328 = vmul.f32 %v314, %v322
      %v329 = vmul.f32 %v315, %v322
      %v330 = vmul.f32 %v316, %v322
      %v331 = vmul.f32 %v317, %v322
      %v333 = vlaneseq
      %v334 = vshrl.u32 %v333, 7
      %v335 = vsub.s32 0, %v334
      %v336 = vrot.slane %v211, %v335
      %v338 = vadd.f32 %v324, %v336
      %v339 = vadd.f32 %v325, %v336
      %v340 = vadd.f32 %v326, %v336
      %v341 = vadd.f32 %v327, %v336
      %v342 = vadd.f32 %v328, %v336
      %v343 = vadd.f32 %v329, %v336
      %v344 = vadd.f32 %v330, %v336
      %v345 = vadd.f32 %v331, %v336
      %v346 = vpack.c.bf16 %v339, %v338
      %v347 = vpack.c.bf16 %v341, %v340
      %v348 = vpack.c.bf16 %v343, %v342
      %v349 = vpack.c.bf16 %v345, %v344
      %v350 = vld [vmem:[%s3] sm:$0xff]
      %v351 = vld [vmem:[%s3 + $0x8] sm:$0xff]
      %v352 = vld [vmem:[%s3 + $0x10] sm:$0xff]
      %v353 = vld [vmem:[%s3 + $0x18] sm:$0xff]
      %v354 = vpack.c.bf16 %v351, %v350
      %v355 = vpack.c.bf16 %v353, %v352
      %v357 = vsel %vm212, %v346, 0
      %v360 = vsel %vm212, %v347, 0
      %v363 = vsel %vm212, %v348, 0
      %v366 = vsel %vm212, %v349, 0
      %368 = vmatprep.subr.bf16.mxu0 0
      %369 = vmatpush1.bf16.msra.mxu0 %v354
      %370 = vmatprep.subr.bf16.mxu0 0
      %371 = vmatpush1.bf16.msra.mxu0 %v355
      %372 = vmatprep.subr.bf16.mxu0 0
      %373 = vmatpush1.bf16.msra.mxu0 0
      %374 = vmatprep.subr.bf16.mxu0 0
      %375 = vmatpush1.bf16.msra.mxu0 0
      %376 = vmatprep.subr.bf16.mxu0 0
      %377 = vmatpush1.bf16.msra.mxu0 0
      %378 = vmatprep.subr.bf16.mxu0 0
      %379 = vmatpush1.bf16.msra.mxu0 0
      %380 = vmatprep.subr.bf16.mxu0 0
      %381 = vmatpush1.bf16.msra.mxu0 0
      %382 = vmatprep.subr.bf16.mxu0 0
      %383 = vmatpush1.bf16.msra.mxu0 0
      %384 = vmatprep.subr.bf16.mxu0 0
      %385 = vmatpush1.bf16.msra.mxu0 0
      %386 = vmatprep.subr.bf16.mxu0 0
      %387 = vmatpush1.bf16.msra.mxu0 0
      %388 = vmatprep.subr.bf16.mxu0 0
      %389 = vmatpush1.bf16.msra.mxu0 0
      %390 = vmatprep.subr.bf16.mxu0 0
      %391 = vmatpush1.bf16.msra.mxu0 0
      %392 = vmatprep.subr.bf16.mxu0 0
      %393 = vmatpush1.bf16.msra.mxu0 0
      %394 = vmatprep.subr.bf16.mxu0 0
      %395 = vmatpush1.bf16.msra.mxu0 0
      %396 = vmatprep.subr.bf16.mxu0 0
      %397 = vmatpush1.bf16.msra.mxu0 0
      %398 = vmatprep.subr.bf16.mxu0 0
      %399 = vmatpush1.bf16.msra.mxu0 0
      %400 = vmatprep.mubr.bf16.mxu0 0
      %401 = vmatmul.mubr.bf16.gmra.mrb[0].mxu0 %v357
      %v402 = vpop.f32.mrb[0].mxu0
      %v403 = vadd.f32 0.0, %v402
      %v404 = vpop.f32.mrb[0].mxu0
      %v405 = vpop.f32.mrb[0].mxu0
      %v406 = vadd.f32 0.0, %v405
      %v407 = vpop.f32.mrb[0].mxu0
      %408 = vmatprep.mubr.bf16.mxu0 0
      %409 = vmatmul.mubr.bf16.gmra.mrb[0].mxu0 %v360
      %v410 = vpop.f32.mrb[0].mxu0
      %v411 = vadd.f32 0.0, %v410
      %v412 = vpop.f32.mrb[0].mxu0
      %v413 = vpop.f32.mrb[0].mxu0
      %v414 = vadd.f32 0.0, %v413
      %v415 = vpop.f32.mrb[0].mxu0
      %416 = vmatprep.mubr.bf16.mxu0 0
      %417 = vmatmul.mubr.bf16.gmra.mrb[0].mxu0 %v363
      %v418 = vpop.f32.mrb[0].mxu0
      %v419 = vadd.f32 0.0, %v418
      %v420 = vpop.f32.mrb[0].mxu0
      %v421 = vpop.f32.mrb[0].mxu0
      %v422 = vadd.f32 0.0, %v421
      %v423 = vpop.f32.mrb[0].mxu0
      %424 = vmatprep.mubr.bf16.mxu0 0
      %425 = vmatmul.mubr.bf16.gmra.mrb[0].mxu0 %v366
      %v426 = vpop.f32.mrb[0].mxu0
      %v427 = vadd.f32 0.0, %v426
      %v428 = vpop.f32.mrb[0].mxu0
      %v429 = vpop.f32.mrb[0].mxu0
      %v430 = vadd.f32 0.0, %v429
      %v431 = vpop.f32.mrb[0].mxu0
      %432 = vdwg.mxu0
      %vm433 = vcmask 785408
      %434 = vst.msk [vmem:[%s199] sm:$0xff] %vm433, %v403
      %435 = vst.msk [vmem:[%s199 + $0x8] sm:$0xff] %vm433, %v406
      %436 = vst.msk [vmem:[%s199 + $0x10] sm:$0xff] %vm433, %v411
      %437 = vst.msk [vmem:[%s199 + $0x18] sm:$0xff] %vm433, %v414
      %438 = vst.msk [vmem:[%s199 + $0x20] sm:$0xff] %vm433, %v419
      %439 = vst.msk [vmem:[%s199 + $0x28] sm:$0xff] %vm433, %v422
      %440 = vst.msk [vmem:[%s199 + $0x30] sm:$0xff] %vm433, %v427
      %441 = vst.msk [vmem:[%s199 + $0x38] sm:$0xff] %vm433, %v430
      %s442 = smul.u32 8, %s15
      %p443 = scmp.lt.s32.totalorder %s442, 15
      %s444 = scalar_select %p443, %s442, 15
      %s445 = smul.addr %s444, 8
      %s446 = scalar_lea.vmem %s4, %s445
      // Predicated region
      $region37: #{swin_module_forward.10} parent=35 // pred_check
        %p447 = pneg %p122
      $region38: #{swin_module_forward.10} parent=35 // pred_check_branch
        %449 = sbr.rel (%p447) target = $region40
      $region39: #{swin_module_forward.10} parent=35 // pred_region
        %s450 = smul.u32 8, %s15
      $region40: #{swin_module_forward.10} parent=35 // pred_fallthru
        _
    $region36: #{swin_module_forward.10} parent=5 // pred_fallthru
      _
    %p451 = scmp.le.s32.totalorder 2, %s10
    // Predicated region
    $region41: #{swin_module_forward.10} parent=5 // pred_check
      %p452 = pneg %p451
    $region42: #{swin_module_forward.10} parent=5 // pred_check_branch
      %454 = sbr.rel (%p452) target = $region44
    $region43: #{swin_module_forward.10} parent=5 // pred_region
      %s455 = ssub.s32 %s10, 2
      // Predicated region
      $region45: #{swin_module_forward.10} parent=43 // pred_check
        %p456 = pneg %p128
      $region46: #{swin_module_forward.10} parent=43 // pred_check_branch
        %458 = sbr.rel (%p456) target = $region48
      $region47: #{swin_module_forward.10} parent=43 // pred_region
        %s459 = smul.u32 8, %s16
        %p460 = scmp.lt.s32.totalorder %s459, 15
        %s461 = scalar_select %p460, %s459, 15
        %s462 = smul.addr %s461, 8
        %s463 = scalar_lea.vmem %s4, %s462
      $region48: #{swin_module_forward.10} parent=43 // pred_fallthru
        _
    $region44: #{swin_module_forward.10} parent=5 // pred_fallthru
      _
  $region6: #{swin_module_forward.10} parent=0 // loop_footer
    %s14 = sadd.s32 1, %s10
  $region7: #{swin_module_forward.10} parent=0 // loop_footer_branch
    %9 = sbr.rel target = $region3
  $region8: #{swin_module_forward.10} parent=0 // loop_exit
    _

// kernel: swin_module_forward.12
$region0: #{swin_module_forward.12}
  #allocation0 [shape = 'u32[]', space=smem, size = 0x4, offset = 0x4, fixed_abs, tag = 'smem constant byte address 0x4 - core index']
  #allocation1 [shape = 'u32[144,128]{1,0:T(1,128)}', space=vmem, size = 0x12000, scoped, tag = 'internal scratch']
  %s0 = inlined_call_operand.vmem [shape: f32[128,32], index: 0, kind: input, shape index: {}]
  %s1 = inlined_call_operand.vmem [shape: f32[32,32], index: 1, kind: input, shape index: {}]
  %s2 = inlined_call_operand.vmem [shape: f32[1,32], index: 2, kind: input, shape index: {}]
  %s3 = inlined_call_operand.vmem [shape: f32[128,32], index: 3, kind: input, shape index: {}]
  %s4 = inlined_call_operand.vmem [shape: f32[128,32], index: 4, kind: output, shape index: {}]
  %s5 = sld [smem:[#allocation0]]
  $region49: #{swin_module_forward.12} parent=0
    _
  %s7 = ssub.s32 1, %s5
  %s8 = scalar_select 0, %s7, %s5
  loop: start=0, step=1, limit=4
  $region2: #{swin_module_forward.12} parent=0 // loop_pre_header
    _
  $region3: #{swin_module_forward.12} parent=0 // loop_header
    %s10 = sphi 0, %s14
    %p11 = scmp.ge.s32.totalorder %s10, 4
    %s20 = sphi 0, %s22
    %s23 = sphi 0, %s20
    %s24 = sphi 0, %s23
    %s40 = sphi 0, %s24
    %s44 = sphi 0, %s44
    %s46 = sphi 0, %s44
    %s47 = sphi 0, %s46
    %s61 = sphi 0, %s47
    %s65 = sphi 0, %s65
    %s67 = sphi 0, %s65
    %s68 = sphi 0, %s67
    %s82 = sphi 0, %s68
    %s88 = sphi 0, %s90
    %s91 = sphi 0, %s88
    %s92 = sphi 0, %s91
    %s108 = sphi 0, %s92
    %s114 = sphi 0, %s116
    %s117 = sphi 0, %s114
    %s118 = sphi 0, %s117
    %s134 = sphi 0, %s118
  $region4: #{swin_module_forward.12} parent=0 // loop_header_branch
    %13 = sbr.rel (%p11) target = $region8
  $region5: #{swin_module_forward.12} parent=0 // loop_body
    %s15 = ssub.s32 %s10, 1
    %s16 = ssub.s32 %s10, 2
    %s17 = sadd.s32 %s10, 1
    %s18 = ssub.s32 %s10, %s17
    %p19 = scmp.eq.s32.totalorder %s18, 0
    %s21 = sadd.s32 %s20, 1
    %s22 = scalar_select %p19, %s20, %s21
    %p25 = pneg %p19
    %p26 = scmp.eq.s32.totalorder %s10, 1
    %p27 = por %p25, %p26
    %p28 = scmp.ne.s32.totalorder %s20, %s23
    %p29 = scmp.eq.s32.totalorder %s10, 0
    %p30 = por %p28, %p29
    %p31 = scmp.ne.s32.totalorder %s20, %s23
    %p32 = scmp.eq.s32.totalorder %s15, 1
    %p33 = por %p31, %p32
    %p34 = scmp.ne.s32.totalorder %s23, %s24
    %p35 = scmp.eq.s32.totalorder %s15, 0
    %p36 = por %p34, %p35
    %p37 = scmp.ne.s32.totalorder %s23, %s24
    %p38 = scmp.eq.s32.totalorder %s16, 1
    %p39 = por %p37, %p38
    %p41 = scmp.ne.s32.totalorder %s24, %s40
    %p42 = scmp.eq.s32.totalorder %s16, 0
    %p43 = por %p41, %p42
    %s45 = sadd.s32 %s44, 1
    %p48 = scmp.eq.s32.totalorder %s10, 1
    %p49 = scmp.ne.s32.totalorder %s44, %s46
    %p50 = scmp.eq.s32.totalorder %s10, 0
    %p51 = por %p49, %p50
    %p52 = scmp.ne.s32.totalorder %s44, %s46
    %p53 = scmp.eq.s32.totalorder %s15, 1
    %p54 = por %p52, %p53
    %p55 = scmp.ne.s32.totalorder %s46, %s47
    %p56 = scmp.eq.s32.totalorder %s15, 0
    %p57 = por %p55, %p56
    %p58 = scmp.ne.s32.totalorder %s46, %s47
    %p59 = scmp.eq.s32.totalorder %s16, 1
    %p60 = por %p58, %p59
    %p62 = scmp.ne.s32.totalorder %s47, %s61
    %p63 = scmp.eq.s32.totalorder %s16, 0
    %p64 = por %p62, %p63
    %s66 = sadd.s32 %s65, 1
    %p69 = scmp.eq.s32.totalorder %s10, 1
    %p70 = scmp.ne.s32.totalorder %s65, %s67
    %p71 = scmp.eq.s32.totalorder %s10, 0
    %p72 = por %p70, %p71
    %p73 = scmp.ne.s32.totalorder %s65, %s67
    %p74 = scmp.eq.s32.totalorder %s15, 1
    %p75 = por %p73, %p74
    %p76 = scmp.ne.s32.totalorder %s67, %s68
    %p77 = scmp.eq.s32.totalorder %s15, 0
    %p78 = por %p76, %p77
    %p79 = scmp.ne.s32.totalorder %s67, %s68
    %p80 = scmp.eq.s32.totalorder %s16, 1
    %p81 = por %p79, %p80
    %p83 = scmp.ne.s32.totalorder %s68, %s82
    %p84 = scmp.eq.s32.totalorder %s16, 0
    %p85 = por %p83, %p84
    %s86 = ssub.s32 %s10, %s17
    %p87 = scmp.eq.s32.totalorder %s86, 0
    %s89 = sadd.s32 %s88, 1
    %s90 = scalar_select %p87, %s88, %s89
    %p93 = pneg %p87
    %p94 = scmp.eq.s32.totalorder %s10, 1
    %p95 = por %p93, %p94
    %p96 = scmp.ne.s32.totalorder %s88, %s91
    %p97 = scmp.eq.s32.totalorder %s10, 0
    %p98 = por %p96, %p97
    %p99 = scmp.ne.s32.totalorder %s88, %s91
    %p100 = scmp.eq.s32.totalorder %s15, 1
    %p101 = por %p99, %p100
    %p102 = scmp.ne.s32.totalorder %s91, %s92
    %p103 = scmp.eq.s32.totalorder %s15, 0
    %p104 = por %p102, %p103
    %p105 = scmp.ne.s32.totalorder %s91, %s92
    %p106 = scmp.eq.s32.totalorder %s16, 1
    %p107 = por %p105, %p106
    %p109 = scmp.ne.s32.totalorder %s92, %s108
    %p110 = scmp.eq.s32.totalorder %s16, 0
    %p111 = por %p109, %p110
    %s112 = ssub.s32 %s10, %s17
    %p113 = scmp.eq.s32.totalorder %s112, 0
    %s115 = sadd.s32 %s114, 1
    %s116 = scalar_select %p113, %s114, %s115
    %p119 = pneg %p113
    %p120 = scmp.eq.s32.totalorder %s10, 1
    %p121 = por %p119, %p120
    %p122 = scmp.ne.s32.totalorder %s114, %s117
    %p123 = scmp.eq.s32.totalorder %s10, 0
    %p124 = por %p122, %p123
    %p125 = scmp.ne.s32.totalorder %s114, %s117
    %p126 = scmp.eq.s32.totalorder %s15, 1
    %p127 = por %p125, %p126
    %p128 = scmp.ne.s32.totalorder %s117, %s118
    %p129 = scmp.eq.s32.totalorder %s15, 0
    %p130 = por %p128, %p129
    %p131 = scmp.ne.s32.totalorder %s117, %s118
    %p132 = scmp.eq.s32.totalorder %s16, 1
    %p133 = por %p131, %p132
    %p135 = scmp.ne.s32.totalorder %s118, %s134
    %p136 = scmp.eq.s32.totalorder %s16, 0
    %p137 = por %p135, %p136
    %p138 = scmp.le.s32.totalorder 1, %s10
    %p139 = scmp.lt.s32.totalorder %s10, 3
    %p140 = pnand %p138, %p139
    %p141 = pneg %p140
    // Predicated region
    $region9: #{swin_module_forward.12} parent=5 // pred_check
      _
    $region10: #{swin_module_forward.12} parent=5 // pred_check_branch
      %143 = sbr.rel (%p140) target = $region12
    $region11: #{swin_module_forward.12} parent=5 // pred_region
      %s144 = ssub.s32 %s10, 1
      // Predicated region
      $region13: #{swin_module_forward.12} parent=11 // pred_check
        %p145 = pneg %p57
      $region14: #{swin_module_forward.12} parent=11 // pred_check_branch
        %147 = sbr.rel (%p145) target = $region16
      $region15: #{swin_module_forward.12} parent=11 // pred_region
        _
      $region16: #{swin_module_forward.12} parent=11 // pred_fallthru
        _
      // Predicated region
      $region17: #{swin_module_forward.12} parent=11 // pred_check
        %p148 = pneg %p78
      $region18: #{swin_module_forward.12} parent=11 // pred_check_branch
        %150 = sbr.rel (%p148) target = $region20
      $region19: #{swin_module_forward.12} parent=11 // pred_region
        _
      $region20: #{swin_module_forward.12} parent=11 // pred_fallthru
        _
    $region12: #{swin_module_forward.12} parent=5 // pred_fallthru
      _
    %p151 = scmp.lt.s32.totalorder %s10, 2
    // Predicated region
    $region21: #{swin_module_forward.12} parent=5 // pred_check
      %p152 = pneg %p151
    $region22: #{swin_module_forward.12} parent=5 // pred_check_branch
      %154 = sbr.rel (%p152) target = $region24
    $region23: #{swin_module_forward.12} parent=5 // pred_region
      // Predicated region
      $region25: #{swin_module_forward.12} parent=23 // pred_check
        %p155 = pneg %p30
      $region26: #{swin_module_forward.12} parent=23 // pred_check_branch
        %157 = sbr.rel (%p155) target = $region28
      $region27: #{swin_module_forward.12} parent=23 // pred_region
        %s158 = smul.u32 8, %s10
        %p159 = scmp.lt.s32.totalorder %s158, 15
        %s160 = scalar_select %p159, %s158, 15
        %s161 = smul.addr %s160, 8
        %s162 = scalar_lea.vmem %s0, %s161
        %s163 = smul.u32 8, %s10
      $region28: #{swin_module_forward.12} parent=23 // pred_fallthru
        _
      // Predicated region
      $region29: #{swin_module_forward.12} parent=23 // pred_check
        %p164 = pneg %p98
      $region30: #{swin_module_forward.12} parent=23 // pred_check_branch
        %166 = sbr.rel (%p164) target = $region32
      $region31: #{swin_module_forward.12} parent=23 // pred_region
        %s167 = smul.u32 8, %s10
        %p168 = scmp.lt.s32.totalorder %s167, 15
        %s169 = scalar_select %p168, %s167, 15
        %s170 = smul.addr %s169, 8
        %s171 = scalar_lea.vmem %s3, %s170
        %s172 = smul.u32 8, %s10
      $region32: #{swin_module_forward.12} parent=23 // pred_fallthru
        _
    $region24: #{swin_module_forward.12} parent=5 // pred_fallthru
      _
    %p173 = scmp.le.s32.totalorder 1, %s10
    %p174 = scmp.lt.s32.totalorder %s10, 3
    %p175 = pnand %p173, %p174
    %p176 = pneg %p175
    // Predicated region
    $region33: #{swin_module_forward.12} parent=5 // pred_check
      _
    $region34: #{swin_module_forward.12} parent=5 // pred_check_branch
      %178 = sbr.rel (%p175) target = $region36
    $region35: #{swin_module_forward.12} parent=5 // pred_region
      %s179 = ssub.s32 %s10, 1
      %s180 = smul.u32 8, %s15
      %p181 = scmp.lt.s32.totalorder %s180, 15
      %s182 = scalar_select %p181, %s180, 15
      %s183 = smul.addr %s182, 8
      %s184 = scalar_lea.vmem %s0, %s183
      %p185 = pneg %p36
      %p186 = pneg %p33
      %p187 = pneg %p57
      %p188 = pneg %p54
      %p189 = pneg %p78
      %p190 = pneg %p75
      %s191 = smul.u32 8, %s15
      %p192 = scmp.lt.s32.totalorder %s191, 15
      %s193 = scalar_select %p192, %s191, 15
      %s194 = smul.addr %s193, 8
      %s195 = scalar_lea.vmem %s3, %s194
      %p196 = pneg %p104
      %p197 = pneg %p101
      %p198 = pneg %p130
      %p199 = pneg %p127
      %s200 = smul.u32 8, %s15
      %p201 = scmp.lt.s32.totalorder %s200, 15
      %s202 = scalar_select %p201, %s200, 15
      %s203 = smul.addr %s202, 8
      %s204 = scalar_lea.vmem %s4, %s203
      %s205 = smul.u32 8, %s15
      %p206 = scmp.lt.s32.totalorder %s205, 15
      %s207 = scalar_select %p206, %s205, 15
      %s208 = smul.addr %s207, 8
      %s209 = scalar_lea.vmem %s0, %s208
      %s210 = smul.u32 8, %s15
      %s211 = smul.u32 8, %s15
      %p212 = scmp.lt.s32.totalorder %s211, 15
      %s213 = scalar_select %p212, %s211, 15
      %s214 = smul.addr %s213, 8
      %s215 = scalar_lea.vmem %s3, %s214
      %s216 = smul.u32 8, %s15
      %s217 = smul.u32 8, %s15
      %p218 = scmp.lt.s32.totalorder %s217, 15
      %s219 = scalar_select %p218, %s217, 15
      %s220 = smul.addr %s219, 8
      %s221 = scalar_lea.vmem %s4, %s220
      %s222 = smul.u32 8, %s15
      %v224 = vld [vmem:[%s209] sm:$0xff]
      %v225 = vld [vmem:[%s209 + $0x8] sm:$0xff]
      %v226 = vld [vmem:[%s209 + $0x10] sm:$0xff]
      %v227 = vld [vmem:[%s209 + $0x18] sm:$0xff]
      %v228 = vld [vmem:[%s209 + $0x20] sm:$0xff]
      %v229 = vld [vmem:[%s209 + $0x28] sm:$0xff]
      %v230 = vld [vmem:[%s209 + $0x30] sm:$0xff]
      %v231 = vld [vmem:[%s209 + $0x38] sm:$0xff]
      %v232 = vpack.c.bf16 %v225, %v224
      %v233 = vpack.c.bf16 %v227, %v226
      %v234 = vpack.c.bf16 %v229, %v228
      %v235 = vpack.c.bf16 %v231, %v230
      %v236 = vld [vmem:[%s1] sm:$0xff]
      %v237 = vld [vmem:[%s1 + $0x8] sm:$0xff]
      %v238 = vld [vmem:[%s1 + $0x10] sm:$0xff]
      %v239 = vld [vmem:[%s1 + $0x18] sm:$0xff]
      %v240 = vpack.c.bf16 %v237, %v236
      %v241 = vpack.c.bf16 %v239, %v238
      %v242 = vld [vmem:[%s2] sm:$0x1]
      %v244 = vlaneseq
      %v245 = vshrl.u32 %v244, 7
      %v246 = vsub.s32 0, %v245
      %v247 = vrot.slane %v242, %v246
      %vm249 = vcmask 261120
      %v251 = vsel %vm249, %v232, 0
      %v254 = vsel %vm249, %v233, 0
      %v257 = vsel %vm249, %v234, 0
      %v260 = vsel %vm249, %v235, 0
      %262 = vmatprep.subr.bf16.mxu0 0
      %263 = vmatpush1.bf16.msra.mxu0 %v240
      %264 = vmatprep.subr.bf16.mxu0 0
      %265 = vmatpush1.bf16.msra.mxu0 %v241
      %266 = vmatprep.subr.bf16.mxu0 0
      %267 = vmatpush1.bf16.msra.mxu0 0
      %268 = vmatprep.subr.bf16.mxu0 0
      %269 = vmatpush1.bf16.msra.mxu0 0
      %270 = vmatprep.subr.bf16.mxu0 0
      %271 = vmatpush1.bf16.msra.mxu0 0
      %272 = vmatprep.subr.bf16.mxu0 0
      %273 = vmatpush1.bf16.msra.mxu0 0
      %274 = vmatprep.subr.bf16.mxu0 0
      %275 = vmatpush1.bf16.msra.mxu0 0
      %276 = vmatprep.subr.bf16.mxu0 0
      %277 = vmatpush1.bf16.msra.mxu0 0
      %278 = vmatprep.subr.bf16.mxu0 0
      %279 = vmatpush1.bf16.msra.mxu0 0
      %280 = vmatprep.subr.bf16.mxu0 0
      %281 = vmatpush1.bf16.msra.mxu0 0
      %282 = vmatprep.subr.bf16.mxu0 0
      %283 = vmatpush1.bf16.msra.mxu0 0
      %284 = vmatprep.subr.bf16.mxu0 0
      %285 = vmatpush1.bf16.msra.mxu0 0
      %286 = vmatprep.subr.bf16.mxu0 0
      %287 = vmatpush1.bf16.msra.mxu0 0
      %288 = vmatprep.subr.bf16.mxu0 0
      %289 = vmatpush1.bf16.msra.mxu0 0
      %290 = vmatprep.subr.bf16.mxu0 0
      %291 = vmatpush1.bf16.msra.mxu0 0
      %292 = vmatprep.subr.bf16.mxu0 0
      %293 = vmatpush1.bf16.msra.mxu0 0
      %294 = vmatprep.mubr.bf16.mxu0 0
      %295 = vmatmul.mubr.bf16.gmra.mrb[0].mxu0 %v251
      %v296 = vpop.f32.mrb[0].mxu0
      %v297 = vadd.f32 %v247, %v296
      %v298 = vpop.f32.mrb[0].mxu0
      %v299 = vpop.f32.mrb[0].mxu0
      %v300 = vadd.f32 %v247, %v299
      %v301 = vpop.f32.mrb[0].mxu0
      %302 = vmatprep.mubr.bf16.mxu0 0
      %303 = vmatmul.mubr.bf16.gmra.mrb[0].mxu0 %v254
      %v304 = vpop.f32.mrb[0].mxu0
      %v305 = vadd.f32 %v247, %v304
      %v306 = vpop.f32.mrb[0].mxu0
      %v307 = vpop.f32.mrb[0].mxu0
      %v308 = vadd.f32 %v247, %v307
      %v309 = vpop.f32.mrb[0].mxu0
      %310 = vmatprep.mubr.bf16.mxu0 0
      %311 = vmatmul.mubr.bf16.gmra.mrb[0].mxu0 %v257
      %v312 = vpop.f32.mrb[0].mxu0
      %v313 = vadd.f32 %v247, %v312
      %v314 = vpop.f32.mrb[0].mxu0
      %v315 = vpop.f32.mrb[0].mxu0
      %v316 = vadd.f32 %v247, %v315
      %v317 = vpop.f32.mrb[0].mxu0
      %318 = vmatprep.mubr.bf16.mxu0 0
      %319 = vmatmul.mubr.bf16.gmra.mrb[0].mxu0 %v260
      %v320 = vpop.f32.mrb[0].mxu0
      %v321 = vadd.f32 %v247, %v320
      %v322 = vpop.f32.mrb[0].mxu0
      %v323 = vpop.f32.mrb[0].mxu0
      %v324 = vadd.f32 %v247, %v323
      %v325 = vpop.f32.mrb[0].mxu0
      %326 = vdwg.mxu0
      %v327 = vld [vmem:[%s215] sm:$0xff]
      %v328 = vld [vmem:[%s215 + $0x8] sm:$0xff]
      %v329 = vld [vmem:[%s215 + $0x10] sm:$0xff]
      %v330 = vld [vmem:[%s215 + $0x18] sm:$0xff]
      %v331 = vld [vmem:[%s215 + $0x20] sm:$0xff]
      %v332 = vld [vmem:[%s215 + $0x28] sm:$0xff]
      %v333 = vld [vmem:[%s215 + $0x30] sm:$0xff]
      %v334 = vld [vmem:[%s215 + $0x38] sm:$0xff]
      %v335 = vadd.f32 %v297, %v327
      %v336 = vadd.f32 %v300, %v328
      %v337 = vadd.f32 %v305, %v329
      %v338 = vadd.f32 %v308, %v330
      %v339 = vadd.f32 %v313, %v331
      %v340 = vadd.f32 %v316, %v332
      %v341 = vadd.f32 %v321, %v333
      %v342 = vadd.f32 %v324, %v334
      %343 = vst.msk [vmem:[%s221] sm:$0xff] %vm249, %v335
      %344 = vst.msk [vmem:[%s221 + $0x8] sm:$0xff] %vm249, %v336
      %345 = vst.msk [vmem:[%s221 + $0x10] sm:$0xff] %vm249, %v337
      %346 = vst.msk [vmem:[%s221 + $0x18] sm:$0xff] %vm249, %v338
      %347 = vst.msk [vmem:[%s221 + $0x20] sm:$0xff] %vm249, %v339
      %348 = vst.msk [vmem:[%s221 + $0x28] sm:$0xff] %vm249, %v340
      %349 = vst.msk [vmem:[%s221 + $0x30] sm:$0xff] %vm249, %v341
      %350 = vst.msk [vmem:[%s221 + $0x38] sm:$0xff] %vm249, %v342
      %s351 = smul.u32 8, %s15
      %p352 = scmp.lt.s32.totalorder %s351, 15
      %s353 = scalar_select %p352, %s351, 15
      %s354 = smul.addr %s353, 8
      %s355 = scalar_lea.vmem %s4, %s354
      // Predicated region
      $region37: #{swin_module_forward.12} parent=35 // pred_check
        %p356 = pneg %p127
      $region38: #{swin_module_forward.12} parent=35 // pred_check_branch
        %358 = sbr.rel (%p356) target = $region40
      $region39: #{swin_module_forward.12} parent=35 // pred_region
        %s359 = smul.u32 8, %s15
      $region40: #{swin_module_forward.12} parent=35 // pred_fallthru
        _
    $region36: #{swin_module_forward.12} parent=5 // pred_fallthru
      _
    %p360 = scmp.le.s32.totalorder 2, %s10
    // Predicated region
    $region41: #{swin_module_forward.12} parent=5 // pred_check
      %p361 = pneg %p360
    $region42: #{swin_module_forward.12} parent=5 // pred_check_branch
      %363 = sbr.rel (%p361) target = $region44
    $region43: #{swin_module_forward.12} parent=5 // pred_region
      %s364 = ssub.s32 %s10, 2
      // Predicated region
      $region45: #{swin_module_forward.12} parent=43 // pred_check
        %p365 = pneg %p133
      $region46: #{swin_module_forward.12} parent=43 // pred_check_branch
        %367 = sbr.rel (%p365) target = $region48
      $region47: #{swin_module_forward.12} parent=43 // pred_region
        %s368 = smul.u32 8, %s16
        %p369 = scmp.lt.s32.totalorder %s368, 15
        %s370 = scalar_select %p369, %s368, 15
        %s371 = smul.addr %s370, 8
        %s372 = scalar_lea.vmem %s4, %s371
      $region48: #{swin_module_forward.12} parent=43 // pred_fallthru
        _
    $region44: #{swin_module_forward.12} parent=5 // pred_fallthru
      _
  $region6: #{swin_module_forward.12} parent=0 // loop_footer
    %s14 = sadd.s32 1, %s10
  $region7: #{swin_module_forward.12} parent=0 // loop_footer_branch
    %9 = sbr.rel target = $region3
  $region8: #{swin_module_forward.12} parent=0 // loop_exit
    _

// kernel: swin_module_forward.11
$region0: #{swin_module_forward.11}
  #allocation0 [shape = 'u32[]', space=smem, size = 0x4, offset = 0x4, fixed_abs, tag = 'smem constant byte address 0x4 - core index']
  #allocation1 [shape = 'u32[144,128]{1,0:T(1,128)}', space=vmem, size = 0x12000, scoped, tag = 'internal scratch']
  %s0 = inlined_call_operand.vmem [shape: f32[2,2,4,16,16], index: 0, kind: input, shape index: {}]
  %s1 = inlined_call_operand.vmem [shape: f32[2,2,4,16,16], index: 1, kind: input, shape index: {}]
  %s2 = inlined_call_operand.vmem [shape: f32[2,2,4,16,16], index: 2, kind: input, shape index: {}]
  %s3 = inlined_call_operand.vmem [shape: f32[16,16], index: 3, kind: input, shape index: {}]
  %s4 = inlined_call_operand.vmem [shape: f32[2,2,4,16,16], index: 4, kind: output, shape index: {}]
  %s5 = sld [smem:[#allocation0]]
  $region49: #{swin_module_forward.11} parent=0
    _
  %s7 = ssub.s32 1, %s5
  %s8 = scalar_select 0, %s7, %s5
  loop: start=0, step=1, limit=4
  $region2: #{swin_module_forward.11} parent=0 // loop_pre_header
    _
  $region3: #{swin_module_forward.11} parent=0 // loop_header
    %s10 = sphi 0, %s14
    %p11 = scmp.ge.s32.totalorder %s10, 4
    %s20 = sphi 0, %s22
    %s23 = sphi 0, %s20
    %s24 = sphi 0, %s23
    %s40 = sphi 0, %s24
    %s46 = sphi 0, %s48
    %s49 = sphi 0, %s46
    %s50 = sphi 0, %s49
    %s66 = sphi 0, %s50
    %s72 = sphi 0, %s74
    %s75 = sphi 0, %s72
    %s76 = sphi 0, %s75
    %s92 = sphi 0, %s76
    %s96 = sphi 0, %s96
    %s98 = sphi 0, %s96
    %s99 = sphi 0, %s98
    %s113 = sphi 0, %s99
    %s119 = sphi 0, %s121
    %s122 = sphi 0, %s119
    %s123 = sphi 0, %s122
    %s139 = sphi 0, %s123
  $region4: #{swin_module_forward.11} parent=0 // loop_header_branch
    %13 = sbr.rel (%p11) target = $region8
  $region5: #{swin_module_forward.11} parent=0 // loop_body
    %s15 = ssub.s32 %s10, 1
    %s16 = ssub.s32 %s10, 2
    %s17 = sadd.s32 %s10, 1
    %s18 = ssub.s32 %s10, %s17
    %p19 = scmp.eq.s32.totalorder %s18, 0
    %s21 = sadd.s32 %s20, 1
    %s22 = scalar_select %p19, %s20, %s21
    %p25 = pneg %p19
    %p26 = scmp.eq.s32.totalorder %s10, 1
    %p27 = por %p25, %p26
    %p28 = scmp.ne.s32.totalorder %s20, %s23
    %p29 = scmp.eq.s32.totalorder %s10, 0
    %p30 = por %p28, %p29
    %p31 = scmp.ne.s32.totalorder %s20, %s23
    %p32 = scmp.eq.s32.totalorder %s15, 1
    %p33 = por %p31, %p32
    %p34 = scmp.ne.s32.totalorder %s23, %s24
    %p35 = scmp.eq.s32.totalorder %s15, 0
    %p36 = por %p34, %p35
    %p37 = scmp.ne.s32.totalorder %s23, %s24
    %p38 = scmp.eq.s32.totalorder %s16, 1
    %p39 = por %p37, %p38
    %p41 = scmp.ne.s32.totalorder %s24, %s40
    %p42 = scmp.eq.s32.totalorder %s16, 0
    %p43 = por %p41, %p42
    %s44 = ssub.s32 %s10, %s17
    %p45 = scmp.eq.s32.totalorder %s44, 0
    %s47 = sadd.s32 %s46, 1
    %s48 = scalar_select %p45, %s46, %s47
    %p51 = pneg %p45
    %p52 = scmp.eq.s32.totalorder %s10, 1
    %p53 = por %p51, %p52
    %p54 = scmp.ne.s32.totalorder %s46, %s49
    %p55 = scmp.eq.s32.totalorder %s10, 0
    %p56 = por %p54, %p55
    %p57 = scmp.ne.s32.totalorder %s46, %s49
    %p58 = scmp.eq.s32.totalorder %s15, 1
    %p59 = por %p57, %p58
    %p60 = scmp.ne.s32.totalorder %s49, %s50
    %p61 = scmp.eq.s32.totalorder %s15, 0
    %p62 = por %p60, %p61
    %p63 = scmp.ne.s32.totalorder %s49, %s50
    %p64 = scmp.eq.s32.totalorder %s16, 1
    %p65 = por %p63, %p64
    %p67 = scmp.ne.s32.totalorder %s50, %s66
    %p68 = scmp.eq.s32.totalorder %s16, 0
    %p69 = por %p67, %p68
    %s70 = ssub.s32 %s10, %s17
    %p71 = scmp.eq.s32.totalorder %s70, 0
    %s73 = sadd.s32 %s72, 1
    %s74 = scalar_select %p71, %s72, %s73
    %p77 = pneg %p71
    %p78 = scmp.eq.s32.totalorder %s10, 1
    %p79 = por %p77, %p78
    %p80 = scmp.ne.s32.totalorder %s72, %s75
    %p81 = scmp.eq.s32.totalorder %s10, 0
    %p82 = por %p80, %p81
    %p83 = scmp.ne.s32.totalorder %s72, %s75
    %p84 = scmp.eq.s32.totalorder %s15, 1
    %p85 = por %p83, %p84
    %p86 = scmp.ne.s32.totalorder %s75, %s76
    %p87 = scmp.eq.s32.totalorder %s15, 0
    %p88 = por %p86, %p87
    %p89 = scmp.ne.s32.totalorder %s75, %s76
    %p90 = scmp.eq.s32.totalorder %s16, 1
    %p91 = por %p89, %p90
    %p93 = scmp.ne.s32.totalorder %s76, %s92
    %p94 = scmp.eq.s32.totalorder %s16, 0
    %p95 = por %p93, %p94
    %s97 = sadd.s32 %s96, 1
    %p100 = scmp.eq.s32.totalorder %s10, 1
    %p101 = scmp.ne.s32.totalorder %s96, %s98
    %p102 = scmp.eq.s32.totalorder %s10, 0
    %p103 = por %p101, %p102
    %p104 = scmp.ne.s32.totalorder %s96, %s98
    %p105 = scmp.eq.s32.totalorder %s15, 1
    %p106 = por %p104, %p105
    %p107 = scmp.ne.s32.totalorder %s98, %s99
    %p108 = scmp.eq.s32.totalorder %s15, 0
    %p109 = por %p107, %p108
    %p110 = scmp.ne.s32.totalorder %s98, %s99
    %p111 = scmp.eq.s32.totalorder %s16, 1
    %p112 = por %p110, %p111
    %p114 = scmp.ne.s32.totalorder %s99, %s113
    %p115 = scmp.eq.s32.totalorder %s16, 0
    %p116 = por %p114, %p115
    %s117 = ssub.s32 %s10, %s17
    %p118 = scmp.eq.s32.totalorder %s117, 0
    %s120 = sadd.s32 %s119, 1
    %s121 = scalar_select %p118, %s119, %s120
    %p124 = pneg %p118
    %p125 = scmp.eq.s32.totalorder %s10, 1
    %p126 = por %p124, %p125
    %p127 = scmp.ne.s32.totalorder %s119, %s122
    %p128 = scmp.eq.s32.totalorder %s10, 0
    %p129 = por %p127, %p128
    %p130 = scmp.ne.s32.totalorder %s119, %s122
    %p131 = scmp.eq.s32.totalorder %s15, 1
    %p132 = por %p130, %p131
    %p133 = scmp.ne.s32.totalorder %s122, %s123
    %p134 = scmp.eq.s32.totalorder %s15, 0
    %p135 = por %p133, %p134
    %p136 = scmp.ne.s32.totalorder %s122, %s123
    %p137 = scmp.eq.s32.totalorder %s16, 1
    %p138 = por %p136, %p137
    %p140 = scmp.ne.s32.totalorder %s123, %s139
    %p141 = scmp.eq.s32.totalorder %s16, 0
    %p142 = por %p140, %p141
    %p143 = scmp.le.s32.totalorder 1, %s10
    %p144 = scmp.lt.s32.totalorder %s10, 3
    %p145 = pnand %p143, %p144
    %p146 = pneg %p145
    // Predicated region
    $region9: #{swin_module_forward.11} parent=5 // pred_check
      _
    $region10: #{swin_module_forward.11} parent=5 // pred_check_branch
      %148 = sbr.rel (%p145) target = $region12
    $region11: #{swin_module_forward.11} parent=5 // pred_region
      %s149 = ssub.s32 %s10, 1
      // Predicated region
      $region13: #{swin_module_forward.11} parent=11 // pred_check
        %p150 = pneg %p109
      $region14: #{swin_module_forward.11} parent=11 // pred_check_branch
        %152 = sbr.rel (%p150) target = $region16
      $region15: #{swin_module_forward.11} parent=11 // pred_region
        _
      $region16: #{swin_module_forward.11} parent=11 // pred_fallthru
        _
    $region12: #{swin_module_forward.11} parent=5 // pred_fallthru
      _
    %p153 = scmp.lt.s32.totalorder %s10, 2
    // Predicated region
    $region17: #{swin_module_forward.11} parent=5 // pred_check
      %p154 = pneg %p153
    $region18: #{swin_module_forward.11} parent=5 // pred_check_branch
      %156 = sbr.rel (%p154) target = $region20
    $region19: #{swin_module_forward.11} parent=5 // pred_region
      // Predicated region
      $region21: #{swin_module_forward.11} parent=19 // pred_check
        %p157 = pneg %p30
      $region22: #{swin_module_forward.11} parent=19 // pred_check_branch
        %159 = sbr.rel (%p157) target = $region24
      $region23: #{swin_module_forward.11} parent=19 // pred_region
        %p160 = scmp.lt.s32.totalorder %s10, 1
        %s161 = scalar_select %p160, %s10, 1
        %s162 = smul.addr %s161, 16
        %s163 = smul.addr %s162, 8
        %s164 = scalar_lea.vmem %s0, %s163
      $region24: #{swin_module_forward.11} parent=19 // pred_fallthru
        _
      // Predicated region
      $region25: #{swin_module_forward.11} parent=19 // pred_check
        %p165 = pneg %p56
      $region26: #{swin_module_forward.11} parent=19 // pred_check_branch
        %167 = sbr.rel (%p165) target = $region28
      $region27: #{swin_module_forward.11} parent=19 // pred_region
        %p168 = scmp.lt.s32.totalorder %s10, 1
        %s169 = scalar_select %p168, %s10, 1
        %s170 = smul.addr %s169, 16
        %s171 = smul.addr %s170, 8
        %s172 = scalar_lea.vmem %s1, %s171
      $region28: #{swin_module_forward.11} parent=19 // pred_fallthru
        _
      // Predicated region
      $region29: #{swin_module_forward.11} parent=19 // pred_check
        %p173 = pneg %p82
      $region30: #{swin_module_forward.11} parent=19 // pred_check_branch
        %175 = sbr.rel (%p173) target = $region32
      $region31: #{swin_module_forward.11} parent=19 // pred_region
        %p176 = scmp.lt.s32.totalorder %s10, 1
        %s177 = scalar_select %p176, %s10, 1
        %s178 = smul.addr %s177, 16
        %s179 = smul.addr %s178, 8
        %s180 = scalar_lea.vmem %s2, %s179
      $region32: #{swin_module_forward.11} parent=19 // pred_fallthru
        _
    $region20: #{swin_module_forward.11} parent=5 // pred_fallthru
      _
    %p181 = scmp.le.s32.totalorder 1, %s10
    %p182 = scmp.lt.s32.totalorder %s10, 3
    %p183 = pnand %p181, %p182
    %p184 = pneg %p183
    // Predicated region
    $region33: #{swin_module_forward.11} parent=5 // pred_check
      _
    $region34: #{swin_module_forward.11} parent=5 // pred_check_branch
      %186 = sbr.rel (%p183) target = $region36
    $region35: #{swin_module_forward.11} parent=5 // pred_region
      %s187 = ssub.s32 %s10, 1
      %p188 = scmp.lt.s32.totalorder %s15, 1
      %s189 = scalar_select %p188, %s15, 1
      %s190 = smul.addr %s189, 16
      %s191 = smul.addr %s190, 8
      %s192 = scalar_lea.vmem %s0, %s191
      %p193 = pneg %p36
      %p194 = pneg %p33
      %p195 = scmp.lt.s32.totalorder %s15, 1
      %s196 = scalar_select %p195, %s15, 1
      %s197 = smul.addr %s196, 16
      %s198 = smul.addr %s197, 8
      %s199 = scalar_lea.vmem %s1, %s198
      %p200 = pneg %p62
      %p201 = pneg %p59
      %p202 = scmp.lt.s32.totalorder %s15, 1
      %s203 = scalar_select %p202, %s15, 1
      %s204 = smul.addr %s203, 16
      %s205 = smul.addr %s204, 8
      %s206 = scalar_lea.vmem %s2, %s205
      %p207 = pneg %p88
      %p208 = pneg %p85
      %p209 = pneg %p109
      %p210 = pneg %p106
      %p211 = pneg %p135
      %p212 = pneg %p132
      %p213 = scmp.lt.s32.totalorder %s15, 1
      %s214 = scalar_select %p213, %s15, 1
      %s215 = smul.addr %s214, 16
      %s216 = smul.addr %s215, 8
      %s217 = scalar_lea.vmem %s4, %s216
      %p218 = scmp.lt.s32.totalorder %s15, 1
      %s219 = scalar_select %p218, %s15, 1
      %s220 = smul.addr %s219, 16
      %s221 = smul.addr %s220, 8
      %s222 = scalar_lea.vmem %s0, %s221
      %p223 = scmp.lt.s32.totalorder %s15, 1
      %s224 = scalar_select %p223, %s15, 1
      %s225 = smul.addr %s224, 16
      %s226 = smul.addr %s225, 8
      %s227 = scalar_lea.vmem %s1, %s226
      %p228 = scmp.lt.s32.totalorder %s15, 1
      %s229 = scalar_select %p228, %s15, 1
      %s230 = smul.addr %s229, 16
      %s231 = smul.addr %s230, 8
      %s232 = scalar_lea.vmem %s2, %s231
      %p233 = scmp.lt.s32.totalorder %s15, 1
      %s234 = scalar_select %p233, %s15, 1
      %s235 = smul.addr %s234, 16
      %s236 = smul.addr %s235, 8
      %s237 = scalar_lea.vmem %s4, %s236
      %v239 = vld [vmem:[%s3] sm:$0xff]
      %v240 = vld [vmem:[%s3 + $0x8] sm:$0xff]
      %v241 = vld [vmem:[%s222] sm:$0xff]
      %v242 = vld [vmem:[%s222 + $0x8] sm:$0xff]
      %v243 = vld [vmem:[%s222 + $0x10] sm:$0xff]
      %v244 = vld [vmem:[%s222 + $0x18] sm:$0xff]
      %v245 = vld [vmem:[%s222 + $0x20] sm:$0xff]
      %v246 = vld [vmem:[%s222 + $0x28] sm:$0xff]
      %v247 = vld [vmem:[%s222 + $0x30] sm:$0xff]
      %v248 = vld [vmem:[%s222 + $0x38] sm:$0xff]
      %v249 = vpack.c.bf16 %v242, %v241
      %v250 = vpack.c.bf16 %v244, %v243
      %v251 = vpack.c.bf16 %v246, %v245
      %v252 = vpack.c.bf16 %v248, %v247
      %v253 = vld [vmem:[%s227] sm:$0xff]
      %v254 = vld [vmem:[%s227 + $0x8] sm:$0xff]
      %v255 = vld [vmem:[%s227 + $0x10] sm:$0xff]
      %v256 = vld [vmem:[%s227 + $0x18] sm:$0xff]
      %v257 = vld [vmem:[%s227 + $0x20] sm:$0xff]
      %v258 = vld [vmem:[%s227 + $0x28] sm:$0xff]
      %v259 = vld [vmem:[%s227 + $0x30] sm:$0xff]
      %v260 = vld [vmem:[%s227 + $0x38] sm:$0xff]
      %v261 = vpack.c.bf16 %v254, %v253
      %v262 = vpack.c.bf16 %v256, %v255
      %v263 = vpack.c.bf16 %v258, %v257
      %v264 = vpack.c.bf16 %v260, %v259
      %v265 = vld [vmem:[%s232] sm:$0xff]
      %v266 = vld [vmem:[%s232 + $0x8] sm:$0xff]
      %v267 = vld [vmem:[%s232 + $0x10] sm:$0xff]
      %v268 = vld [vmem:[%s232 + $0x18] sm:$0xff]
      %v269 = vld [vmem:[%s232 + $0x20] sm:$0xff]
      %v270 = vld [vmem:[%s232 + $0x28] sm:$0xff]
      %v271 = vld [vmem:[%s232 + $0x30] sm:$0xff]
      %v272 = vld [vmem:[%s232 + $0x38] sm:$0xff]
      %v273 = vpack.c.bf16 %v266, %v265
      %v274 = vpack.c.bf16 %v268, %v267
      %v275 = vpack.c.bf16 %v270, %v269
      %v276 = vpack.c.bf16 %v272, %v271
      %vm277 = vcmask 130048
      %v279 = vsel %vm277, %v249, 0
      %v282 = vsel %vm277, %v261, 0
      %284 = vmatprep.subr.bf16.mxu0 0
      %285 = vmatpush1.bf16.xpose.msra.mxu0 %v282
      %286 = vmatprep.subr.bf16.mxu0 0
      %287 = vmatpush1.bf16.xpose.msra.mxu0 0
      %288 = vmatprep.subr.bf16.mxu0 0
      %289 = vmatpush1.bf16.xpose.msra.mxu0 0
      %290 = vmatprep.subr.bf16.mxu0 0
      %291 = vmatpush1.bf16.xpose.msra.mxu0 0
      %292 = vmatprep.subr.bf16.mxu0 0
      %293 = vmatpush1.bf16.xpose.msra.mxu0 0
      %294 = vmatprep.subr.bf16.mxu0 0
      %295 = vmatpush1.bf16.xpose.msra.mxu0 0
      %296 = vmatprep.subr.bf16.mxu0 0
      %297 = vmatpush1.bf16.xpose.msra.mxu0 0
      %298 = vmatprep.subr.bf16.mxu0 0
      %299 = vmatpush1.bf16.xpose.msra.mxu0 0
      %300 = vmatprep.subr.bf16.mxu0 0
      %301 = vmatpush1.bf16.xpose.msra.mxu0 0
      %302 = vmatprep.subr.bf16.mxu0 0
      %303 = vmatpush1.bf16.xpose.msra.mxu0 0
      %304 = vmatprep.subr.bf16.mxu0 0
      %305 = vmatpush1.bf16.xpose.msra.mxu0 0
      %306 = vmatprep.subr.bf16.mxu0 0
      %307 = vmatpush1.bf16.xpose.msra.mxu0 0
      %308 = vmatprep.subr.bf16.mxu0 0
      %309 = vmatpush1.bf16.xpose.msra.mxu0 0
      %310 = vmatprep.subr.bf16.mxu0 0
      %311 = vmatpush1.bf16.xpose.msra.mxu0 0
      %312 = vmatprep.subr.bf16.mxu0 0
      %313 = vmatpush1.bf16.xpose.msra.mxu0 0
      %314 = vmatprep.subr.bf16.mxu0 0
      %315 = vmatpush1.bf16.xpose.msra.mxu0 0
      %316 = vmatprep.mubr.bf16.mxu0 0
      %317 = vmatmul.mubr.bf16.gmra.mrb[0].mxu0 %v279
      %v318 = vpop.f32.mrb[0].mxu0
      %v319 = vadd.f32 0.0, %v318
      %v320 = vpop.f32.mrb[0].mxu0
      %v321 = vpop.f32.mrb[0].mxu0
      %v322 = vadd.f32 0.0, %v321
      %v323 = vpop.f32.mrb[0].mxu0
      %324 = vdwg.mxu0
      %v326 = vsel %vm277, %v250, 0
      %v329 = vsel %vm277, %v262, 0
      %331 = vmatprep.subr.bf16.mxu0 0
      %332 = vmatpush1.bf16.xpose.msra.mxu0 %v329
      %333 = vmatprep.subr.bf16.mxu0 0
      %334 = vmatpush1.bf16.xpose.msra.mxu0 0
      %335 = vmatprep.subr.bf16.mxu0 0
      %336 = vmatpush1.bf16.xpose.msra.mxu0 0
      %337 = vmatprep.subr.bf16.mxu0 0
      %338 = vmatpush1.bf16.xpose.msra.mxu0 0
      %339 = vmatprep.subr.bf16.mxu0 0
      %340 = vmatpush1.bf16.xpose.msra.mxu0 0
      %341 = vmatprep.subr.bf16.mxu0 0
      %342 = vmatpush1.bf16.xpose.msra.mxu0 0
      %343 = vmatprep.subr.bf16.mxu0 0
      %344 = vmatpush1.bf16.xpose.msra.mxu0 0
      %345 = vmatprep.subr.bf16.mxu0 0
      %346 = vmatpush1.bf16.xpose.msra.mxu0 0
      %347 = vmatprep.subr.bf16.mxu0 0
      %348 = vmatpush1.bf16.xpose.msra.mxu0 0
      %349 = vmatprep.subr.bf16.mxu0 0
      %350 = vmatpush1.bf16.xpose.msra.mxu0 0
      %351 = vmatprep.subr.bf16.mxu0 0
      %352 = vmatpush1.bf16.xpose.msra.mxu0 0
      %353 = vmatprep.subr.bf16.mxu0 0
      %354 = vmatpush1.bf16.xpose.msra.mxu0 0
      %355 = vmatprep.subr.bf16.mxu0 0
      %356 = vmatpush1.bf16.xpose.msra.mxu0 0
      %357 = vmatprep.subr.bf16.mxu0 0
      %358 = vmatpush1.bf16.xpose.msra.mxu0 0
      %359 = vmatprep.subr.bf16.mxu0 0
      %360 = vmatpush1.bf16.xpose.msra.mxu0 0
      %361 = vmatprep.subr.bf16.mxu0 0
      %362 = vmatpush1.bf16.xpose.msra.mxu0 0
      %363 = vmatprep.mubr.bf16.mxu0 0
      %364 = vmatmul.mubr.bf16.gmra.mrb[0].mxu0 %v326
      %v365 = vpop.f32.mrb[0].mxu0
      %v366 = vadd.f32 0.0, %v365
      %v367 = vpop.f32.mrb[0].mxu0
      %v368 = vpop.f32.mrb[0].mxu0
      %v369 = vadd.f32 0.0, %v368
      %v370 = vpop.f32.mrb[0].mxu0
      %371 = vdwg.mxu0
      %v373 = vsel %vm277, %v251, 0
      %v376 = vsel %vm277, %v263, 0
      %378 = vmatprep.subr.bf16.mxu0 0
      %379 = vmatpush1.bf16.xpose.msra.mxu0 %v376
      %380 = vmatprep.subr.bf16.mxu0 0
      %381 = vmatpush1.bf16.xpose.msra.mxu0 0
      %382 = vmatprep.subr.bf16.mxu0 0
      %383 = vmatpush1.bf16.xpose.msra.mxu0 0
      %384 = vmatprep.subr.bf16.mxu0 0
      %385 = vmatpush1.bf16.xpose.msra.mxu0 0
      %386 = vmatprep.subr.bf16.mxu0 0
      %387 = vmatpush1.bf16.xpose.msra.mxu0 0
      %388 = vmatprep.subr.bf16.mxu0 0
      %389 = vmatpush1.bf16.xpose.msra.mxu0 0
      %390 = vmatprep.subr.bf16.mxu0 0
      %391 = vmatpush1.bf16.xpose.msra.mxu0 0
      %392 = vmatprep.subr.bf16.mxu0 0
      %393 = vmatpush1.bf16.xpose.msra.mxu0 0
      %394 = vmatprep.subr.bf16.mxu0 0
      %395 = vmatpush1.bf16.xpose.msra.mxu0 0
      %396 = vmatprep.subr.bf16.mxu0 0
      %397 = vmatpush1.bf16.xpose.msra.mxu0 0
      %398 = vmatprep.subr.bf16.mxu0 0
      %399 = vmatpush1.bf16.xpose.msra.mxu0 0
      %400 = vmatprep.subr.bf16.mxu0 0
      %401 = vmatpush1.bf16.xpose.msra.mxu0 0
      %402 = vmatprep.subr.bf16.mxu0 0
      %403 = vmatpush1.bf16.xpose.msra.mxu0 0
      %404 = vmatprep.subr.bf16.mxu0 0
      %405 = vmatpush1.bf16.xpose.msra.mxu0 0
      %406 = vmatprep.subr.bf16.mxu0 0
      %407 = vmatpush1.bf16.xpose.msra.mxu0 0
      %408 = vmatprep.subr.bf16.mxu0 0
      %409 = vmatpush1.bf16.xpose.msra.mxu0 0
      %410 = vmatprep.mubr.bf16.mxu0 0
      %411 = vmatmul.mubr.bf16.gmra.mrb[0].mxu0 %v373
      %v412 = vpop.f32.mrb[0].mxu0
      %v413 = vadd.f32 0.0, %v412
      %v414 = vpop.f32.mrb[0].mxu0
      %v415 = vpop.f32.mrb[0].mxu0
      %v416 = vadd.f32 0.0, %v415
      %v417 = vpop.f32.mrb[0].mxu0
      %418 = vdwg.mxu0
      %v420 = vsel %vm277, %v252, 0
      %v423 = vsel %vm277, %v264, 0
      %425 = vmatprep.subr.bf16.mxu0 0
      %426 = vmatpush1.bf16.xpose.msra.mxu0 %v423
      %427 = vmatprep.subr.bf16.mxu0 0
      %428 = vmatpush1.bf16.xpose.msra.mxu0 0
      %429 = vmatprep.subr.bf16.mxu0 0
      %430 = vmatpush1.bf16.xpose.msra.mxu0 0
      %431 = vmatprep.subr.bf16.mxu0 0
      %432 = vmatpush1.bf16.xpose.msra.mxu0 0
      %433 = vmatprep.subr.bf16.mxu0 0
      %434 = vmatpush1.bf16.xpose.msra.mxu0 0
      %435 = vmatprep.subr.bf16.mxu0 0
      %436 = vmatpush1.bf16.xpose.msra.mxu0 0
      %437 = vmatprep.subr.bf16.mxu0 0
      %438 = vmatpush1.bf16.xpose.msra.mxu0 0
      %439 = vmatprep.subr.bf16.mxu0 0
      %440 = vmatpush1.bf16.xpose.msra.mxu0 0
      %441 = vmatprep.subr.bf16.mxu0 0
      %442 = vmatpush1.bf16.xpose.msra.mxu0 0
      %443 = vmatprep.subr.bf16.mxu0 0
      %444 = vmatpush1.bf16.xpose.msra.mxu0 0
      %445 = vmatprep.subr.bf16.mxu0 0
      %446 = vmatpush1.bf16.xpose.msra.mxu0 0
      %447 = vmatprep.subr.bf16.mxu0 0
      %448 = vmatpush1.bf16.xpose.msra.mxu0 0
      %449 = vmatprep.subr.bf16.mxu0 0
      %450 = vmatpush1.bf16.xpose.msra.mxu0 0
      %451 = vmatprep.subr.bf16.mxu0 0
      %452 = vmatpush1.bf16.xpose.msra.mxu0 0
      %453 = vmatprep.subr.bf16.mxu0 0
      %454 = vmatpush1.bf16.xpose.msra.mxu0 0
      %455 = vmatprep.subr.bf16.mxu0 0
      %456 = vmatpush1.bf16.xpose.msra.mxu0 0
      %457 = vmatprep.mubr.bf16.mxu0 0
      %458 = vmatmul.mubr.bf16.gmra.mrb[0].mxu0 %v420
      %v459 = vpop.f32.mrb[0].mxu0
      %v460 = vadd.f32 0.0, %v459
      %v461 = vpop.f32.mrb[0].mxu0
      %v462 = vpop.f32.mrb[0].mxu0
      %v463 = vadd.f32 0.0, %v462
      %v464 = vpop.f32.mrb[0].mxu0
      %465 = vdwg.mxu0
      %v466 = vmul.f32 %v319, 0.25
      %v467 = vmul.f32 %v322, 0.25
      %v468 = vmul.f32 %v366, 0.25
      %v469 = vmul.f32 %v369, 0.25
      %v470 = vmul.f32 %v413, 0.25
      %v471 = vmul.f32 %v416, 0.25
      %v472 = vmul.f32 %v460, 0.25
      %v473 = vmul.f32 %v463, 0.25
      %v474 = vadd.f32 %v466, %v239
      %v475 = vadd.f32 %v467, %v240
      %v476 = vadd.f32 %v468, %v239
      %v477 = vadd.f32 %v469, %v240
      %v478 = vadd.f32 %v470, %v239
      %v479 = vadd.f32 %v471, %v240
      %v480 = vadd.f32 %v472, %v239
      %v481 = vadd.f32 %v473, %v240
      %v482 = vsel %vm277, %v474, -inf
      %483 = vmax.xlane.f32.xlu0 %v482
      %v484 = vpop.xlane.xlu0 %483
      %v485 = vsel %vm277, %v475, -inf
      %486 = vmax.xlane.f32.xlu0 %v485
      %v487 = vpop.xlane.xlu0 %486
      %v488 = vsel %vm277, %v476, -inf
      %489 = vmax.xlane.f32.xlu0 %v488
      %v490 = vpop.xlane.xlu0 %489
      %v491 = vsel %vm277, %v477, -inf
      %492 = vmax.xlane.f32.xlu0 %v491
      %v493 = vpop.xlane.xlu0 %492
      %v494 = vsel %vm277, %v478, -inf
      %495 = vmax.xlane.f32.xlu0 %v494
      %v496 = vpop.xlane.xlu0 %495
      %v497 = vsel %vm277, %v479, -inf
      %498 = vmax.xlane.f32.xlu0 %v497
      %v499 = vpop.xlane.xlu0 %498
      %v500 = vsel %vm277, %v480, -inf
      %501 = vmax.xlane.f32.xlu0 %v500
      %v502 = vpop.xlane.xlu0 %501
      %v503 = vsel %vm277, %v481, -inf
      %504 = vmax.xlane.f32.xlu0 %v503
      %v505 = vpop.xlane.xlu0 %504
      %v506 = vsub.f32 %v474, %v484
      %v507 = vsub.f32 %v475, %v487
      %v508 = vsub.f32 %v476, %v490
      %v509 = vsub.f32 %v477, %v493
      %v510 = vsub.f32 %v478, %v496
      %v511 = vsub.f32 %v479, %v499
      %v512 = vsub.f32 %v480, %v502
      %v513 = vsub.f32 %v481, %v505
      %v514 = vmul.f32 %v506, 1.442695
      %v515 = vpow.pop %v514
      %v516 = vmul.f32 %v507, 1.442695
      %v517 = vpow.pop %v516
      %v518 = vmul.f32 %v508, 1.442695
      %v519 = vpow.pop %v518
      %v520 = vmul.f32 %v509, 1.442695
      %v521 = vpow.pop %v520
      %v522 = vmul.f32 %v510, 1.442695
      %v523 = vpow.pop %v522
      %v524 = vmul.f32 %v511, 1.442695
      %v525 = vpow.pop %v524
      %v526 = vmul.f32 %v512, 1.442695
      %v527 = vpow.pop %v526
      %v528 = vmul.f32 %v513, 1.442695
      %v529 = vpow.pop %v528
      %v530 = vsel %vm277, %v515, 0.0
      %531 = vadd.xlane.f32.xlu0 %v530
      %v532 = vpop.xlane.xlu0 %531
      %v533 = vsel %vm277, %v517, 0.0
      %534 = vadd.xlane.f32.xlu0 %v533
      %v535 = vpop.xlane.xlu0 %534
      %v536 = vsel %vm277, %v519, 0.0
      %537 = vadd.xlane.f32.xlu0 %v536
      %v538 = vpop.xlane.xlu0 %537
      %v539 = vsel %vm277, %v521, 0.0
      %540 = vadd.xlane.f32.xlu0 %v539
      %v541 = vpop.xlane.xlu0 %540
      %v542 = vsel %vm277, %v523, 0.0
      %543 = vadd.xlane.f32.xlu0 %v542
      %v544 = vpop.xlane.xlu0 %543
      %v545 = vsel %vm277, %v525, 0.0
      %546 = vadd.xlane.f32.xlu0 %v545
      %v547 = vpop.xlane.xlu0 %546
      %v548 = vsel %vm277, %v527, 0.0
      %549 = vadd.xlane.f32.xlu0 %v548
      %v550 = vpop.xlane.xlu0 %549
      %v551 = vsel %vm277, %v529, 0.0
      %552 = vadd.xlane.f32.xlu0 %v551
      %v553 = vpop.xlane.xlu0 %552
      %v554 = vrcp.pop %v532
      %v555 = vrcp.pop %v535
      %v556 = vrcp.pop %v538
      %v557 = vrcp.pop %v541
      %v558 = vrcp.pop %v544
      %v559 = vrcp.pop %v547
      %v560 = vrcp.pop %v550
      %v561 = vrcp.pop %v553
      %v562 = vmul.f32 %v515, %v554
      %v563 = vmul.f32 %v517, %v555
      %v564 = vmul.f32 %v519, %v556
      %v565 = vmul.f32 %v521, %v557
      %v566 = vmul.f32 %v523, %v558
      %v567 = vmul.f32 %v525, %v559
      %v568 = vmul.f32 %v527, %v560
      %v569 = vmul.f32 %v529, %v561
      %v570 = vpack.c.bf16 %v563, %v562
      %v571 = vpack.c.bf16 %v565, %v564
      %v572 = vpack.c.bf16 %v567, %v566
      %v573 = vpack.c.bf16 %v569, %v568
      %v575 = vsel %vm277, %v570, 0
      %577 = vmatprep.subr.bf16.mxu0 0
      %578 = vmatpush1.bf16.msra.mxu0 %v273
      %579 = vmatprep.subr.bf16.mxu0 0
      %580 = vmatpush1.bf16.msra.mxu0 0
      %581 = vmatprep.subr.bf16.mxu0 0
      %582 = vmatpush1.bf16.msra.mxu0 0
      %583 = vmatprep.subr.bf16.mxu0 0
      %584 = vmatpush1.bf16.msra.mxu0 0
      %585 = vmatprep.subr.bf16.mxu0 0
      %586 = vmatpush1.bf16.msra.mxu0 0
      %587 = vmatprep.subr.bf16.mxu0 0
      %588 = vmatpush1.bf16.msra.mxu0 0
      %589 = vmatprep.subr.bf16.mxu0 0
      %590 = vmatpush1.bf16.msra.mxu0 0
      %591 = vmatprep.subr.bf16.mxu0 0
      %592 = vmatpush1.bf16.msra.mxu0 0
      %593 = vmatprep.subr.bf16.mxu0 0
      %594 = vmatpush1.bf16.msra.mxu0 0
      %595 = vmatprep.subr.bf16.mxu0 0
      %596 = vmatpush1.bf16.msra.mxu0 0
      %597 = vmatprep.subr.bf16.mxu0 0
      %598 = vmatpush1.bf16.msra.mxu0 0
      %599 = vmatprep.subr.bf16.mxu0 0
      %600 = vmatpush1.bf16.msra.mxu0 0
      %601 = vmatprep.subr.bf16.mxu0 0
      %602 = vmatpush1.bf16.msra.mxu0 0
      %603 = vmatprep.subr.bf16.mxu0 0
      %604 = vmatpush1.bf16.msra.mxu0 0
      %605 = vmatprep.subr.bf16.mxu0 0
      %606 = vmatpush1.bf16.msra.mxu0 0
      %607 = vmatprep.subr.bf16.mxu0 0
      %608 = vmatpush1.bf16.msra.mxu0 0
      %609 = vmatprep.mubr.bf16.mxu0 0
      %610 = vmatmul.mubr.bf16.gmra.mrb[0].mxu0 %v575
      %v611 = vpop.f32.mrb[0].mxu0
      %v612 = vadd.f32 0.0, %v611
      %v613 = vpop.f32.mrb[0].mxu0
      %v614 = vpop.f32.mrb[0].mxu0
      %v615 = vadd.f32 0.0, %v614
      %v616 = vpop.f32.mrb[0].mxu0
      %617 = vdwg.mxu0
      %v619 = vsel %vm277, %v571, 0
      %621 = vmatprep.subr.bf16.mxu0 0
      %622 = vmatpush1.bf16.msra.mxu0 %v274
      %623 = vmatprep.subr.bf16.mxu0 0
      %624 = vmatpush1.bf16.msra.mxu0 0
      %625 = vmatprep.subr.bf16.mxu0 0
      %626 = vmatpush1.bf16.msra.mxu0 0
      %627 = vmatprep.subr.bf16.mxu0 0
      %628 = vmatpush1.bf16.msra.mxu0 0
      %629 = vmatprep.subr.bf16.mxu0 0
      %630 = vmatpush1.bf16.msra.mxu0 0
      %631 = vmatprep.subr.bf16.mxu0 0
      %632 = vmatpush1.bf16.msra.mxu0 0
      %633 = vmatprep.subr.bf16.mxu0 0
      %634 = vmatpush1.bf16.msra.mxu0 0
      %635 = vmatprep.subr.bf16.mxu0 0
      %636 = vmatpush1.bf16.msra.mxu0 0
      %637 = vmatprep.subr.bf16.mxu0 0
      %638 = vmatpush1.bf16.msra.mxu0 0
      %639 = vmatprep.subr.bf16.mxu0 0
      %640 = vmatpush1.bf16.msra.mxu0 0
      %641 = vmatprep.subr.bf16.mxu0 0
      %642 = vmatpush1.bf16.msra.mxu0 0
      %643 = vmatprep.subr.bf16.mxu0 0
      %644 = vmatpush1.bf16.msra.mxu0 0
      %645 = vmatprep.subr.bf16.mxu0 0
      %646 = vmatpush1.bf16.msra.mxu0 0
      %647 = vmatprep.subr.bf16.mxu0 0
      %648 = vmatpush1.bf16.msra.mxu0 0
      %649 = vmatprep.subr.bf16.mxu0 0
      %650 = vmatpush1.bf16.msra.mxu0 0
      %651 = vmatprep.subr.bf16.mxu0 0
      %652 = vmatpush1.bf16.msra.mxu0 0
      %653 = vmatprep.mubr.bf16.mxu0 0
      %654 = vmatmul.mubr.bf16.gmra.mrb[0].mxu0 %v619
      %v655 = vpop.f32.mrb[0].mxu0
      %v656 = vadd.f32 0.0, %v655
      %v657 = vpop.f32.mrb[0].mxu0
      %v658 = vpop.f32.mrb[0].mxu0
      %v659 = vadd.f32 0.0, %v658
      %v660 = vpop.f32.mrb[0].mxu0
      %661 = vdwg.mxu0
      %v663 = vsel %vm277, %v572, 0
      %665 = vmatprep.subr.bf16.mxu0 0
      %666 = vmatpush1.bf16.msra.mxu0 %v275
      %667 = vmatprep.subr.bf16.mxu0 0
      %668 = vmatpush1.bf16.msra.mxu0 0
      %669 = vmatprep.subr.bf16.mxu0 0
      %670 = vmatpush1.bf16.msra.mxu0 0
      %671 = vmatprep.subr.bf16.mxu0 0
      %672 = vmatpush1.bf16.msra.mxu0 0
      %673 = vmatprep.subr.bf16.mxu0 0
      %674 = vmatpush1.bf16.msra.mxu0 0
      %675 = vmatprep.subr.bf16.mxu0 0
      %676 = vmatpush1.bf16.msra.mxu0 0
      %677 = vmatprep.subr.bf16.mxu0 0
      %678 = vmatpush1.bf16.msra.mxu0 0
      %679 = vmatprep.subr.bf16.mxu0 0
      %680 = vmatpush1.bf16.msra.mxu0 0
      %681 = vmatprep.subr.bf16.mxu0 0
      %682 = vmatpush1.bf16.msra.mxu0 0
      %683 = vmatprep.subr.bf16.mxu0 0
      %684 = vmatpush1.bf16.msra.mxu0 0
      %685 = vmatprep.subr.bf16.mxu0 0
      %686 = vmatpush1.bf16.msra.mxu0 0
      %687 = vmatprep.subr.bf16.mxu0 0
      %688 = vmatpush1.bf16.msra.mxu0 0
      %689 = vmatprep.subr.bf16.mxu0 0
      %690 = vmatpush1.bf16.msra.mxu0 0
      %691 = vmatprep.subr.bf16.mxu0 0
      %692 = vmatpush1.bf16.msra.mxu0 0
      %693 = vmatprep.subr.bf16.mxu0 0
      %694 = vmatpush1.bf16.msra.mxu0 0
      %695 = vmatprep.subr.bf16.mxu0 0
      %696 = vmatpush1.bf16.msra.mxu0 0
      %697 = vmatprep.mubr.bf16.mxu0 0
      %698 = vmatmul.mubr.bf16.gmra.mrb[0].mxu0 %v663
      %v699 = vpop.f32.mrb[0].mxu0
      %v700 = vadd.f32 0.0, %v699
      %v701 = vpop.f32.mrb[0].mxu0
      %v702 = vpop.f32.mrb[0].mxu0
      %v703 = vadd.f32 0.0, %v702
      %v704 = vpop.f32.mrb[0].mxu0
      %705 = vdwg.mxu0
      %v707 = vsel %vm277, %v573, 0
      %709 = vmatprep.subr.bf16.mxu0 0
      %710 = vmatpush1.bf16.msra.mxu0 %v276
      %711 = vmatprep.subr.bf16.mxu0 0
      %712 = vmatpush1.bf16.msra.mxu0 0
      %713 = vmatprep.subr.bf16.mxu0 0
      %714 = vmatpush1.bf16.msra.mxu0 0
      %715 = vmatprep.subr.bf16.mxu0 0
      %716 = vmatpush1.bf16.msra.mxu0 0
      %717 = vmatprep.subr.bf16.mxu0 0
      %718 = vmatpush1.bf16.msra.mxu0 0
      %719 = vmatprep.subr.bf16.mxu0 0
      %720 = vmatpush1.bf16.msra.mxu0 0
      %721 = vmatprep.subr.bf16.mxu0 0
      %722 = vmatpush1.bf16.msra.mxu0 0
      %723 = vmatprep.subr.bf16.mxu0 0
      %724 = vmatpush1.bf16.msra.mxu0 0
      %725 = vmatprep.subr.bf16.mxu0 0
      %726 = vmatpush1.bf16.msra.mxu0 0
      %727 = vmatprep.subr.bf16.mxu0 0
      %728 = vmatpush1.bf16.msra.mxu0 0
      %729 = vmatprep.subr.bf16.mxu0 0
      %730 = vmatpush1.bf16.msra.mxu0 0
      %731 = vmatprep.subr.bf16.mxu0 0
      %732 = vmatpush1.bf16.msra.mxu0 0
      %733 = vmatprep.subr.bf16.mxu0 0
      %734 = vmatpush1.bf16.msra.mxu0 0
      %735 = vmatprep.subr.bf16.mxu0 0
      %736 = vmatpush1.bf16.msra.mxu0 0
      %737 = vmatprep.subr.bf16.mxu0 0
      %738 = vmatpush1.bf16.msra.mxu0 0
      %739 = vmatprep.subr.bf16.mxu0 0
      %740 = vmatpush1.bf16.msra.mxu0 0
      %741 = vmatprep.mubr.bf16.mxu0 0
      %742 = vmatmul.mubr.bf16.gmra.mrb[0].mxu0 %v707
      %v743 = vpop.f32.mrb[0].mxu0
      %v744 = vadd.f32 0.0, %v743
      %v745 = vpop.f32.mrb[0].mxu0
      %v746 = vpop.f32.mrb[0].mxu0
      %v747 = vadd.f32 0.0, %v746
      %v748 = vpop.f32.mrb[0].mxu0
      %749 = vdwg.mxu0
      %750 = vst.msk [vmem:[%s237] sm:$0xff] %vm277, %v612
      %751 = vst.msk [vmem:[%s237 + $0x8] sm:$0xff] %vm277, %v615
      %752 = vst.msk [vmem:[%s237 + $0x10] sm:$0xff] %vm277, %v656
      %753 = vst.msk [vmem:[%s237 + $0x18] sm:$0xff] %vm277, %v659
      %754 = vst.msk [vmem:[%s237 + $0x20] sm:$0xff] %vm277, %v700
      %755 = vst.msk [vmem:[%s237 + $0x28] sm:$0xff] %vm277, %v703
      %756 = vst.msk [vmem:[%s237 + $0x30] sm:$0xff] %vm277, %v744
      %757 = vst.msk [vmem:[%s237 + $0x38] sm:$0xff] %vm277, %v747
      %s758 = scalar_lea.vmem %s222, 64
      %v759 = vld [vmem:[%s758] sm:$0xff]
      %v760 = vld [vmem:[%s758 + $0x8] sm:$0xff]
      %v761 = vld [vmem:[%s758 + $0x10] sm:$0xff]
      %v762 = vld [vmem:[%s758 + $0x18] sm:$0xff]
      %v763 = vld [vmem:[%s758 + $0x20] sm:$0xff]
      %v764 = vld [vmem:[%s758 + $0x28] sm:$0xff]
      %v765 = vld [vmem:[%s758 + $0x30] sm:$0xff]
      %v766 = vld [vmem:[%s758 + $0x38] sm:$0xff]
      %v767 = vpack.c.bf16 %v760, %v759
      %v768 = vpack.c.bf16 %v762, %v761
      %v769 = vpack.c.bf16 %v764, %v763
      %v770 = vpack.c.bf16 %v766, %v765
      %s771 = scalar_lea.vmem %s227, 64
      %v772 = vld [vmem:[%s771] sm:$0xff]
      %v773 = vld [vmem:[%s771 + $0x8] sm:$0xff]
      %v774 = vld [vmem:[%s771 + $0x10] sm:$0xff]
      %v775 = vld [vmem:[%s771 + $0x18] sm:$0xff]
      %v776 = vld [vmem:[%s771 + $0x20] sm:$0xff]
      %v777 = vld [vmem:[%s771 + $0x28] sm:$0xff]
      %v778 = vld [vmem:[%s771 + $0x30] sm:$0xff]
      %v779 = vld [vmem:[%s771 + $0x38] sm:$0xff]
      %v780 = vpack.c.bf16 %v773, %v772
      %v781 = vpack.c.bf16 %v775, %v774
      %v782 = vpack.c.bf16 %v777, %v776
      %v783 = vpack.c.bf16 %v779, %v778
      %s784 = scalar_lea.vmem %s232, 64
      %v785 = vld [vmem:[%s784] sm:$0xff]
      %v786 = vld [vmem:[%s784 + $0x8] sm:$0xff]
      %v787 = vld [vmem:[%s784 + $0x10] sm:$0xff]
      %v788 = vld [vmem:[%s784 + $0x18] sm:$0xff]
      %v789 = vld [vmem:[%s784 + $0x20] sm:$0xff]
      %v790 = vld [vmem:[%s784 + $0x28] sm:$0xff]
      %v791 = vld [vmem:[%s784 + $0x30] sm:$0xff]
      %v792 = vld [vmem:[%s784 + $0x38] sm:$0xff]
      %v793 = vpack.c.bf16 %v786, %v785
      %v794 = vpack.c.bf16 %v788, %v787
      %v795 = vpack.c.bf16 %v790, %v789
      %v796 = vpack.c.bf16 %v792, %v791
      %v798 = vsel %vm277, %v767, 0
      %v801 = vsel %vm277, %v780, 0
      %803 = vmatprep.subr.bf16.mxu0 0
      %804 = vmatpush1.bf16.xpose.msra.mxu0 %v801
      %805 = vmatprep.subr.bf16.mxu0 0
      %806 = vmatpush1.bf16.xpose.msra.mxu0 0
      %807 = vmatprep.subr.bf16.mxu0 0
      %808 = vmatpush1.bf16.xpose.msra.mxu0 0
      %809 = vmatprep.subr.bf16.mxu0 0
      %810 = vmatpush1.bf16.xpose.msra.mxu0 0
      %811 = vmatprep.subr.bf16.mxu0 0
      %812 = vmatpush1.bf16.xpose.msra.mxu0 0
      %813 = vmatprep.subr.bf16.mxu0 0
      %814 = vmatpush1.bf16.xpose.msra.mxu0 0
      %815 = vmatprep.subr.bf16.mxu0 0
      %816 = vmatpush1.bf16.xpose.msra.mxu0 0
      %817 = vmatprep.subr.bf16.mxu0 0
      %818 = vmatpush1.bf16.xpose.msra.mxu0 0
      %819 = vmatprep.subr.bf16.mxu0 0
      %820 = vmatpush1.bf16.xpose.msra.mxu0 0
      %821 = vmatprep.subr.bf16.mxu0 0
      %822 = vmatpush1.bf16.xpose.msra.mxu0 0
      %823 = vmatprep.subr.bf16.mxu0 0
      %824 = vmatpush1.bf16.xpose.msra.mxu0 0
      %825 = vmatprep.subr.bf16.mxu0 0
      %826 = vmatpush1.bf16.xpose.msra.mxu0 0
      %827 = vmatprep.subr.bf16.mxu0 0
      %828 = vmatpush1.bf16.xpose.msra.mxu0 0
      %829 = vmatprep.subr.bf16.mxu0 0
      %830 = vmatpush1.bf16.xpose.msra.mxu0 0
      %831 = vmatprep.subr.bf16.mxu0 0
      %832 = vmatpush1.bf16.xpose.msra.mxu0 0
      %833 = vmatprep.subr.bf16.mxu0 0
      %834 = vmatpush1.bf16.xpose.msra.mxu0 0
      %835 = vmatprep.mubr.bf16.mxu0 0
      %836 = vmatmul.mubr.bf16.gmra.mrb[0].mxu0 %v798
      %v837 = vpop.f32.mrb[0].mxu0
      %v838 = vadd.f32 0.0, %v837
      %v839 = vpop.f32.mrb[0].mxu0
      %v840 = vpop.f32.mrb[0].mxu0
      %v841 = vadd.f32 0.0, %v840
      %v842 = vpop.f32.mrb[0].mxu0
      %843 = vdwg.mxu0
      %v845 = vsel %vm277, %v768, 0
      %v848 = vsel %vm277, %v781, 0
      %850 = vmatprep.subr.bf16.mxu0 0
      %851 = vmatpush1.bf16.xpose.msra.mxu0 %v848
      %852 = vmatprep.subr.bf16.mxu0 0
      %853 = vmatpush1.bf16.xpose.msra.mxu0 0
      %854 = vmatprep.subr.bf16.mxu0 0
      %855 = vmatpush1.bf16.xpose.msra.mxu0 0
      %856 = vmatprep.subr.bf16.mxu0 0
      %857 = vmatpush1.bf16.xpose.msra.mxu0 0
      %858 = vmatprep.subr.bf16.mxu0 0
      %859 = vmatpush1.bf16.xpose.msra.mxu0 0
      %860 = vmatprep.subr.bf16.mxu0 0
      %861 = vmatpush1.bf16.xpose.msra.mxu0 0
      %862 = vmatprep.subr.bf16.mxu0 0
      %863 = vmatpush1.bf16.xpose.msra.mxu0 0
      %864 = vmatprep.subr.bf16.mxu0 0
      %865 = vmatpush1.bf16.xpose.msra.mxu0 0
      %866 = vmatprep.subr.bf16.mxu0 0
      %867 = vmatpush1.bf16.xpose.msra.mxu0 0
      %868 = vmatprep.subr.bf16.mxu0 0
      %869 = vmatpush1.bf16.xpose.msra.mxu0 0
      %870 = vmatprep.subr.bf16.mxu0 0
      %871 = vmatpush1.bf16.xpose.msra.mxu0 0
      %872 = vmatprep.subr.bf16.mxu0 0
      %873 = vmatpush1.bf16.xpose.msra.mxu0 0
      %874 = vmatprep.subr.bf16.mxu0 0
      %875 = vmatpush1.bf16.xpose.msra.mxu0 0
      %876 = vmatprep.subr.bf16.mxu0 0
      %877 = vmatpush1.bf16.xpose.msra.mxu0 0
      %878 = vmatprep.subr.bf16.mxu0 0
      %879 = vmatpush1.bf16.xpose.msra.mxu0 0
      %880 = vmatprep.subr.bf16.mxu0 0
      %881 = vmatpush1.bf16.xpose.msra.mxu0 0
      %882 = vmatprep.mubr.bf16.mxu0 0
      %883 = vmatmul.mubr.bf16.gmra.mrb[0].mxu0 %v845
      %v884 = vpop.f32.mrb[0].mxu0
      %v885 = vadd.f32 0.0, %v884
      %v886 = vpop.f32.mrb[0].mxu0
      %v887 = vpop.f32.mrb[0].mxu0
      %v888 = vadd.f32 0.0, %v887
      %v889 = vpop.f32.mrb[0].mxu0
      %890 = vdwg.mxu0
      %v892 = vsel %vm277, %v769, 0
      %v895 = vsel %vm277, %v782, 0
      %897 = vmatprep.subr.bf16.mxu0 0
      %898 = vmatpush1.bf16.xpose.msra.mxu0 %v895
      %899 = vmatprep.subr.bf16.mxu0 0
      %900 = vmatpush1.bf16.xpose.msra.mxu0 0
      %901 = vmatprep.subr.bf16.mxu0 0
      %902 = vmatpush1.bf16.xpose.msra.mxu0 0
      %903 = vmatprep.subr.bf16.mxu0 0
      %904 = vmatpush1.bf16.xpose.msra.mxu0 0
      %905 = vmatprep.subr.bf16.mxu0 0
      %906 = vmatpush1.bf16.xpose.msra.mxu0 0
      %907 = vmatprep.subr.bf16.mxu0 0
      %908 = vmatpush1.bf16.xpose.msra.mxu0 0
      %909 = vmatprep.subr.bf16.mxu0 0
      %910 = vmatpush1.bf16.xpose.msra.mxu0 0
      %911 = vmatprep.subr.bf16.mxu0 0
      %912 = vmatpush1.bf16.xpose.msra.mxu0 0
      %913 = vmatprep.subr.bf16.mxu0 0
      %914 = vmatpush1.bf16.xpose.msra.mxu0 0
      %915 = vmatprep.subr.bf16.mxu0 0
      %916 = vmatpush1.bf16.xpose.msra.mxu0 0
      %917 = vmatprep.subr.bf16.mxu0 0
      %918 = vmatpush1.bf16.xpose.msra.mxu0 0
      %919 = vmatprep.subr.bf16.mxu0 0
      %920 = vmatpush1.bf16.xpose.msra.mxu0 0
      %921 = vmatprep.subr.bf16.mxu0 0
      %922 = vmatpush1.bf16.xpose.msra.mxu0 0
      %923 = vmatprep.subr.bf16.mxu0 0
      %924 = vmatpush1.bf16.xpose.msra.mxu0 0
      %925 = vmatprep.subr.bf16.mxu0 0
      %926 = vmatpush1.bf16.xpose.msra.mxu0 0
      %927 = vmatprep.subr.bf16.mxu0 0
      %928 = vmatpush1.bf16.xpose.msra.mxu0 0
      %929 = vmatprep.mubr.bf16.mxu0 0
      %930 = vmatmul.mubr.bf16.gmra.mrb[0].mxu0 %v892
      %v931 = vpop.f32.mrb[0].mxu0
      %v932 = vadd.f32 0.0, %v931
      %v933 = vpop.f32.mrb[0].mxu0
      %v934 = vpop.f32.mrb[0].mxu0
      %v935 = vadd.f32 0.0, %v934
      %v936 = vpop.f32.mrb[0].mxu0
      %937 = vdwg.mxu0
      %v939 = vsel %vm277, %v770, 0
      %v942 = vsel %vm277, %v783, 0
      %944 = vmatprep.subr.bf16.mxu0 0
      %945 = vmatpush1.bf16.xpose.msra.mxu0 %v942
      %946 = vmatprep.subr.bf16.mxu0 0
      %947 = vmatpush1.bf16.xpose.msra.mxu0 0
      %948 = vmatprep.subr.bf16.mxu0 0
      %949 = vmatpush1.bf16.xpose.msra.mxu0 0
      %950 = vmatprep.subr.bf16.mxu0 0
      %951 = vmatpush1.bf16.xpose.msra.mxu0 0
      %952 = vmatprep.subr.bf16.mxu0 0
      %953 = vmatpush1.bf16.xpose.msra.mxu0 0
      %954 = vmatprep.subr.bf16.mxu0 0
      %955 = vmatpush1.bf16.xpose.msra.mxu0 0
      %956 = vmatprep.subr.bf16.mxu0 0
      %957 = vmatpush1.bf16.xpose.msra.mxu0 0
      %958 = vmatprep.subr.bf16.mxu0 0
      %959 = vmatpush1.bf16.xpose.msra.mxu0 0
      %960 = vmatprep.subr.bf16.mxu0 0
      %961 = vmatpush1.bf16.xpose.msra.mxu0 0
      %962 = vmatprep.subr.bf16.mxu0 0
      %963 = vmatpush1.bf16.xpose.msra.mxu0 0
      %964 = vmatprep.subr.bf16.mxu0 0
      %965 = vmatpush1.bf16.xpose.msra.mxu0 0
      %966 = vmatprep.subr.bf16.mxu0 0
      %967 = vmatpush1.bf16.xpose.msra.mxu0 0
      %968 = vmatprep.subr.bf16.mxu0 0
      %969 = vmatpush1.bf16.xpose.msra.mxu0 0
      %970 = vmatprep.subr.bf16.mxu0 0
      %971 = vmatpush1.bf16.xpose.msra.mxu0 0
      %972 = vmatprep.subr.bf16.mxu0 0
      %973 = vmatpush1.bf16.xpose.msra.mxu0 0
      %974 = vmatprep.subr.bf16.mxu0 0
      %975 = vmatpush1.bf16.xpose.msra.mxu0 0
      %976 = vmatprep.mubr.bf16.mxu0 0
      %977 = vmatmul.mubr.bf16.gmra.mrb[0].mxu0 %v939
      %v978 = vpop.f32.mrb[0].mxu0
      %v979 = vadd.f32 0.0, %v978
      %v980 = vpop.f32.mrb[0].mxu0
      %v981 = vpop.f32.mrb[0].mxu0
      %v982 = vadd.f32 0.0, %v981
      %v983 = vpop.f32.mrb[0].mxu0
      %984 = vdwg.mxu0
      %v985 = vmul.f32 %v838, 0.25
      %v986 = vmul.f32 %v841, 0.25
      %v987 = vmul.f32 %v885, 0.25
      %v988 = vmul.f32 %v888, 0.25
      %v989 = vmul.f32 %v932, 0.25
      %v990 = vmul.f32 %v935, 0.25
      %v991 = vmul.f32 %v979, 0.25
      %v992 = vmul.f32 %v982, 0.25
      %v993 = vadd.f32 %v985, %v239
      %v994 = vadd.f32 %v986, %v240
      %v995 = vadd.f32 %v987, %v239
      %v996 = vadd.f32 %v988, %v240
      %v997 = vadd.f32 %v989, %v239
      %v998 = vadd.f32 %v990, %v240
      %v999 = vadd.f32 %v991, %v239
      %v1000 = vadd.f32 %v992, %v240
      %v1001 = vsel %vm277, %v993, -inf
      %1002 = vmax.xlane.f32.xlu0 %v1001
      %v1003 = vpop.xlane.xlu0 %1002
      %v1004 = vsel %vm277, %v994, -inf
      %1005 = vmax.xlane.f32.xlu0 %v1004
      %v1006 = vpop.xlane.xlu0 %1005
      %v1007 = vsel %vm277, %v995, -inf
      %1008 = vmax.xlane.f32.xlu0 %v1007
      %v1009 = vpop.xlane.xlu0 %1008
      %v1010 = vsel %vm277, %v996, -inf
      %1011 = vmax.xlane.f32.xlu0 %v1010
      %v1012 = vpop.xlane.xlu0 %1011
      %v1013 = vsel %vm277, %v997, -inf
      %1014 = vmax.xlane.f32.xlu0 %v1013
      %v1015 = vpop.xlane.xlu0 %1014
      %v1016 = vsel %vm277, %v998, -inf
      %1017 = vmax.xlane.f32.xlu0 %v1016
      %v1018 = vpop.xlane.xlu0 %1017
      %v1019 = vsel %vm277, %v999, -inf
      %1020 = vmax.xlane.f32.xlu0 %v1019
      %v1021 = vpop.xlane.xlu0 %1020
      %v1022 = vsel %vm277, %v1000, -inf
      %1023 = vmax.xlane.f32.xlu0 %v1022
      %v1024 = vpop.xlane.xlu0 %1023
      %v1025 = vsub.f32 %v993, %v1003
      %v1026 = vsub.f32 %v994, %v1006
      %v1027 = vsub.f32 %v995, %v1009
      %v1028 = vsub.f32 %v996, %v1012
      %v1029 = vsub.f32 %v997, %v1015
      %v1030 = vsub.f32 %v998, %v1018
      %v1031 = vsub.f32 %v999, %v1021
      %v1032 = vsub.f32 %v1000, %v1024
      %v1033 = vmul.f32 %v1025, 1.442695
      %v1034 = vpow.pop %v1033
      %v1035 = vmul.f32 %v1026, 1.442695
      %v1036 = vpow.pop %v1035
      %v1037 = vmul.f32 %v1027, 1.442695
      %v1038 = vpow.pop %v1037
      %v1039 = vmul.f32 %v1028, 1.442695
      %v1040 = vpow.pop %v1039
      %v1041 = vmul.f32 %v1029, 1.442695
      %v1042 = vpow.pop %v1041
      %v1043 = vmul.f32 %v1030, 1.442695
      %v1044 = vpow.pop %v1043
      %v1045 = vmul.f32 %v1031, 1.442695
      %v1046 = vpow.pop %v1045
      %v1047 = vmul.f32 %v1032, 1.442695
      %v1048 = vpow.pop %v1047
      %v1049 = vsel %vm277, %v1034, 0.0
      %1050 = vadd.xlane.f32.xlu0 %v1049
      %v1051 = vpop.xlane.xlu0 %1050
      %v1052 = vsel %vm277, %v1036, 0.0
      %1053 = vadd.xlane.f32.xlu0 %v1052
      %v1054 = vpop.xlane.xlu0 %1053
      %v1055 = vsel %vm277, %v1038, 0.0
      %1056 = vadd.xlane.f32.xlu0 %v1055
      %v1057 = vpop.xlane.xlu0 %1056
      %v1058 = vsel %vm277, %v1040, 0.0
      %1059 = vadd.xlane.f32.xlu0 %v1058
      %v1060 = vpop.xlane.xlu0 %1059
      %v1061 = vsel %vm277, %v1042, 0.0
      %1062 = vadd.xlane.f32.xlu0 %v1061
      %v1063 = vpop.xlane.xlu0 %1062
      %v1064 = vsel %vm277, %v1044, 0.0
      %1065 = vadd.xlane.f32.xlu0 %v1064
      %v1066 = vpop.xlane.xlu0 %1065
      %v1067 = vsel %vm277, %v1046, 0.0
      %1068 = vadd.xlane.f32.xlu0 %v1067
      %v1069 = vpop.xlane.xlu0 %1068
      %v1070 = vsel %vm277, %v1048, 0.0
      %1071 = vadd.xlane.f32.xlu0 %v1070
      %v1072 = vpop.xlane.xlu0 %1071
      %v1073 = vrcp.pop %v1051
      %v1074 = vrcp.pop %v1054
      %v1075 = vrcp.pop %v1057
      %v1076 = vrcp.pop %v1060
      %v1077 = vrcp.pop %v1063
      %v1078 = vrcp.pop %v1066
      %v1079 = vrcp.pop %v1069
      %v1080 = vrcp.pop %v1072
      %v1081 = vmul.f32 %v1034, %v1073
      %v1082 = vmul.f32 %v1036, %v1074
      %v1083 = vmul.f32 %v1038, %v1075
      %v1084 = vmul.f32 %v1040, %v1076
      %v1085 = vmul.f32 %v1042, %v1077
      %v1086 = vmul.f32 %v1044, %v1078
      %v1087 = vmul.f32 %v1046, %v1079
      %v1088 = vmul.f32 %v1048, %v1080
      %v1089 = vpack.c.bf16 %v1082, %v1081
      %v1090 = vpack.c.bf16 %v1084, %v1083
      %v1091 = vpack.c.bf16 %v1086, %v1085
      %v1092 = vpack.c.bf16 %v1088, %v1087
      %v1094 = vsel %vm277, %v1089, 0
      %1096 = vmatprep.subr.bf16.mxu0 0
      %1097 = vmatpush1.bf16.msra.mxu0 %v793
      %1098 = vmatprep.subr.bf16.mxu0 0
      %1099 = vmatpush1.bf16.msra.mxu0 0
      %1100 = vmatprep.subr.bf16.mxu0 0
      %1101 = vmatpush1.bf16.msra.mxu0 0
      %1102 = vmatprep.subr.bf16.mxu0 0
      %1103 = vmatpush1.bf16.msra.mxu0 0
      %1104 = vmatprep.subr.bf16.mxu0 0
      %1105 = vmatpush1.bf16.msra.mxu0 0
      %1106 = vmatprep.subr.bf16.mxu0 0
      %1107 = vmatpush1.bf16.msra.mxu0 0
      %1108 = vmatprep.subr.bf16.mxu0 0
      %1109 = vmatpush1.bf16.msra.mxu0 0
      %1110 = vmatprep.subr.bf16.mxu0 0
      %1111 = vmatpush1.bf16.msra.mxu0 0
      %1112 = vmatprep.subr.bf16.mxu0 0
      %1113 = vmatpush1.bf16.msra.mxu0 0
      %1114 = vmatprep.subr.bf16.mxu0 0
      %1115 = vmatpush1.bf16.msra.mxu0 0
      %1116 = vmatprep.subr.bf16.mxu0 0
      %1117 = vmatpush1.bf16.msra.mxu0 0
      %1118 = vmatprep.subr.bf16.mxu0 0
      %1119 = vmatpush1.bf16.msra.mxu0 0
      %1120 = vmatprep.subr.bf16.mxu0 0
      %1121 = vmatpush1.bf16.msra.mxu0 0
      %1122 = vmatprep.subr.bf16.mxu0 0
      %1123 = vmatpush1.bf16.msra.mxu0 0
      %1124 = vmatprep.subr.bf16.mxu0 0
      %1125 = vmatpush1.bf16.msra.mxu0 0
      %1126 = vmatprep.subr.bf16.mxu0 0
      %1127 = vmatpush1.bf16.msra.mxu0 0
      %1128 = vmatprep.mubr.bf16.mxu0 0
      %1129 = vmatmul.mubr.bf16.gmra.mrb[0].mxu0 %v1094
      %v1130 = vpop.f32.mrb[0].mxu0
      %v1131 = vadd.f32 0.0, %v1130
      %v1132 = vpop.f32.mrb[0].mxu0
      %v1133 = vpop.f32.mrb[0].mxu0
      %v1134 = vadd.f32 0.0, %v1133
      %v1135 = vpop.f32.mrb[0].mxu0
      %1136 = vdwg.mxu0
      %v1138 = vsel %vm277, %v1090, 0
      %1140 = vmatprep.subr.bf16.mxu0 0
      %1141 = vmatpush1.bf16.msra.mxu0 %v794
      %1142 = vmatprep.subr.bf16.mxu0 0
      %1143 = vmatpush1.bf16.msra.mxu0 0
      %1144 = vmatprep.subr.bf16.mxu0 0
      %1145 = vmatpush1.bf16.msra.mxu0 0
      %1146 = vmatprep.subr.bf16.mxu0 0
      %1147 = vmatpush1.bf16.msra.mxu0 0
      %1148 = vmatprep.subr.bf16.mxu0 0
      %1149 = vmatpush1.bf16.msra.mxu0 0
      %1150 = vmatprep.subr.bf16.mxu0 0
      %1151 = vmatpush1.bf16.msra.mxu0 0
      %1152 = vmatprep.subr.bf16.mxu0 0
      %1153 = vmatpush1.bf16.msra.mxu0 0
      %1154 = vmatprep.subr.bf16.mxu0 0
      %1155 = vmatpush1.bf16.msra.mxu0 0
      %1156 = vmatprep.subr.bf16.mxu0 0
      %1157 = vmatpush1.bf16.msra.mxu0 0
      %1158 = vmatprep.subr.bf16.mxu0 0
      %1159 = vmatpush1.bf16.msra.mxu0 0
      %1160 = vmatprep.subr.bf16.mxu0 0
      %1161 = vmatpush1.bf16.msra.mxu0 0
      %1162 = vmatprep.subr.bf16.mxu0 0
      %1163 = vmatpush1.bf16.msra.mxu0 0
      %1164 = vmatprep.subr.bf16.mxu0 0
      %1165 = vmatpush1.bf16.msra.mxu0 0
      %1166 = vmatprep.subr.bf16.mxu0 0
      %1167 = vmatpush1.bf16.msra.mxu0 0
      %1168 = vmatprep.subr.bf16.mxu0 0
      %1169 = vmatpush1.bf16.msra.mxu0 0
      %1170 = vmatprep.subr.bf16.mxu0 0
      %1171 = vmatpush1.bf16.msra.mxu0 0
      %1172 = vmatprep.mubr.bf16.mxu0 0
      %1173 = vmatmul.mubr.bf16.gmra.mrb[0].mxu0 %v1138
      %v1174 = vpop.f32.mrb[0].mxu0
      %v1175 = vadd.f32 0.0, %v1174
      %v1176 = vpop.f32.mrb[0].mxu0
      %v1177 = vpop.f32.mrb[0].mxu0
      %v1178 = vadd.f32 0.0, %v1177
      %v1179 = vpop.f32.mrb[0].mxu0
      %1180 = vdwg.mxu0
      %v1182 = vsel %vm277, %v1091, 0
      %1184 = vmatprep.subr.bf16.mxu0 0
      %1185 = vmatpush1.bf16.msra.mxu0 %v795
      %1186 = vmatprep.subr.bf16.mxu0 0
      %1187 = vmatpush1.bf16.msra.mxu0 0
      %1188 = vmatprep.subr.bf16.mxu0 0
      %1189 = vmatpush1.bf16.msra.mxu0 0
      %1190 = vmatprep.subr.bf16.mxu0 0
      %1191 = vmatpush1.bf16.msra.mxu0 0
      %1192 = vmatprep.subr.bf16.mxu0 0
      %1193 = vmatpush1.bf16.msra.mxu0 0
      %1194 = vmatprep.subr.bf16.mxu0 0
      %1195 = vmatpush1.bf16.msra.mxu0 0
      %1196 = vmatprep.subr.bf16.mxu0 0
      %1197 = vmatpush1.bf16.msra.mxu0 0
      %1198 = vmatprep.subr.bf16.mxu0 0
      %1199 = vmatpush1.bf16.msra.mxu0 0
      %1200 = vmatprep.subr.bf16.mxu0 0
      %1201 = vmatpush1.bf16.msra.mxu0 0
      %1202 = vmatprep.subr.bf16.mxu0 0
      %1203 = vmatpush1.bf16.msra.mxu0 0
      %1204 = vmatprep.subr.bf16.mxu0 0
      %1205 = vmatpush1.bf16.msra.mxu0 0
      %1206 = vmatprep.subr.bf16.mxu0 0
      %1207 = vmatpush1.bf16.msra.mxu0 0
      %1208 = vmatprep.subr.bf16.mxu0 0
      %1209 = vmatpush1.bf16.msra.mxu0 0
      %1210 = vmatprep.subr.bf16.mxu0 0
      %1211 = vmatpush1.bf16.msra.mxu0 0
      %1212 = vmatprep.subr.bf16.mxu0 0
      %1213 = vmatpush1.bf16.msra.mxu0 0
      %1214 = vmatprep.subr.bf16.mxu0 0
      %1215 = vmatpush1.bf16.msra.mxu0 0
      %1216 = vmatprep.mubr.bf16.mxu0 0
      %1217 = vmatmul.mubr.bf16.gmra.mrb[0].mxu0 %v1182
      %v1218 = vpop.f32.mrb[0].mxu0
      %v1219 = vadd.f32 0.0, %v1218
      %v1220 = vpop.f32.mrb[0].mxu0
      %v1221 = vpop.f32.mrb[0].mxu0
      %v1222 = vadd.f32 0.0, %v1221
      %v1223 = vpop.f32.mrb[0].mxu0
      %1224 = vdwg.mxu0
      %v1226 = vsel %vm277, %v1092, 0
      %1228 = vmatprep.subr.bf16.mxu0 0
      %1229 = vmatpush1.bf16.msra.mxu0 %v796
      %1230 = vmatprep.subr.bf16.mxu0 0
      %1231 = vmatpush1.bf16.msra.mxu0 0
      %1232 = vmatprep.subr.bf16.mxu0 0
      %1233 = vmatpush1.bf16.msra.mxu0 0
      %1234 = vmatprep.subr.bf16.mxu0 0
      %1235 = vmatpush1.bf16.msra.mxu0 0
      %1236 = vmatprep.subr.bf16.mxu0 0
      %1237 = vmatpush1.bf16.msra.mxu0 0
      %1238 = vmatprep.subr.bf16.mxu0 0
      %1239 = vmatpush1.bf16.msra.mxu0 0
      %1240 = vmatprep.subr.bf16.mxu0 0
      %1241 = vmatpush1.bf16.msra.mxu0 0
      %1242 = vmatprep.subr.bf16.mxu0 0
      %1243 = vmatpush1.bf16.msra.mxu0 0
      %1244 = vmatprep.subr.bf16.mxu0 0
      %1245 = vmatpush1.bf16.msra.mxu0 0
      %1246 = vmatprep.subr.bf16.mxu0 0
      %1247 = vmatpush1.bf16.msra.mxu0 0
      %1248 = vmatprep.subr.bf16.mxu0 0
      %1249 = vmatpush1.bf16.msra.mxu0 0
      %1250 = vmatprep.subr.bf16.mxu0 0
      %1251 = vmatpush1.bf16.msra.mxu0 0
      %1252 = vmatprep.subr.bf16.mxu0 0
      %1253 = vmatpush1.bf16.msra.mxu0 0
      %1254 = vmatprep.subr.bf16.mxu0 0
      %1255 = vmatpush1.bf16.msra.mxu0 0
      %1256 = vmatprep.subr.bf16.mxu0 0
      %1257 = vmatpush1.bf16.msra.mxu0 0
      %1258 = vmatprep.subr.bf16.mxu0 0
      %1259 = vmatpush1.bf16.msra.mxu0 0
      %1260 = vmatprep.mubr.bf16.mxu0 0
      %1261 = vmatmul.mubr.bf16.gmra.mrb[0].mxu0 %v1226
      %v1262 = vpop.f32.mrb[0].mxu0
      %v1263 = vadd.f32 0.0, %v1262
      %v1264 = vpop.f32.mrb[0].mxu0
      %v1265 = vpop.f32.mrb[0].mxu0
      %v1266 = vadd.f32 0.0, %v1265
      %v1267 = vpop.f32.mrb[0].mxu0
      %1268 = vdwg.mxu0
      %s1269 = scalar_lea.vmem %s237, 64
      %1270 = vst.msk [vmem:[%s1269] sm:$0xff] %vm277, %v1131
      %1271 = vst.msk [vmem:[%s1269 + $0x8] sm:$0xff] %vm277, %v1134
      %1272 = vst.msk [vmem:[%s1269 + $0x10] sm:$0xff] %vm277, %v1175
      %1273 = vst.msk [vmem:[%s1269 + $0x18] sm:$0xff] %vm277, %v1178
      %1274 = vst.msk [vmem:[%s1269 + $0x20] sm:$0xff] %vm277, %v1219
      %1275 = vst.msk [vmem:[%s1269 + $0x28] sm:$0xff] %vm277, %v1222
      %1276 = vst.msk [vmem:[%s1269 + $0x30] sm:$0xff] %vm277, %v1263
      %1277 = vst.msk [vmem:[%s1269 + $0x38] sm:$0xff] %vm277, %v1266
      %p1278 = scmp.lt.s32.totalorder %s15, 1
      %s1279 = scalar_select %p1278, %s15, 1
      %s1280 = smul.addr %s1279, 16
      %s1281 = smul.addr %s1280, 8
      %s1282 = scalar_lea.vmem %s4, %s1281
      // Predicated region
      $region37: #{swin_module_forward.11} parent=35 // pred_check
        %p1283 = pneg %p132
      $region38: #{swin_module_forward.11} parent=35 // pred_check_branch
        %1285 = sbr.rel (%p1283) target = $region40
      $region39: #{swin_module_forward.11} parent=35 // pred_region
        _
      $region40: #{swin_module_forward.11} parent=35 // pred_fallthru
        _
    $region36: #{swin_module_forward.11} parent=5 // pred_fallthru
      _
    %p1286 = scmp.le.s32.totalorder 2, %s10
    // Predicated region
    $region41: #{swin_module_forward.11} parent=5 // pred_check
      %p1287 = pneg %p1286
    $region42: #{swin_module_forward.11} parent=5 // pred_check_branch
      %1289 = sbr.rel (%p1287) target = $region44
    $region43: #{swin_module_forward.11} parent=5 // pred_region
      %s1290 = ssub.s32 %s10, 2
      // Predicated region
      $region45: #{swin_module_forward.11} parent=43 // pred_check
        %p1291 = pneg %p138
      $region46: #{swin_module_forward.11} parent=43 // pred_check_branch
        %1293 = sbr.rel (%p1291) target = $region48
      $region47: #{swin_module_forward.11} parent=43 // pred_region
        %p1294 = scmp.lt.s32.totalorder %s16, 1
        %s1295 = scalar_select %p1294, %s16, 1
        %s1296 = smul.addr %s1295, 16
        %s1297 = smul.addr %s1296, 8
        %s1298 = scalar_lea.vmem %s4, %s1297
      $region48: #{swin_module_forward.11} parent=43 // pred_fallthru
        _
    $region44: #{swin_module_forward.11} parent=5 // pred_fallthru
      _
  $region6: #{swin_module_forward.11} parent=0 // loop_footer
    %s14 = sadd.s32 1, %s10
  $region7: #{swin_module_forward.11} parent=0 // loop_footer_branch
    %9 = sbr.rel target = $region3
  $region8: #{swin_module_forward.11} parent=0 // loop_exit
    _

// kernel: swin_module_forward.13
$region0: #{swin_module_forward.13}
  #allocation0 [shape = 'u32[]', space=smem, size = 0x4, offset = 0x4, fixed_abs, tag = 'smem constant byte address 0x4 - core index']
  #allocation1 [shape = 'u32[144,128]{1,0:T(1,128)}', space=vmem, size = 0x12000, scoped, tag = 'internal scratch']
  %s0 = inlined_call_operand.vmem [shape: f32[128,32], index: 0, kind: input, shape index: {}]
  %s1 = inlined_call_operand.vmem [shape: f32[1,32], index: 1, kind: input, shape index: {}]
  %s2 = inlined_call_operand.vmem [shape: f32[1,32], index: 2, kind: input, shape index: {}]
  %s3 = inlined_call_operand.vmem [shape: f32[32,128], index: 3, kind: input, shape index: {}]
  %s4 = inlined_call_operand.vmem [shape: f32[1,128], index: 4, kind: input, shape index: {}]
  %s5 = inlined_call_operand.vmem [shape: f32[128,32], index: 5, kind: input, shape index: {}]
  %s6 = inlined_call_operand.vmem [shape: f32[1,32], index: 6, kind: input, shape index: {}]
  %s7 = inlined_call_operand.vmem [shape: f32[128,32], index: 7, kind: output, shape index: {}]
  %s8 = sld [smem:[#allocation0]]
  $region61: #{swin_module_forward.13} parent=0
    _
  %s10 = ssub.s32 1, %s8
  %s11 = scalar_select 0, %s10, %s8
  loop: start=0, step=1, limit=4
  $region2: #{swin_module_forward.13} parent=0 // loop_pre_header
    _
  $region3: #{swin_module_forward.13} parent=0 // loop_header
    %s13 = sphi 0, %s17
    %p14 = scmp.ge.s32.totalorder %s13, 4
    %s23 = sphi 0, %s25
    %s26 = sphi 0, %s23
    %s27 = sphi 0, %s26
    %s43 = sphi 0, %s27
    %s47 = sphi 0, %s47
    %s49 = sphi 0, %s47
    %s50 = sphi 0, %s49
    %s64 = sphi 0, %s50
    %s68 = sphi 0, %s68
    %s70 = sphi 0, %s68
    %s71 = sphi 0, %s70
    %s85 = sphi 0, %s71
    %s89 = sphi 0, %s89
    %s91 = sphi 0, %s89
    %s92 = sphi 0, %s91
    %s106 = sphi 0, %s92
    %s110 = sphi 0, %s110
    %s112 = sphi 0, %s110
    %s113 = sphi 0, %s112
    %s127 = sphi 0, %s113
    %s131 = sphi 0, %s131
    %s133 = sphi 0, %s131
    %s134 = sphi 0, %s133
    %s148 = sphi 0, %s134
    %s152 = sphi 0, %s152
    %s154 = sphi 0, %s152
    %s155 = sphi 0, %s154
    %s169 = sphi 0, %s155
    %s175 = sphi 0, %s177
    %s178 = sphi 0, %s175
    %s179 = sphi 0, %s178
    %s195 = sphi 0, %s179
  $region4: #{swin_module_forward.13} parent=0 // loop_header_branch
    %16 = sbr.rel (%p14) target = $region8
  $region5: #{swin_module_forward.13} parent=0 // loop_body
    %s18 = ssub.s32 %s13, 1
    %s19 = ssub.s32 %s13, 2
    %s20 = sadd.s32 %s13, 1
    %s21 = ssub.s32 %s13, %s20
    %p22 = scmp.eq.s32.totalorder %s21, 0
    %s24 = sadd.s32 %s23, 1
    %s25 = scalar_select %p22, %s23, %s24
    %p28 = pneg %p22
    %p29 = scmp.eq.s32.totalorder %s13, 1
    %p30 = por %p28, %p29
    %p31 = scmp.ne.s32.totalorder %s23, %s26
    %p32 = scmp.eq.s32.totalorder %s13, 0
    %p33 = por %p31, %p32
    %p34 = scmp.ne.s32.totalorder %s23, %s26
    %p35 = scmp.eq.s32.totalorder %s18, 1
    %p36 = por %p34, %p35
    %p37 = scmp.ne.s32.totalorder %s26, %s27
    %p38 = scmp.eq.s32.totalorder %s18, 0
    %p39 = por %p37, %p38
    %p40 = scmp.ne.s32.totalorder %s26, %s27
    %p41 = scmp.eq.s32.totalorder %s19, 1
    %p42 = por %p40, %p41
    %p44 = scmp.ne.s32.totalorder %s27, %s43
    %p45 = scmp.eq.s32.totalorder %s19, 0
    %p46 = por %p44, %p45
    %s48 = sadd.s32 %s47, 1
    %p51 = scmp.eq.s32.totalorder %s13, 1
    %p52 = scmp.ne.s32.totalorder %s47, %s49
    %p53 = scmp.eq.s32.totalorder %s13, 0
    %p54 = por %p52, %p53
    %p55 = scmp.ne.s32.totalorder %s47, %s49
    %p56 = scmp.eq.s32.totalorder %s18, 1
    %p57 = por %p55, %p56
    %p58 = scmp.ne.s32.totalorder %s49, %s50
    %p59 = scmp.eq.s32.totalorder %s18, 0
    %p60 = por %p58, %p59
    %p61 = scmp.ne.s32.totalorder %s49, %s50
    %p62 = scmp.eq.s32.totalorder %s19, 1
    %p63 = por %p61, %p62
    %p65 = scmp.ne.s32.totalorder %s50, %s64
    %p66 = scmp.eq.s32.totalorder %s19, 0
    %p67 = por %p65, %p66
    %s69 = sadd.s32 %s68, 1
    %p72 = scmp.eq.s32.totalorder %s13, 1
    %p73 = scmp.ne.s32.totalorder %s68, %s70
    %p74 = scmp.eq.s32.totalorder %s13, 0
    %p75 = por %p73, %p74
    %p76 = scmp.ne.s32.totalorder %s68, %s70
    %p77 = scmp.eq.s32.totalorder %s18, 1
    %p78 = por %p76, %p77
    %p79 = scmp.ne.s32.totalorder %s70, %s71
    %p80 = scmp.eq.s32.totalorder %s18, 0
    %p81 = por %p79, %p80
    %p82 = scmp.ne.s32.totalorder %s70, %s71
    %p83 = scmp.eq.s32.totalorder %s19, 1
    %p84 = por %p82, %p83
    %p86 = scmp.ne.s32.totalorder %s71, %s85
    %p87 = scmp.eq.s32.totalorder %s19, 0
    %p88 = por %p86, %p87
    %s90 = sadd.s32 %s89, 1
    %p93 = scmp.eq.s32.totalorder %s13, 1
    %p94 = scmp.ne.s32.totalorder %s89, %s91
    %p95 = scmp.eq.s32.totalorder %s13, 0
    %p96 = por %p94, %p95
    %p97 = scmp.ne.s32.totalorder %s89, %s91
    %p98 = scmp.eq.s32.totalorder %s18, 1
    %p99 = por %p97, %p98
    %p100 = scmp.ne.s32.totalorder %s91, %s92
    %p101 = scmp.eq.s32.totalorder %s18, 0
    %p102 = por %p100, %p101
    %p103 = scmp.ne.s32.totalorder %s91, %s92
    %p104 = scmp.eq.s32.totalorder %s19, 1
    %p105 = por %p103, %p104
    %p107 = scmp.ne.s32.totalorder %s92, %s106
    %p108 = scmp.eq.s32.totalorder %s19, 0
    %p109 = por %p107, %p108
    %s111 = sadd.s32 %s110, 1
    %p114 = scmp.eq.s32.totalorder %s13, 1
    %p115 = scmp.ne.s32.totalorder %s110, %s112
    %p116 = scmp.eq.s32.totalorder %s13, 0
    %p117 = por %p115, %p116
    %p118 = scmp.ne.s32.totalorder %s110, %s112
    %p119 = scmp.eq.s32.totalorder %s18, 1
    %p120 = por %p118, %p119
    %p121 = scmp.ne.s32.totalorder %s112, %s113
    %p122 = scmp.eq.s32.totalorder %s18, 0
    %p123 = por %p121, %p122
    %p124 = scmp.ne.s32.totalorder %s112, %s113
    %p125 = scmp.eq.s32.totalorder %s19, 1
    %p126 = por %p124, %p125
    %p128 = scmp.ne.s32.totalorder %s113, %s127
    %p129 = scmp.eq.s32.totalorder %s19, 0
    %p130 = por %p128, %p129
    %s132 = sadd.s32 %s131, 1
    %p135 = scmp.eq.s32.totalorder %s13, 1
    %p136 = scmp.ne.s32.totalorder %s131, %s133
    %p137 = scmp.eq.s32.totalorder %s13, 0
    %p138 = por %p136, %p137
    %p139 = scmp.ne.s32.totalorder %s131, %s133
    %p140 = scmp.eq.s32.totalorder %s18, 1
    %p141 = por %p139, %p140
    %p142 = scmp.ne.s32.totalorder %s133, %s134
    %p143 = scmp.eq.s32.totalorder %s18, 0
    %p144 = por %p142, %p143
    %p145 = scmp.ne.s32.totalorder %s133, %s134
    %p146 = scmp.eq.s32.totalorder %s19, 1
    %p147 = por %p145, %p146
    %p149 = scmp.ne.s32.totalorder %s134, %s148
    %p150 = scmp.eq.s32.totalorder %s19, 0
    %p151 = por %p149, %p150
    %s153 = sadd.s32 %s152, 1
    %p156 = scmp.eq.s32.totalorder %s13, 1
    %p157 = scmp.ne.s32.totalorder %s152, %s154
    %p158 = scmp.eq.s32.totalorder %s13, 0
    %p159 = por %p157, %p158
    %p160 = scmp.ne.s32.totalorder %s152, %s154
    %p161 = scmp.eq.s32.totalorder %s18, 1
    %p162 = por %p160, %p161
    %p163 = scmp.ne.s32.totalorder %s154, %s155
    %p164 = scmp.eq.s32.totalorder %s18, 0
    %p165 = por %p163, %p164
    %p166 = scmp.ne.s32.totalorder %s154, %s155
    %p167 = scmp.eq.s32.totalorder %s19, 1
    %p168 = por %p166, %p167
    %p170 = scmp.ne.s32.totalorder %s155, %s169
    %p171 = scmp.eq.s32.totalorder %s19, 0
    %p172 = por %p170, %p171
    %s173 = ssub.s32 %s13, %s20
    %p174 = scmp.eq.s32.totalorder %s173, 0
    %s176 = sadd.s32 %s175, 1
    %s177 = scalar_select %p174, %s175, %s176
    %p180 = pneg %p174
    %p181 = scmp.eq.s32.totalorder %s13, 1
    %p182 = por %p180, %p181
    %p183 = scmp.ne.s32.totalorder %s175, %s178
    %p184 = scmp.eq.s32.totalorder %s13, 0
    %p185 = por %p183, %p184
    %p186 = scmp.ne.s32.totalorder %s175, %s178
    %p187 = scmp.eq.s32.totalorder %s18, 1
    %p188 = por %p186, %p187
    %p189 = scmp.ne.s32.totalorder %s178, %s179
    %p190 = scmp.eq.s32.totalorder %s18, 0
    %p191 = por %p189, %p190
    %p192 = scmp.ne.s32.totalorder %s178, %s179
    %p193 = scmp.eq.s32.totalorder %s19, 1
    %p194 = por %p192, %p193
    %p196 = scmp.ne.s32.totalorder %s179, %s195
    %p197 = scmp.eq.s32.totalorder %s19, 0
    %p198 = por %p196, %p197
    %p199 = scmp.le.s32.totalorder 1, %s13
    %p200 = scmp.lt.s32.totalorder %s13, 3
    %p201 = pnand %p199, %p200
    %p202 = pneg %p201
    // Predicated region
    $region9: #{swin_module_forward.13} parent=5 // pred_check
      _
    $region10: #{swin_module_forward.13} parent=5 // pred_check_branch
      %204 = sbr.rel (%p201) target = $region12
    $region11: #{swin_module_forward.13} parent=5 // pred_region
      %s205 = ssub.s32 %s13, 1
      // Predicated region
      $region13: #{swin_module_forward.13} parent=11 // pred_check
        %p206 = pneg %p60
      $region14: #{swin_module_forward.13} parent=11 // pred_check_branch
        %208 = sbr.rel (%p206) target = $region16
      $region15: #{swin_module_forward.13} parent=11 // pred_region
        _
      $region16: #{swin_module_forward.13} parent=11 // pred_fallthru
        _
      // Predicated region
      $region17: #{swin_module_forward.13} parent=11 // pred_check
        %p209 = pneg %p81
      $region18: #{swin_module_forward.13} parent=11 // pred_check_branch
        %211 = sbr.rel (%p209) target = $region20
      $region19: #{swin_module_forward.13} parent=11 // pred_region
        _
      $region20: #{swin_module_forward.13} parent=11 // pred_fallthru
        _
      // Predicated region
      $region21: #{swin_module_forward.13} parent=11 // pred_check
        %p212 = pneg %p102
      $region22: #{swin_module_forward.13} parent=11 // pred_check_branch
        %214 = sbr.rel (%p212) target = $region24
      $region23: #{swin_module_forward.13} parent=11 // pred_region
        _
      $region24: #{swin_module_forward.13} parent=11 // pred_fallthru
        _
      // Predicated region
      $region25: #{swin_module_forward.13} parent=11 // pred_check
        %p215 = pneg %p123
      $region26: #{swin_module_forward.13} parent=11 // pred_check_branch
        %217 = sbr.rel (%p215) target = $region28
      $region27: #{swin_module_forward.13} parent=11 // pred_region
        _
      $region28: #{swin_module_forward.13} parent=11 // pred_fallthru
        _
      // Predicated region
      $region29: #{swin_module_forward.13} parent=11 // pred_check
        %p218 = pneg %p144
      $region30: #{swin_module_forward.13} parent=11 // pred_check_branch
        %220 = sbr.rel (%p218) target = $region32
      $region31: #{swin_module_forward.13} parent=11 // pred_region
        _
      $region32: #{swin_module_forward.13} parent=11 // pred_fallthru
        _
      // Predicated region
      $region33: #{swin_module_forward.13} parent=11 // pred_check
        %p221 = pneg %p165
      $region34: #{swin_module_forward.13} parent=11 // pred_check_branch
        %223 = sbr.rel (%p221) target = $region36
      $region35: #{swin_module_forward.13} parent=11 // pred_region
        _
      $region36: #{swin_module_forward.13} parent=11 // pred_fallthru
        _
    $region12: #{swin_module_forward.13} parent=5 // pred_fallthru
      _
    %p224 = scmp.lt.s32.totalorder %s13, 2
    // Predicated region
    $region37: #{swin_module_forward.13} parent=5 // pred_check
      %p225 = pneg %p224
    $region38: #{swin_module_forward.13} parent=5 // pred_check_branch
      %227 = sbr.rel (%p225) target = $region40
    $region39: #{swin_module_forward.13} parent=5 // pred_region
      // Predicated region
      $region41: #{swin_module_forward.13} parent=39 // pred_check
        %p228 = pneg %p33
      $region42: #{swin_module_forward.13} parent=39 // pred_check_branch
        %230 = sbr.rel (%p228) target = $region44
      $region43: #{swin_module_forward.13} parent=39 // pred_region
        %s231 = smul.u32 8, %s13
        %p232 = scmp.lt.s32.totalorder %s231, 15
        %s233 = scalar_select %p232, %s231, 15
        %s234 = smul.addr %s233, 8
        %s235 = scalar_lea.vmem %s0, %s234
        %s236 = smul.u32 8, %s13
      $region44: #{swin_module_forward.13} parent=39 // pred_fallthru
        _
    $region40: #{swin_module_forward.13} parent=5 // pred_fallthru
      _
    %p237 = scmp.le.s32.totalorder 1, %s13
    %p238 = scmp.lt.s32.totalorder %s13, 3
    %p239 = pnand %p237, %p238
    %p240 = pneg %p239
    // Predicated region
    $region45: #{swin_module_forward.13} parent=5 // pred_check
      _
    $region46: #{swin_module_forward.13} parent=5 // pred_check_branch
      %242 = sbr.rel (%p239) target = $region48
    $region47: #{swin_module_forward.13} parent=5 // pred_region
      %s243 = ssub.s32 %s13, 1
      %s244 = smul.u32 8, %s18
      %p245 = scmp.lt.s32.totalorder %s244, 15
      %s246 = scalar_select %p245, %s244, 15
      %s247 = smul.addr %s246, 8
      %s248 = scalar_lea.vmem %s0, %s247
      %p249 = pneg %p39
      %p250 = pneg %p36
      %p251 = pneg %p60
      %p252 = pneg %p57
      %p253 = pneg %p81
      %p254 = pneg %p78
      %p255 = pneg %p102
      %p256 = pneg %p99
      %p257 = pneg %p123
      %p258 = pneg %p120
      %p259 = pneg %p144
      %p260 = pneg %p141
      %p261 = pneg %p165
      %p262 = pneg %p162
      %p263 = pneg %p191
      %p264 = pneg %p188
      %s265 = smul.u32 8, %s18
      %p266 = scmp.lt.s32.totalorder %s265, 15
      %s267 = scalar_select %p266, %s265, 15
      %s268 = smul.addr %s267, 8
      %s269 = scalar_lea.vmem %s7, %s268
      %s270 = smul.u32 8, %s18
      %p271 = scmp.lt.s32.totalorder %s270, 15
      %s272 = scalar_select %p271, %s270, 15
      %s273 = smul.addr %s272, 8
      %s274 = scalar_lea.vmem %s0, %s273
      %s275 = smul.u32 8, %s18
      %s276 = smul.u32 8, %s18
      %p277 = scmp.lt.s32.totalorder %s276, 15
      %s278 = scalar_select %p277, %s276, 15
      %s279 = smul.addr %s278, 8
      %s280 = scalar_lea.vmem %s7, %s279
      %s281 = smul.u32 8, %s18
      %v283 = vld [vmem:[%s274] sm:$0xff]
      %v284 = vld [vmem:[%s274 + $0x8] sm:$0xff]
      %v285 = vld [vmem:[%s274 + $0x10] sm:$0xff]
      %v286 = vld [vmem:[%s274 + $0x18] sm:$0xff]
      %v287 = vld [vmem:[%s274 + $0x20] sm:$0xff]
      %v288 = vld [vmem:[%s274 + $0x28] sm:$0xff]
      %v289 = vld [vmem:[%s274 + $0x30] sm:$0xff]
      %v290 = vld [vmem:[%s274 + $0x38] sm:$0xff]
      %v291 = vld [vmem:[%s1] sm:$0x1]
      %v292 = vld [vmem:[%s2] sm:$0x1]
      %vm293 = vcmask 261120
      %v294 = vsel %vm293, %v283, 0.0
      %295 = vadd.xlane.f32.xlu0 %v294
      %v296 = vpop.xlane.xlu0 %295
      %v297 = vsel %vm293, %v284, 0.0
      %298 = vadd.xlane.f32.xlu0 %v297
      %v299 = vpop.xlane.xlu0 %298
      %v300 = vsel %vm293, %v285, 0.0
      %301 = vadd.xlane.f32.xlu0 %v300
      %v302 = vpop.xlane.xlu0 %301
      %v303 = vsel %vm293, %v286, 0.0
      %304 = vadd.xlane.f32.xlu0 %v303
      %v305 = vpop.xlane.xlu0 %304
      %v306 = vsel %vm293, %v287, 0.0
      %307 = vadd.xlane.f32.xlu0 %v306
      %v308 = vpop.xlane.xlu0 %307
      %v309 = vsel %vm293, %v288, 0.0
      %310 = vadd.xlane.f32.xlu0 %v309
      %v311 = vpop.xlane.xlu0 %310
      %v312 = vsel %vm293, %v289, 0.0
      %313 = vadd.xlane.f32.xlu0 %v312
      %v314 = vpop.xlane.xlu0 %313
      %v315 = vsel %vm293, %v290, 0.0
      %316 = vadd.xlane.f32.xlu0 %v315
      %v317 = vpop.xlane.xlu0 %316
      %v318 = vrcp.pop 32.0
      %v319 = vmul.f32 %v296, %v318
      %v320 = vmul.f32 %v299, %v318
      %v321 = vmul.f32 %v302, %v318
      %v322 = vmul.f32 %v305, %v318
      %v323 = vmul.f32 %v308, %v318
      %v324 = vmul.f32 %v311, %v318
      %v325 = vmul.f32 %v314, %v318
      %v326 = vmul.f32 %v317, %v318
      %v327 = vsub.f32 %v283, %v319
      %v328 = vsub.f32 %v284, %v320
      %v329 = vsub.f32 %v285, %v321
      %v330 = vsub.f32 %v286, %v322
      %v331 = vsub.f32 %v287, %v323
      %v332 = vsub.f32 %v288, %v324
      %v333 = vsub.f32 %v289, %v325
      %v334 = vsub.f32 %v290, %v326
      %v335 = vmul.f32 %v327, %v327
      %v336 = vmul.f32 %v328, %v328
      %v337 = vmul.f32 %v329, %v329
      %v338 = vmul.f32 %v330, %v330
      %v339 = vmul.f32 %v331, %v331
      %v340 = vmul.f32 %v332, %v332
      %v341 = vmul.f32 %v333, %v333
      %v342 = vmul.f32 %v334, %v334
      %v343 = vsel %vm293, %v335, 0.0
      %344 = vadd.xlane.f32.xlu0 %v343
      %v345 = vpop.xlane.xlu0 %344
      %v346 = vsel %vm293, %v336, 0.0
      %347 = vadd.xlane.f32.xlu0 %v346
      %v348 = vpop.xlane.xlu0 %347
      %v349 = vsel %vm293, %v337, 0.0
      %350 = vadd.xlane.f32.xlu0 %v349
      %v351 = vpop.xlane.xlu0 %350
      %v352 = vsel %vm293, %v338, 0.0
      %353 = vadd.xlane.f32.xlu0 %v352
      %v354 = vpop.xlane.xlu0 %353
      %v355 = vsel %vm293, %v339, 0.0
      %356 = vadd.xlane.f32.xlu0 %v355
      %v357 = vpop.xlane.xlu0 %356
      %v358 = vsel %vm293, %v340, 0.0
      %359 = vadd.xlane.f32.xlu0 %v358
      %v360 = vpop.xlane.xlu0 %359
      %v361 = vsel %vm293, %v341, 0.0
      %362 = vadd.xlane.f32.xlu0 %v361
      %v363 = vpop.xlane.xlu0 %362
      %v364 = vsel %vm293, %v342, 0.0
      %365 = vadd.xlane.f32.xlu0 %v364
      %v366 = vpop.xlane.xlu0 %365
      %v367 = vmul.f32 %v345, %v318
      %v368 = vmul.f32 %v348, %v318
      %v369 = vmul.f32 %v351, %v318
      %v370 = vmul.f32 %v354, %v318
      %v371 = vmul.f32 %v357, %v318
      %v372 = vmul.f32 %v360, %v318
      %v373 = vmul.f32 %v363, %v318
      %v374 = vmul.f32 %v366, %v318
      %v375 = vadd.f32 %v367, 1e-05
      %v376 = vadd.f32 %v368, 1e-05
      %v377 = vadd.f32 %v369, 1e-05
      %v378 = vadd.f32 %v370, 1e-05
      %v379 = vadd.f32 %v371, 1e-05
      %v380 = vadd.f32 %v372, 1e-05
      %v381 = vadd.f32 %v373, 1e-05
      %v382 = vadd.f32 %v374, 1e-05
      %v383 = vrsqrt.pop %v375
      %v384 = vrsqrt.pop %v376
      %v385 = vrsqrt.pop %v377
      %v386 = vrsqrt.pop %v378
      %v387 = vrsqrt.pop %v379
      %v388 = vrsqrt.pop %v380
      %v389 = vrsqrt.pop %v381
      %v390 = vrsqrt.pop %v382
      %v391 = vmul.f32 %v327, %v383
      %v392 = vmul.f32 %v328, %v384
      %v393 = vmul.f32 %v329, %v385
      %v394 = vmul.f32 %v330, %v386
      %v395 = vmul.f32 %v331, %v387
      %v396 = vmul.f32 %v332, %v388
      %v397 = vmul.f32 %v333, %v389
      %v398 = vmul.f32 %v334, %v390
      %v400 = vlaneseq
      %v401 = vshrl.u32 %v400, 7
      %v402 = vsub.s32 0, %v401
      %v403 = vrot.slane %v291, %v402
      %v405 = vmul.f32 %v391, %v403
      %v406 = vmul.f32 %v392, %v403
      %v407 = vmul.f32 %v393, %v403
      %v408 = vmul.f32 %v394, %v403
      %v409 = vmul.f32 %v395, %v403
      %v410 = vmul.f32 %v396, %v403
      %v411 = vmul.f32 %v397, %v403
      %v412 = vmul.f32 %v398, %v403
      %v414 = vlaneseq
      %v415 = vshrl.u32 %v414, 7
      %v416 = vsub.s32 0, %v415
      %v417 = vrot.slane %v292, %v416
      %v419 = vadd.f32 %v405, %v417
      %v420 = vadd.f32 %v406, %v417
      %v421 = vadd.f32 %v407, %v417
      %v422 = vadd.f32 %v408, %v417
      %v423 = vadd.f32 %v409, %v417
      %v424 = vadd.f32 %v410, %v417
      %v425 = vadd.f32 %v411, %v417
      %v426 = vadd.f32 %v412, %v417
      %v427 = vpack.c.bf16 %v420, %v419
      %v428 = vpack.c.bf16 %v422, %v421
      %v429 = vpack.c.bf16 %v424, %v423
      %v430 = vpack.c.bf16 %v426, %v425
      %v431 = vld [vmem:[%s3] sm:$0xff]
      %v432 = vld [vmem:[%s3 + $0x8] sm:$0xff]
      %v433 = vld [vmem:[%s3 + $0x10] sm:$0xff]
      %v434 = vld [vmem:[%s3 + $0x18] sm:$0xff]
      %v435 = vpack.c.bf16 %v432, %v431
      %v436 = vpack.c.bf16 %v434, %v433
      %v437 = vld [vmem:[%s4] sm:$0x1]
      %v439 = vlaneseq
      %v440 = vshrl.u32 %v439, 7
      %v441 = vsub.s32 0, %v440
      %v442 = vrot.slane %v437, %v441
      %v445 = vsel %vm293, %v427, 0
      %v448 = vsel %vm293, %v428, 0
      %v451 = vsel %vm293, %v429, 0
      %v454 = vsel %vm293, %v430, 0
      %456 = vmatprep.subr.bf16.mxu0 0
      %457 = vmatpush1.bf16.msra.mxu0 %v435
      %458 = vmatprep.subr.bf16.mxu0 0
      %459 = vmatpush1.bf16.msra.mxu0 %v436
      %460 = vmatprep.subr.bf16.mxu0 0
      %461 = vmatpush1.bf16.msra.mxu0 0
      %462 = vmatprep.subr.bf16.mxu0 0
      %463 = vmatpush1.bf16.msra.mxu0 0
      %464 = vmatprep.subr.bf16.mxu0 0
      %465 = vmatpush1.bf16.msra.mxu0 0
      %466 = vmatprep.subr.bf16.mxu0 0
      %467 = vmatpush1.bf16.msra.mxu0 0
      %468 = vmatprep.subr.bf16.mxu0 0
      %469 = vmatpush1.bf16.msra.mxu0 0
      %470 = vmatprep.subr.bf16.mxu0 0
      %471 = vmatpush1.bf16.msra.mxu0 0
      %472 = vmatprep.subr.bf16.mxu0 0
      %473 = vmatpush1.bf16.msra.mxu0 0
      %474 = vmatprep.subr.bf16.mxu0 0
      %475 = vmatpush1.bf16.msra.mxu0 0
      %476 = vmatprep.subr.bf16.mxu0 0
      %477 = vmatpush1.bf16.msra.mxu0 0
      %478 = vmatprep.subr.bf16.mxu0 0
      %479 = vmatpush1.bf16.msra.mxu0 0
      %480 = vmatprep.subr.bf16.mxu0 0
      %481 = vmatpush1.bf16.msra.mxu0 0
      %482 = vmatprep.subr.bf16.mxu0 0
      %483 = vmatpush1.bf16.msra.mxu0 0
      %484 = vmatprep.subr.bf16.mxu0 0
      %485 = vmatpush1.bf16.msra.mxu0 0
      %486 = vmatprep.subr.bf16.mxu0 0
      %487 = vmatpush1.bf16.msra.mxu0 0
      %488 = vmatprep.mubr.bf16.mxu0 0
      %489 = vmatmul.mubr.bf16.gmra.mrb[0].mxu0 %v445
      %v490 = vpop.f32.mrb[0].mxu0
      %v491 = vadd.f32 %v442, %v490
      %v492 = vpop.f32.mrb[0].mxu0
      %v493 = vpop.f32.mrb[0].mxu0
      %v494 = vadd.f32 %v442, %v493
      %v495 = vpop.f32.mrb[0].mxu0
      %496 = vmatprep.mubr.bf16.mxu0 0
      %497 = vmatmul.mubr.bf16.gmra.mrb[0].mxu0 %v448
      %v498 = vpop.f32.mrb[0].mxu0
      %v499 = vadd.f32 %v442, %v498
      %v500 = vpop.f32.mrb[0].mxu0
      %v501 = vpop.f32.mrb[0].mxu0
      %v502 = vadd.f32 %v442, %v501
      %v503 = vpop.f32.mrb[0].mxu0
      %504 = vmatprep.mubr.bf16.mxu0 0
      %505 = vmatmul.mubr.bf16.gmra.mrb[0].mxu0 %v451
      %v506 = vpop.f32.mrb[0].mxu0
      %v507 = vadd.f32 %v442, %v506
      %v508 = vpop.f32.mrb[0].mxu0
      %v509 = vpop.f32.mrb[0].mxu0
      %v510 = vadd.f32 %v442, %v509
      %v511 = vpop.f32.mrb[0].mxu0
      %512 = vmatprep.mubr.bf16.mxu0 0
      %513 = vmatmul.mubr.bf16.gmra.mrb[0].mxu0 %v454
      %v514 = vpop.f32.mrb[0].mxu0
      %v515 = vadd.f32 %v442, %v514
      %v516 = vpop.f32.mrb[0].mxu0
      %v517 = vpop.f32.mrb[0].mxu0
      %v518 = vadd.f32 %v442, %v517
      %v519 = vpop.f32.mrb[0].mxu0
      %520 = vdwg.mxu0
      %v521 = vmul.f32 %v491, 0.5
      %v522 = vmul.f32 %v494, 0.5
      %v523 = vmul.f32 %v499, 0.5
      %v524 = vmul.f32 %v502, 0.5
      %v525 = vmul.f32 %v507, 0.5
      %v526 = vmul.f32 %v510, 0.5
      %v527 = vmul.f32 %v515, 0.5
      %v528 = vmul.f32 %v518, 0.5
      %v529 = vmul.f32 %v491, 0.70710677
      %v530 = vmul.f32 %v494, 0.70710677
      %v531 = vmul.f32 %v499, 0.70710677
      %v532 = vmul.f32 %v502, 0.70710677
      %v533 = vmul.f32 %v507, 0.70710677
      %v534 = vmul.f32 %v510, 0.70710677
      %v535 = vmul.f32 %v515, 0.70710677
      %v536 = vmul.f32 %v518, 0.70710677
      %vm537 = vcmp.ge.f32.partialorder %v529, 0.0
      %vm538 = vcmp.ge.f32.partialorder %v530, 0.0
      %vm539 = vcmp.ge.f32.partialorder %v531, 0.0
      %vm540 = vcmp.ge.f32.partialorder %v532, 0.0
      %vm541 = vcmp.ge.f32.partialorder %v533, 0.0
      %vm542 = vcmp.ge.f32.partialorder %v534, 0.0
      %vm543 = vcmp.ge.f32.partialorder %v535, 0.0
      %vm544 = vcmp.ge.f32.partialorder %v536, 0.0
      %v545 = vsel %vm537, 1.0, -1.0
      %v546 = vsel %vm538, 1.0, -1.0
      %v547 = vsel %vm539, 1.0, -1.0
      %v548 = vsel %vm540, 1.0, -1.0
      %v549 = vsel %vm541, 1.0, -1.0
      %v550 = vsel %vm542, 1.0, -1.0
      %v551 = vsel %vm543, 1.0, -1.0
      %v552 = vsel %vm544, 1.0, -1.0
      %v553 = vand.u32 2147483647, %v529
      %v554 = vand.u32 2147483647, %v530
      %v555 = vand.u32 2147483647, %v531
      %v556 = vand.u32 2147483647, %v532
      %v557 = vand.u32 2147483647, %v533
      %v558 = vand.u32 2147483647, %v534
      %v559 = vand.u32 2147483647, %v535
      %v560 = vand.u32 2147483647, %v536
      %v561 = vmul.f32 %v553, 0.3275911
      %v562 = vmul.f32 %v554, 0.3275911
      %v563 = vmul.f32 %v555, 0.3275911
      %v564 = vmul.f32 %v556, 0.3275911
      %v565 = vmul.f32 %v557, 0.3275911
      %v566 = vmul.f32 %v558, 0.3275911
      %v567 = vmul.f32 %v559, 0.3275911
      %v568 = vmul.f32 %v560, 0.3275911
      %v569 = vadd.f32 %v561, 1.0
      %v570 = vadd.f32 %v562, 1.0
      %v571 = vadd.f32 %v563, 1.0
      %v572 = vadd.f32 %v564, 1.0
      %v573 = vadd.f32 %v565, 1.0
      %v574 = vadd.f32 %v566, 1.0
      %v575 = vadd.f32 %v567, 1.0
      %v576 = vadd.f32 %v568, 1.0
      %v577 = vrcp.pop %v569
      %v578 = vmul.f32 1.0, %v577
      %v579 = vrcp.pop %v570
      %v580 = vmul.f32 1.0, %v579
      %v581 = vrcp.pop %v571
      %v582 = vmul.f32 1.0, %v581
      %v583 = vrcp.pop %v572
      %v584 = vmul.f32 1.0, %v583
      %v585 = vrcp.pop %v573
      %v586 = vmul.f32 1.0, %v585
      %v587 = vrcp.pop %v574
      %v588 = vmul.f32 1.0, %v587
      %v589 = vrcp.pop %v575
      %v590 = vmul.f32 1.0, %v589
      %v591 = vrcp.pop %v576
      %v592 = vmul.f32 1.0, %v591
      %v593 = vmul.f32 %v578, 1.0614054
      %v594 = vmul.f32 %v580, 1.0614054
      %v595 = vmul.f32 %v582, 1.0614054
      %v596 = vmul.f32 %v584, 1.0614054
      %v597 = vmul.f32 %v586, 1.0614054
      %v598 = vmul.f32 %v588, 1.0614054
      %v599 = vmul.f32 %v590, 1.0614054
      %v600 = vmul.f32 %v592, 1.0614054
      %v601 = vadd.f32 %v593, -1.4531521
      %v602 = vadd.f32 %v594, -1.4531521
      %v603 = vadd.f32 %v595, -1.4531521
      %v604 = vadd.f32 %v596, -1.4531521
      %v605 = vadd.f32 %v597, -1.4531521
      %v606 = vadd.f32 %v598, -1.4531521
      %v607 = vadd.f32 %v599, -1.4531521
      %v608 = vadd.f32 %v600, -1.4531521
      %v609 = vmul.f32 %v601, %v578
      %v610 = vmul.f32 %v602, %v580
      %v611 = vmul.f32 %v603, %v582
      %v612 = vmul.f32 %v604, %v584
      %v613 = vmul.f32 %v605, %v586
      %v614 = vmul.f32 %v606, %v588
      %v615 = vmul.f32 %v607, %v590
      %v616 = vmul.f32 %v608, %v592
      %v617 = vadd.f32 %v609, 1.4214138
      %v618 = vadd.f32 %v610, 1.4214138
      %v619 = vadd.f32 %v611, 1.4214138
      %v620 = vadd.f32 %v612, 1.4214138
      %v621 = vadd.f32 %v613, 1.4214138
      %v622 = vadd.f32 %v614, 1.4214138
      %v623 = vadd.f32 %v615, 1.4214138
      %v624 = vadd.f32 %v616, 1.4214138
      %v625 = vmul.f32 %v617, %v578
      %v626 = vmul.f32 %v618, %v580
      %v627 = vmul.f32 %v619, %v582
      %v628 = vmul.f32 %v620, %v584
      %v629 = vmul.f32 %v621, %v586
      %v630 = vmul.f32 %v622, %v588
      %v631 = vmul.f32 %v623, %v590
      %v632 = vmul.f32 %v624, %v592
      %v633 = vadd.f32 %v625, -0.28449672
      %v634 = vadd.f32 %v626, -0.28449672
      %v635 = vadd.f32 %v627, -0.28449672
      %v636 = vadd.f32 %v628, -0.28449672
      %v637 = vadd.f32 %v629, -0.28449672
      %v638 = vadd.f32 %v630, -0.28449672
      %v639 = vadd.f32 %v631, -0.28449672
      %v640 = vadd.f32 %v632, -0.28449672
      %v641 = vmul.f32 %v633, %v578
      %v642 = vmul.f32 %v634, %v580
      %v643 = vmul.f32 %v635, %v582
      %v644 = vmul.f32 %v636, %v584
      %v645 = vmul.f32 %v637, %v586
      %v646 = vmul.f32 %v638, %v588
      %v647 = vmul.f32 %v639, %v590
      %v648 = vmul.f32 %v640, %v592
      %v649 = vadd.f32 %v641, 0.2548296
      %v650 = vadd.f32 %v642, 0.2548296
      %v651 = vadd.f32 %v643, 0.2548296
      %v652 = vadd.f32 %v644, 0.2548296
      %v653 = vadd.f32 %v645, 0.2548296
      %v654 = vadd.f32 %v646, 0.2548296
      %v655 = vadd.f32 %v647, 0.2548296
      %v656 = vadd.f32 %v648, 0.2548296
      %v657 = vmul.f32 %v649, %v578
      %v658 = vmul.f32 %v650, %v580
      %v659 = vmul.f32 %v651, %v582
      %v660 = vmul.f32 %v652, %v584
      %v661 = vmul.f32 %v653, %v586
      %v662 = vmul.f32 %v654, %v588
      %v663 = vmul.f32 %v655, %v590
      %v664 = vmul.f32 %v656, %v592
      %v665 = vsub.f32 0.0, %v553
      %v666 = vsub.f32 0.0, %v554
      %v667 = vsub.f32 0.0, %v555
      %v668 = vsub.f32 0.0, %v556
      %v669 = vsub.f32 0.0, %v557
      %v670 = vsub.f32 0.0, %v558
      %v671 = vsub.f32 0.0, %v559
      %v672 = vsub.f32 0.0, %v560
      %v673 = vmul.f32 %v665, %v553
      %v674 = vmul.f32 %v666, %v554
      %v675 = vmul.f32 %v667, %v555
      %v676 = vmul.f32 %v668, %v556
      %v677 = vmul.f32 %v669, %v557
      %v678 = vmul.f32 %v670, %v558
      %v679 = vmul.f32 %v671, %v559
      %v680 = vmul.f32 %v672, %v560
      %v681 = vmul.f32 %v673, 1.442695
      %v682 = vpow.pop %v681
      %v683 = vmul.f32 %v674, 1.442695
      %v684 = vpow.pop %v683
      %v685 = vmul.f32 %v675, 1.442695
      %v686 = vpow.pop %v685
      %v687 = vmul.f32 %v676, 1.442695
      %v688 = vpow.pop %v687
      %v689 = vmul.f32 %v677, 1.442695
      %v690 = vpow.pop %v689
      %v691 = vmul.f32 %v678, 1.442695
      %v692 = vpow.pop %v691
      %v693 = vmul.f32 %v679, 1.442695
      %v694 = vpow.pop %v693
      %v695 = vmul.f32 %v680, 1.442695
      %v696 = vpow.pop %v695
      %v697 = vmul.f32 %v657, %v682
      %v698 = vmul.f32 %v658, %v684
      %v699 = vmul.f32 %v659, %v686
      %v700 = vmul.f32 %v660, %v688
      %v701 = vmul.f32 %v661, %v690
      %v702 = vmul.f32 %v662, %v692
      %v703 = vmul.f32 %v663, %v694
      %v704 = vmul.f32 %v664, %v696
      %v705 = vsub.f32 1.0, %v697
      %v706 = vsub.f32 1.0, %v698
      %v707 = vsub.f32 1.0, %v699
      %v708 = vsub.f32 1.0, %v700
      %v709 = vsub.f32 1.0, %v701
      %v710 = vsub.f32 1.0, %v702
      %v711 = vsub.f32 1.0, %v703
      %v712 = vsub.f32 1.0, %v704
      %v713 = vmul.f32 %v545, %v705
      %v714 = vmul.f32 %v546, %v706
      %v715 = vmul.f32 %v547, %v707
      %v716 = vmul.f32 %v548, %v708
      %v717 = vmul.f32 %v549, %v709
      %v718 = vmul.f32 %v550, %v710
      %v719 = vmul.f32 %v551, %v711
      %v720 = vmul.f32 %v552, %v712
      %v721 = vadd.f32 %v713, 1.0
      %v722 = vadd.f32 %v714, 1.0
      %v723 = vadd.f32 %v715, 1.0
      %v724 = vadd.f32 %v716, 1.0
      %v725 = vadd.f32 %v717, 1.0
      %v726 = vadd.f32 %v718, 1.0
      %v727 = vadd.f32 %v719, 1.0
      %v728 = vadd.f32 %v720, 1.0
      %v729 = vmul.f32 %v521, %v721
      %v730 = vmul.f32 %v522, %v722
      %v731 = vmul.f32 %v523, %v723
      %v732 = vmul.f32 %v524, %v724
      %v733 = vmul.f32 %v525, %v725
      %v734 = vmul.f32 %v526, %v726
      %v735 = vmul.f32 %v527, %v727
      %v736 = vmul.f32 %v528, %v728
      %v737 = vpack.c.bf16 %v730, %v729
      %v738 = vpack.c.bf16 %v732, %v731
      %v739 = vpack.c.bf16 %v734, %v733
      %v740 = vpack.c.bf16 %v736, %v735
      %v741 = vld [vmem:[%s5] sm:$0xff]
      %v742 = vld [vmem:[%s5 + $0x8] sm:$0xff]
      %v743 = vld [vmem:[%s5 + $0x10] sm:$0xff]
      %v744 = vld [vmem:[%s5 + $0x18] sm:$0xff]
      %v745 = vld [vmem:[%s5 + $0x20] sm:$0xff]
      %v746 = vld [vmem:[%s5 + $0x28] sm:$0xff]
      %v747 = vld [vmem:[%s5 + $0x30] sm:$0xff]
      %v748 = vld [vmem:[%s5 + $0x38] sm:$0xff]
      %v749 = vld [vmem:[%s5 + $0x40] sm:$0xff]
      %v750 = vld [vmem:[%s5 + $0x48] sm:$0xff]
      %v751 = vld [vmem:[%s5 + $0x50] sm:$0xff]
      %v752 = vld [vmem:[%s5 + $0x58] sm:$0xff]
      %v753 = vld [vmem:[%s5 + $0x60] sm:$0xff]
      %v754 = vld [vmem:[%s5 + $0x68] sm:$0xff]
      %v755 = vld [vmem:[%s5 + $0x70] sm:$0xff]
      %v756 = vld [vmem:[%s5 + $0x78] sm:$0xff]
      %v757 = vpack.c.bf16 %v742, %v741
      %v758 = vpack.c.bf16 %v744, %v743
      %v759 = vpack.c.bf16 %v746, %v745
      %v760 = vpack.c.bf16 %v748, %v747
      %v761 = vpack.c.bf16 %v750, %v749
      %v762 = vpack.c.bf16 %v752, %v751
      %v763 = vpack.c.bf16 %v754, %v753
      %v764 = vpack.c.bf16 %v756, %v755
      %v765 = vld [vmem:[%s6] sm:$0x1]
      %v767 = vlaneseq
      %v768 = vshrl.u32 %v767, 7
      %v769 = vsub.s32 0, %v768
      %v770 = vrot.slane %v765, %v769
      %772 = vmatprep.subr.bf16.mxu0 0
      %773 = vmatpush1.bf16.msra.mxu0 %v757
      %774 = vmatprep.subr.bf16.mxu0 0
      %775 = vmatpush1.bf16.msra.mxu0 %v758
      %776 = vmatprep.subr.bf16.mxu0 0
      %777 = vmatpush1.bf16.msra.mxu0 %v759
      %778 = vmatprep.subr.bf16.mxu0 0
      %779 = vmatpush1.bf16.msra.mxu0 %v760
      %780 = vmatprep.subr.bf16.mxu0 0
      %781 = vmatpush1.bf16.msra.mxu0 %v761
      %782 = vmatprep.subr.bf16.mxu0 0
      %783 = vmatpush1.bf16.msra.mxu0 %v762
      %784 = vmatprep.subr.bf16.mxu0 0
      %785 = vmatpush1.bf16.msra.mxu0 %v763
      %786 = vmatprep.subr.bf16.mxu0 0
      %787 = vmatpush1.bf16.msra.mxu0 %v764
      %788 = vmatprep.subr.bf16.mxu0 0
      %789 = vmatpush1.bf16.msra.mxu0 0
      %790 = vmatprep.subr.bf16.mxu0 0
      %791 = vmatpush1.bf16.msra.mxu0 0
      %792 = vmatprep.subr.bf16.mxu0 0
      %793 = vmatpush1.bf16.msra.mxu0 0
      %794 = vmatprep.subr.bf16.mxu0 0
      %795 = vmatpush1.bf16.msra.mxu0 0
      %796 = vmatprep.subr.bf16.mxu0 0
      %797 = vmatpush1.bf16.msra.mxu0 0
      %798 = vmatprep.subr.bf16.mxu0 0
      %799 = vmatpush1.bf16.msra.mxu0 0
      %800 = vmatprep.subr.bf16.mxu0 0
      %801 = vmatpush1.bf16.msra.mxu0 0
      %802 = vmatprep.subr.bf16.mxu0 0
      %803 = vmatpush1.bf16.msra.mxu0 0
      %804 = vmatprep.mubr.bf16.mxu0 0
      %805 = vmatmul.mubr.bf16.gmra.mrb[0].mxu0 %v737
      %v806 = vpop.f32.mrb[0].mxu0
      %v807 = vadd.f32 %v770, %v806
      %v808 = vpop.f32.mrb[0].mxu0
      %v809 = vpop.f32.mrb[0].mxu0
      %v810 = vadd.f32 %v770, %v809
      %v811 = vpop.f32.mrb[0].mxu0
      %812 = vmatprep.mubr.bf16.mxu0 0
      %813 = vmatmul.mubr.bf16.gmra.mrb[0].mxu0 %v738
      %v814 = vpop.f32.mrb[0].mxu0
      %v815 = vadd.f32 %v770, %v814
      %v816 = vpop.f32.mrb[0].mxu0
      %v817 = vpop.f32.mrb[0].mxu0
      %v818 = vadd.f32 %v770, %v817
      %v819 = vpop.f32.mrb[0].mxu0
      %820 = vmatprep.mubr.bf16.mxu0 0
      %821 = vmatmul.mubr.bf16.gmra.mrb[0].mxu0 %v739
      %v822 = vpop.f32.mrb[0].mxu0
      %v823 = vadd.f32 %v770, %v822
      %v824 = vpop.f32.mrb[0].mxu0
      %v825 = vpop.f32.mrb[0].mxu0
      %v826 = vadd.f32 %v770, %v825
      %v827 = vpop.f32.mrb[0].mxu0
      %828 = vmatprep.mubr.bf16.mxu0 0
      %829 = vmatmul.mubr.bf16.gmra.mrb[0].mxu0 %v740
      %v830 = vpop.f32.mrb[0].mxu0
      %v831 = vadd.f32 %v770, %v830
      %v832 = vpop.f32.mrb[0].mxu0
      %v833 = vpop.f32.mrb[0].mxu0
      %v834 = vadd.f32 %v770, %v833
      %v835 = vpop.f32.mrb[0].mxu0
      %836 = vdwg.mxu0
      %v837 = vadd.f32 %v283, %v807
      %v838 = vadd.f32 %v284, %v810
      %v839 = vadd.f32 %v285, %v815
      %v840 = vadd.f32 %v286, %v818
      %v841 = vadd.f32 %v287, %v823
      %v842 = vadd.f32 %v288, %v826
      %v843 = vadd.f32 %v289, %v831
      %v844 = vadd.f32 %v290, %v834
      %845 = vst.msk [vmem:[%s280] sm:$0xff] %vm293, %v837
      %846 = vst.msk [vmem:[%s280 + $0x8] sm:$0xff] %vm293, %v838
      %847 = vst.msk [vmem:[%s280 + $0x10] sm:$0xff] %vm293, %v839
      %848 = vst.msk [vmem:[%s280 + $0x18] sm:$0xff] %vm293, %v840
      %849 = vst.msk [vmem:[%s280 + $0x20] sm:$0xff] %vm293, %v841
      %850 = vst.msk [vmem:[%s280 + $0x28] sm:$0xff] %vm293, %v842
      %851 = vst.msk [vmem:[%s280 + $0x30] sm:$0xff] %vm293, %v843
      %852 = vst.msk [vmem:[%s280 + $0x38] sm:$0xff] %vm293, %v844
      %s853 = smul.u32 8, %s18
      %p854 = scmp.lt.s32.totalorder %s853, 15
      %s855 = scalar_select %p854, %s853, 15
      %s856 = smul.addr %s855, 8
      %s857 = scalar_lea.vmem %s7, %s856
      // Predicated region
      $region49: #{swin_module_forward.13} parent=47 // pred_check
        %p858 = pneg %p188
      $region50: #{swin_module_forward.13} parent=47 // pred_check_branch
        %860 = sbr.rel (%p858) target = $region52
      $region51: #{swin_module_forward.13} parent=47 // pred_region
        %s861 = smul.u32 8, %s18
      $region52: #{swin_module_forward.13} parent=47 // pred_fallthru
        _
    $region48: #{swin_module_forward.13} parent=5 // pred_fallthru
      _
    %p862 = scmp.le.s32.totalorder 2, %s13
    // Predicated region
    $region53: #{swin_module_forward.13} parent=5 // pred_check
      %p863 = pneg %p862
    $region54: #{swin_module_forward.13} parent=5 // pred_check_branch
      %865 = sbr.rel (%p863) target = $region56
    $region55: #{swin_module_forward.13} parent=5 // pred_region
      %s866 = ssub.s32 %s13, 2
      // Predicated region
      $region57: #{swin_module_forward.13} parent=55 // pred_check
        %p867 = pneg %p194
      $region58: #{swin_module_forward.13} parent=55 // pred_check_branch
        %869 = sbr.rel (%p867) target = $region60
      $region59: #{swin_module_forward.13} parent=55 // pred_region
        %s870 = smul.u32 8, %s19
        %p871 = scmp.lt.s32.totalorder %s870, 15
        %s872 = scalar_select %p871, %s870, 15
        %s873 = smul.addr %s872, 8
        %s874 = scalar_lea.vmem %s7, %s873
      $region60: #{swin_module_forward.13} parent=55 // pred_fallthru
        _
    $region56: #{swin_module_forward.13} parent=5 // pred_fallthru
      _
  $region6: #{swin_module_forward.13} parent=0 // loop_footer
    %s17 = sadd.s32 1, %s13
  $region7: #{swin_module_forward.13} parent=0 // loop_footer_branch
    %12 = sbr.rel target = $region3
  $region8: #{swin_module_forward.13} parent=0 // loop_exit
    _

// kernel: swin_module_forward.17
$region0: #{swin_module_forward.17}
  #allocation0 [shape = 'u32[]', space=smem, size = 0x4, offset = 0x4, fixed_abs, tag = 'smem constant byte address 0x4 - core index']
  #allocation1 [shape = 'u32[144,128]{1,0:T(1,128)}', space=vmem, size = 0x12000, scoped, tag = 'internal scratch']
  %s0 = inlined_call_operand.vmem [shape: f32[128,32], index: 0, kind: input, shape index: {}]
  %s1 = inlined_call_operand.vmem [shape: f32[1,32], index: 1, kind: input, shape index: {}]
  %s2 = inlined_call_operand.vmem [shape: f32[1,32], index: 2, kind: input, shape index: {}]
  %s3 = inlined_call_operand.vmem [shape: f32[32,128], index: 3, kind: input, shape index: {}]
  %s4 = inlined_call_operand.vmem [shape: f32[1,128], index: 4, kind: input, shape index: {}]
  %s5 = inlined_call_operand.vmem [shape: f32[128,32], index: 5, kind: input, shape index: {}]
  %s6 = inlined_call_operand.vmem [shape: f32[1,32], index: 6, kind: input, shape index: {}]
  %s7 = inlined_call_operand.hbm [shape: f32[128,32], index: 7, kind: output, shape index: {}]
  %s8 = sld [smem:[#allocation0]]
  $region61: #{swin_module_forward.17} parent=0
    _
  %s10 = ssub.s32 1, %s8
  %s11 = scalar_select 0, %s10, %s8
  $region1: #{swin_module_forward.17} parent=0
    #allocation2 [shape = 'u8[65536]{0}', space=vmem, size = 0x10000, scoped, tag = 'output window, operand 0']
    #allocation3 [shape = 's32[2]{0}', space=sflag, size = 0x8, scoped, tag = 'scoped memory for swin_module_forward.17']
    %12 = vsyncpa [#allocation3], 0
    %s13 = scalar_lea.sflag [#allocation3], 1
    %14 = vsyncpa %s13, 0
    loop: start=0, step=1, limit=4
    $region2: #{swin_module_forward.17} parent=1 // loop_pre_header
      _
    $region3: #{swin_module_forward.17} parent=1 // loop_header
      %s16 = sphi 0, %s20
      %p17 = scmp.ge.s32.totalorder %s16, 4
      %s26 = sphi 0, %s28
      %s29 = sphi 0, %s26
      %s30 = sphi 0, %s29
      %s46 = sphi 0, %s30
      %s50 = sphi 0, %s50
      %s52 = sphi 0, %s50
      %s53 = sphi 0, %s52
      %s67 = sphi 0, %s53
      %s71 = sphi 0, %s71
      %s73 = sphi 0, %s71
      %s74 = sphi 0, %s73
      %s88 = sphi 0, %s74
      %s92 = sphi 0, %s92
      %s94 = sphi 0, %s92
      %s95 = sphi 0, %s94
      %s109 = sphi 0, %s95
      %s113 = sphi 0, %s113
      %s115 = sphi 0, %s113
      %s116 = sphi 0, %s115
      %s130 = sphi 0, %s116
      %s134 = sphi 0, %s134
      %s136 = sphi 0, %s134
      %s137 = sphi 0, %s136
      %s151 = sphi 0, %s137
      %s155 = sphi 0, %s155
      %s157 = sphi 0, %s155
      %s158 = sphi 0, %s157
      %s172 = sphi 0, %s158
      %s178 = sphi 0, %s180
      %s181 = sphi 0, %s178
      %s182 = sphi 0, %s181
      %s198 = sphi 0, %s182
    $region4: #{swin_module_forward.17} parent=1 // loop_header_branch
      %19 = sbr.rel (%p17) target = $region8
    $region5: #{swin_module_forward.17} parent=1 // loop_body
      %s21 = ssub.s32 %s16, 1
      %s22 = ssub.s32 %s16, 2
      %s23 = sadd.s32 %s16, 1
      %s24 = ssub.s32 %s16, %s23
      %p25 = scmp.eq.s32.totalorder %s24, 0
      %s27 = sadd.s32 %s26, 1
      %s28 = scalar_select %p25, %s26, %s27
      %p31 = pneg %p25
      %p32 = scmp.eq.s32.totalorder %s16, 1
      %p33 = por %p31, %p32
      %p34 = scmp.ne.s32.totalorder %s26, %s29
      %p35 = scmp.eq.s32.totalorder %s16, 0
      %p36 = por %p34, %p35
      %p37 = scmp.ne.s32.totalorder %s26, %s29
      %p38 = scmp.eq.s32.totalorder %s21, 1
      %p39 = por %p37, %p38
      %p40 = scmp.ne.s32.totalorder %s29, %s30
      %p41 = scmp.eq.s32.totalorder %s21, 0
      %p42 = por %p40, %p41
      %p43 = scmp.ne.s32.totalorder %s29, %s30
      %p44 = scmp.eq.s32.totalorder %s22, 1
      %p45 = por %p43, %p44
      %p47 = scmp.ne.s32.totalorder %s30, %s46
      %p48 = scmp.eq.s32.totalorder %s22, 0
      %p49 = por %p47, %p48
      %s51 = sadd.s32 %s50, 1
      %p54 = scmp.eq.s32.totalorder %s16, 1
      %p55 = scmp.ne.s32.totalorder %s50, %s52
      %p56 = scmp.eq.s32.totalorder %s16, 0
      %p57 = por %p55, %p56
      %p58 = scmp.ne.s32.totalorder %s50, %s52
      %p59 = scmp.eq.s32.totalorder %s21, 1
      %p60 = por %p58, %p59
      %p61 = scmp.ne.s32.totalorder %s52, %s53
      %p62 = scmp.eq.s32.totalorder %s21, 0
      %p63 = por %p61, %p62
      %p64 = scmp.ne.s32.totalorder %s52, %s53
      %p65 = scmp.eq.s32.totalorder %s22, 1
      %p66 = por %p64, %p65
      %p68 = scmp.ne.s32.totalorder %s53, %s67
      %p69 = scmp.eq.s32.totalorder %s22, 0
      %p70 = por %p68, %p69
      %s72 = sadd.s32 %s71, 1
      %p75 = scmp.eq.s32.totalorder %s16, 1
      %p76 = scmp.ne.s32.totalorder %s71, %s73
      %p77 = scmp.eq.s32.totalorder %s16, 0
      %p78 = por %p76, %p77
      %p79 = scmp.ne.s32.totalorder %s71, %s73
      %p80 = scmp.eq.s32.totalorder %s21, 1
      %p81 = por %p79, %p80
      %p82 = scmp.ne.s32.totalorder %s73, %s74
      %p83 = scmp.eq.s32.totalorder %s21, 0
      %p84 = por %p82, %p83
      %p85 = scmp.ne.s32.totalorder %s73, %s74
      %p86 = scmp.eq.s32.totalorder %s22, 1
      %p87 = por %p85, %p86
      %p89 = scmp.ne.s32.totalorder %s74, %s88
      %p90 = scmp.eq.s32.totalorder %s22, 0
      %p91 = por %p89, %p90
      %s93 = sadd.s32 %s92, 1
      %p96 = scmp.eq.s32.totalorder %s16, 1
      %p97 = scmp.ne.s32.totalorder %s92, %s94
      %p98 = scmp.eq.s32.totalorder %s16, 0
      %p99 = por %p97, %p98
      %p100 = scmp.ne.s32.totalorder %s92, %s94
      %p101 = scmp.eq.s32.totalorder %s21, 1
      %p102 = por %p100, %p101
      %p103 = scmp.ne.s32.totalorder %s94, %s95
      %p104 = scmp.eq.s32.totalorder %s21, 0
      %p105 = por %p103, %p104
      %p106 = scmp.ne.s32.totalorder %s94, %s95
      %p107 = scmp.eq.s32.totalorder %s22, 1
      %p108 = por %p106, %p107
      %p110 = scmp.ne.s32.totalorder %s95, %s109
      %p111 = scmp.eq.s32.totalorder %s22, 0
      %p112 = por %p110, %p111
      %s114 = sadd.s32 %s113, 1
      %p117 = scmp.eq.s32.totalorder %s16, 1
      %p118 = scmp.ne.s32.totalorder %s113, %s115
      %p119 = scmp.eq.s32.totalorder %s16, 0
      %p120 = por %p118, %p119
      %p121 = scmp.ne.s32.totalorder %s113, %s115
      %p122 = scmp.eq.s32.totalorder %s21, 1
      %p123 = por %p121, %p122
      %p124 = scmp.ne.s32.totalorder %s115, %s116
      %p125 = scmp.eq.s32.totalorder %s21, 0
      %p126 = por %p124, %p125
      %p127 = scmp.ne.s32.totalorder %s115, %s116
      %p128 = scmp.eq.s32.totalorder %s22, 1
      %p129 = por %p127, %p128
      %p131 = scmp.ne.s32.totalorder %s116, %s130
      %p132 = scmp.eq.s32.totalorder %s22, 0
      %p133 = por %p131, %p132
      %s135 = sadd.s32 %s134, 1
      %p138 = scmp.eq.s32.totalorder %s16, 1
      %p139 = scmp.ne.s32.totalorder %s134, %s136
      %p140 = scmp.eq.s32.totalorder %s16, 0
      %p141 = por %p139, %p140
      %p142 = scmp.ne.s32.totalorder %s134, %s136
      %p143 = scmp.eq.s32.totalorder %s21, 1
      %p144 = por %p142, %p143
      %p145 = scmp.ne.s32.totalorder %s136, %s137
      %p146 = scmp.eq.s32.totalorder %s21, 0
      %p147 = por %p145, %p146
      %p148 = scmp.ne.s32.totalorder %s136, %s137
      %p149 = scmp.eq.s32.totalorder %s22, 1
      %p150 = por %p148, %p149
      %p152 = scmp.ne.s32.totalorder %s137, %s151
      %p153 = scmp.eq.s32.totalorder %s22, 0
      %p154 = por %p152, %p153
      %s156 = sadd.s32 %s155, 1
      %p159 = scmp.eq.s32.totalorder %s16, 1
      %p160 = scmp.ne.s32.totalorder %s155, %s157
      %p161 = scmp.eq.s32.totalorder %s16, 0
      %p162 = por %p160, %p161
      %p163 = scmp.ne.s32.totalorder %s155, %s157
      %p164 = scmp.eq.s32.totalorder %s21, 1
      %p165 = por %p163, %p164
      %p166 = scmp.ne.s32.totalorder %s157, %s158
      %p167 = scmp.eq.s32.totalorder %s21, 0
      %p168 = por %p166, %p167
      %p169 = scmp.ne.s32.totalorder %s157, %s158
      %p170 = scmp.eq.s32.totalorder %s22, 1
      %p171 = por %p169, %p170
      %p173 = scmp.ne.s32.totalorder %s158, %s172
      %p174 = scmp.eq.s32.totalorder %s22, 0
      %p175 = por %p173, %p174
      %s176 = ssub.s32 %s16, %s23
      %p177 = scmp.eq.s32.totalorder %s176, 0
      %s179 = sadd.s32 %s178, 1
      %s180 = scalar_select %p177, %s178, %s179
      %p183 = pneg %p177
      %p184 = scmp.eq.s32.totalorder %s16, 1
      %p185 = por %p183, %p184
      %p186 = scmp.ne.s32.totalorder %s178, %s181
      %p187 = scmp.eq.s32.totalorder %s16, 0
      %p188 = por %p186, %p187
      %p189 = scmp.ne.s32.totalorder %s178, %s181
      %p190 = scmp.eq.s32.totalorder %s21, 1
      %p191 = por %p189, %p190
      %p192 = scmp.ne.s32.totalorder %s181, %s182
      %p193 = scmp.eq.s32.totalorder %s21, 0
      %p194 = por %p192, %p193
      %p195 = scmp.ne.s32.totalorder %s181, %s182
      %p196 = scmp.eq.s32.totalorder %s22, 1
      %p197 = por %p195, %p196
      %p199 = scmp.ne.s32.totalorder %s182, %s198
      %p200 = scmp.eq.s32.totalorder %s22, 0
      %p201 = por %p199, %p200
      %p202 = scmp.le.s32.totalorder 1, %s16
      %p203 = scmp.lt.s32.totalorder %s16, 3
      %p204 = pnand %p202, %p203
      %p205 = pneg %p204
      // Predicated region
      $region9: #{swin_module_forward.17} parent=5 // pred_check
        _
      $region10: #{swin_module_forward.17} parent=5 // pred_check_branch
        %207 = sbr.rel (%p204) target = $region12
      $region11: #{swin_module_forward.17} parent=5 // pred_region
        %s208 = ssub.s32 %s16, 1
        // Predicated region
        $region13: #{swin_module_forward.17} parent=11 // pred_check
          %p209 = pneg %p63
        $region14: #{swin_module_forward.17} parent=11 // pred_check_branch
          %211 = sbr.rel (%p209) target = $region16
        $region15: #{swin_module_forward.17} parent=11 // pred_region
          _
        $region16: #{swin_module_forward.17} parent=11 // pred_fallthru
          _
        // Predicated region
        $region17: #{swin_module_forward.17} parent=11 // pred_check
          %p212 = pneg %p84
        $region18: #{swin_module_forward.17} parent=11 // pred_check_branch
          %214 = sbr.rel (%p212) target = $region20
        $region19: #{swin_module_forward.17} parent=11 // pred_region
          _
        $region20: #{swin_module_forward.17} parent=11 // pred_fallthru
          _
        // Predicated region
        $region21: #{swin_module_forward.17} parent=11 // pred_check
          %p215 = pneg %p105
        $region22: #{swin_module_forward.17} parent=11 // pred_check_branch
          %217 = sbr.rel (%p215) target = $region24
        $region23: #{swin_module_forward.17} parent=11 // pred_region
          _
        $region24: #{swin_module_forward.17} parent=11 // pred_fallthru
          _
        // Predicated region
        $region25: #{swin_module_forward.17} parent=11 // pred_check
          %p218 = pneg %p126
        $region26: #{swin_module_forward.17} parent=11 // pred_check_branch
          %220 = sbr.rel (%p218) target = $region28
        $region27: #{swin_module_forward.17} parent=11 // pred_region
          _
        $region28: #{swin_module_forward.17} parent=11 // pred_fallthru
          _
        // Predicated region
        $region29: #{swin_module_forward.17} parent=11 // pred_check
          %p221 = pneg %p147
        $region30: #{swin_module_forward.17} parent=11 // pred_check_branch
          %223 = sbr.rel (%p221) target = $region32
        $region31: #{swin_module_forward.17} parent=11 // pred_region
          _
        $region32: #{swin_module_forward.17} parent=11 // pred_fallthru
          _
        // Predicated region
        $region33: #{swin_module_forward.17} parent=11 // pred_check
          %p224 = pneg %p168
        $region34: #{swin_module_forward.17} parent=11 // pred_check_branch
          %226 = sbr.rel (%p224) target = $region36
        $region35: #{swin_module_forward.17} parent=11 // pred_region
          _
        $region36: #{swin_module_forward.17} parent=11 // pred_fallthru
          _
      $region12: #{swin_module_forward.17} parent=5 // pred_fallthru
        _
      %p227 = scmp.lt.s32.totalorder %s16, 2
      // Predicated region
      $region37: #{swin_module_forward.17} parent=5 // pred_check
        %p228 = pneg %p227
      $region38: #{swin_module_forward.17} parent=5 // pred_check_branch
        %230 = sbr.rel (%p228) target = $region40
      $region39: #{swin_module_forward.17} parent=5 // pred_region
        // Predicated region
        $region41: #{swin_module_forward.17} parent=39 // pred_check
          %p231 = pneg %p36
        $region42: #{swin_module_forward.17} parent=39 // pred_check_branch
          %233 = sbr.rel (%p231) target = $region44
        $region43: #{swin_module_forward.17} parent=39 // pred_region
          %s234 = smul.u32 8, %s16
          %p235 = scmp.lt.s32.totalorder %s234, 15
          %s236 = scalar_select %p235, %s234, 15
          %s237 = smul.addr %s236, 8
          %s238 = scalar_lea.vmem %s0, %s237
          %s239 = smul.u32 8, %s16
        $region44: #{swin_module_forward.17} parent=39 // pred_fallthru
          _
      $region40: #{swin_module_forward.17} parent=5 // pred_fallthru
        _
      %p240 = scmp.le.s32.totalorder 1, %s16
      %p241 = scmp.lt.s32.totalorder %s16, 3
      %p242 = pnand %p240, %p241
      %p243 = pneg %p242
      // Predicated region
      $region45: #{swin_module_forward.17} parent=5 // pred_check
        _
      $region46: #{swin_module_forward.17} parent=5 // pred_check_branch
        %245 = sbr.rel (%p242) target = $region48
      $region47: #{swin_module_forward.17} parent=5 // pred_region
        %s246 = ssub.s32 %s16, 1
        %s247 = smul.u32 8, %s21
        %p248 = scmp.lt.s32.totalorder %s247, 15
        %s249 = scalar_select %p248, %s247, 15
        %s250 = smul.addr %s249, 8
        %s251 = scalar_lea.vmem %s0, %s250
        %p252 = pneg %p42
        %p253 = pneg %p39
        %p254 = pneg %p63
        %p255 = pneg %p60
        %p256 = pneg %p84
        %p257 = pneg %p81
        %p258 = pneg %p105
        %p259 = pneg %p102
        %p260 = pneg %p126
        %p261 = pneg %p123
        %p262 = pneg %p147
        %p263 = pneg %p144
        %p264 = pneg %p168
        %p265 = pneg %p165
        %p266 = pneg %p194
        %p267 = pneg %p191
        %s268 = sand.u32 %s181, 1
        %s269 = scalar_lea.sflag [#allocation3], %s268
        %s270 = sand.u32 %s181, 1
        %s271 = smul.addr %s270, 64
        %s272 = scalar_lea.vmem [#allocation2], %s271
        %s273 = smul.u32 8, %s21
        %p274 = scmp.lt.s32.totalorder %s273, 15
        %s275 = scalar_select %p274, %s273, 15
        %s276 = smul.addr %s275, 8
        %s277 = scalar_lea.vmem %s0, %s276
        %s278 = smul.u32 8, %s21
        %s279 = smul.u32 8, %s21
        %v281 = vld [vmem:[%s277] sm:$0xff]
        %v282 = vld [vmem:[%s277 + $0x8] sm:$0xff]
        %v283 = vld [vmem:[%s277 + $0x10] sm:$0xff]
        %v284 = vld [vmem:[%s277 + $0x18] sm:$0xff]
        %v285 = vld [vmem:[%s277 + $0x20] sm:$0xff]
        %v286 = vld [vmem:[%s277 + $0x28] sm:$0xff]
        %v287 = vld [vmem:[%s277 + $0x30] sm:$0xff]
        %v288 = vld [vmem:[%s277 + $0x38] sm:$0xff]
        %v289 = vld [vmem:[%s1] sm:$0x1]
        %v290 = vld [vmem:[%s2] sm:$0x1]
        %vm291 = vcmask 261120
        %v292 = vsel %vm291, %v281, 0.0
        %293 = vadd.xlane.f32.xlu0 %v292
        %v294 = vpop.xlane.xlu0 %293
        %v295 = vsel %vm291, %v282, 0.0
        %296 = vadd.xlane.f32.xlu0 %v295
        %v297 = vpop.xlane.xlu0 %296
        %v298 = vsel %vm291, %v283, 0.0
        %299 = vadd.xlane.f32.xlu0 %v298
        %v300 = vpop.xlane.xlu0 %299
        %v301 = vsel %vm291, %v284, 0.0
        %302 = vadd.xlane.f32.xlu0 %v301
        %v303 = vpop.xlane.xlu0 %302
        %v304 = vsel %vm291, %v285, 0.0
        %305 = vadd.xlane.f32.xlu0 %v304
        %v306 = vpop.xlane.xlu0 %305
        %v307 = vsel %vm291, %v286, 0.0
        %308 = vadd.xlane.f32.xlu0 %v307
        %v309 = vpop.xlane.xlu0 %308
        %v310 = vsel %vm291, %v287, 0.0
        %311 = vadd.xlane.f32.xlu0 %v310
        %v312 = vpop.xlane.xlu0 %311
        %v313 = vsel %vm291, %v288, 0.0
        %314 = vadd.xlane.f32.xlu0 %v313
        %v315 = vpop.xlane.xlu0 %314
        %v316 = vrcp.pop 32.0
        %v317 = vmul.f32 %v294, %v316
        %v318 = vmul.f32 %v297, %v316
        %v319 = vmul.f32 %v300, %v316
        %v320 = vmul.f32 %v303, %v316
        %v321 = vmul.f32 %v306, %v316
        %v322 = vmul.f32 %v309, %v316
        %v323 = vmul.f32 %v312, %v316
        %v324 = vmul.f32 %v315, %v316
        %v325 = vsub.f32 %v281, %v317
        %v326 = vsub.f32 %v282, %v318
        %v327 = vsub.f32 %v283, %v319
        %v328 = vsub.f32 %v284, %v320
        %v329 = vsub.f32 %v285, %v321
        %v330 = vsub.f32 %v286, %v322
        %v331 = vsub.f32 %v287, %v323
        %v332 = vsub.f32 %v288, %v324
        %v333 = vmul.f32 %v325, %v325
        %v334 = vmul.f32 %v326, %v326
        %v335 = vmul.f32 %v327, %v327
        %v336 = vmul.f32 %v328, %v328
        %v337 = vmul.f32 %v329, %v329
        %v338 = vmul.f32 %v330, %v330
        %v339 = vmul.f32 %v331, %v331
        %v340 = vmul.f32 %v332, %v332
        %v341 = vsel %vm291, %v333, 0.0
        %342 = vadd.xlane.f32.xlu0 %v341
        %v343 = vpop.xlane.xlu0 %342
        %v344 = vsel %vm291, %v334, 0.0
        %345 = vadd.xlane.f32.xlu0 %v344
        %v346 = vpop.xlane.xlu0 %345
        %v347 = vsel %vm291, %v335, 0.0
        %348 = vadd.xlane.f32.xlu0 %v347
        %v349 = vpop.xlane.xlu0 %348
        %v350 = vsel %vm291, %v336, 0.0
        %351 = vadd.xlane.f32.xlu0 %v350
        %v352 = vpop.xlane.xlu0 %351
        %v353 = vsel %vm291, %v337, 0.0
        %354 = vadd.xlane.f32.xlu0 %v353
        %v355 = vpop.xlane.xlu0 %354
        %v356 = vsel %vm291, %v338, 0.0
        %357 = vadd.xlane.f32.xlu0 %v356
        %v358 = vpop.xlane.xlu0 %357
        %v359 = vsel %vm291, %v339, 0.0
        %360 = vadd.xlane.f32.xlu0 %v359
        %v361 = vpop.xlane.xlu0 %360
        %v362 = vsel %vm291, %v340, 0.0
        %363 = vadd.xlane.f32.xlu0 %v362
        %v364 = vpop.xlane.xlu0 %363
        %v365 = vmul.f32 %v343, %v316
        %v366 = vmul.f32 %v346, %v316
        %v367 = vmul.f32 %v349, %v316
        %v368 = vmul.f32 %v352, %v316
        %v369 = vmul.f32 %v355, %v316
        %v370 = vmul.f32 %v358, %v316
        %v371 = vmul.f32 %v361, %v316
        %v372 = vmul.f32 %v364, %v316
        %v373 = vadd.f32 %v365, 1e-05
        %v374 = vadd.f32 %v366, 1e-05
        %v375 = vadd.f32 %v367, 1e-05
        %v376 = vadd.f32 %v368, 1e-05
        %v377 = vadd.f32 %v369, 1e-05
        %v378 = vadd.f32 %v370, 1e-05
        %v379 = vadd.f32 %v371, 1e-05
        %v380 = vadd.f32 %v372, 1e-05
        %v381 = vrsqrt.pop %v373
        %v382 = vrsqrt.pop %v374
        %v383 = vrsqrt.pop %v375
        %v384 = vrsqrt.pop %v376
        %v385 = vrsqrt.pop %v377
        %v386 = vrsqrt.pop %v378
        %v387 = vrsqrt.pop %v379
        %v388 = vrsqrt.pop %v380
        %v389 = vmul.f32 %v325, %v381
        %v390 = vmul.f32 %v326, %v382
        %v391 = vmul.f32 %v327, %v383
        %v392 = vmul.f32 %v328, %v384
        %v393 = vmul.f32 %v329, %v385
        %v394 = vmul.f32 %v330, %v386
        %v395 = vmul.f32 %v331, %v387
        %v396 = vmul.f32 %v332, %v388
        %v398 = vlaneseq
        %v399 = vshrl.u32 %v398, 7
        %v400 = vsub.s32 0, %v399
        %v401 = vrot.slane %v289, %v400
        %v403 = vmul.f32 %v389, %v401
        %v404 = vmul.f32 %v390, %v401
        %v405 = vmul.f32 %v391, %v401
        %v406 = vmul.f32 %v392, %v401
        %v407 = vmul.f32 %v393, %v401
        %v408 = vmul.f32 %v394, %v401
        %v409 = vmul.f32 %v395, %v401
        %v410 = vmul.f32 %v396, %v401
        %v412 = vlaneseq
        %v413 = vshrl.u32 %v412, 7
        %v414 = vsub.s32 0, %v413
        %v415 = vrot.slane %v290, %v414
        %v417 = vadd.f32 %v403, %v415
        %v418 = vadd.f32 %v404, %v415
        %v419 = vadd.f32 %v405, %v415
        %v420 = vadd.f32 %v406, %v415
        %v421 = vadd.f32 %v407, %v415
        %v422 = vadd.f32 %v408, %v415
        %v423 = vadd.f32 %v409, %v415
        %v424 = vadd.f32 %v410, %v415
        %v425 = vpack.c.bf16 %v418, %v417
        %v426 = vpack.c.bf16 %v420, %v419
        %v427 = vpack.c.bf16 %v422, %v421
        %v428 = vpack.c.bf16 %v424, %v423
        %v429 = vld [vmem:[%s3] sm:$0xff]
        %v430 = vld [vmem:[%s3 + $0x8] sm:$0xff]
        %v431 = vld [vmem:[%s3 + $0x10] sm:$0xff]
        %v432 = vld [vmem:[%s3 + $0x18] sm:$0xff]
        %v433 = vpack.c.bf16 %v430, %v429
        %v434 = vpack.c.bf16 %v432, %v431
        %v435 = vld [vmem:[%s4] sm:$0x1]
        %v437 = vlaneseq
        %v438 = vshrl.u32 %v437, 7
        %v439 = vsub.s32 0, %v438
        %v440 = vrot.slane %v435, %v439
        %v443 = vsel %vm291, %v425, 0
        %v446 = vsel %vm291, %v426, 0
        %v449 = vsel %vm291, %v427, 0
        %v452 = vsel %vm291, %v428, 0
        %454 = vmatprep.subr.bf16.mxu0 0
        %455 = vmatpush1.bf16.msra.mxu0 %v433
        %456 = vmatprep.subr.bf16.mxu0 0
        %457 = vmatpush1.bf16.msra.mxu0 %v434
        %458 = vmatprep.subr.bf16.mxu0 0
        %459 = vmatpush1.bf16.msra.mxu0 0
        %460 = vmatprep.subr.bf16.mxu0 0
        %461 = vmatpush1.bf16.msra.mxu0 0
        %462 = vmatprep.subr.bf16.mxu0 0
        %463 = vmatpush1.bf16.msra.mxu0 0
        %464 = vmatprep.subr.bf16.mxu0 0
        %465 = vmatpush1.bf16.msra.mxu0 0
        %466 = vmatprep.subr.bf16.mxu0 0
        %467 = vmatpush1.bf16.msra.mxu0 0
        %468 = vmatprep.subr.bf16.mxu0 0
        %469 = vmatpush1.bf16.msra.mxu0 0
        %470 = vmatprep.subr.bf16.mxu0 0
        %471 = vmatpush1.bf16.msra.mxu0 0
        %472 = vmatprep.subr.bf16.mxu0 0
        %473 = vmatpush1.bf16.msra.mxu0 0
        %474 = vmatprep.subr.bf16.mxu0 0
        %475 = vmatpush1.bf16.msra.mxu0 0
        %476 = vmatprep.subr.bf16.mxu0 0
        %477 = vmatpush1.bf16.msra.mxu0 0
        %478 = vmatprep.subr.bf16.mxu0 0
        %479 = vmatpush1.bf16.msra.mxu0 0
        %480 = vmatprep.subr.bf16.mxu0 0
        %481 = vmatpush1.bf16.msra.mxu0 0
        %482 = vmatprep.subr.bf16.mxu0 0
        %483 = vmatpush1.bf16.msra.mxu0 0
        %484 = vmatprep.subr.bf16.mxu0 0
        %485 = vmatpush1.bf16.msra.mxu0 0
        %486 = vmatprep.mubr.bf16.mxu0 0
        %487 = vmatmul.mubr.bf16.gmra.mrb[0].mxu0 %v443
        %v488 = vpop.f32.mrb[0].mxu0
        %v489 = vadd.f32 %v440, %v488
        %v490 = vpop.f32.mrb[0].mxu0
        %v491 = vpop.f32.mrb[0].mxu0
        %v492 = vadd.f32 %v440, %v491
        %v493 = vpop.f32.mrb[0].mxu0
        %494 = vmatprep.mubr.bf16.mxu0 0
        %495 = vmatmul.mubr.bf16.gmra.mrb[0].mxu0 %v446
        %v496 = vpop.f32.mrb[0].mxu0
        %v497 = vadd.f32 %v440, %v496
        %v498 = vpop.f32.mrb[0].mxu0
        %v499 = vpop.f32.mrb[0].mxu0
        %v500 = vadd.f32 %v440, %v499
        %v501 = vpop.f32.mrb[0].mxu0
        %502 = vmatprep.mubr.bf16.mxu0 0
        %503 = vmatmul.mubr.bf16.gmra.mrb[0].mxu0 %v449
        %v504 = vpop.f32.mrb[0].mxu0
        %v505 = vadd.f32 %v440, %v504
        %v506 = vpop.f32.mrb[0].mxu0
        %v507 = vpop.f32.mrb[0].mxu0
        %v508 = vadd.f32 %v440, %v507
        %v509 = vpop.f32.mrb[0].mxu0
        %510 = vmatprep.mubr.bf16.mxu0 0
        %511 = vmatmul.mubr.bf16.gmra.mrb[0].mxu0 %v452
        %v512 = vpop.f32.mrb[0].mxu0
        %v513 = vadd.f32 %v440, %v512
        %v514 = vpop.f32.mrb[0].mxu0
        %v515 = vpop.f32.mrb[0].mxu0
        %v516 = vadd.f32 %v440, %v515
        %v517 = vpop.f32.mrb[0].mxu0
        %518 = vdwg.mxu0
        %v519 = vmul.f32 %v489, 0.5
        %v520 = vmul.f32 %v492, 0.5
        %v521 = vmul.f32 %v497, 0.5
        %v522 = vmul.f32 %v500, 0.5
        %v523 = vmul.f32 %v505, 0.5
        %v524 = vmul.f32 %v508, 0.5
        %v525 = vmul.f32 %v513, 0.5
        %v526 = vmul.f32 %v516, 0.5
        %v527 = vmul.f32 %v489, 0.70710677
        %v528 = vmul.f32 %v492, 0.70710677
        %v529 = vmul.f32 %v497, 0.70710677
        %v530 = vmul.f32 %v500, 0.70710677
        %v531 = vmul.f32 %v505, 0.70710677
        %v532 = vmul.f32 %v508, 0.70710677
        %v533 = vmul.f32 %v513, 0.70710677
        %v534 = vmul.f32 %v516, 0.70710677
        %vm535 = vcmp.ge.f32.partialorder %v527, 0.0
        %vm536 = vcmp.ge.f32.partialorder %v528, 0.0
        %vm537 = vcmp.ge.f32.partialorder %v529, 0.0
        %vm538 = vcmp.ge.f32.partialorder %v530, 0.0
        %vm539 = vcmp.ge.f32.partialorder %v531, 0.0
        %vm540 = vcmp.ge.f32.partialorder %v532, 0.0
        %vm541 = vcmp.ge.f32.partialorder %v533, 0.0
        %vm542 = vcmp.ge.f32.partialorder %v534, 0.0
        %v543 = vsel %vm535, 1.0, -1.0
        %v544 = vsel %vm536, 1.0, -1.0
        %v545 = vsel %vm537, 1.0, -1.0
        %v546 = vsel %vm538, 1.0, -1.0
        %v547 = vsel %vm539, 1.0, -1.0
        %v548 = vsel %vm540, 1.0, -1.0
        %v549 = vsel %vm541, 1.0, -1.0
        %v550 = vsel %vm542, 1.0, -1.0
        %v551 = vand.u32 2147483647, %v527
        %v552 = vand.u32 2147483647, %v528
        %v553 = vand.u32 2147483647, %v529
        %v554 = vand.u32 2147483647, %v530
        %v555 = vand.u32 2147483647, %v531
        %v556 = vand.u32 2147483647, %v532
        %v557 = vand.u32 2147483647, %v533
        %v558 = vand.u32 2147483647, %v534
        %v559 = vmul.f32 %v551, 0.3275911
        %v560 = vmul.f32 %v552, 0.3275911
        %v561 = vmul.f32 %v553, 0.3275911
        %v562 = vmul.f32 %v554, 0.3275911
        %v563 = vmul.f32 %v555, 0.3275911
        %v564 = vmul.f32 %v556, 0.3275911
        %v565 = vmul.f32 %v557, 0.3275911
        %v566 = vmul.f32 %v558, 0.3275911
        %v567 = vadd.f32 %v559, 1.0
        %v568 = vadd.f32 %v560, 1.0
        %v569 = vadd.f32 %v561, 1.0
        %v570 = vadd.f32 %v562, 1.0
        %v571 = vadd.f32 %v563, 1.0
        %v572 = vadd.f32 %v564, 1.0
        %v573 = vadd.f32 %v565, 1.0
        %v574 = vadd.f32 %v566, 1.0
        %v575 = vrcp.pop %v567
        %v576 = vmul.f32 1.0, %v575
        %v577 = vrcp.pop %v568
        %v578 = vmul.f32 1.0, %v577
        %v579 = vrcp.pop %v569
        %v580 = vmul.f32 1.0, %v579
        %v581 = vrcp.pop %v570
        %v582 = vmul.f32 1.0, %v581
        %v583 = vrcp.pop %v571
        %v584 = vmul.f32 1.0, %v583
        %v585 = vrcp.pop %v572
        %v586 = vmul.f32 1.0, %v585
        %v587 = vrcp.pop %v573
        %v588 = vmul.f32 1.0, %v587
        %v589 = vrcp.pop %v574
        %v590 = vmul.f32 1.0, %v589
        %v591 = vmul.f32 %v576, 1.0614054
        %v592 = vmul.f32 %v578, 1.0614054
        %v593 = vmul.f32 %v580, 1.0614054
        %v594 = vmul.f32 %v582, 1.0614054
        %v595 = vmul.f32 %v584, 1.0614054
        %v596 = vmul.f32 %v586, 1.0614054
        %v597 = vmul.f32 %v588, 1.0614054
        %v598 = vmul.f32 %v590, 1.0614054
        %v599 = vadd.f32 %v591, -1.4531521
        %v600 = vadd.f32 %v592, -1.4531521
        %v601 = vadd.f32 %v593, -1.4531521
        %v602 = vadd.f32 %v594, -1.4531521
        %v603 = vadd.f32 %v595, -1.4531521
        %v604 = vadd.f32 %v596, -1.4531521
        %v605 = vadd.f32 %v597, -1.4531521
        %v606 = vadd.f32 %v598, -1.4531521
        %v607 = vmul.f32 %v599, %v576
        %v608 = vmul.f32 %v600, %v578
        %v609 = vmul.f32 %v601, %v580
        %v610 = vmul.f32 %v602, %v582
        %v611 = vmul.f32 %v603, %v584
        %v612 = vmul.f32 %v604, %v586
        %v613 = vmul.f32 %v605, %v588
        %v614 = vmul.f32 %v606, %v590
        %v615 = vadd.f32 %v607, 1.4214138
        %v616 = vadd.f32 %v608, 1.4214138
        %v617 = vadd.f32 %v609, 1.4214138
        %v618 = vadd.f32 %v610, 1.4214138
        %v619 = vadd.f32 %v611, 1.4214138
        %v620 = vadd.f32 %v612, 1.4214138
        %v621 = vadd.f32 %v613, 1.4214138
        %v622 = vadd.f32 %v614, 1.4214138
        %v623 = vmul.f32 %v615, %v576
        %v624 = vmul.f32 %v616, %v578
        %v625 = vmul.f32 %v617, %v580
        %v626 = vmul.f32 %v618, %v582
        %v627 = vmul.f32 %v619, %v584
        %v628 = vmul.f32 %v620, %v586
        %v629 = vmul.f32 %v621, %v588
        %v630 = vmul.f32 %v622, %v590
        %v631 = vadd.f32 %v623, -0.28449672
        %v632 = vadd.f32 %v624, -0.28449672
        %v633 = vadd.f32 %v625, -0.28449672
        %v634 = vadd.f32 %v626, -0.28449672
        %v635 = vadd.f32 %v627, -0.28449672
        %v636 = vadd.f32 %v628, -0.28449672
        %v637 = vadd.f32 %v629, -0.28449672
        %v638 = vadd.f32 %v630, -0.28449672
        %v639 = vmul.f32 %v631, %v576
        %v640 = vmul.f32 %v632, %v578
        %v641 = vmul.f32 %v633, %v580
        %v642 = vmul.f32 %v634, %v582
        %v643 = vmul.f32 %v635, %v584
        %v644 = vmul.f32 %v636, %v586
        %v645 = vmul.f32 %v637, %v588
        %v646 = vmul.f32 %v638, %v590
        %v647 = vadd.f32 %v639, 0.2548296
        %v648 = vadd.f32 %v640, 0.2548296
        %v649 = vadd.f32 %v641, 0.2548296
        %v650 = vadd.f32 %v642, 0.2548296
        %v651 = vadd.f32 %v643, 0.2548296
        %v652 = vadd.f32 %v644, 0.2548296
        %v653 = vadd.f32 %v645, 0.2548296
        %v654 = vadd.f32 %v646, 0.2548296
        %v655 = vmul.f32 %v647, %v576
        %v656 = vmul.f32 %v648, %v578
        %v657 = vmul.f32 %v649, %v580
        %v658 = vmul.f32 %v650, %v582
        %v659 = vmul.f32 %v651, %v584
        %v660 = vmul.f32 %v652, %v586
        %v661 = vmul.f32 %v653, %v588
        %v662 = vmul.f32 %v654, %v590
        %v663 = vsub.f32 0.0, %v551
        %v664 = vsub.f32 0.0, %v552
        %v665 = vsub.f32 0.0, %v553
        %v666 = vsub.f32 0.0, %v554
        %v667 = vsub.f32 0.0, %v555
        %v668 = vsub.f32 0.0, %v556
        %v669 = vsub.f32 0.0, %v557
        %v670 = vsub.f32 0.0, %v558
        %v671 = vmul.f32 %v663, %v551
        %v672 = vmul.f32 %v664, %v552
        %v673 = vmul.f32 %v665, %v553
        %v674 = vmul.f32 %v666, %v554
        %v675 = vmul.f32 %v667, %v555
        %v676 = vmul.f32 %v668, %v556
        %v677 = vmul.f32 %v669, %v557
        %v678 = vmul.f32 %v670, %v558
        %v679 = vmul.f32 %v671, 1.442695
        %v680 = vpow.pop %v679
        %v681 = vmul.f32 %v672, 1.442695
        %v682 = vpow.pop %v681
        %v683 = vmul.f32 %v673, 1.442695
        %v684 = vpow.pop %v683
        %v685 = vmul.f32 %v674, 1.442695
        %v686 = vpow.pop %v685
        %v687 = vmul.f32 %v675, 1.442695
        %v688 = vpow.pop %v687
        %v689 = vmul.f32 %v676, 1.442695
        %v690 = vpow.pop %v689
        %v691 = vmul.f32 %v677, 1.442695
        %v692 = vpow.pop %v691
        %v693 = vmul.f32 %v678, 1.442695
        %v694 = vpow.pop %v693
        %v695 = vmul.f32 %v655, %v680
        %v696 = vmul.f32 %v656, %v682
        %v697 = vmul.f32 %v657, %v684
        %v698 = vmul.f32 %v658, %v686
        %v699 = vmul.f32 %v659, %v688
        %v700 = vmul.f32 %v660, %v690
        %v701 = vmul.f32 %v661, %v692
        %v702 = vmul.f32 %v662, %v694
        %v703 = vsub.f32 1.0, %v695
        %v704 = vsub.f32 1.0, %v696
        %v705 = vsub.f32 1.0, %v697
        %v706 = vsub.f32 1.0, %v698
        %v707 = vsub.f32 1.0, %v699
        %v708 = vsub.f32 1.0, %v700
        %v709 = vsub.f32 1.0, %v701
        %v710 = vsub.f32 1.0, %v702
        %v711 = vmul.f32 %v543, %v703
        %v712 = vmul.f32 %v544, %v704
        %v713 = vmul.f32 %v545, %v705
        %v714 = vmul.f32 %v546, %v706
        %v715 = vmul.f32 %v547, %v707
        %v716 = vmul.f32 %v548, %v708
        %v717 = vmul.f32 %v549, %v709
        %v718 = vmul.f32 %v550, %v710
        %v719 = vadd.f32 %v711, 1.0
        %v720 = vadd.f32 %v712, 1.0
        %v721 = vadd.f32 %v713, 1.0
        %v722 = vadd.f32 %v714, 1.0
        %v723 = vadd.f32 %v715, 1.0
        %v724 = vadd.f32 %v716, 1.0
        %v725 = vadd.f32 %v717, 1.0
        %v726 = vadd.f32 %v718, 1.0
        %v727 = vmul.f32 %v519, %v719
        %v728 = vmul.f32 %v520, %v720
        %v729 = vmul.f32 %v521, %v721
        %v730 = vmul.f32 %v522, %v722
        %v731 = vmul.f32 %v523, %v723
        %v732 = vmul.f32 %v524, %v724
        %v733 = vmul.f32 %v525, %v725
        %v734 = vmul.f32 %v526, %v726
        %v735 = vpack.c.bf16 %v728, %v727
        %v736 = vpack.c.bf16 %v730, %v729
        %v737 = vpack.c.bf16 %v732, %v731
        %v738 = vpack.c.bf16 %v734, %v733
        %v739 = vld [vmem:[%s5] sm:$0xff]
        %v740 = vld [vmem:[%s5 + $0x8] sm:$0xff]
        %v741 = vld [vmem:[%s5 + $0x10] sm:$0xff]
        %v742 = vld [vmem:[%s5 + $0x18] sm:$0xff]
        %v743 = vld [vmem:[%s5 + $0x20] sm:$0xff]
        %v744 = vld [vmem:[%s5 + $0x28] sm:$0xff]
        %v745 = vld [vmem:[%s5 + $0x30] sm:$0xff]
        %v746 = vld [vmem:[%s5 + $0x38] sm:$0xff]
        %v747 = vld [vmem:[%s5 + $0x40] sm:$0xff]
        %v748 = vld [vmem:[%s5 + $0x48] sm:$0xff]
        %v749 = vld [vmem:[%s5 + $0x50] sm:$0xff]
        %v750 = vld [vmem:[%s5 + $0x58] sm:$0xff]
        %v751 = vld [vmem:[%s5 + $0x60] sm:$0xff]
        %v752 = vld [vmem:[%s5 + $0x68] sm:$0xff]
        %v753 = vld [vmem:[%s5 + $0x70] sm:$0xff]
        %v754 = vld [vmem:[%s5 + $0x78] sm:$0xff]
        %v755 = vpack.c.bf16 %v740, %v739
        %v756 = vpack.c.bf16 %v742, %v741
        %v757 = vpack.c.bf16 %v744, %v743
        %v758 = vpack.c.bf16 %v746, %v745
        %v759 = vpack.c.bf16 %v748, %v747
        %v760 = vpack.c.bf16 %v750, %v749
        %v761 = vpack.c.bf16 %v752, %v751
        %v762 = vpack.c.bf16 %v754, %v753
        %v763 = vld [vmem:[%s6] sm:$0x1]
        %v765 = vlaneseq
        %v766 = vshrl.u32 %v765, 7
        %v767 = vsub.s32 0, %v766
        %v768 = vrot.slane %v763, %v767
        %770 = vmatprep.subr.bf16.mxu0 0
        %771 = vmatpush1.bf16.msra.mxu0 %v755
        %772 = vmatprep.subr.bf16.mxu0 0
        %773 = vmatpush1.bf16.msra.mxu0 %v756
        %774 = vmatprep.subr.bf16.mxu0 0
        %775 = vmatpush1.bf16.msra.mxu0 %v757
        %776 = vmatprep.subr.bf16.mxu0 0
        %777 = vmatpush1.bf16.msra.mxu0 %v758
        %778 = vmatprep.subr.bf16.mxu0 0
        %779 = vmatpush1.bf16.msra.mxu0 %v759
        %780 = vmatprep.subr.bf16.mxu0 0
        %781 = vmatpush1.bf16.msra.mxu0 %v760
        %782 = vmatprep.subr.bf16.mxu0 0
        %783 = vmatpush1.bf16.msra.mxu0 %v761
        %784 = vmatprep.subr.bf16.mxu0 0
        %785 = vmatpush1.bf16.msra.mxu0 %v762
        %786 = vmatprep.subr.bf16.mxu0 0
        %787 = vmatpush1.bf16.msra.mxu0 0
        %788 = vmatprep.subr.bf16.mxu0 0
        %789 = vmatpush1.bf16.msra.mxu0 0
        %790 = vmatprep.subr.bf16.mxu0 0
        %791 = vmatpush1.bf16.msra.mxu0 0
        %792 = vmatprep.subr.bf16.mxu0 0
        %793 = vmatpush1.bf16.msra.mxu0 0
        %794 = vmatprep.subr.bf16.mxu0 0
        %795 = vmatpush1.bf16.msra.mxu0 0
        %796 = vmatprep.subr.bf16.mxu0 0
        %797 = vmatpush1.bf16.msra.mxu0 0
        %798 = vmatprep.subr.bf16.mxu0 0
        %799 = vmatpush1.bf16.msra.mxu0 0
        %800 = vmatprep.subr.bf16.mxu0 0
        %801 = vmatpush1.bf16.msra.mxu0 0
        %802 = vmatprep.mubr.bf16.mxu0 0
        %803 = vmatmul.mubr.bf16.gmra.mrb[0].mxu0 %v735
        %v804 = vpop.f32.mrb[0].mxu0
        %v805 = vadd.f32 %v768, %v804
        %v806 = vpop.f32.mrb[0].mxu0
        %v807 = vpop.f32.mrb[0].mxu0
        %v808 = vadd.f32 %v768, %v807
        %v809 = vpop.f32.mrb[0].mxu0
        %810 = vmatprep.mubr.bf16.mxu0 0
        %811 = vmatmul.mubr.bf16.gmra.mrb[0].mxu0 %v736
        %v812 = vpop.f32.mrb[0].mxu0
        %v813 = vadd.f32 %v768, %v812
        %v814 = vpop.f32.mrb[0].mxu0
        %v815 = vpop.f32.mrb[0].mxu0
        %v816 = vadd.f32 %v768, %v815
        %v817 = vpop.f32.mrb[0].mxu0
        %818 = vmatprep.mubr.bf16.mxu0 0
        %819 = vmatmul.mubr.bf16.gmra.mrb[0].mxu0 %v737
        %v820 = vpop.f32.mrb[0].mxu0
        %v821 = vadd.f32 %v768, %v820
        %v822 = vpop.f32.mrb[0].mxu0
        %v823 = vpop.f32.mrb[0].mxu0
        %v824 = vadd.f32 %v768, %v823
        %v825 = vpop.f32.mrb[0].mxu0
        %826 = vmatprep.mubr.bf16.mxu0 0
        %827 = vmatmul.mubr.bf16.gmra.mrb[0].mxu0 %v738
        %v828 = vpop.f32.mrb[0].mxu0
        %v829 = vadd.f32 %v768, %v828
        %v830 = vpop.f32.mrb[0].mxu0
        %v831 = vpop.f32.mrb[0].mxu0
        %v832 = vadd.f32 %v768, %v831
        %v833 = vpop.f32.mrb[0].mxu0
        %834 = vdwg.mxu0
        %v835 = vadd.f32 %v281, %v805
        %v836 = vadd.f32 %v282, %v808
        %v837 = vadd.f32 %v283, %v813
        %v838 = vadd.f32 %v284, %v816
        %v839 = vadd.f32 %v285, %v821
        %v840 = vadd.f32 %v286, %v824
        %v841 = vadd.f32 %v287, %v829
        %v842 = vadd.f32 %v288, %v832
        %843 = vst.msk [vmem:[%s272] sm:$0xff] %vm291, %v835
        %844 = vst.msk [vmem:[%s272 + $0x8] sm:$0xff] %vm291, %v836
        %845 = vst.msk [vmem:[%s272 + $0x10] sm:$0xff] %vm291, %v837
        %846 = vst.msk [vmem:[%s272 + $0x18] sm:$0xff] %vm291, %v838
        %847 = vst.msk [vmem:[%s272 + $0x20] sm:$0xff] %vm291, %v839
        %848 = vst.msk [vmem:[%s272 + $0x28] sm:$0xff] %vm291, %v840
        %849 = vst.msk [vmem:[%s272 + $0x30] sm:$0xff] %vm291, %v841
        %850 = vst.msk [vmem:[%s272 + $0x38] sm:$0xff] %vm291, %v842
        %s851 = sand.u32 %s181, 1
        %s852 = scalar_lea.sflag [#allocation3], %s851
        %s853 = sand.u32 %s181, 1
        %s854 = smul.addr %s853, 64
        %s855 = scalar_lea.vmem [#allocation2], %s854
        // Predicated region
        $region49: #{swin_module_forward.17} parent=47 // pred_check
          %p856 = pneg %p191
        $region50: #{swin_module_forward.17} parent=47 // pred_check_branch
          %858 = sbr.rel (%p856) target = $region52
        $region51: #{swin_module_forward.17} parent=47 // pred_region
          %s859 = smul.u32 8, %s21
          %s861 = ssub.s32 1024, 1024
          %862 = vsyncadd %s852, %s861
          %s863 = smul.addr %s859, 128
          %s864 = scalar_lea.hbm %s7, %s863
          %s865 = sshll.u32 %s855, 4
          %s866 = int_to_ptr.vmem [resolvable:$true] %s865
          %871 = dma.vmem_to_hbm [thread:$0]  %s866, 1024, %s864, %s852, 128, 128, 8
        $region52: #{swin_module_forward.17} parent=47 // pred_fallthru
          _
      $region48: #{swin_module_forward.17} parent=5 // pred_fallthru
        _
      %p872 = scmp.le.s32.totalorder 2, %s16
      // Predicated region
      $region53: #{swin_module_forward.17} parent=5 // pred_check
        %p873 = pneg %p872
      $region54: #{swin_module_forward.17} parent=5 // pred_check_branch
        %875 = sbr.rel (%p873) target = $region56
      $region55: #{swin_module_forward.17} parent=5 // pred_region
        %s876 = ssub.s32 %s16, 2
        // Predicated region
        $region57: #{swin_module_forward.17} parent=55 // pred_check
          %p877 = pneg %p197
        $region58: #{swin_module_forward.17} parent=55 // pred_check_branch
          %879 = sbr.rel (%p877) target = $region60
        $region59: #{swin_module_forward.17} parent=55 // pred_region
          %s880 = sand.u32 %s182, 1
          %s881 = scalar_lea.sflag [#allocation3], %s880
          %s882 = sand.u32 %s182, 1
          %s883 = smul.addr %s882, 64
          %s884 = scalar_lea.vmem [#allocation2], %s883
          %885 = dma.done %s881, 1024
        $region60: #{swin_module_forward.17} parent=55 // pred_fallthru
          _
      $region56: #{swin_module_forward.17} parent=5 // pred_fallthru
        _
    $region6: #{swin_module_forward.17} parent=1 // loop_footer
      %s20 = sadd.s32 1, %s16
    $region7: #{swin_module_forward.17} parent=1 // loop_footer_branch
      %15 = sbr.rel target = $region3
    $region8: #{swin_module_forward.17} parent=1 // loop_exit
      _
    %886 = vsyncpa [#allocation3], 1
    %s887 = scalar_lea.sflag [#allocation3], 1
    %888 = vsyncpa %s887, 1

// kernel: swin_module_forward.15
$region0: #{swin_module_forward.15}
  #allocation0 [shape = 'u32[]', space=smem, size = 0x4, offset = 0x4, fixed_abs, tag = 'smem constant byte address 0x4 - core index']
  #allocation1 [shape = 'u32[144,128]{1,0:T(1,128)}', space=vmem, size = 0x12000, scoped, tag = 'internal scratch']
  %s0 = inlined_call_operand.vmem [shape: f32[2,2,4,16,16], index: 0, kind: input, shape index: {}]
  %s1 = inlined_call_operand.vmem [shape: f32[2,2,4,16,16], index: 1, kind: input, shape index: {}]
  %s2 = inlined_call_operand.vmem [shape: f32[2,2,4,16,16], index: 2, kind: input, shape index: {}]
  %s3 = inlined_call_operand.vmem [shape: f32[16,16], index: 3, kind: input, shape index: {}]
  %s4 = inlined_call_operand.vmem [shape: f32[4,16,16], index: 4, kind: input, shape index: {}]
  %s5 = inlined_call_operand.vmem [shape: f32[2,2,4,16,16], index: 5, kind: output, shape index: {}]
  %s6 = sld [smem:[#allocation0]]
  $region53: #{swin_module_forward.15} parent=0
    _
  %s8 = ssub.s32 1, %s6
  %s9 = scalar_select 0, %s8, %s6
  loop: start=0, step=1, limit=4
  $region2: #{swin_module_forward.15} parent=0 // loop_pre_header
    _
  $region3: #{swin_module_forward.15} parent=0 // loop_header
    %s11 = sphi 0, %s15
    %p12 = scmp.ge.s32.totalorder %s11, 4
    %s21 = sphi 0, %s23
    %s24 = sphi 0, %s21
    %s25 = sphi 0, %s24
    %s41 = sphi 0, %s25
    %s47 = sphi 0, %s49
    %s50 = sphi 0, %s47
    %s51 = sphi 0, %s50
    %s67 = sphi 0, %s51
    %s73 = sphi 0, %s75
    %s76 = sphi 0, %s73
    %s77 = sphi 0, %s76
    %s93 = sphi 0, %s77
    %s97 = sphi 0, %s97
    %s99 = sphi 0, %s97
    %s100 = sphi 0, %s99
    %s114 = sphi 0, %s100
    %s118 = sphi 0, %s118
    %s120 = sphi 0, %s118
    %s121 = sphi 0, %s120
    %s135 = sphi 0, %s121
    %s141 = sphi 0, %s143
    %s144 = sphi 0, %s141
    %s145 = sphi 0, %s144
    %s161 = sphi 0, %s145
  $region4: #{swin_module_forward.15} parent=0 // loop_header_branch
    %14 = sbr.rel (%p12) target = $region8
  $region5: #{swin_module_forward.15} parent=0 // loop_body
    %s16 = ssub.s32 %s11, 1
    %s17 = ssub.s32 %s11, 2
    %s18 = sadd.s32 %s11, 1
    %s19 = ssub.s32 %s11, %s18
    %p20 = scmp.eq.s32.totalorder %s19, 0
    %s22 = sadd.s32 %s21, 1
    %s23 = scalar_select %p20, %s21, %s22
    %p26 = pneg %p20
    %p27 = scmp.eq.s32.totalorder %s11, 1
    %p28 = por %p26, %p27
    %p29 = scmp.ne.s32.totalorder %s21, %s24
    %p30 = scmp.eq.s32.totalorder %s11, 0
    %p31 = por %p29, %p30
    %p32 = scmp.ne.s32.totalorder %s21, %s24
    %p33 = scmp.eq.s32.totalorder %s16, 1
    %p34 = por %p32, %p33
    %p35 = scmp.ne.s32.totalorder %s24, %s25
    %p36 = scmp.eq.s32.totalorder %s16, 0
    %p37 = por %p35, %p36
    %p38 = scmp.ne.s32.totalorder %s24, %s25
    %p39 = scmp.eq.s32.totalorder %s17, 1
    %p40 = por %p38, %p39
    %p42 = scmp.ne.s32.totalorder %s25, %s41
    %p43 = scmp.eq.s32.totalorder %s17, 0
    %p44 = por %p42, %p43
    %s45 = ssub.s32 %s11, %s18
    %p46 = scmp.eq.s32.totalorder %s45, 0
    %s48 = sadd.s32 %s47, 1
    %s49 = scalar_select %p46, %s47, %s48
    %p52 = pneg %p46
    %p53 = scmp.eq.s32.totalorder %s11, 1
    %p54 = por %p52, %p53
    %p55 = scmp.ne.s32.totalorder %s47, %s50
    %p56 = scmp.eq.s32.totalorder %s11, 0
    %p57 = por %p55, %p56
    %p58 = scmp.ne.s32.totalorder %s47, %s50
    %p59 = scmp.eq.s32.totalorder %s16, 1
    %p60 = por %p58, %p59
    %p61 = scmp.ne.s32.totalorder %s50, %s51
    %p62 = scmp.eq.s32.totalorder %s16, 0
    %p63 = por %p61, %p62
    %p64 = scmp.ne.s32.totalorder %s50, %s51
    %p65 = scmp.eq.s32.totalorder %s17, 1
    %p66 = por %p64, %p65
    %p68 = scmp.ne.s32.totalorder %s51, %s67
    %p69 = scmp.eq.s32.totalorder %s17, 0
    %p70 = por %p68, %p69
    %s71 = ssub.s32 %s11, %s18
    %p72 = scmp.eq.s32.totalorder %s71, 0
    %s74 = sadd.s32 %s73, 1
    %s75 = scalar_select %p72, %s73, %s74
    %p78 = pneg %p72
    %p79 = scmp.eq.s32.totalorder %s11, 1
    %p80 = por %p78, %p79
    %p81 = scmp.ne.s32.totalorder %s73, %s76
    %p82 = scmp.eq.s32.totalorder %s11, 0
    %p83 = por %p81, %p82
    %p84 = scmp.ne.s32.totalorder %s73, %s76
    %p85 = scmp.eq.s32.totalorder %s16, 1
    %p86 = por %p84, %p85
    %p87 = scmp.ne.s32.totalorder %s76, %s77
    %p88 = scmp.eq.s32.totalorder %s16, 0
    %p89 = por %p87, %p88
    %p90 = scmp.ne.s32.totalorder %s76, %s77
    %p91 = scmp.eq.s32.totalorder %s17, 1
    %p92 = por %p90, %p91
    %p94 = scmp.ne.s32.totalorder %s77, %s93
    %p95 = scmp.eq.s32.totalorder %s17, 0
    %p96 = por %p94, %p95
    %s98 = sadd.s32 %s97, 1
    %p101 = scmp.eq.s32.totalorder %s11, 1
    %p102 = scmp.ne.s32.totalorder %s97, %s99
    %p103 = scmp.eq.s32.totalorder %s11, 0
    %p104 = por %p102, %p103
    %p105 = scmp.ne.s32.totalorder %s97, %s99
    %p106 = scmp.eq.s32.totalorder %s16, 1
    %p107 = por %p105, %p106
    %p108 = scmp.ne.s32.totalorder %s99, %s100
    %p109 = scmp.eq.s32.totalorder %s16, 0
    %p110 = por %p108, %p109
    %p111 = scmp.ne.s32.totalorder %s99, %s100
    %p112 = scmp.eq.s32.totalorder %s17, 1
    %p113 = por %p111, %p112
    %p115 = scmp.ne.s32.totalorder %s100, %s114
    %p116 = scmp.eq.s32.totalorder %s17, 0
    %p117 = por %p115, %p116
    %s119 = sadd.s32 %s118, 1
    %p122 = scmp.eq.s32.totalorder %s11, 1
    %p123 = scmp.ne.s32.totalorder %s118, %s120
    %p124 = scmp.eq.s32.totalorder %s11, 0
    %p125 = por %p123, %p124
    %p126 = scmp.ne.s32.totalorder %s118, %s120
    %p127 = scmp.eq.s32.totalorder %s16, 1
    %p128 = por %p126, %p127
    %p129 = scmp.ne.s32.totalorder %s120, %s121
    %p130 = scmp.eq.s32.totalorder %s16, 0
    %p131 = por %p129, %p130
    %p132 = scmp.ne.s32.totalorder %s120, %s121
    %p133 = scmp.eq.s32.totalorder %s17, 1
    %p134 = por %p132, %p133
    %p136 = scmp.ne.s32.totalorder %s121, %s135
    %p137 = scmp.eq.s32.totalorder %s17, 0
    %p138 = por %p136, %p137
    %s139 = ssub.s32 %s11, %s18
    %p140 = scmp.eq.s32.totalorder %s139, 0
    %s142 = sadd.s32 %s141, 1
    %s143 = scalar_select %p140, %s141, %s142
    %p146 = pneg %p140
    %p147 = scmp.eq.s32.totalorder %s11, 1
    %p148 = por %p146, %p147
    %p149 = scmp.ne.s32.totalorder %s141, %s144
    %p150 = scmp.eq.s32.totalorder %s11, 0
    %p151 = por %p149, %p150
    %p152 = scmp.ne.s32.totalorder %s141, %s144
    %p153 = scmp.eq.s32.totalorder %s16, 1
    %p154 = por %p152, %p153
    %p155 = scmp.ne.s32.totalorder %s144, %s145
    %p156 = scmp.eq.s32.totalorder %s16, 0
    %p157 = por %p155, %p156
    %p158 = scmp.ne.s32.totalorder %s144, %s145
    %p159 = scmp.eq.s32.totalorder %s17, 1
    %p160 = por %p158, %p159
    %p162 = scmp.ne.s32.totalorder %s145, %s161
    %p163 = scmp.eq.s32.totalorder %s17, 0
    %p164 = por %p162, %p163
    %p165 = scmp.le.s32.totalorder 1, %s11
    %p166 = scmp.lt.s32.totalorder %s11, 3
    %p167 = pnand %p165, %p166
    %p168 = pneg %p167
    // Predicated region
    $region9: #{swin_module_forward.15} parent=5 // pred_check
      _
    $region10: #{swin_module_forward.15} parent=5 // pred_check_branch
      %170 = sbr.rel (%p167) target = $region12
    $region11: #{swin_module_forward.15} parent=5 // pred_region
      %s171 = ssub.s32 %s11, 1
      // Predicated region
      $region13: #{swin_module_forward.15} parent=11 // pred_check
        %p172 = pneg %p110
      $region14: #{swin_module_forward.15} parent=11 // pred_check_branch
        %174 = sbr.rel (%p172) target = $region16
      $region15: #{swin_module_forward.15} parent=11 // pred_region
        _
      $region16: #{swin_module_forward.15} parent=11 // pred_fallthru
        _
      // Predicated region
      $region17: #{swin_module_forward.15} parent=11 // pred_check
        %p175 = pneg %p131
      $region18: #{swin_module_forward.15} parent=11 // pred_check_branch
        %177 = sbr.rel (%p175) target = $region20
      $region19: #{swin_module_forward.15} parent=11 // pred_region
        _
      $region20: #{swin_module_forward.15} parent=11 // pred_fallthru
        _
    $region12: #{swin_module_forward.15} parent=5 // pred_fallthru
      _
    %p178 = scmp.lt.s32.totalorder %s11, 2
    // Predicated region
    $region21: #{swin_module_forward.15} parent=5 // pred_check
      %p179 = pneg %p178
    $region22: #{swin_module_forward.15} parent=5 // pred_check_branch
      %181 = sbr.rel (%p179) target = $region24
    $region23: #{swin_module_forward.15} parent=5 // pred_region
      // Predicated region
      $region25: #{swin_module_forward.15} parent=23 // pred_check
        %p182 = pneg %p31
      $region26: #{swin_module_forward.15} parent=23 // pred_check_branch
        %184 = sbr.rel (%p182) target = $region28
      $region27: #{swin_module_forward.15} parent=23 // pred_region
        %p185 = scmp.lt.s32.totalorder %s11, 1
        %s186 = scalar_select %p185, %s11, 1
        %s187 = smul.addr %s186, 16
        %s188 = smul.addr %s187, 8
        %s189 = scalar_lea.vmem %s0, %s188
      $region28: #{swin_module_forward.15} parent=23 // pred_fallthru
        _
      // Predicated region
      $region29: #{swin_module_forward.15} parent=23 // pred_check
        %p190 = pneg %p57
      $region30: #{swin_module_forward.15} parent=23 // pred_check_branch
        %192 = sbr.rel (%p190) target = $region32
      $region31: #{swin_module_forward.15} parent=23 // pred_region
        %p193 = scmp.lt.s32.totalorder %s11, 1
        %s194 = scalar_select %p193, %s11, 1
        %s195 = smul.addr %s194, 16
        %s196 = smul.addr %s195, 8
        %s197 = scalar_lea.vmem %s1, %s196
      $region32: #{swin_module_forward.15} parent=23 // pred_fallthru
        _
      // Predicated region
      $region33: #{swin_module_forward.15} parent=23 // pred_check
        %p198 = pneg %p83
      $region34: #{swin_module_forward.15} parent=23 // pred_check_branch
        %200 = sbr.rel (%p198) target = $region36
      $region35: #{swin_module_forward.15} parent=23 // pred_region
        %p201 = scmp.lt.s32.totalorder %s11, 1
        %s202 = scalar_select %p201, %s11, 1
        %s203 = smul.addr %s202, 16
        %s204 = smul.addr %s203, 8
        %s205 = scalar_lea.vmem %s2, %s204
      $region36: #{swin_module_forward.15} parent=23 // pred_fallthru
        _
    $region24: #{swin_module_forward.15} parent=5 // pred_fallthru
      _
    %p206 = scmp.le.s32.totalorder 1, %s11
    %p207 = scmp.lt.s32.totalorder %s11, 3
    %p208 = pnand %p206, %p207
    %p209 = pneg %p208
    // Predicated region
    $region37: #{swin_module_forward.15} parent=5 // pred_check
      _
    $region38: #{swin_module_forward.15} parent=5 // pred_check_branch
      %211 = sbr.rel (%p208) target = $region40
    $region39: #{swin_module_forward.15} parent=5 // pred_region
      %s212 = ssub.s32 %s11, 1
      %p213 = scmp.lt.s32.totalorder %s16, 1
      %s214 = scalar_select %p213, %s16, 1
      %s215 = smul.addr %s214, 16
      %s216 = smul.addr %s215, 8
      %s217 = scalar_lea.vmem %s0, %s216
      %p218 = pneg %p37
      %p219 = pneg %p34
      %p220 = scmp.lt.s32.totalorder %s16, 1
      %s221 = scalar_select %p220, %s16, 1
      %s222 = smul.addr %s221, 16
      %s223 = smul.addr %s222, 8
      %s224 = scalar_lea.vmem %s1, %s223
      %p225 = pneg %p63
      %p226 = pneg %p60
      %p227 = scmp.lt.s32.totalorder %s16, 1
      %s228 = scalar_select %p227, %s16, 1
      %s229 = smul.addr %s228, 16
      %s230 = smul.addr %s229, 8
      %s231 = scalar_lea.vmem %s2, %s230
      %p232 = pneg %p89
      %p233 = pneg %p86
      %p234 = pneg %p110
      %p235 = pneg %p107
      %p236 = pneg %p131
      %p237 = pneg %p128
      %p238 = pneg %p157
      %p239 = pneg %p154
      %p240 = scmp.lt.s32.totalorder %s16, 1
      %s241 = scalar_select %p240, %s16, 1
      %s242 = smul.addr %s241, 16
      %s243 = smul.addr %s242, 8
      %s244 = scalar_lea.vmem %s5, %s243
      %p245 = scmp.lt.s32.totalorder %s16, 1
      %s246 = scalar_select %p245, %s16, 1
      %s247 = smul.addr %s246, 16
      %s248 = smul.addr %s247, 8
      %s249 = scalar_lea.vmem %s0, %s248
      %p250 = scmp.lt.s32.totalorder %s16, 1
      %s251 = scalar_select %p250, %s16, 1
      %s252 = smul.addr %s251, 16
      %s253 = smul.addr %s252, 8
      %s254 = scalar_lea.vmem %s1, %s253
      %p255 = scmp.lt.s32.totalorder %s16, 1
      %s256 = scalar_select %p255, %s16, 1
      %s257 = smul.addr %s256, 16
      %s258 = smul.addr %s257, 8
      %s259 = scalar_lea.vmem %s2, %s258
      %p260 = scmp.lt.s32.totalorder %s16, 1
      %s261 = scalar_select %p260, %s16, 1
      %s262 = smul.addr %s261, 16
      %s263 = smul.addr %s262, 8
      %s264 = scalar_lea.vmem %s5, %s263
      %v266 = vld [vmem:[%s3] sm:$0xff]
      %v267 = vld [vmem:[%s3 + $0x8] sm:$0xff]
      %v268 = vld [vmem:[%s4] sm:$0xff]
      %v269 = vld [vmem:[%s4 + $0x8] sm:$0xff]
      %v270 = vld [vmem:[%s4 + $0x10] sm:$0xff]
      %v271 = vld [vmem:[%s4 + $0x18] sm:$0xff]
      %v272 = vld [vmem:[%s4 + $0x20] sm:$0xff]
      %v273 = vld [vmem:[%s4 + $0x28] sm:$0xff]
      %v274 = vld [vmem:[%s4 + $0x30] sm:$0xff]
      %v275 = vld [vmem:[%s4 + $0x38] sm:$0xff]
      %v276 = vadd.f32 %v266, %v268
      %v277 = vadd.f32 %v267, %v269
      %v278 = vadd.f32 %v266, %v270
      %v279 = vadd.f32 %v267, %v271
      %v280 = vadd.f32 %v266, %v272
      %v281 = vadd.f32 %v267, %v273
      %v282 = vadd.f32 %v266, %v274
      %v283 = vadd.f32 %v267, %v275
      %v284 = vld [vmem:[%s249] sm:$0xff]
      %v285 = vld [vmem:[%s249 + $0x8] sm:$0xff]
      %v286 = vld [vmem:[%s249 + $0x10] sm:$0xff]
      %v287 = vld [vmem:[%s249 + $0x18] sm:$0xff]
      %v288 = vld [vmem:[%s249 + $0x20] sm:$0xff]
      %v289 = vld [vmem:[%s249 + $0x28] sm:$0xff]
      %v290 = vld [vmem:[%s249 + $0x30] sm:$0xff]
      %v291 = vld [vmem:[%s249 + $0x38] sm:$0xff]
      %v292 = vpack.c.bf16 %v285, %v284
      %v293 = vpack.c.bf16 %v287, %v286
      %v294 = vpack.c.bf16 %v289, %v288
      %v295 = vpack.c.bf16 %v291, %v290
      %v296 = vld [vmem:[%s254] sm:$0xff]
      %v297 = vld [vmem:[%s254 + $0x8] sm:$0xff]
      %v298 = vld [vmem:[%s254 + $0x10] sm:$0xff]
      %v299 = vld [vmem:[%s254 + $0x18] sm:$0xff]
      %v300 = vld [vmem:[%s254 + $0x20] sm:$0xff]
      %v301 = vld [vmem:[%s254 + $0x28] sm:$0xff]
      %v302 = vld [vmem:[%s254 + $0x30] sm:$0xff]
      %v303 = vld [vmem:[%s254 + $0x38] sm:$0xff]
      %v304 = vpack.c.bf16 %v297, %v296
      %v305 = vpack.c.bf16 %v299, %v298
      %v306 = vpack.c.bf16 %v301, %v300
      %v307 = vpack.c.bf16 %v303, %v302
      %v308 = vld [vmem:[%s259] sm:$0xff]
      %v309 = vld [vmem:[%s259 + $0x8] sm:$0xff]
      %v310 = vld [vmem:[%s259 + $0x10] sm:$0xff]
      %v311 = vld [vmem:[%s259 + $0x18] sm:$0xff]
      %v312 = vld [vmem:[%s259 + $0x20] sm:$0xff]
      %v313 = vld [vmem:[%s259 + $0x28] sm:$0xff]
      %v314 = vld [vmem:[%s259 + $0x30] sm:$0xff]
      %v315 = vld [vmem:[%s259 + $0x38] sm:$0xff]
      %v316 = vpack.c.bf16 %v309, %v308
      %v317 = vpack.c.bf16 %v311, %v310
      %v318 = vpack.c.bf16 %v313, %v312
      %v319 = vpack.c.bf16 %v315, %v314
      %vm320 = vcmask 130048
      %v322 = vsel %vm320, %v292, 0
      %v325 = vsel %vm320, %v304, 0
      %327 = vmatprep.subr.bf16.mxu0 0
      %328 = vmatpush1.bf16.xpose.msra.mxu0 %v325
      %329 = vmatprep.subr.bf16.mxu0 0
      %330 = vmatpush1.bf16.xpose.msra.mxu0 0
      %331 = vmatprep.subr.bf16.mxu0 0
      %332 = vmatpush1.bf16.xpose.msra.mxu0 0
      %333 = vmatprep.subr.bf16.mxu0 0
      %334 = vmatpush1.bf16.xpose.msra.mxu0 0
      %335 = vmatprep.subr.bf16.mxu0 0
      %336 = vmatpush1.bf16.xpose.msra.mxu0 0
      %337 = vmatprep.subr.bf16.mxu0 0
      %338 = vmatpush1.bf16.xpose.msra.mxu0 0
      %339 = vmatprep.subr.bf16.mxu0 0
      %340 = vmatpush1.bf16.xpose.msra.mxu0 0
      %341 = vmatprep.subr.bf16.mxu0 0
      %342 = vmatpush1.bf16.xpose.msra.mxu0 0
      %343 = vmatprep.subr.bf16.mxu0 0
      %344 = vmatpush1.bf16.xpose.msra.mxu0 0
      %345 = vmatprep.subr.bf16.mxu0 0
      %346 = vmatpush1.bf16.xpose.msra.mxu0 0
      %347 = vmatprep.subr.bf16.mxu0 0
      %348 = vmatpush1.bf16.xpose.msra.mxu0 0
      %349 = vmatprep.subr.bf16.mxu0 0
      %350 = vmatpush1.bf16.xpose.msra.mxu0 0
      %351 = vmatprep.subr.bf16.mxu0 0
      %352 = vmatpush1.bf16.xpose.msra.mxu0 0
      %353 = vmatprep.subr.bf16.mxu0 0
      %354 = vmatpush1.bf16.xpose.msra.mxu0 0
      %355 = vmatprep.subr.bf16.mxu0 0
      %356 = vmatpush1.bf16.xpose.msra.mxu0 0
      %357 = vmatprep.subr.bf16.mxu0 0
      %358 = vmatpush1.bf16.xpose.msra.mxu0 0
      %359 = vmatprep.mubr.bf16.mxu0 0
      %360 = vmatmul.mubr.bf16.gmra.mrb[0].mxu0 %v322
      %v361 = vpop.f32.mrb[0].mxu0
      %v362 = vadd.f32 0.0, %v361
      %v363 = vpop.f32.mrb[0].mxu0
      %v364 = vpop.f32.mrb[0].mxu0
      %v365 = vadd.f32 0.0, %v364
      %v366 = vpop.f32.mrb[0].mxu0
      %367 = vdwg.mxu0
      %v369 = vsel %vm320, %v293, 0
      %v372 = vsel %vm320, %v305, 0
      %374 = vmatprep.subr.bf16.mxu0 0
      %375 = vmatpush1.bf16.xpose.msra.mxu0 %v372
      %376 = vmatprep.subr.bf16.mxu0 0
      %377 = vmatpush1.bf16.xpose.msra.mxu0 0
      %378 = vmatprep.subr.bf16.mxu0 0
      %379 = vmatpush1.bf16.xpose.msra.mxu0 0
      %380 = vmatprep.subr.bf16.mxu0 0
      %381 = vmatpush1.bf16.xpose.msra.mxu0 0
      %382 = vmatprep.subr.bf16.mxu0 0
      %383 = vmatpush1.bf16.xpose.msra.mxu0 0
      %384 = vmatprep.subr.bf16.mxu0 0
      %385 = vmatpush1.bf16.xpose.msra.mxu0 0
      %386 = vmatprep.subr.bf16.mxu0 0
      %387 = vmatpush1.bf16.xpose.msra.mxu0 0
      %388 = vmatprep.subr.bf16.mxu0 0
      %389 = vmatpush1.bf16.xpose.msra.mxu0 0
      %390 = vmatprep.subr.bf16.mxu0 0
      %391 = vmatpush1.bf16.xpose.msra.mxu0 0
      %392 = vmatprep.subr.bf16.mxu0 0
      %393 = vmatpush1.bf16.xpose.msra.mxu0 0
      %394 = vmatprep.subr.bf16.mxu0 0
      %395 = vmatpush1.bf16.xpose.msra.mxu0 0
      %396 = vmatprep.subr.bf16.mxu0 0
      %397 = vmatpush1.bf16.xpose.msra.mxu0 0
      %398 = vmatprep.subr.bf16.mxu0 0
      %399 = vmatpush1.bf16.xpose.msra.mxu0 0
      %400 = vmatprep.subr.bf16.mxu0 0
      %401 = vmatpush1.bf16.xpose.msra.mxu0 0
      %402 = vmatprep.subr.bf16.mxu0 0
      %403 = vmatpush1.bf16.xpose.msra.mxu0 0
      %404 = vmatprep.subr.bf16.mxu0 0
      %405 = vmatpush1.bf16.xpose.msra.mxu0 0
      %406 = vmatprep.mubr.bf16.mxu0 0
      %407 = vmatmul.mubr.bf16.gmra.mrb[0].mxu0 %v369
      %v408 = vpop.f32.mrb[0].mxu0
      %v409 = vadd.f32 0.0, %v408
      %v410 = vpop.f32.mrb[0].mxu0
      %v411 = vpop.f32.mrb[0].mxu0
      %v412 = vadd.f32 0.0, %v411
      %v413 = vpop.f32.mrb[0].mxu0
      %414 = vdwg.mxu0
      %v416 = vsel %vm320, %v294, 0
      %v419 = vsel %vm320, %v306, 0
      %421 = vmatprep.subr.bf16.mxu0 0
      %422 = vmatpush1.bf16.xpose.msra.mxu0 %v419
      %423 = vmatprep.subr.bf16.mxu0 0
      %424 = vmatpush1.bf16.xpose.msra.mxu0 0
      %425 = vmatprep.subr.bf16.mxu0 0
      %426 = vmatpush1.bf16.xpose.msra.mxu0 0
      %427 = vmatprep.subr.bf16.mxu0 0
      %428 = vmatpush1.bf16.xpose.msra.mxu0 0
      %429 = vmatprep.subr.bf16.mxu0 0
      %430 = vmatpush1.bf16.xpose.msra.mxu0 0
      %431 = vmatprep.subr.bf16.mxu0 0
      %432 = vmatpush1.bf16.xpose.msra.mxu0 0
      %433 = vmatprep.subr.bf16.mxu0 0
      %434 = vmatpush1.bf16.xpose.msra.mxu0 0
      %435 = vmatprep.subr.bf16.mxu0 0
      %436 = vmatpush1.bf16.xpose.msra.mxu0 0
      %437 = vmatprep.subr.bf16.mxu0 0
      %438 = vmatpush1.bf16.xpose.msra.mxu0 0
      %439 = vmatprep.subr.bf16.mxu0 0
      %440 = vmatpush1.bf16.xpose.msra.mxu0 0
      %441 = vmatprep.subr.bf16.mxu0 0
      %442 = vmatpush1.bf16.xpose.msra.mxu0 0
      %443 = vmatprep.subr.bf16.mxu0 0
      %444 = vmatpush1.bf16.xpose.msra.mxu0 0
      %445 = vmatprep.subr.bf16.mxu0 0
      %446 = vmatpush1.bf16.xpose.msra.mxu0 0
      %447 = vmatprep.subr.bf16.mxu0 0
      %448 = vmatpush1.bf16.xpose.msra.mxu0 0
      %449 = vmatprep.subr.bf16.mxu0 0
      %450 = vmatpush1.bf16.xpose.msra.mxu0 0
      %451 = vmatprep.subr.bf16.mxu0 0
      %452 = vmatpush1.bf16.xpose.msra.mxu0 0
      %453 = vmatprep.mubr.bf16.mxu0 0
      %454 = vmatmul.mubr.bf16.gmra.mrb[0].mxu0 %v416
      %v455 = vpop.f32.mrb[0].mxu0
      %v456 = vadd.f32 0.0, %v455
      %v457 = vpop.f32.mrb[0].mxu0
      %v458 = vpop.f32.mrb[0].mxu0
      %v459 = vadd.f32 0.0, %v458
      %v460 = vpop.f32.mrb[0].mxu0
      %461 = vdwg.mxu0
      %v463 = vsel %vm320, %v295, 0
      %v466 = vsel %vm320, %v307, 0
      %468 = vmatprep.subr.bf16.mxu0 0
      %469 = vmatpush1.bf16.xpose.msra.mxu0 %v466
      %470 = vmatprep.subr.bf16.mxu0 0
      %471 = vmatpush1.bf16.xpose.msra.mxu0 0
      %472 = vmatprep.subr.bf16.mxu0 0
      %473 = vmatpush1.bf16.xpose.msra.mxu0 0
      %474 = vmatprep.subr.bf16.mxu0 0
      %475 = vmatpush1.bf16.xpose.msra.mxu0 0
      %476 = vmatprep.subr.bf16.mxu0 0
      %477 = vmatpush1.bf16.xpose.msra.mxu0 0
      %478 = vmatprep.subr.bf16.mxu0 0
      %479 = vmatpush1.bf16.xpose.msra.mxu0 0
      %480 = vmatprep.subr.bf16.mxu0 0
      %481 = vmatpush1.bf16.xpose.msra.mxu0 0
      %482 = vmatprep.subr.bf16.mxu0 0
      %483 = vmatpush1.bf16.xpose.msra.mxu0 0
      %484 = vmatprep.subr.bf16.mxu0 0
      %485 = vmatpush1.bf16.xpose.msra.mxu0 0
      %486 = vmatprep.subr.bf16.mxu0 0
      %487 = vmatpush1.bf16.xpose.msra.mxu0 0
      %488 = vmatprep.subr.bf16.mxu0 0
      %489 = vmatpush1.bf16.xpose.msra.mxu0 0
      %490 = vmatprep.subr.bf16.mxu0 0
      %491 = vmatpush1.bf16.xpose.msra.mxu0 0
      %492 = vmatprep.subr.bf16.mxu0 0
      %493 = vmatpush1.bf16.xpose.msra.mxu0 0
      %494 = vmatprep.subr.bf16.mxu0 0
      %495 = vmatpush1.bf16.xpose.msra.mxu0 0
      %496 = vmatprep.subr.bf16.mxu0 0
      %497 = vmatpush1.bf16.xpose.msra.mxu0 0
      %498 = vmatprep.subr.bf16.mxu0 0
      %499 = vmatpush1.bf16.xpose.msra.mxu0 0
      %500 = vmatprep.mubr.bf16.mxu0 0
      %501 = vmatmul.mubr.bf16.gmra.mrb[0].mxu0 %v463
      %v502 = vpop.f32.mrb[0].mxu0
      %v503 = vadd.f32 0.0, %v502
      %v504 = vpop.f32.mrb[0].mxu0
      %v505 = vpop.f32.mrb[0].mxu0
      %v506 = vadd.f32 0.0, %v505
      %v507 = vpop.f32.mrb[0].mxu0
      %508 = vdwg.mxu0
      %v509 = vmul.f32 %v362, 0.25
      %v510 = vmul.f32 %v365, 0.25
      %v511 = vmul.f32 %v409, 0.25
      %v512 = vmul.f32 %v412, 0.25
      %v513 = vmul.f32 %v456, 0.25
      %v514 = vmul.f32 %v459, 0.25
      %v515 = vmul.f32 %v503, 0.25
      %v516 = vmul.f32 %v506, 0.25
      %v517 = vadd.f32 %v509, %v276
      %v518 = vadd.f32 %v510, %v277
      %v519 = vadd.f32 %v511, %v278
      %v520 = vadd.f32 %v512, %v279
      %v521 = vadd.f32 %v513, %v280
      %v522 = vadd.f32 %v514, %v281
      %v523 = vadd.f32 %v515, %v282
      %v524 = vadd.f32 %v516, %v283
      %v525 = vsel %vm320, %v517, -inf
      %526 = vmax.xlane.f32.xlu0 %v525
      %v527 = vpop.xlane.xlu0 %526
      %v528 = vsel %vm320, %v518, -inf
      %529 = vmax.xlane.f32.xlu0 %v528
      %v530 = vpop.xlane.xlu0 %529
      %v531 = vsel %vm320, %v519, -inf
      %532 = vmax.xlane.f32.xlu0 %v531
      %v533 = vpop.xlane.xlu0 %532
      %v534 = vsel %vm320, %v520, -inf
      %535 = vmax.xlane.f32.xlu0 %v534
      %v536 = vpop.xlane.xlu0 %535
      %v537 = vsel %vm320, %v521, -inf
      %538 = vmax.xlane.f32.xlu0 %v537
      %v539 = vpop.xlane.xlu0 %538
      %v540 = vsel %vm320, %v522, -inf
      %541 = vmax.xlane.f32.xlu0 %v540
      %v542 = vpop.xlane.xlu0 %541
      %v543 = vsel %vm320, %v523, -inf
      %544 = vmax.xlane.f32.xlu0 %v543
      %v545 = vpop.xlane.xlu0 %544
      %v546 = vsel %vm320, %v524, -inf
      %547 = vmax.xlane.f32.xlu0 %v546
      %v548 = vpop.xlane.xlu0 %547
      %v549 = vsub.f32 %v517, %v527
      %v550 = vsub.f32 %v518, %v530
      %v551 = vsub.f32 %v519, %v533
      %v552 = vsub.f32 %v520, %v536
      %v553 = vsub.f32 %v521, %v539
      %v554 = vsub.f32 %v522, %v542
      %v555 = vsub.f32 %v523, %v545
      %v556 = vsub.f32 %v524, %v548
      %v557 = vmul.f32 %v549, 1.442695
      %v558 = vpow.pop %v557
      %v559 = vmul.f32 %v550, 1.442695
      %v560 = vpow.pop %v559
      %v561 = vmul.f32 %v551, 1.442695
      %v562 = vpow.pop %v561
      %v563 = vmul.f32 %v552, 1.442695
      %v564 = vpow.pop %v563
      %v565 = vmul.f32 %v553, 1.442695
      %v566 = vpow.pop %v565
      %v567 = vmul.f32 %v554, 1.442695
      %v568 = vpow.pop %v567
      %v569 = vmul.f32 %v555, 1.442695
      %v570 = vpow.pop %v569
      %v571 = vmul.f32 %v556, 1.442695
      %v572 = vpow.pop %v571
      %v573 = vsel %vm320, %v558, 0.0
      %574 = vadd.xlane.f32.xlu0 %v573
      %v575 = vpop.xlane.xlu0 %574
      %v576 = vsel %vm320, %v560, 0.0
      %577 = vadd.xlane.f32.xlu0 %v576
      %v578 = vpop.xlane.xlu0 %577
      %v579 = vsel %vm320, %v562, 0.0
      %580 = vadd.xlane.f32.xlu0 %v579
      %v581 = vpop.xlane.xlu0 %580
      %v582 = vsel %vm320, %v564, 0.0
      %583 = vadd.xlane.f32.xlu0 %v582
      %v584 = vpop.xlane.xlu0 %583
      %v585 = vsel %vm320, %v566, 0.0
      %586 = vadd.xlane.f32.xlu0 %v585
      %v587 = vpop.xlane.xlu0 %586
      %v588 = vsel %vm320, %v568, 0.0
      %589 = vadd.xlane.f32.xlu0 %v588
      %v590 = vpop.xlane.xlu0 %589
      %v591 = vsel %vm320, %v570, 0.0
      %592 = vadd.xlane.f32.xlu0 %v591
      %v593 = vpop.xlane.xlu0 %592
      %v594 = vsel %vm320, %v572, 0.0
      %595 = vadd.xlane.f32.xlu0 %v594
      %v596 = vpop.xlane.xlu0 %595
      %v597 = vrcp.pop %v575
      %v598 = vrcp.pop %v578
      %v599 = vrcp.pop %v581
      %v600 = vrcp.pop %v584
      %v601 = vrcp.pop %v587
      %v602 = vrcp.pop %v590
      %v603 = vrcp.pop %v593
      %v604 = vrcp.pop %v596
      %v605 = vmul.f32 %v558, %v597
      %v606 = vmul.f32 %v560, %v598
      %v607 = vmul.f32 %v562, %v599
      %v608 = vmul.f32 %v564, %v600
      %v609 = vmul.f32 %v566, %v601
      %v610 = vmul.f32 %v568, %v602
      %v611 = vmul.f32 %v570, %v603
      %v612 = vmul.f32 %v572, %v604
      %v613 = vpack.c.bf16 %v606, %v605
      %v614 = vpack.c.bf16 %v608, %v607
      %v615 = vpack.c.bf16 %v610, %v609
      %v616 = vpack.c.bf16 %v612, %v611
      %v618 = vsel %vm320, %v613, 0
      %620 = vmatprep.subr.bf16.mxu0 0
      %621 = vmatpush1.bf16.msra.mxu0 %v316
      %622 = vmatprep.subr.bf16.mxu0 0
      %623 = vmatpush1.bf16.msra.mxu0 0
      %624 = vmatprep.subr.bf16.mxu0 0
      %625 = vmatpush1.bf16.msra.mxu0 0
      %626 = vmatprep.subr.bf16.mxu0 0
      %627 = vmatpush1.bf16.msra.mxu0 0
      %628 = vmatprep.subr.bf16.mxu0 0
      %629 = vmatpush1.bf16.msra.mxu0 0
      %630 = vmatprep.subr.bf16.mxu0 0
      %631 = vmatpush1.bf16.msra.mxu0 0
      %632 = vmatprep.subr.bf16.mxu0 0
      %633 = vmatpush1.bf16.msra.mxu0 0
      %634 = vmatprep.subr.bf16.mxu0 0
      %635 = vmatpush1.bf16.msra.mxu0 0
      %636 = vmatprep.subr.bf16.mxu0 0
      %637 = vmatpush1.bf16.msra.mxu0 0
      %638 = vmatprep.subr.bf16.mxu0 0
      %639 = vmatpush1.bf16.msra.mxu0 0
      %640 = vmatprep.subr.bf16.mxu0 0
      %641 = vmatpush1.bf16.msra.mxu0 0
      %642 = vmatprep.subr.bf16.mxu0 0
      %643 = vmatpush1.bf16.msra.mxu0 0
      %644 = vmatprep.subr.bf16.mxu0 0
      %645 = vmatpush1.bf16.msra.mxu0 0
      %646 = vmatprep.subr.bf16.mxu0 0
      %647 = vmatpush1.bf16.msra.mxu0 0
      %648 = vmatprep.subr.bf16.mxu0 0
      %649 = vmatpush1.bf16.msra.mxu0 0
      %650 = vmatprep.subr.bf16.mxu0 0
      %651 = vmatpush1.bf16.msra.mxu0 0
      %652 = vmatprep.mubr.bf16.mxu0 0
      %653 = vmatmul.mubr.bf16.gmra.mrb[0].mxu0 %v618
      %v654 = vpop.f32.mrb[0].mxu0
      %v655 = vadd.f32 0.0, %v654
      %v656 = vpop.f32.mrb[0].mxu0
      %v657 = vpop.f32.mrb[0].mxu0
      %v658 = vadd.f32 0.0, %v657
      %v659 = vpop.f32.mrb[0].mxu0
      %660 = vdwg.mxu0
      %v662 = vsel %vm320, %v614, 0
      %664 = vmatprep.subr.bf16.mxu0 0
      %665 = vmatpush1.bf16.msra.mxu0 %v317
      %666 = vmatprep.subr.bf16.mxu0 0
      %667 = vmatpush1.bf16.msra.mxu0 0
      %668 = vmatprep.subr.bf16.mxu0 0
      %669 = vmatpush1.bf16.msra.mxu0 0
      %670 = vmatprep.subr.bf16.mxu0 0
      %671 = vmatpush1.bf16.msra.mxu0 0
      %672 = vmatprep.subr.bf16.mxu0 0
      %673 = vmatpush1.bf16.msra.mxu0 0
      %674 = vmatprep.subr.bf16.mxu0 0
      %675 = vmatpush1.bf16.msra.mxu0 0
      %676 = vmatprep.subr.bf16.mxu0 0
      %677 = vmatpush1.bf16.msra.mxu0 0
      %678 = vmatprep.subr.bf16.mxu0 0
      %679 = vmatpush1.bf16.msra.mxu0 0
      %680 = vmatprep.subr.bf16.mxu0 0
      %681 = vmatpush1.bf16.msra.mxu0 0
      %682 = vmatprep.subr.bf16.mxu0 0
      %683 = vmatpush1.bf16.msra.mxu0 0
      %684 = vmatprep.subr.bf16.mxu0 0
      %685 = vmatpush1.bf16.msra.mxu0 0
      %686 = vmatprep.subr.bf16.mxu0 0
      %687 = vmatpush1.bf16.msra.mxu0 0
      %688 = vmatprep.subr.bf16.mxu0 0
      %689 = vmatpush1.bf16.msra.mxu0 0
      %690 = vmatprep.subr.bf16.mxu0 0
      %691 = vmatpush1.bf16.msra.mxu0 0
      %692 = vmatprep.subr.bf16.mxu0 0
      %693 = vmatpush1.bf16.msra.mxu0 0
      %694 = vmatprep.subr.bf16.mxu0 0
      %695 = vmatpush1.bf16.msra.mxu0 0
      %696 = vmatprep.mubr.bf16.mxu0 0
      %697 = vmatmul.mubr.bf16.gmra.mrb[0].mxu0 %v662
      %v698 = vpop.f32.mrb[0].mxu0
      %v699 = vadd.f32 0.0, %v698
      %v700 = vpop.f32.mrb[0].mxu0
      %v701 = vpop.f32.mrb[0].mxu0
      %v702 = vadd.f32 0.0, %v701
      %v703 = vpop.f32.mrb[0].mxu0
      %704 = vdwg.mxu0
      %v706 = vsel %vm320, %v615, 0
      %708 = vmatprep.subr.bf16.mxu0 0
      %709 = vmatpush1.bf16.msra.mxu0 %v318
      %710 = vmatprep.subr.bf16.mxu0 0
      %711 = vmatpush1.bf16.msra.mxu0 0
      %712 = vmatprep.subr.bf16.mxu0 0
      %713 = vmatpush1.bf16.msra.mxu0 0
      %714 = vmatprep.subr.bf16.mxu0 0
      %715 = vmatpush1.bf16.msra.mxu0 0
      %716 = vmatprep.subr.bf16.mxu0 0
      %717 = vmatpush1.bf16.msra.mxu0 0
      %718 = vmatprep.subr.bf16.mxu0 0
      %719 = vmatpush1.bf16.msra.mxu0 0
      %720 = vmatprep.subr.bf16.mxu0 0
      %721 = vmatpush1.bf16.msra.mxu0 0
      %722 = vmatprep.subr.bf16.mxu0 0
      %723 = vmatpush1.bf16.msra.mxu0 0
      %724 = vmatprep.subr.bf16.mxu0 0
      %725 = vmatpush1.bf16.msra.mxu0 0
      %726 = vmatprep.subr.bf16.mxu0 0
      %727 = vmatpush1.bf16.msra.mxu0 0
      %728 = vmatprep.subr.bf16.mxu0 0
      %729 = vmatpush1.bf16.msra.mxu0 0
      %730 = vmatprep.subr.bf16.mxu0 0
      %731 = vmatpush1.bf16.msra.mxu0 0
      %732 = vmatprep.subr.bf16.mxu0 0
      %733 = vmatpush1.bf16.msra.mxu0 0
      %734 = vmatprep.subr.bf16.mxu0 0
      %735 = vmatpush1.bf16.msra.mxu0 0
      %736 = vmatprep.subr.bf16.mxu0 0
      %737 = vmatpush1.bf16.msra.mxu0 0
      %738 = vmatprep.subr.bf16.mxu0 0
      %739 = vmatpush1.bf16.msra.mxu0 0
      %740 = vmatprep.mubr.bf16.mxu0 0
      %741 = vmatmul.mubr.bf16.gmra.mrb[0].mxu0 %v706
      %v742 = vpop.f32.mrb[0].mxu0
      %v743 = vadd.f32 0.0, %v742
      %v744 = vpop.f32.mrb[0].mxu0
      %v745 = vpop.f32.mrb[0].mxu0
      %v746 = vadd.f32 0.0, %v745
      %v747 = vpop.f32.mrb[0].mxu0
      %748 = vdwg.mxu0
      %v750 = vsel %vm320, %v616, 0
      %752 = vmatprep.subr.bf16.mxu0 0
      %753 = vmatpush1.bf16.msra.mxu0 %v319
      %754 = vmatprep.subr.bf16.mxu0 0
      %755 = vmatpush1.bf16.msra.mxu0 0
      %756 = vmatprep.subr.bf16.mxu0 0
      %757 = vmatpush1.bf16.msra.mxu0 0
      %758 = vmatprep.subr.bf16.mxu0 0
      %759 = vmatpush1.bf16.msra.mxu0 0
      %760 = vmatprep.subr.bf16.mxu0 0
      %761 = vmatpush1.bf16.msra.mxu0 0
      %762 = vmatprep.subr.bf16.mxu0 0
      %763 = vmatpush1.bf16.msra.mxu0 0
      %764 = vmatprep.subr.bf16.mxu0 0
      %765 = vmatpush1.bf16.msra.mxu0 0
      %766 = vmatprep.subr.bf16.mxu0 0
      %767 = vmatpush1.bf16.msra.mxu0 0
      %768 = vmatprep.subr.bf16.mxu0 0
      %769 = vmatpush1.bf16.msra.mxu0 0
      %770 = vmatprep.subr.bf16.mxu0 0
      %771 = vmatpush1.bf16.msra.mxu0 0
      %772 = vmatprep.subr.bf16.mxu0 0
      %773 = vmatpush1.bf16.msra.mxu0 0
      %774 = vmatprep.subr.bf16.mxu0 0
      %775 = vmatpush1.bf16.msra.mxu0 0
      %776 = vmatprep.subr.bf16.mxu0 0
      %777 = vmatpush1.bf16.msra.mxu0 0
      %778 = vmatprep.subr.bf16.mxu0 0
      %779 = vmatpush1.bf16.msra.mxu0 0
      %780 = vmatprep.subr.bf16.mxu0 0
      %781 = vmatpush1.bf16.msra.mxu0 0
      %782 = vmatprep.subr.bf16.mxu0 0
      %783 = vmatpush1.bf16.msra.mxu0 0
      %784 = vmatprep.mubr.bf16.mxu0 0
      %785 = vmatmul.mubr.bf16.gmra.mrb[0].mxu0 %v750
      %v786 = vpop.f32.mrb[0].mxu0
      %v787 = vadd.f32 0.0, %v786
      %v788 = vpop.f32.mrb[0].mxu0
      %v789 = vpop.f32.mrb[0].mxu0
      %v790 = vadd.f32 0.0, %v789
      %v791 = vpop.f32.mrb[0].mxu0
      %792 = vdwg.mxu0
      %793 = vst.msk [vmem:[%s264] sm:$0xff] %vm320, %v655
      %794 = vst.msk [vmem:[%s264 + $0x8] sm:$0xff] %vm320, %v658
      %795 = vst.msk [vmem:[%s264 + $0x10] sm:$0xff] %vm320, %v699
      %796 = vst.msk [vmem:[%s264 + $0x18] sm:$0xff] %vm320, %v702
      %797 = vst.msk [vmem:[%s264 + $0x20] sm:$0xff] %vm320, %v743
      %798 = vst.msk [vmem:[%s264 + $0x28] sm:$0xff] %vm320, %v746
      %799 = vst.msk [vmem:[%s264 + $0x30] sm:$0xff] %vm320, %v787
      %800 = vst.msk [vmem:[%s264 + $0x38] sm:$0xff] %vm320, %v790
      %s801 = scalar_lea.vmem %s249, 64
      %v802 = vld [vmem:[%s801] sm:$0xff]
      %v803 = vld [vmem:[%s801 + $0x8] sm:$0xff]
      %v804 = vld [vmem:[%s801 + $0x10] sm:$0xff]
      %v805 = vld [vmem:[%s801 + $0x18] sm:$0xff]
      %v806 = vld [vmem:[%s801 + $0x20] sm:$0xff]
      %v807 = vld [vmem:[%s801 + $0x28] sm:$0xff]
      %v808 = vld [vmem:[%s801 + $0x30] sm:$0xff]
      %v809 = vld [vmem:[%s801 + $0x38] sm:$0xff]
      %v810 = vpack.c.bf16 %v803, %v802
      %v811 = vpack.c.bf16 %v805, %v804
      %v812 = vpack.c.bf16 %v807, %v806
      %v813 = vpack.c.bf16 %v809, %v808
      %s814 = scalar_lea.vmem %s254, 64
      %v815 = vld [vmem:[%s814] sm:$0xff]
      %v816 = vld [vmem:[%s814 + $0x8] sm:$0xff]
      %v817 = vld [vmem:[%s814 + $0x10] sm:$0xff]
      %v818 = vld [vmem:[%s814 + $0x18] sm:$0xff]
      %v819 = vld [vmem:[%s814 + $0x20] sm:$0xff]
      %v820 = vld [vmem:[%s814 + $0x28] sm:$0xff]
      %v821 = vld [vmem:[%s814 + $0x30] sm:$0xff]
      %v822 = vld [vmem:[%s814 + $0x38] sm:$0xff]
      %v823 = vpack.c.bf16 %v816, %v815
      %v824 = vpack.c.bf16 %v818, %v817
      %v825 = vpack.c.bf16 %v820, %v819
      %v826 = vpack.c.bf16 %v822, %v821
      %s827 = scalar_lea.vmem %s259, 64
      %v828 = vld [vmem:[%s827] sm:$0xff]
      %v829 = vld [vmem:[%s827 + $0x8] sm:$0xff]
      %v830 = vld [vmem:[%s827 + $0x10] sm:$0xff]
      %v831 = vld [vmem:[%s827 + $0x18] sm:$0xff]
      %v832 = vld [vmem:[%s827 + $0x20] sm:$0xff]
      %v833 = vld [vmem:[%s827 + $0x28] sm:$0xff]
      %v834 = vld [vmem:[%s827 + $0x30] sm:$0xff]
      %v835 = vld [vmem:[%s827 + $0x38] sm:$0xff]
      %v836 = vpack.c.bf16 %v829, %v828
      %v837 = vpack.c.bf16 %v831, %v830
      %v838 = vpack.c.bf16 %v833, %v832
      %v839 = vpack.c.bf16 %v835, %v834
      %v841 = vsel %vm320, %v810, 0
      %v844 = vsel %vm320, %v823, 0
      %846 = vmatprep.subr.bf16.mxu0 0
      %847 = vmatpush1.bf16.xpose.msra.mxu0 %v844
      %848 = vmatprep.subr.bf16.mxu0 0
      %849 = vmatpush1.bf16.xpose.msra.mxu0 0
      %850 = vmatprep.subr.bf16.mxu0 0
      %851 = vmatpush1.bf16.xpose.msra.mxu0 0
      %852 = vmatprep.subr.bf16.mxu0 0
      %853 = vmatpush1.bf16.xpose.msra.mxu0 0
      %854 = vmatprep.subr.bf16.mxu0 0
      %855 = vmatpush1.bf16.xpose.msra.mxu0 0
      %856 = vmatprep.subr.bf16.mxu0 0
      %857 = vmatpush1.bf16.xpose.msra.mxu0 0
      %858 = vmatprep.subr.bf16.mxu0 0
      %859 = vmatpush1.bf16.xpose.msra.mxu0 0
      %860 = vmatprep.subr.bf16.mxu0 0
      %861 = vmatpush1.bf16.xpose.msra.mxu0 0
      %862 = vmatprep.subr.bf16.mxu0 0
      %863 = vmatpush1.bf16.xpose.msra.mxu0 0
      %864 = vmatprep.subr.bf16.mxu0 0
      %865 = vmatpush1.bf16.xpose.msra.mxu0 0
      %866 = vmatprep.subr.bf16.mxu0 0
      %867 = vmatpush1.bf16.xpose.msra.mxu0 0
      %868 = vmatprep.subr.bf16.mxu0 0
      %869 = vmatpush1.bf16.xpose.msra.mxu0 0
      %870 = vmatprep.subr.bf16.mxu0 0
      %871 = vmatpush1.bf16.xpose.msra.mxu0 0
      %872 = vmatprep.subr.bf16.mxu0 0
      %873 = vmatpush1.bf16.xpose.msra.mxu0 0
      %874 = vmatprep.subr.bf16.mxu0 0
      %875 = vmatpush1.bf16.xpose.msra.mxu0 0
      %876 = vmatprep.subr.bf16.mxu0 0
      %877 = vmatpush1.bf16.xpose.msra.mxu0 0
      %878 = vmatprep.mubr.bf16.mxu0 0
      %879 = vmatmul.mubr.bf16.gmra.mrb[0].mxu0 %v841
      %v880 = vpop.f32.mrb[0].mxu0
      %v881 = vadd.f32 0.0, %v880
      %v882 = vpop.f32.mrb[0].mxu0
      %v883 = vpop.f32.mrb[0].mxu0
      %v884 = vadd.f32 0.0, %v883
      %v885 = vpop.f32.mrb[0].mxu0
      %886 = vdwg.mxu0
      %v888 = vsel %vm320, %v811, 0
      %v891 = vsel %vm320, %v824, 0
      %893 = vmatprep.subr.bf16.mxu0 0
      %894 = vmatpush1.bf16.xpose.msra.mxu0 %v891
      %895 = vmatprep.subr.bf16.mxu0 0
      %896 = vmatpush1.bf16.xpose.msra.mxu0 0
      %897 = vmatprep.subr.bf16.mxu0 0
      %898 = vmatpush1.bf16.xpose.msra.mxu0 0
      %899 = vmatprep.subr.bf16.mxu0 0
      %900 = vmatpush1.bf16.xpose.msra.mxu0 0
      %901 = vmatprep.subr.bf16.mxu0 0
      %902 = vmatpush1.bf16.xpose.msra.mxu0 0
      %903 = vmatprep.subr.bf16.mxu0 0
      %904 = vmatpush1.bf16.xpose.msra.mxu0 0
      %905 = vmatprep.subr.bf16.mxu0 0
      %906 = vmatpush1.bf16.xpose.msra.mxu0 0
      %907 = vmatprep.subr.bf16.mxu0 0
      %908 = vmatpush1.bf16.xpose.msra.mxu0 0
      %909 = vmatprep.subr.bf16.mxu0 0
      %910 = vmatpush1.bf16.xpose.msra.mxu0 0
      %911 = vmatprep.subr.bf16.mxu0 0
      %912 = vmatpush1.bf16.xpose.msra.mxu0 0
      %913 = vmatprep.subr.bf16.mxu0 0
      %914 = vmatpush1.bf16.xpose.msra.mxu0 0
      %915 = vmatprep.subr.bf16.mxu0 0
      %916 = vmatpush1.bf16.xpose.msra.mxu0 0
      %917 = vmatprep.subr.bf16.mxu0 0
      %918 = vmatpush1.bf16.xpose.msra.mxu0 0
      %919 = vmatprep.subr.bf16.mxu0 0
      %920 = vmatpush1.bf16.xpose.msra.mxu0 0
      %921 = vmatprep.subr.bf16.mxu0 0
      %922 = vmatpush1.bf16.xpose.msra.mxu0 0
      %923 = vmatprep.subr.bf16.mxu0 0
      %924 = vmatpush1.bf16.xpose.msra.mxu0 0
      %925 = vmatprep.mubr.bf16.mxu0 0
      %926 = vmatmul.mubr.bf16.gmra.mrb[0].mxu0 %v888
      %v927 = vpop.f32.mrb[0].mxu0
      %v928 = vadd.f32 0.0, %v927
      %v929 = vpop.f32.mrb[0].mxu0
      %v930 = vpop.f32.mrb[0].mxu0
      %v931 = vadd.f32 0.0, %v930
      %v932 = vpop.f32.mrb[0].mxu0
      %933 = vdwg.mxu0
      %v935 = vsel %vm320, %v812, 0
      %v938 = vsel %vm320, %v825, 0
      %940 = vmatprep.subr.bf16.mxu0 0
      %941 = vmatpush1.bf16.xpose.msra.mxu0 %v938
      %942 = vmatprep.subr.bf16.mxu0 0
      %943 = vmatpush1.bf16.xpose.msra.mxu0 0
      %944 = vmatprep.subr.bf16.mxu0 0
      %945 = vmatpush1.bf16.xpose.msra.mxu0 0
      %946 = vmatprep.subr.bf16.mxu0 0
      %947 = vmatpush1.bf16.xpose.msra.mxu0 0
      %948 = vmatprep.subr.bf16.mxu0 0
      %949 = vmatpush1.bf16.xpose.msra.mxu0 0
      %950 = vmatprep.subr.bf16.mxu0 0
      %951 = vmatpush1.bf16.xpose.msra.mxu0 0
      %952 = vmatprep.subr.bf16.mxu0 0
      %953 = vmatpush1.bf16.xpose.msra.mxu0 0
      %954 = vmatprep.subr.bf16.mxu0 0
      %955 = vmatpush1.bf16.xpose.msra.mxu0 0
      %956 = vmatprep.subr.bf16.mxu0 0
      %957 = vmatpush1.bf16.xpose.msra.mxu0 0
      %958 = vmatprep.subr.bf16.mxu0 0
      %959 = vmatpush1.bf16.xpose.msra.mxu0 0
      %960 = vmatprep.subr.bf16.mxu0 0
      %961 = vmatpush1.bf16.xpose.msra.mxu0 0
      %962 = vmatprep.subr.bf16.mxu0 0
      %963 = vmatpush1.bf16.xpose.msra.mxu0 0
      %964 = vmatprep.subr.bf16.mxu0 0
      %965 = vmatpush1.bf16.xpose.msra.mxu0 0
      %966 = vmatprep.subr.bf16.mxu0 0
      %967 = vmatpush1.bf16.xpose.msra.mxu0 0
      %968 = vmatprep.subr.bf16.mxu0 0
      %969 = vmatpush1.bf16.xpose.msra.mxu0 0
      %970 = vmatprep.subr.bf16.mxu0 0
      %971 = vmatpush1.bf16.xpose.msra.mxu0 0
      %972 = vmatprep.mubr.bf16.mxu0 0
      %973 = vmatmul.mubr.bf16.gmra.mrb[0].mxu0 %v935
      %v974 = vpop.f32.mrb[0].mxu0
      %v975 = vadd.f32 0.0, %v974
      %v976 = vpop.f32.mrb[0].mxu0
      %v977 = vpop.f32.mrb[0].mxu0
      %v978 = vadd.f32 0.0, %v977
      %v979 = vpop.f32.mrb[0].mxu0
      %980 = vdwg.mxu0
      %v982 = vsel %vm320, %v813, 0
      %v985 = vsel %vm320, %v826, 0
      %987 = vmatprep.subr.bf16.mxu0 0
      %988 = vmatpush1.bf16.xpose.msra.mxu0 %v985
      %989 = vmatprep.subr.bf16.mxu0 0
      %990 = vmatpush1.bf16.xpose.msra.mxu0 0
      %991 = vmatprep.subr.bf16.mxu0 0
      %992 = vmatpush1.bf16.xpose.msra.mxu0 0
      %993 = vmatprep.subr.bf16.mxu0 0
      %994 = vmatpush1.bf16.xpose.msra.mxu0 0
      %995 = vmatprep.subr.bf16.mxu0 0
      %996 = vmatpush1.bf16.xpose.msra.mxu0 0
      %997 = vmatprep.subr.bf16.mxu0 0
      %998 = vmatpush1.bf16.xpose.msra.mxu0 0
      %999 = vmatprep.subr.bf16.mxu0 0
      %1000 = vmatpush1.bf16.xpose.msra.mxu0 0
      %1001 = vmatprep.subr.bf16.mxu0 0
      %1002 = vmatpush1.bf16.xpose.msra.mxu0 0
      %1003 = vmatprep.subr.bf16.mxu0 0
      %1004 = vmatpush1.bf16.xpose.msra.mxu0 0
      %1005 = vmatprep.subr.bf16.mxu0 0
      %1006 = vmatpush1.bf16.xpose.msra.mxu0 0
      %1007 = vmatprep.subr.bf16.mxu0 0
      %1008 = vmatpush1.bf16.xpose.msra.mxu0 0
      %1009 = vmatprep.subr.bf16.mxu0 0
      %1010 = vmatpush1.bf16.xpose.msra.mxu0 0
      %1011 = vmatprep.subr.bf16.mxu0 0
      %1012 = vmatpush1.bf16.xpose.msra.mxu0 0
      %1013 = vmatprep.subr.bf16.mxu0 0
      %1014 = vmatpush1.bf16.xpose.msra.mxu0 0
      %1015 = vmatprep.subr.bf16.mxu0 0
      %1016 = vmatpush1.bf16.xpose.msra.mxu0 0
      %1017 = vmatprep.subr.bf16.mxu0 0
      %1018 = vmatpush1.bf16.xpose.msra.mxu0 0
      %1019 = vmatprep.mubr.bf16.mxu0 0
      %1020 = vmatmul.mubr.bf16.gmra.mrb[0].mxu0 %v982
      %v1021 = vpop.f32.mrb[0].mxu0
      %v1022 = vadd.f32 0.0, %v1021
      %v1023 = vpop.f32.mrb[0].mxu0
      %v1024 = vpop.f32.mrb[0].mxu0
      %v1025 = vadd.f32 0.0, %v1024
      %v1026 = vpop.f32.mrb[0].mxu0
      %1027 = vdwg.mxu0
      %v1028 = vmul.f32 %v881, 0.25
      %v1029 = vmul.f32 %v884, 0.25
      %v1030 = vmul.f32 %v928, 0.25
      %v1031 = vmul.f32 %v931, 0.25
      %v1032 = vmul.f32 %v975, 0.25
      %v1033 = vmul.f32 %v978, 0.25
      %v1034 = vmul.f32 %v1022, 0.25
      %v1035 = vmul.f32 %v1025, 0.25
      %v1036 = vadd.f32 %v1028, %v276
      %v1037 = vadd.f32 %v1029, %v277
      %v1038 = vadd.f32 %v1030, %v278
      %v1039 = vadd.f32 %v1031, %v279
      %v1040 = vadd.f32 %v1032, %v280
      %v1041 = vadd.f32 %v1033, %v281
      %v1042 = vadd.f32 %v1034, %v282
      %v1043 = vadd.f32 %v1035, %v283
      %v1044 = vsel %vm320, %v1036, -inf
      %1045 = vmax.xlane.f32.xlu0 %v1044
      %v1046 = vpop.xlane.xlu0 %1045
      %v1047 = vsel %vm320, %v1037, -inf
      %1048 = vmax.xlane.f32.xlu0 %v1047
      %v1049 = vpop.xlane.xlu0 %1048
      %v1050 = vsel %vm320, %v1038, -inf
      %1051 = vmax.xlane.f32.xlu0 %v1050
      %v1052 = vpop.xlane.xlu0 %1051
      %v1053 = vsel %vm320, %v1039, -inf
      %1054 = vmax.xlane.f32.xlu0 %v1053
      %v1055 = vpop.xlane.xlu0 %1054
      %v1056 = vsel %vm320, %v1040, -inf
      %1057 = vmax.xlane.f32.xlu0 %v1056
      %v1058 = vpop.xlane.xlu0 %1057
      %v1059 = vsel %vm320, %v1041, -inf
      %1060 = vmax.xlane.f32.xlu0 %v1059
      %v1061 = vpop.xlane.xlu0 %1060
      %v1062 = vsel %vm320, %v1042, -inf
      %1063 = vmax.xlane.f32.xlu0 %v1062
      %v1064 = vpop.xlane.xlu0 %1063
      %v1065 = vsel %vm320, %v1043, -inf
      %1066 = vmax.xlane.f32.xlu0 %v1065
      %v1067 = vpop.xlane.xlu0 %1066
      %v1068 = vsub.f32 %v1036, %v1046
      %v1069 = vsub.f32 %v1037, %v1049
      %v1070 = vsub.f32 %v1038, %v1052
      %v1071 = vsub.f32 %v1039, %v1055
      %v1072 = vsub.f32 %v1040, %v1058
      %v1073 = vsub.f32 %v1041, %v1061
      %v1074 = vsub.f32 %v1042, %v1064
      %v1075 = vsub.f32 %v1043, %v1067
      %v1076 = vmul.f32 %v1068, 1.442695
      %v1077 = vpow.pop %v1076
      %v1078 = vmul.f32 %v1069, 1.442695
      %v1079 = vpow.pop %v1078
      %v1080 = vmul.f32 %v1070, 1.442695
      %v1081 = vpow.pop %v1080
      %v1082 = vmul.f32 %v1071, 1.442695
      %v1083 = vpow.pop %v1082
      %v1084 = vmul.f32 %v1072, 1.442695
      %v1085 = vpow.pop %v1084
      %v1086 = vmul.f32 %v1073, 1.442695
      %v1087 = vpow.pop %v1086
      %v1088 = vmul.f32 %v1074, 1.442695
      %v1089 = vpow.pop %v1088
      %v1090 = vmul.f32 %v1075, 1.442695
      %v1091 = vpow.pop %v1090
      %v1092 = vsel %vm320, %v1077, 0.0
      %1093 = vadd.xlane.f32.xlu0 %v1092
      %v1094 = vpop.xlane.xlu0 %1093
      %v1095 = vsel %vm320, %v1079, 0.0
      %1096 = vadd.xlane.f32.xlu0 %v1095
      %v1097 = vpop.xlane.xlu0 %1096
      %v1098 = vsel %vm320, %v1081, 0.0
      %1099 = vadd.xlane.f32.xlu0 %v1098
      %v1100 = vpop.xlane.xlu0 %1099
      %v1101 = vsel %vm320, %v1083, 0.0
      %1102 = vadd.xlane.f32.xlu0 %v1101
      %v1103 = vpop.xlane.xlu0 %1102
      %v1104 = vsel %vm320, %v1085, 0.0
      %1105 = vadd.xlane.f32.xlu0 %v1104
      %v1106 = vpop.xlane.xlu0 %1105
      %v1107 = vsel %vm320, %v1087, 0.0
      %1108 = vadd.xlane.f32.xlu0 %v1107
      %v1109 = vpop.xlane.xlu0 %1108
      %v1110 = vsel %vm320, %v1089, 0.0
      %1111 = vadd.xlane.f32.xlu0 %v1110
      %v1112 = vpop.xlane.xlu0 %1111
      %v1113 = vsel %vm320, %v1091, 0.0
      %1114 = vadd.xlane.f32.xlu0 %v1113
      %v1115 = vpop.xlane.xlu0 %1114
      %v1116 = vrcp.pop %v1094
      %v1117 = vrcp.pop %v1097
      %v1118 = vrcp.pop %v1100
      %v1119 = vrcp.pop %v1103
      %v1120 = vrcp.pop %v1106
      %v1121 = vrcp.pop %v1109
      %v1122 = vrcp.pop %v1112
      %v1123 = vrcp.pop %v1115
      %v1124 = vmul.f32 %v1077, %v1116
      %v1125 = vmul.f32 %v1079, %v1117
      %v1126 = vmul.f32 %v1081, %v1118
      %v1127 = vmul.f32 %v1083, %v1119
      %v1128 = vmul.f32 %v1085, %v1120
      %v1129 = vmul.f32 %v1087, %v1121
      %v1130 = vmul.f32 %v1089, %v1122
      %v1131 = vmul.f32 %v1091, %v1123
      %v1132 = vpack.c.bf16 %v1125, %v1124
      %v1133 = vpack.c.bf16 %v1127, %v1126
      %v1134 = vpack.c.bf16 %v1129, %v1128
      %v1135 = vpack.c.bf16 %v1131, %v1130
      %v1137 = vsel %vm320, %v1132, 0
      %1139 = vmatprep.subr.bf16.mxu0 0
      %1140 = vmatpush1.bf16.msra.mxu0 %v836
      %1141 = vmatprep.subr.bf16.mxu0 0
      %1142 = vmatpush1.bf16.msra.mxu0 0
      %1143 = vmatprep.subr.bf16.mxu0 0
      %1144 = vmatpush1.bf16.msra.mxu0 0
      %1145 = vmatprep.subr.bf16.mxu0 0
      %1146 = vmatpush1.bf16.msra.mxu0 0
      %1147 = vmatprep.subr.bf16.mxu0 0
      %1148 = vmatpush1.bf16.msra.mxu0 0
      %1149 = vmatprep.subr.bf16.mxu0 0
      %1150 = vmatpush1.bf16.msra.mxu0 0
      %1151 = vmatprep.subr.bf16.mxu0 0
      %1152 = vmatpush1.bf16.msra.mxu0 0
      %1153 = vmatprep.subr.bf16.mxu0 0
      %1154 = vmatpush1.bf16.msra.mxu0 0
      %1155 = vmatprep.subr.bf16.mxu0 0
      %1156 = vmatpush1.bf16.msra.mxu0 0
      %1157 = vmatprep.subr.bf16.mxu0 0
      %1158 = vmatpush1.bf16.msra.mxu0 0
      %1159 = vmatprep.subr.bf16.mxu0 0
      %1160 = vmatpush1.bf16.msra.mxu0 0
      %1161 = vmatprep.subr.bf16.mxu0 0
      %1162 = vmatpush1.bf16.msra.mxu0 0
      %1163 = vmatprep.subr.bf16.mxu0 0
      %1164 = vmatpush1.bf16.msra.mxu0 0
      %1165 = vmatprep.subr.bf16.mxu0 0
      %1166 = vmatpush1.bf16.msra.mxu0 0
      %1167 = vmatprep.subr.bf16.mxu0 0
      %1168 = vmatpush1.bf16.msra.mxu0 0
      %1169 = vmatprep.subr.bf16.mxu0 0
      %1170 = vmatpush1.bf16.msra.mxu0 0
      %1171 = vmatprep.mubr.bf16.mxu0 0
      %1172 = vmatmul.mubr.bf16.gmra.mrb[0].mxu0 %v1137
      %v1173 = vpop.f32.mrb[0].mxu0
      %v1174 = vadd.f32 0.0, %v1173
      %v1175 = vpop.f32.mrb[0].mxu0
      %v1176 = vpop.f32.mrb[0].mxu0
      %v1177 = vadd.f32 0.0, %v1176
      %v1178 = vpop.f32.mrb[0].mxu0
      %1179 = vdwg.mxu0
      %v1181 = vsel %vm320, %v1133, 0
      %1183 = vmatprep.subr.bf16.mxu0 0
      %1184 = vmatpush1.bf16.msra.mxu0 %v837
      %1185 = vmatprep.subr.bf16.mxu0 0
      %1186 = vmatpush1.bf16.msra.mxu0 0
      %1187 = vmatprep.subr.bf16.mxu0 0
      %1188 = vmatpush1.bf16.msra.mxu0 0
      %1189 = vmatprep.subr.bf16.mxu0 0
      %1190 = vmatpush1.bf16.msra.mxu0 0
      %1191 = vmatprep.subr.bf16.mxu0 0
      %1192 = vmatpush1.bf16.msra.mxu0 0
      %1193 = vmatprep.subr.bf16.mxu0 0
      %1194 = vmatpush1.bf16.msra.mxu0 0
      %1195 = vmatprep.subr.bf16.mxu0 0
      %1196 = vmatpush1.bf16.msra.mxu0 0
      %1197 = vmatprep.subr.bf16.mxu0 0
      %1198 = vmatpush1.bf16.msra.mxu0 0
      %1199 = vmatprep.subr.bf16.mxu0 0
      %1200 = vmatpush1.bf16.msra.mxu0 0
      %1201 = vmatprep.subr.bf16.mxu0 0
      %1202 = vmatpush1.bf16.msra.mxu0 0
      %1203 = vmatprep.subr.bf16.mxu0 0
      %1204 = vmatpush1.bf16.msra.mxu0 0
      %1205 = vmatprep.subr.bf16.mxu0 0
      %1206 = vmatpush1.bf16.msra.mxu0 0
      %1207 = vmatprep.subr.bf16.mxu0 0
      %1208 = vmatpush1.bf16.msra.mxu0 0
      %1209 = vmatprep.subr.bf16.mxu0 0
      %1210 = vmatpush1.bf16.msra.mxu0 0
      %1211 = vmatprep.subr.bf16.mxu0 0
      %1212 = vmatpush1.bf16.msra.mxu0 0
      %1213 = vmatprep.subr.bf16.mxu0 0
      %1214 = vmatpush1.bf16.msra.mxu0 0
      %1215 = vmatprep.mubr.bf16.mxu0 0
      %1216 = vmatmul.mubr.bf16.gmra.mrb[0].mxu0 %v1181
      %v1217 = vpop.f32.mrb[0].mxu0
      %v1218 = vadd.f32 0.0, %v1217
      %v1219 = vpop.f32.mrb[0].mxu0
      %v1220 = vpop.f32.mrb[0].mxu0
      %v1221 = vadd.f32 0.0, %v1220
      %v1222 = vpop.f32.mrb[0].mxu0
      %1223 = vdwg.mxu0
      %v1225 = vsel %vm320, %v1134, 0
      %1227 = vmatprep.subr.bf16.mxu0 0
      %1228 = vmatpush1.bf16.msra.mxu0 %v838
      %1229 = vmatprep.subr.bf16.mxu0 0
      %1230 = vmatpush1.bf16.msra.mxu0 0
      %1231 = vmatprep.subr.bf16.mxu0 0
      %1232 = vmatpush1.bf16.msra.mxu0 0
      %1233 = vmatprep.subr.bf16.mxu0 0
      %1234 = vmatpush1.bf16.msra.mxu0 0
      %1235 = vmatprep.subr.bf16.mxu0 0
      %1236 = vmatpush1.bf16.msra.mxu0 0
      %1237 = vmatprep.subr.bf16.mxu0 0
      %1238 = vmatpush1.bf16.msra.mxu0 0
      %1239 = vmatprep.subr.bf16.mxu0 0
      %1240 = vmatpush1.bf16.msra.mxu0 0
      %1241 = vmatprep.subr.bf16.mxu0 0
      %1242 = vmatpush1.bf16.msra.mxu0 0
      %1243 = vmatprep.subr.bf16.mxu0 0
      %1244 = vmatpush1.bf16.msra.mxu0 0
      %1245 = vmatprep.subr.bf16.mxu0 0
      %1246 = vmatpush1.bf16.msra.mxu0 0
      %1247 = vmatprep.subr.bf16.mxu0 0
      %1248 = vmatpush1.bf16.msra.mxu0 0
      %1249 = vmatprep.subr.bf16.mxu0 0
      %1250 = vmatpush1.bf16.msra.mxu0 0
      %1251 = vmatprep.subr.bf16.mxu0 0
      %1252 = vmatpush1.bf16.msra.mxu0 0
      %1253 = vmatprep.subr.bf16.mxu0 0
      %1254 = vmatpush1.bf16.msra.mxu0 0
      %1255 = vmatprep.subr.bf16.mxu0 0
      %1256 = vmatpush1.bf16.msra.mxu0 0
      %1257 = vmatprep.subr.bf16.mxu0 0
      %1258 = vmatpush1.bf16.msra.mxu0 0
      %1259 = vmatprep.mubr.bf16.mxu0 0
      %1260 = vmatmul.mubr.bf16.gmra.mrb[0].mxu0 %v1225
      %v1261 = vpop.f32.mrb[0].mxu0
      %v1262 = vadd.f32 0.0, %v1261
      %v1263 = vpop.f32.mrb[0].mxu0
      %v1264 = vpop.f32.mrb[0].mxu0
      %v1265 = vadd.f32 0.0, %v1264
      %v1266 = vpop.f32.mrb[0].mxu0
      %1267 = vdwg.mxu0
      %v1269 = vsel %vm320, %v1135, 0
      %1271 = vmatprep.subr.bf16.mxu0 0
      %1272 = vmatpush1.bf16.msra.mxu0 %v839
      %1273 = vmatprep.subr.bf16.mxu0 0
      %1274 = vmatpush1.bf16.msra.mxu0 0
      %1275 = vmatprep.subr.bf16.mxu0 0
      %1276 = vmatpush1.bf16.msra.mxu0 0
      %1277 = vmatprep.subr.bf16.mxu0 0
      %1278 = vmatpush1.bf16.msra.mxu0 0
      %1279 = vmatprep.subr.bf16.mxu0 0
      %1280 = vmatpush1.bf16.msra.mxu0 0
      %1281 = vmatprep.subr.bf16.mxu0 0
      %1282 = vmatpush1.bf16.msra.mxu0 0
      %1283 = vmatprep.subr.bf16.mxu0 0
      %1284 = vmatpush1.bf16.msra.mxu0 0
      %1285 = vmatprep.subr.bf16.mxu0 0
      %1286 = vmatpush1.bf16.msra.mxu0 0
      %1287 = vmatprep.subr.bf16.mxu0 0
      %1288 = vmatpush1.bf16.msra.mxu0 0
      %1289 = vmatprep.subr.bf16.mxu0 0
      %1290 = vmatpush1.bf16.msra.mxu0 0
      %1291 = vmatprep.subr.bf16.mxu0 0
      %1292 = vmatpush1.bf16.msra.mxu0 0
      %1293 = vmatprep.subr.bf16.mxu0 0
      %1294 = vmatpush1.bf16.msra.mxu0 0
      %1295 = vmatprep.subr.bf16.mxu0 0
      %1296 = vmatpush1.bf16.msra.mxu0 0
      %1297 = vmatprep.subr.bf16.mxu0 0
      %1298 = vmatpush1.bf16.msra.mxu0 0
      %1299 = vmatprep.subr.bf16.mxu0 0
      %1300 = vmatpush1.bf16.msra.mxu0 0
      %1301 = vmatprep.subr.bf16.mxu0 0
      %1302 = vmatpush1.bf16.msra.mxu0 0
      %1303 = vmatprep.mubr.bf16.mxu0 0
      %1304 = vmatmul.mubr.bf16.gmra.mrb[0].mxu0 %v1269
      %v1305 = vpop.f32.mrb[0].mxu0
      %v1306 = vadd.f32 0.0, %v1305
      %v1307 = vpop.f32.mrb[0].mxu0
      %v1308 = vpop.f32.mrb[0].mxu0
      %v1309 = vadd.f32 0.0, %v1308
      %v1310 = vpop.f32.mrb[0].mxu0
      %1311 = vdwg.mxu0
      %s1312 = scalar_lea.vmem %s264, 64
      %1313 = vst.msk [vmem:[%s1312] sm:$0xff] %vm320, %v1174
      %1314 = vst.msk [vmem:[%s1312 + $0x8] sm:$0xff] %vm320, %v1177
      %1315 = vst.msk [vmem:[%s1312 + $0x10] sm:$0xff] %vm320, %v1218
      %1316 = vst.msk [vmem:[%s1312 + $0x18] sm:$0xff] %vm320, %v1221
      %1317 = vst.msk [vmem:[%s1312 + $0x20] sm:$0xff] %vm320, %v1262
      %1318 = vst.msk [vmem:[%s1312 + $0x28] sm:$0xff] %vm320, %v1265
      %1319 = vst.msk [vmem:[%s1312 + $0x30] sm:$0xff] %vm320, %v1306
      %1320 = vst.msk [vmem:[%s1312 + $0x38] sm:$0xff] %vm320, %v1309
      %p1321 = scmp.lt.s32.totalorder %s16, 1
      %s1322 = scalar_select %p1321, %s16, 1
      %s1323 = smul.addr %s1322, 16
      %s1324 = smul.addr %s1323, 8
      %s1325 = scalar_lea.vmem %s5, %s1324
      // Predicated region
      $region41: #{swin_module_forward.15} parent=39 // pred_check
        %p1326 = pneg %p154
      $region42: #{swin_module_forward.15} parent=39 // pred_check_branch
        %1328 = sbr.rel (%p1326) target = $region44
      $region43: #{swin_module_forward.15} parent=39 // pred_region
        _
      $region44: #{swin_module_forward.15} parent=39 // pred_fallthru
        _
    $region40: #{swin_module_forward.15} parent=5 // pred_fallthru
      _
    %p1329 = scmp.le.s32.totalorder 2, %s11
    // Predicated region
    $region45: #{swin_module_forward.15} parent=5 // pred_check
      %p1330 = pneg %p1329
    $region46: #{swin_module_forward.15} parent=5 // pred_check_branch
      %1332 = sbr.rel (%p1330) target = $region48
    $region47: #{swin_module_forward.15} parent=5 // pred_region
      %s1333 = ssub.s32 %s11, 2
      // Predicated region
      $region49: #{swin_module_forward.15} parent=47 // pred_check
        %p1334 = pneg %p160
      $region50: #{swin_module_forward.15} parent=47 // pred_check_branch
        %1336 = sbr.rel (%p1334) target = $region52
      $region51: #{swin_module_forward.15} parent=47 // pred_region
        %p1337 = scmp.lt.s32.totalorder %s17, 1
        %s1338 = scalar_select %p1337, %s17, 1
        %s1339 = smul.addr %s1338, 16
        %s1340 = smul.addr %s1339, 8
        %s1341 = scalar_lea.vmem %s5, %s1340
      $region52: #{swin_module_forward.15} parent=47 // pred_fallthru
        _
    $region48: #{swin_module_forward.15} parent=5 // pred_fallthru
      _
  $region6: #{swin_module_forward.15} parent=0 // loop_footer
    %s15 = sadd.s32 1, %s11
  $region7: #{swin_module_forward.15} parent=0 // loop_footer_branch
    %10 = sbr.rel target = $region3
  $region8: #{swin_module_forward.15} parent=0 // loop_exit
    _

</llo_original>
